<compile_context>
chip_gen: v7x
topology: tpu7x:2x2x1
jax: 0.10.0
libtpu: 0.0.40
codegen_flags: <defaults>
</compile_context>

<pallas_src>
import jax
import jax.numpy as jnp
from jax.experimental import pallas as pl
from jax.experimental.pallas import tpu as pltpu

EPS = 1e-5
F32 = jnp.float32
BF16 = jnp.bfloat16

H_IN = 16          # spatial size the fused kernel is specialized for
W_IN = 16
PAD2 = 24          # halo rows around the 256-row conv1 map (>= W_IN+1, multiple of 8)
PAD3 = 16          # halo rows around the 64-row pooled conv2 map (>= 8+1, multiple of 8)


# ---------------------------------------------------------------------------
# In-kernel helpers (traced inside the fused kernel)
# ---------------------------------------------------------------------------
def _conv3x3_from_rows(buf_ref, pad, hs, ws, w_ref, scale_ref, shift_ref):
    """3x3 same-padding conv over a feature map stored flat as (hs*ws, Cin)
    rows inside `buf_ref` at sublane offset `pad`, with a zero halo of >= ws+1
    rows on both sides.  Computed as 9 shifted-row bf16 matmuls accumulated in
    f32.  Returns post-BN+ReLU activations, shape (hs*ws, Cout), f32."""
    m = hs * ws
    cin = buf_ref.shape[1]
    cout = w_ref.shape[2]
    col = jax.lax.broadcasted_iota(jnp.int32, (m, cin), 0) % ws
    not_left = col >= 1            # valid when sampling column w-1
    not_right = col < (ws - 1)     # valid when sampling column w+1

    acc = jnp.zeros((m, cout), F32)
    for oy in (-1, 0, 1):
        for ox in (-1, 0, 1):
            v = buf_ref[pl.ds(pad + oy * ws + ox, m), :]        # (m, cin) f32
            if ox == -1:
                v = jnp.where(not_left, v, 0.0)
            elif ox == 1:
                v = jnp.where(not_right, v, 0.0)
            k = (oy + 1) * 3 + (ox + 1)
            acc += jnp.dot(v.astype(BF16), w_ref[k],
                           preferred_element_type=F32)
    return jnp.maximum(acc * scale_ref[...] + shift_ref[...], 0.0)


def _maxpool2x2_rows(y, hs, ws, scr_ref):
    """2x2 / stride-2 max pool of a flat-rows map y: (hs*ws, C) -> (hs//2*ws//2, C).
    H direction via leading-dim reshape + max; W direction via stride-2
    sublane reads of a small VMEM scratch."""
    c = y.shape[1]
    y = y.reshape(hs // 2, 2, ws, c)
    y = jnp.maximum(y[:, 0], y[:, 1]).reshape((hs // 2) * ws, c)   # pool along H
    scr_ref[...] = y
    half = ((hs // 2) * ws) // 2
    return jnp.maximum(scr_ref[pl.ds(0, half, stride=2), :],
                       scr_ref[pl.ds(1, half, stride=2), :])       # pool along W


# ---------------------------------------------------------------------------
# Fused forward kernel (one batch element per grid step)
# ---------------------------------------------------------------------------
def _fused_forward_kernel(
        p1_ref, w1_ref, s1_ref, t1_ref,
        w2_ref, s2_ref, t2_ref,
        w3_ref, s3_ref, t3_ref,
        wa1_ref, ba1_ref, wa2_ref, ba2_ref,
        wc1_ref, sc1_ref, tc1_ref,
        wc2_ref, sc2_ref, tc2_ref,
        wc3_ref, bc3_ref, wc4_ref, bc4_ref,
        o_ref,
        buf2_ref, buf3_ref, pool2_ref, pool3_ref):
    n1 = H_IN * W_IN                       # 256
    n2 = (H_IN // 2) * (W_IN // 2)         # 64

    # Zero the halo rows of the row-shift buffers (done every step: cheap and
    # safe under megacore batch-parallelism).
    zero2 = jnp.zeros((PAD2, buf2_ref.shape[1]), F32)
    buf2_ref[pl.ds(0, PAD2), :] = zero2
    buf2_ref[pl.ds(PAD2 + n1, PAD2), :] = zero2
    zero3 = jnp.zeros((PAD3, buf3_ref.shape[1]), F32)
    buf3_ref[pl.ds(0, PAD3), :] = zero3
    buf3_ref[pl.ds(PAD3 + n2, PAD3), :] = zero3

    # ---- conv1 + BN + ReLU (im2col patches from the wrapper, K = 9) --------
    a1 = jnp.dot(p1_ref[0], w1_ref[...], preferred_element_type=F32)   # (256, 32)
    a1 = jnp.maximum(a1 * s1_ref[...] + t1_ref[...], 0.0)
    buf2_ref[pl.ds(PAD2, n1), :] = a1

    # ---- conv2 + BN + ReLU + 2x2 max-pool ----------------------------------
    a2 = _conv3x3_from_rows(buf2_ref, PAD2, H_IN, W_IN, w2_ref, s2_ref, t2_ref)  # (256, 64)
    p2 = _maxpool2x2_rows(a2, H_IN, W_IN, pool2_ref)                             # (64, 64)
    buf3_ref[pl.ds(PAD3, n2), :] = p2

    # ---- conv3 + BN + ReLU + 2x2 max-pool ----------------------------------
    a3 = _conv3x3_from_rows(buf3_ref, PAD3, H_IN // 2, W_IN // 2,
                            w3_ref, s3_ref, t3_ref)                              # (64, 128)
    p3 = _maxpool2x2_rows(a3, H_IN // 2, W_IN // 2, pool3_ref)                   # (16, 128)

    # ---- attention + global average pool + classifier ----------------------
    g = jnp.mean(p3, axis=0, keepdims=True)                                      # (1, 128)
    a = jnp.maximum(jnp.dot(g.astype(BF16), wa1_ref[...],
                            preferred_element_type=F32) + ba1_ref[...], 0.0)
    z = jnp.dot(a.astype(BF16), wa2_ref[...],
                preferred_element_type=F32) + ba2_ref[...]
    att = 1.0 / (1.0 + jnp.exp(-z))                                              # Sigmoid
    # global_pool(x * att) == mean_spatial(x) * att (att is spatially constant)
    p = g * att
    h = jnp.maximum(jnp.dot(p.astype(BF16), wc1_ref[...],
                            preferred_element_type=F32) * sc1_ref[...] + tc1_ref[...], 0.0)
    h = jnp.maximum(jnp.dot(h.astype(BF16), wc2_ref[...],
                            preferred_element_type=F32) * sc2_ref[...] + tc2_ref[...], 0.0)
    h = jnp.maximum(jnp.dot(h.astype(BF16), wc3_ref[...],
                            preferred_element_type=F32) + bc3_ref[...], 0.0)
    out = jnp.sum(h * wc4_ref[...], axis=1, keepdims=True) + bc4_ref[...]        # (1, 1)
    o_ref[...] = out.reshape(1, 1, 1)


# ---------------------------------------------------------------------------
# Wrapper
# ---------------------------------------------------------------------------
def _im2col_3x3(x):
    # x: (B, H, W, 1) -> (B, H, W, 9) patches, tap order k = dy*3 + dx
    B, H, W, _ = x.shape
    xp = jnp.pad(x, ((0, 0), (1, 1), (1, 1), (0, 0)))
    cols = [xp[:, dy:dy + H, dx:dx + W, :] for dy in range(3) for dx in range(3)]
    return jnp.concatenate(cols, axis=-1)


def improved_language_detection_cnn(x_nchw, params):
    x = jnp.transpose(x_nchw, (0, 2, 3, 1)).astype(F32)          # NCHW -> NHWC (B,16,16,1)
    B, H, W, _ = x.shape
    assert H == H_IN and W == W_IN, "fused kernel is specialized for 16x16 inputs"
    patches = _im2col_3x3(x).reshape(B, H * W, 9)                # tiny conv1 im2col (XLA)

    p = params
    weight_args = (p["w1"], p["s1"], p["t1"],
                   p["w2"], p["s2"], p["t2"],
                   p["w3"], p["s3"], p["t3"],
                   p["wa1"], p["ba1"], p["wa2"], p["ba2"],
                   p["wc1"], p["sc1"], p["tc1"],
                   p["wc2"], p["sc2"], p["tc2"],
                   p["wc3"], p["bc3"], p["wc4"], p["bc4"])

    def full_spec(a):
        return pl.BlockSpec(a.shape, lambda b, nd=a.ndim: (0,) * nd)

    out = pl.pallas_call(
        _fused_forward_kernel,
        out_shape=jax.ShapeDtypeStruct((B, 1, 1), F32),
        grid=(B,),
        in_specs=[pl.BlockSpec((1, H * W, 9), lambda b: (b, 0, 0))]
                 + [full_spec(a) for a in weight_args],
        out_specs=pl.BlockSpec((1, 1, 1), lambda b: (b, 0, 0)),
        scratch_shapes=[
            pltpu.VMEM((2 * PAD2 + H_IN * W_IN, 32), F32),                 # conv1 map + halo
            pltpu.VMEM((2 * PAD3 + (H_IN // 2) * (W_IN // 2), 64), F32),   # pooled conv2 map + halo
            pltpu.VMEM(((H_IN // 2) * W_IN, 64), F32),                     # conv2 W-pool staging
            pltpu.VMEM(((H_IN // 4) * (W_IN // 2), 128), F32),             # conv3 W-pool staging
        ],
        compiler_params=pltpu.CompilerParams(dimension_semantics=("parallel",)),
    )(patches, *weight_args)
    return out.reshape(B, 1)


# ---------------------------------------------------------------------------
# Deterministic synthetic parameters
# ---------------------------------------------------------------------------
def _bn_fold(bias, n):
    # eval-mode BN with default running stats (mean=0, var=1, gamma=1, beta=0)
    scale = jnp.full((1, n), (1.0 + EPS) ** -0.5, F32)
    return scale, scale * bias.reshape(1, n)


def make_params(key):
    ks = jax.random.split(key, 18)

    def nrm(k, shape, s=0.1):
        return (s * jax.random.normal(k, shape)).astype(F32)

    p = {}
    # conv stack: HWIO weights flattened tap-major to (9, Cin, Cout)
    w1 = nrm(ks[0], (3, 3, 1, 32));    b1 = nrm(ks[1], (32,))
    w2 = nrm(ks[2], (3, 3, 32, 64));   b2 = nrm(ks[3], (64,))
    w3 = nrm(ks[4], (3, 3, 64, 128));  b3 = nrm(ks[5], (128,))
    p["w1"] = w1.reshape(9, 32)                        # conv1 stays f32 (tiny K=9 matmul)
    p["w2"] = w2.reshape(9, 32, 64).astype(BF16)
    p["w3"] = w3.reshape(9, 64, 128).astype(BF16)
    p["s1"], p["t1"] = _bn_fold(b1, 32)
    p["s2"], p["t2"] = _bn_fold(b2, 64)
    p["s3"], p["t3"] = _bn_fold(b3, 128)
    # attention MLP: Linear(128,64) -> ReLU -> Linear(64,128) -> Sigmoid
    p["wa1"] = nrm(ks[6], (128, 64)).astype(BF16);   p["ba1"] = nrm(ks[7], (64,)).reshape(1, 64)
    p["wa2"] = nrm(ks[8], (64, 128)).astype(BF16);   p["ba2"] = nrm(ks[9], (128,)).reshape(1, 128)
    # classifier: 128->256(+BN)->128(+BN)->64->1
    p["wc1"] = nrm(ks[10], (128, 256)).astype(BF16); bc1 = nrm(ks[11], (256,))
    p["wc2"] = nrm(ks[12], (256, 128)).astype(BF16); bc2 = nrm(ks[13], (128,))
    p["wc3"] = nrm(ks[14], (128, 64)).astype(BF16);  p["bc3"] = nrm(ks[15], (64,)).reshape(1, 64)
    p["wc4"] = nrm(ks[16], (1, 64))                  # final Linear(64,1) as an f32 row vector
    p["bc4"] = nrm(ks[17], (1,)).reshape(1, 1)
    p["sc1"], p["tc1"] = _bn_fold(bc1, 256)
    p["sc2"], p["tc2"] = _bn_fold(bc2, 128)
    return p


if __name__ == "__main__":
    B = 2
    # PyTorch-style NCHW input, 1 channel (Conv2d(1, 32, ...)), 16x16 spatial
    x = jax.random.normal(jax.random.PRNGKey(0), (B, 1, H_IN, W_IN), dtype=F32)
    params = make_params(jax.random.PRNGKey(1))
    fwd = jax.jit(improved_language_detection_cnn)
    out = jax.block_until_ready(fwd(x, params))
    assert out.shape == (B, 1) and out.dtype == F32
    print("KERNEL_OK")
</pallas_src>

<mosaic_0001>
module attributes {stable_mosaic.version = 11 : i64} {
  func.func @_fused_forward_kernel(%arg0: i32, %arg1: memref<1x256x9xf32, #tpu.memory_space<vmem>>, %arg2: memref<9x32xf32, #tpu.memory_space<vmem>>, %arg3: memref<1x32xf32, #tpu.memory_space<vmem>>, %arg4: memref<1x32xf32, #tpu.memory_space<vmem>>, %arg5: memref<9x32x64xbf16, #tpu.memory_space<vmem>>, %arg6: memref<1x64xf32, #tpu.memory_space<vmem>>, %arg7: memref<1x64xf32, #tpu.memory_space<vmem>>, %arg8: memref<9x64x128xbf16, #tpu.memory_space<vmem>>, %arg9: memref<1x128xf32, #tpu.memory_space<vmem>>, %arg10: memref<1x128xf32, #tpu.memory_space<vmem>>, %arg11: memref<128x64xbf16, #tpu.memory_space<vmem>>, %arg12: memref<1x64xf32, #tpu.memory_space<vmem>>, %arg13: memref<64x128xbf16, #tpu.memory_space<vmem>>, %arg14: memref<1x128xf32, #tpu.memory_space<vmem>>, %arg15: memref<128x256xbf16, #tpu.memory_space<vmem>>, %arg16: memref<1x256xf32, #tpu.memory_space<vmem>>, %arg17: memref<1x256xf32, #tpu.memory_space<vmem>>, %arg18: memref<256x128xbf16, #tpu.memory_space<vmem>>, %arg19: memref<1x128xf32, #tpu.memory_space<vmem>>, %arg20: memref<1x128xf32, #tpu.memory_space<vmem>>, %arg21: memref<128x64xbf16, #tpu.memory_space<vmem>>, %arg22: memref<1x64xf32, #tpu.memory_space<vmem>>, %arg23: memref<1x64xf32, #tpu.memory_space<vmem>>, %arg24: memref<1x1xf32, #tpu.memory_space<vmem>>, %arg25: memref<1x1x1xf32, #tpu.memory_space<vmem>>, %arg26: memref<304x32xf32, #tpu.memory_space<vmem>>, %arg27: memref<96x64xf32, #tpu.memory_space<vmem>>, %arg28: memref<128x64xf32, #tpu.memory_space<vmem>>, %arg29: memref<32x128xf32, #tpu.memory_space<vmem>>) attributes {dimension_semantics = [#tpu.dimension_semantics<parallel>], iteration_bounds = array<i64: 2>, scalar_prefetch = 0 : i64, scratch_operands = 4 : i64, tpu.core_type = #tpu.core_type<tc>, window_params = [{transform_indices = @transform_0, window_bounds = array<i64: 1, 256, 9>}, {pipeline_mode = #tpu.pipeline_mode<synchronous>, transform_indices = @transform_1, window_bounds = array<i64: 9, 32>}, {pipeline_mode = #tpu.pipeline_mode<synchronous>, transform_indices = @transform_2, window_bounds = array<i64: 1, 32>}, {pipeline_mode = #tpu.pipeline_mode<synchronous>, transform_indices = @transform_3, window_bounds = array<i64: 1, 32>}, {pipeline_mode = #tpu.pipeline_mode<synchronous>, transform_indices = @transform_4, window_bounds = array<i64: 9, 32, 64>}, {pipeline_mode = #tpu.pipeline_mode<synchronous>, transform_indices = @transform_5, window_bounds = array<i64: 1, 64>}, {pipeline_mode = #tpu.pipeline_mode<synchronous>, transform_indices = @transform_6, window_bounds = array<i64: 1, 64>}, {pipeline_mode = #tpu.pipeline_mode<synchronous>, transform_indices = @transform_7, window_bounds = array<i64: 9, 64, 128>}, {pipeline_mode = #tpu.pipeline_mode<synchronous>, transform_indices = @transform_8, window_bounds = array<i64: 1, 128>}, {pipeline_mode = #tpu.pipeline_mode<synchronous>, transform_indices = @transform_9, window_bounds = array<i64: 1, 128>}, {pipeline_mode = #tpu.pipeline_mode<synchronous>, transform_indices = @transform_10, window_bounds = array<i64: 128, 64>}, {pipeline_mode = #tpu.pipeline_mode<synchronous>, transform_indices = @transform_11, window_bounds = array<i64: 1, 64>}, {pipeline_mode = #tpu.pipeline_mode<synchronous>, transform_indices = @transform_12, window_bounds = array<i64: 64, 128>}, {pipeline_mode = #tpu.pipeline_mode<synchronous>, transform_indices = @transform_13, window_bounds = array<i64: 1, 128>}, {pipeline_mode = #tpu.pipeline_mode<synchronous>, transform_indices = @transform_14, window_bounds = array<i64: 128, 256>}, {pipeline_mode = #tpu.pipeline_mode<synchronous>, transform_indices = @transform_15, window_bounds = array<i64: 1, 256>}, {pipeline_mode = #tpu.pipeline_mode<synchronous>, transform_indices = @transform_16, window_bounds = array<i64: 1, 256>}, {pipeline_mode = #tpu.pipeline_mode<synchronous>, transform_indices = @transform_17, window_bounds = array<i64: 256, 128>}, {pipeline_mode = #tpu.pipeline_mode<synchronous>, transform_indices = @transform_18, window_bounds = array<i64: 1, 128>}, {pipeline_mode = #tpu.pipeline_mode<synchronous>, transform_indices = @transform_19, window_bounds = array<i64: 1, 128>}, {pipeline_mode = #tpu.pipeline_mode<synchronous>, transform_indices = @transform_20, window_bounds = array<i64: 128, 64>}, {pipeline_mode = #tpu.pipeline_mode<synchronous>, transform_indices = @transform_21, window_bounds = array<i64: 1, 64>}, {pipeline_mode = #tpu.pipeline_mode<synchronous>, transform_indices = @transform_22, window_bounds = array<i64: 1, 64>}, {pipeline_mode = #tpu.pipeline_mode<synchronous>, transform_indices = @transform_23, window_bounds = array<i64: 1, 1>}, {transform_indices = @transform_24, window_bounds = array<i64: 1, 1, 1>}]} {
    %cst = arith.constant 0.000000e+00 : f32
    %0 = vector.broadcast %cst : f32 to vector<24x32xf32>
    %c0 = arith.constant 0 : index
    %c0_0 = arith.constant 0 : index
    %1 = vector.load %arg26[%c0, %c0_0] : memref<304x32xf32, #tpu.memory_space<vmem>>, vector<24x32xf32>
    tpu.vector_store %arg26[%c0, %c0_0], %0 {strides = array<i32>} : memref<304x32xf32, #tpu.memory_space<vmem>>, vector<24x32xf32>,
    %c280 = arith.constant 280 : index
    %c0_1 = arith.constant 0 : index
    %2 = vector.load %arg26[%c280, %c0_1] : memref<304x32xf32, #tpu.memory_space<vmem>>, vector<24x32xf32>
    tpu.vector_store %arg26[%c280, %c0_1], %0 {strides = array<i32>} : memref<304x32xf32, #tpu.memory_space<vmem>>, vector<24x32xf32>,
    %cst_2 = arith.constant 0.000000e+00 : f32
    %3 = vector.broadcast %cst_2 : f32 to vector<16x64xf32>
    %c0_3 = arith.constant 0 : index
    %c0_4 = arith.constant 0 : index
    %4 = vector.load %arg27[%c0_3, %c0_4] : memref<96x64xf32, #tpu.memory_space<vmem>>, vector<16x64xf32>
    tpu.vector_store %arg27[%c0_3, %c0_4], %3 {strides = array<i32>} : memref<96x64xf32, #tpu.memory_space<vmem>>, vector<16x64xf32>,
    %c80 = arith.constant 80 : index
    %c0_5 = arith.constant 0 : index
    %5 = vector.load %arg27[%c80, %c0_5] : memref<96x64xf32, #tpu.memory_space<vmem>>, vector<16x64xf32>
    tpu.vector_store %arg27[%c80, %c0_5], %3 {strides = array<i32>} : memref<96x64xf32, #tpu.memory_space<vmem>>, vector<16x64xf32>,
    %c0_6 = arith.constant 0 : index
    %c0_7 = arith.constant 0 : index
    %c0_8 = arith.constant 0 : index
    %6 = vector.load %arg1[%c0_6, %c0_7, %c0_8] : memref<1x256x9xf32, #tpu.memory_space<vmem>>, vector<1x256x9xf32>
    %7 = vector.shape_cast %6 : vector<1x256x9xf32> to vector<256x9xf32>
    %c0_9 = arith.constant 0 : index
    %c0_10 = arith.constant 0 : index
    %8 = vector.load %arg2[%c0_9, %c0_10] : memref<9x32xf32, #tpu.memory_space<vmem>>, vector<9x32xf32>
    %cst_11 = arith.constant dense<0.000000e+00> : vector<256x32xf32>
    %9 = tpu.matmul %7, %8, %cst_11 {dimension_numbers = #tpu.dot_dimension_numbers<[1], [0], [0], [1], [0, 0, 1, 1], [], []>} : vector<256x9xf32>, vector<9x32xf32>, vector<256x32xf32> -> vector<256x32xf32>
    %c0_12 = arith.constant 0 : index
    %c0_13 = arith.constant 0 : index
    %10 = vector.load %arg3[%c0_12, %c0_13] : memref<1x32xf32, #tpu.memory_space<vmem>>, vector<1x32xf32>
    %11 = vector.broadcast %10 : vector<1x32xf32> to vector<256x32xf32>
    %12 = arith.mulf %9, %11 : vector<256x32xf32>
    %c0_14 = arith.constant 0 : index
    %c0_15 = arith.constant 0 : index
    %13 = vector.load %arg4[%c0_14, %c0_15] : memref<1x32xf32, #tpu.memory_space<vmem>>, vector<1x32xf32>
    %14 = vector.broadcast %13 : vector<1x32xf32> to vector<256x32xf32>
    %15 = arith.addf %12, %14 : vector<256x32xf32>
    %cst_16 = arith.constant 0.000000e+00 : f32
    %16 = vector.broadcast %cst_16 : f32 to vector<256x32xf32>
    %17 = arith.maximumf %15, %16 : vector<256x32xf32>
    %c24 = arith.constant 24 : index
    %c0_17 = arith.constant 0 : index
    %18 = vector.load %arg26[%c24, %c0_17] : memref<304x32xf32, #tpu.memory_space<vmem>>, vector<256x32xf32>
    tpu.vector_store %arg26[%c24, %c0_17], %17 {strides = array<i32>} : memref<304x32xf32, #tpu.memory_space<vmem>>, vector<256x32xf32>,
    %19 = tpu.iota {dimensions = array<i32: 0>} : vector<256x32xi32>
    %c16_i32 = arith.constant 16 : i32
    %c0_i32 = arith.constant 0 : i32
    %20 = arith.cmpi eq, %c16_i32, %c0_i32 : i32
    %c1_i32 = arith.constant 1 : i32
    %21 = arith.select %20, %c1_i32, %c16_i32 : i32
    %22 = vector.broadcast %21 : i32 to vector<256x32xi32>
    %23 = arith.remsi %19, %22 : vector<256x32xi32>
    %c0_i32_18 = arith.constant 0 : i32
    %24 = vector.broadcast %c0_i32_18 : i32 to vector<256x32xi32>
    %25 = arith.cmpi ne, %23, %24 : vector<256x32xi32>
    %c0_i32_19 = arith.constant 0 : i32
    %26 = vector.broadcast %c0_i32_19 : i32 to vector<256x32xi32>
    %27 = arith.cmpi slt, %23, %26 : vector<256x32xi32>
    %c0_i32_20 = arith.constant 0 : i32
    %28 = arith.cmpi slt, %21, %c0_i32_20 : i32
    %29 = vector.broadcast %28 : i1 to vector<256x32xi1>
    %30 = vector.broadcast %29 : vector<256x32xi1> to vector<256x32xi1>
    %31 = arith.xori %27, %30 : vector<256x32xi1>
    %32 = arith.andi %31, %25 : vector<256x32xi1>
    %33 = vector.broadcast %21 : i32 to vector<256x32xi32>
    %34 = arith.addi %23, %33 : vector<256x32xi32>
    %35 = arith.select %32, %34, %23 : vector<256x32xi1>, vector<256x32xi32>
    %c1_i32_21 = arith.constant 1 : i32
    %36 = vector.broadcast %c1_i32_21 : i32 to vector<256x32xi32>
    %37 = arith.cmpi sge, %35, %36 : vector<256x32xi32>
    %c15_i32 = arith.constant 15 : i32
    %38 = vector.broadcast %c15_i32 : i32 to vector<256x32xi32>
    %39 = arith.cmpi slt, %35, %38 : vector<256x32xi32>
    %cst_22 = arith.constant 0.000000e+00 : f32
    %40 = vector.broadcast %cst_22 : f32 to vector<256x64xf32>
    %c7 = arith.constant 7 : index
    %c0_23 = arith.constant 0 : index
    %41 = vector.load %arg26[%c7, %c0_23] : memref<304x32xf32, #tpu.memory_space<vmem>>, vector<256x32xf32>
    %cst_24 = arith.constant 0.000000e+00 : f32
    %42 = vector.broadcast %cst_24 : f32 to vector<256x32xf32>
    %43 = arith.select %37, %41, %42 : vector<256x32xi1>, vector<256x32xf32>
    %44 = arith.truncf %43 : vector<256x32xf32> to vector<256x32xbf16>
    %c0_25 = arith.constant 0 : index
    %c0_26 = arith.constant 0 : index
    %c0_27 = arith.constant 0 : index
    %45 = vector.load %arg5[%c0_25, %c0_26, %c0_27] : memref<9x32x64xbf16, #tpu.memory_space<vmem>>, vector<1x32x64xbf16>
    %46 = vector.shape_cast %45 : vector<1x32x64xbf16> to vector<32x64xbf16>
    %cst_28 = arith.constant dense<0.000000e+00> : vector<256x64xf32>
    %47 = tpu.matmul %44, %46, %cst_28 {dimension_numbers = #tpu.dot_dimension_numbers<[1], [0], [0], [1], [0, 0, 1, 1], [], []>} : vector<256x32xbf16>, vector<32x64xbf16>, vector<256x64xf32> -> vector<256x64xf32>
    %48 = arith.addf %40, %47 : vector<256x64xf32>
    %c8 = arith.constant 8 : index
    %c0_29 = arith.constant 0 : index
    %49 = vector.load %arg26[%c8, %c0_29] : memref<304x32xf32, #tpu.memory_space<vmem>>, vector<256x32xf32>
    %50 = arith.truncf %49 : vector<256x32xf32> to vector<256x32xbf16>
    %c1 = arith.constant 1 : index
    %c0_30 = arith.constant 0 : index
    %c0_31 = arith.constant 0 : index
    %51 = vector.load %arg5[%c1, %c0_30, %c0_31] : memref<9x32x64xbf16, #tpu.memory_space<vmem>>, vector<1x32x64xbf16>
    %52 = vector.shape_cast %51 : vector<1x32x64xbf16> to vector<32x64xbf16>
    %cst_32 = arith.constant dense<0.000000e+00> : vector<256x64xf32>
    %53 = tpu.matmul %50, %52, %cst_32 {dimension_numbers = #tpu.dot_dimension_numbers<[1], [0], [0], [1], [0, 0, 1, 1], [], []>} : vector<256x32xbf16>, vector<32x64xbf16>, vector<256x64xf32> -> vector<256x64xf32>
    %54 = arith.addf %48, %53 : vector<256x64xf32>
    %c9 = arith.constant 9 : index
    %c0_33 = arith.constant 0 : index
    %55 = vector.load %arg26[%c9, %c0_33] : memref<304x32xf32, #tpu.memory_space<vmem>>, vector<256x32xf32>
    %cst_34 = arith.constant 0.000000e+00 : f32
    %56 = vector.broadcast %cst_34 : f32 to vector<256x32xf32>
    %57 = arith.select %39, %55, %56 : vector<256x32xi1>, vector<256x32xf32>
    %58 = arith.truncf %57 : vector<256x32xf32> to vector<256x32xbf16>
    %c2 = arith.constant 2 : index
    %c0_35 = arith.constant 0 : index
    %c0_36 = arith.constant 0 : index
    %59 = vector.load %arg5[%c2, %c0_35, %c0_36] : memref<9x32x64xbf16, #tpu.memory_space<vmem>>, vector<1x32x64xbf16>
    %60 = vector.shape_cast %59 : vector<1x32x64xbf16> to vector<32x64xbf16>
    %cst_37 = arith.constant dense<0.000000e+00> : vector<256x64xf32>
    %61 = tpu.matmul %58, %60, %cst_37 {dimension_numbers = #tpu.dot_dimension_numbers<[1], [0], [0], [1], [0, 0, 1, 1], [], []>} : vector<256x32xbf16>, vector<32x64xbf16>, vector<256x64xf32> -> vector<256x64xf32>
    %62 = arith.addf %54, %61 : vector<256x64xf32>
    %c23 = arith.constant 23 : index
    %c0_38 = arith.constant 0 : index
    %63 = vector.load %arg26[%c23, %c0_38] : memref<304x32xf32, #tpu.memory_space<vmem>>, vector<256x32xf32>
    %cst_39 = arith.constant 0.000000e+00 : f32
    %64 = vector.broadcast %cst_39 : f32 to vector<256x32xf32>
    %65 = arith.select %37, %63, %64 : vector<256x32xi1>, vector<256x32xf32>
    %66 = arith.truncf %65 : vector<256x32xf32> to vector<256x32xbf16>
    %c3 = arith.constant 3 : index
    %c0_40 = arith.constant 0 : index
    %c0_41 = arith.constant 0 : index
    %67 = vector.load %arg5[%c3, %c0_40, %c0_41] : memref<9x32x64xbf16, #tpu.memory_space<vmem>>, vector<1x32x64xbf16>
    %68 = vector.shape_cast %67 : vector<1x32x64xbf16> to vector<32x64xbf16>
    %cst_42 = arith.constant dense<0.000000e+00> : vector<256x64xf32>
    %69 = tpu.matmul %66, %68, %cst_42 {dimension_numbers = #tpu.dot_dimension_numbers<[1], [0], [0], [1], [0, 0, 1, 1], [], []>} : vector<256x32xbf16>, vector<32x64xbf16>, vector<256x64xf32> -> vector<256x64xf32>
    %70 = arith.addf %62, %69 : vector<256x64xf32>
    %c24_43 = arith.constant 24 : index
    %c0_44 = arith.constant 0 : index
    %71 = vector.load %arg26[%c24_43, %c0_44] : memref<304x32xf32, #tpu.memory_space<vmem>>, vector<256x32xf32>
    %72 = arith.truncf %71 : vector<256x32xf32> to vector<256x32xbf16>
    %c4 = arith.constant 4 : index
    %c0_45 = arith.constant 0 : index
    %c0_46 = arith.constant 0 : index
    %73 = vector.load %arg5[%c4, %c0_45, %c0_46] : memref<9x32x64xbf16, #tpu.memory_space<vmem>>, vector<1x32x64xbf16>
    %74 = vector.shape_cast %73 : vector<1x32x64xbf16> to vector<32x64xbf16>
    %cst_47 = arith.constant dense<0.000000e+00> : vector<256x64xf32>
    %75 = tpu.matmul %72, %74, %cst_47 {dimension_numbers = #tpu.dot_dimension_numbers<[1], [0], [0], [1], [0, 0, 1, 1], [], []>} : vector<256x32xbf16>, vector<32x64xbf16>, vector<256x64xf32> -> vector<256x64xf32>
    %76 = arith.addf %70, %75 : vector<256x64xf32>
    %c25 = arith.constant 25 : index
    %c0_48 = arith.constant 0 : index
    %77 = vector.load %arg26[%c25, %c0_48] : memref<304x32xf32, #tpu.memory_space<vmem>>, vector<256x32xf32>
    %cst_49 = arith.constant 0.000000e+00 : f32
    %78 = vector.broadcast %cst_49 : f32 to vector<256x32xf32>
    %79 = arith.select %39, %77, %78 : vector<256x32xi1>, vector<256x32xf32>
    %80 = arith.truncf %79 : vector<256x32xf32> to vector<256x32xbf16>
    %c5 = arith.constant 5 : index
    %c0_50 = arith.constant 0 : index
    %c0_51 = arith.constant 0 : index
    %81 = vector.load %arg5[%c5, %c0_50, %c0_51] : memref<9x32x64xbf16, #tpu.memory_space<vmem>>, vector<1x32x64xbf16>
    %82 = vector.shape_cast %81 : vector<1x32x64xbf16> to vector<32x64xbf16>
    %cst_52 = arith.constant dense<0.000000e+00> : vector<256x64xf32>
    %83 = tpu.matmul %80, %82, %cst_52 {dimension_numbers = #tpu.dot_dimension_numbers<[1], [0], [0], [1], [0, 0, 1, 1], [], []>} : vector<256x32xbf16>, vector<32x64xbf16>, vector<256x64xf32> -> vector<256x64xf32>
    %84 = arith.addf %76, %83 : vector<256x64xf32>
    %c39 = arith.constant 39 : index
    %c0_53 = arith.constant 0 : index
    %85 = vector.load %arg26[%c39, %c0_53] : memref<304x32xf32, #tpu.memory_space<vmem>>, vector<256x32xf32>
    %cst_54 = arith.constant 0.000000e+00 : f32
    %86 = vector.broadcast %cst_54 : f32 to vector<256x32xf32>
    %87 = arith.select %37, %85, %86 : vector<256x32xi1>, vector<256x32xf32>
    %88 = arith.truncf %87 : vector<256x32xf32> to vector<256x32xbf16>
    %c6 = arith.constant 6 : index
    %c0_55 = arith.constant 0 : index
    %c0_56 = arith.constant 0 : index
    %89 = vector.load %arg5[%c6, %c0_55, %c0_56] : memref<9x32x64xbf16, #tpu.memory_space<vmem>>, vector<1x32x64xbf16>
    %90 = vector.shape_cast %89 : vector<1x32x64xbf16> to vector<32x64xbf16>
    %cst_57 = arith.constant dense<0.000000e+00> : vector<256x64xf32>
    %91 = tpu.matmul %88, %90, %cst_57 {dimension_numbers = #tpu.dot_dimension_numbers<[1], [0], [0], [1], [0, 0, 1, 1], [], []>} : vector<256x32xbf16>, vector<32x64xbf16>, vector<256x64xf32> -> vector<256x64xf32>
    %92 = arith.addf %84, %91 : vector<256x64xf32>
    %c40 = arith.constant 40 : index
    %c0_58 = arith.constant 0 : index
    %93 = vector.load %arg26[%c40, %c0_58] : memref<304x32xf32, #tpu.memory_space<vmem>>, vector<256x32xf32>
    %94 = arith.truncf %93 : vector<256x32xf32> to vector<256x32xbf16>
    %c7_59 = arith.constant 7 : index
    %c0_60 = arith.constant 0 : index
    %c0_61 = arith.constant 0 : index
    %95 = vector.load %arg5[%c7_59, %c0_60, %c0_61] : memref<9x32x64xbf16, #tpu.memory_space<vmem>>, vector<1x32x64xbf16>
    %96 = vector.shape_cast %95 : vector<1x32x64xbf16> to vector<32x64xbf16>
    %cst_62 = arith.constant dense<0.000000e+00> : vector<256x64xf32>
    %97 = tpu.matmul %94, %96, %cst_62 {dimension_numbers = #tpu.dot_dimension_numbers<[1], [0], [0], [1], [0, 0, 1, 1], [], []>} : vector<256x32xbf16>, vector<32x64xbf16>, vector<256x64xf32> -> vector<256x64xf32>
    %98 = arith.addf %92, %97 : vector<256x64xf32>
    %c41 = arith.constant 41 : index
    %c0_63 = arith.constant 0 : index
    %99 = vector.load %arg26[%c41, %c0_63] : memref<304x32xf32, #tpu.memory_space<vmem>>, vector<256x32xf32>
    %cst_64 = arith.constant 0.000000e+00 : f32
    %100 = vector.broadcast %cst_64 : f32 to vector<256x32xf32>
    %101 = arith.select %39, %99, %100 : vector<256x32xi1>, vector<256x32xf32>
    %102 = arith.truncf %101 : vector<256x32xf32> to vector<256x32xbf16>
    %c8_65 = arith.constant 8 : index
    %c0_66 = arith.constant 0 : index
    %c0_67 = arith.constant 0 : index
    %103 = vector.load %arg5[%c8_65, %c0_66, %c0_67] : memref<9x32x64xbf16, #tpu.memory_space<vmem>>, vector<1x32x64xbf16>
    %104 = vector.shape_cast %103 : vector<1x32x64xbf16> to vector<32x64xbf16>
    %cst_68 = arith.constant dense<0.000000e+00> : vector<256x64xf32>
    %105 = tpu.matmul %102, %104, %cst_68 {dimension_numbers = #tpu.dot_dimension_numbers<[1], [0], [0], [1], [0, 0, 1, 1], [], []>} : vector<256x32xbf16>, vector<32x64xbf16>, vector<256x64xf32> -> vector<256x64xf32>
    %106 = arith.addf %98, %105 : vector<256x64xf32>
    %c0_69 = arith.constant 0 : index
    %c0_70 = arith.constant 0 : index
    %107 = vector.load %arg6[%c0_69, %c0_70] : memref<1x64xf32, #tpu.memory_space<vmem>>, vector<1x64xf32>
    %108 = vector.broadcast %107 : vector<1x64xf32> to vector<256x64xf32>
    %109 = arith.mulf %106, %108 : vector<256x64xf32>
    %c0_71 = arith.constant 0 : index
    %c0_72 = arith.constant 0 : index
    %110 = vector.load %arg7[%c0_71, %c0_72] : memref<1x64xf32, #tpu.memory_space<vmem>>, vector<1x64xf32>
    %111 = vector.broadcast %110 : vector<1x64xf32> to vector<256x64xf32>
    %112 = arith.addf %109, %111 : vector<256x64xf32>
    %cst_73 = arith.constant 0.000000e+00 : f32
    %113 = vector.broadcast %cst_73 : f32 to vector<256x64xf32>
    %114 = arith.maximumf %112, %113 : vector<256x64xf32>
    %115 = vector.shape_cast %114 : vector<256x64xf32> to vector<8x2x16x64xf32>
    %116 = vector.extract_strided_slice %115 {offsets = [0, 0, 0, 0], sizes = [8, 1, 16, 64], strides = [1, 1, 1, 1]} : vector<8x2x16x64xf32> to vector<8x1x16x64xf32>
    %117 = vector.shape_cast %116 : vector<8x1x16x64xf32> to vector<8x16x64xf32>
    %118 = vector.extract_strided_slice %115 {offsets = [0, 1, 0, 0], sizes = [8, 1, 16, 64], strides = [1, 1, 1, 1]} : vector<8x2x16x64xf32> to vector<8x1x16x64xf32>
    %119 = vector.shape_cast %118 : vector<8x1x16x64xf32> to vector<8x16x64xf32>
    %120 = arith.maximumf %117, %119 : vector<8x16x64xf32>
    %121 = vector.shape_cast %120 : vector<8x16x64xf32> to vector<128x64xf32>
    %c0_74 = arith.constant 0 : index
    %c0_75 = arith.constant 0 : index
    %122 = vector.load %arg28[%c0_74, %c0_75] : memref<128x64xf32, #tpu.memory_space<vmem>>, vector<128x64xf32>
    tpu.vector_store %arg28[%c0_74, %c0_75], %121 {strides = array<i32>} : memref<128x64xf32, #tpu.memory_space<vmem>>, vector<128x64xf32>,
    %c0_76 = arith.constant 0 : index
    %c0_77 = arith.constant 0 : index
    %123 = tpu.strided_load %arg28[%c0_76, %c0_77] {strides = array<i32: 2, 1>} : memref<128x64xf32, #tpu.memory_space<vmem>>, vector<64x64xf32>
    %c1_78 = arith.constant 1 : index
    %c0_79 = arith.constant 0 : index
    %124 = tpu.strided_load %arg28[%c1_78, %c0_79] {strides = array<i32: 2, 1>} : memref<128x64xf32, #tpu.memory_space<vmem>>, vector<64x64xf32>
    %125 = arith.maximumf %123, %124 : vector<64x64xf32>
    %c16 = arith.constant 16 : index
    %c0_80 = arith.constant 0 : index
    %126 = vector.load %arg27[%c16, %c0_80] : memref<96x64xf32, #tpu.memory_space<vmem>>, vector<64x64xf32>
    tpu.vector_store %arg27[%c16, %c0_80], %125 {strides = array<i32>} : memref<96x64xf32, #tpu.memory_space<vmem>>, vector<64x64xf32>,
    %127 = tpu.iota {dimensions = array<i32: 0>} : vector<64x64xi32>
    %c8_i32 = arith.constant 8 : i32
    %c0_i32_81 = arith.constant 0 : i32
    %128 = arith.cmpi eq, %c8_i32, %c0_i32_81 : i32
    %c1_i32_82 = arith.constant 1 : i32
    %129 = arith.select %128, %c1_i32_82, %c8_i32 : i32
    %130 = vector.broadcast %129 : i32 to vector<64x64xi32>
    %131 = arith.remsi %127, %130 : vector<64x64xi32>
    %c0_i32_83 = arith.constant 0 : i32
    %132 = vector.broadcast %c0_i32_83 : i32 to vector<64x64xi32>
    %133 = arith.cmpi ne, %131, %132 : vector<64x64xi32>
    %c0_i32_84 = arith.constant 0 : i32
    %134 = vector.broadcast %c0_i32_84 : i32 to vector<64x64xi32>
    %135 = arith.cmpi slt, %131, %134 : vector<64x64xi32>
    %c0_i32_85 = arith.constant 0 : i32
    %136 = arith.cmpi slt, %129, %c0_i32_85 : i32
    %137 = vector.broadcast %136 : i1 to vector<64x64xi1>
    %138 = vector.broadcast %137 : vector<64x64xi1> to vector<64x64xi1>
    %139 = arith.xori %135, %138 : vector<64x64xi1>
    %140 = arith.andi %139, %133 : vector<64x64xi1>
    %141 = vector.broadcast %129 : i32 to vector<64x64xi32>
    %142 = arith.addi %131, %141 : vector<64x64xi32>
    %143 = arith.select %140, %142, %131 : vector<64x64xi1>, vector<64x64xi32>
    %c1_i32_86 = arith.constant 1 : i32
    %144 = vector.broadcast %c1_i32_86 : i32 to vector<64x64xi32>
    %145 = arith.cmpi sge, %143, %144 : vector<64x64xi32>
    %c7_i32 = arith.constant 7 : i32
    %146 = vector.broadcast %c7_i32 : i32 to vector<64x64xi32>
    %147 = arith.cmpi slt, %143, %146 : vector<64x64xi32>
    %cst_87 = arith.constant 0.000000e+00 : f32
    %148 = vector.broadcast %cst_87 : f32 to vector<64x128xf32>
    %c7_88 = arith.constant 7 : index
    %c0_89 = arith.constant 0 : index
    %149 = vector.load %arg27[%c7_88, %c0_89] : memref<96x64xf32, #tpu.memory_space<vmem>>, vector<64x64xf32>
    %cst_90 = arith.constant 0.000000e+00 : f32
    %150 = vector.broadcast %cst_90 : f32 to vector<64x64xf32>
    %151 = arith.select %145, %149, %150 : vector<64x64xi1>, vector<64x64xf32>
    %152 = arith.truncf %151 : vector<64x64xf32> to vector<64x64xbf16>
    %c0_91 = arith.constant 0 : index
    %c0_92 = arith.constant 0 : index
    %c0_93 = arith.constant 0 : index
    %153 = vector.load %arg8[%c0_91, %c0_92, %c0_93] : memref<9x64x128xbf16, #tpu.memory_space<vmem>>, vector<1x64x128xbf16>
    %154 = vector.shape_cast %153 : vector<1x64x128xbf16> to vector<64x128xbf16>
    %cst_94 = arith.constant dense<0.000000e+00> : vector<64x128xf32>
    %155 = tpu.matmul %152, %154, %cst_94 {dimension_numbers = #tpu.dot_dimension_numbers<[1], [0], [0], [1], [0, 0, 1, 1], [], []>} : vector<64x64xbf16>, vector<64x128xbf16>, vector<64x128xf32> -> vector<64x128xf32>
    %156 = arith.addf %148, %155 : vector<64x128xf32>
    %c8_95 = arith.constant 8 : index
    %c0_96 = arith.constant 0 : index
    %157 = vector.load %arg27[%c8_95, %c0_96] : memref<96x64xf32, #tpu.memory_space<vmem>>, vector<64x64xf32>
    %158 = arith.truncf %157 : vector<64x64xf32> to vector<64x64xbf16>
    %c1_97 = arith.constant 1 : index
    %c0_98 = arith.constant 0 : index
    %c0_99 = arith.constant 0 : index
    %159 = vector.load %arg8[%c1_97, %c0_98, %c0_99] : memref<9x64x128xbf16, #tpu.memory_space<vmem>>, vector<1x64x128xbf16>
    %160 = vector.shape_cast %159 : vector<1x64x128xbf16> to vector<64x128xbf16>
    %cst_100 = arith.constant dense<0.000000e+00> : vector<64x128xf32>
    %161 = tpu.matmul %158, %160, %cst_100 {dimension_numbers = #tpu.dot_dimension_numbers<[1], [0], [0], [1], [0, 0, 1, 1], [], []>} : vector<64x64xbf16>, vector<64x128xbf16>, vector<64x128xf32> -> vector<64x128xf32>
    %162 = arith.addf %156, %161 : vector<64x128xf32>
    %c9_101 = arith.constant 9 : index
    %c0_102 = arith.constant 0 : index
    %163 = vector.load %arg27[%c9_101, %c0_102] : memref<96x64xf32, #tpu.memory_space<vmem>>, vector<64x64xf32>
    %cst_103 = arith.constant 0.000000e+00 : f32
    %164 = vector.broadcast %cst_103 : f32 to vector<64x64xf32>
    %165 = arith.select %147, %163, %164 : vector<64x64xi1>, vector<64x64xf32>
    %166 = arith.truncf %165 : vector<64x64xf32> to vector<64x64xbf16>
    %c2_104 = arith.constant 2 : index
    %c0_105 = arith.constant 0 : index
    %c0_106 = arith.constant 0 : index
    %167 = vector.load %arg8[%c2_104, %c0_105, %c0_106] : memref<9x64x128xbf16, #tpu.memory_space<vmem>>, vector<1x64x128xbf16>
    %168 = vector.shape_cast %167 : vector<1x64x128xbf16> to vector<64x128xbf16>
    %cst_107 = arith.constant dense<0.000000e+00> : vector<64x128xf32>
    %169 = tpu.matmul %166, %168, %cst_107 {dimension_numbers = #tpu.dot_dimension_numbers<[1], [0], [0], [1], [0, 0, 1, 1], [], []>} : vector<64x64xbf16>, vector<64x128xbf16>, vector<64x128xf32> -> vector<64x128xf32>
    %170 = arith.addf %162, %169 : vector<64x128xf32>
    %c15 = arith.constant 15 : index
    %c0_108 = arith.constant 0 : index
    %171 = vector.load %arg27[%c15, %c0_108] : memref<96x64xf32, #tpu.memory_space<vmem>>, vector<64x64xf32>
    %cst_109 = arith.constant 0.000000e+00 : f32
    %172 = vector.broadcast %cst_109 : f32 to vector<64x64xf32>
    %173 = arith.select %145, %171, %172 : vector<64x64xi1>, vector<64x64xf32>
    %174 = arith.truncf %173 : vector<64x64xf32> to vector<64x64xbf16>
    %c3_110 = arith.constant 3 : index
    %c0_111 = arith.constant 0 : index
    %c0_112 = arith.constant 0 : index
    %175 = vector.load %arg8[%c3_110, %c0_111, %c0_112] : memref<9x64x128xbf16, #tpu.memory_space<vmem>>, vector<1x64x128xbf16>
    %176 = vector.shape_cast %175 : vector<1x64x128xbf16> to vector<64x128xbf16>
    %cst_113 = arith.constant dense<0.000000e+00> : vector<64x128xf32>
    %177 = tpu.matmul %174, %176, %cst_113 {dimension_numbers = #tpu.dot_dimension_numbers<[1], [0], [0], [1], [0, 0, 1, 1], [], []>} : vector<64x64xbf16>, vector<64x128xbf16>, vector<64x128xf32> -> vector<64x128xf32>
    %178 = arith.addf %170, %177 : vector<64x128xf32>
    %c16_114 = arith.constant 16 : index
    %c0_115 = arith.constant 0 : index
    %179 = vector.load %arg27[%c16_114, %c0_115] : memref<96x64xf32, #tpu.memory_space<vmem>>, vector<64x64xf32>
    %180 = arith.truncf %179 : vector<64x64xf32> to vector<64x64xbf16>
    %c4_116 = arith.constant 4 : index
    %c0_117 = arith.constant 0 : index
    %c0_118 = arith.constant 0 : index
    %181 = vector.load %arg8[%c4_116, %c0_117, %c0_118] : memref<9x64x128xbf16, #tpu.memory_space<vmem>>, vector<1x64x128xbf16>
    %182 = vector.shape_cast %181 : vector<1x64x128xbf16> to vector<64x128xbf16>
    %cst_119 = arith.constant dense<0.000000e+00> : vector<64x128xf32>
    %183 = tpu.matmul %180, %182, %cst_119 {dimension_numbers = #tpu.dot_dimension_numbers<[1], [0], [0], [1], [0, 0, 1, 1], [], []>} : vector<64x64xbf16>, vector<64x128xbf16>, vector<64x128xf32> -> vector<64x128xf32>
    %184 = arith.addf %178, %183 : vector<64x128xf32>
    %c17 = arith.constant 17 : index
    %c0_120 = arith.constant 0 : index
    %185 = vector.load %arg27[%c17, %c0_120] : memref<96x64xf32, #tpu.memory_space<vmem>>, vector<64x64xf32>
    %cst_121 = arith.constant 0.000000e+00 : f32
    %186 = vector.broadcast %cst_121 : f32 to vector<64x64xf32>
    %187 = arith.select %147, %185, %186 : vector<64x64xi1>, vector<64x64xf32>
    %188 = arith.truncf %187 : vector<64x64xf32> to vector<64x64xbf16>
    %c5_122 = arith.constant 5 : index
    %c0_123 = arith.constant 0 : index
    %c0_124 = arith.constant 0 : index
    %189 = vector.load %arg8[%c5_122, %c0_123, %c0_124] : memref<9x64x128xbf16, #tpu.memory_space<vmem>>, vector<1x64x128xbf16>
    %190 = vector.shape_cast %189 : vector<1x64x128xbf16> to vector<64x128xbf16>
    %cst_125 = arith.constant dense<0.000000e+00> : vector<64x128xf32>
    %191 = tpu.matmul %188, %190, %cst_125 {dimension_numbers = #tpu.dot_dimension_numbers<[1], [0], [0], [1], [0, 0, 1, 1], [], []>} : vector<64x64xbf16>, vector<64x128xbf16>, vector<64x128xf32> -> vector<64x128xf32>
    %192 = arith.addf %184, %191 : vector<64x128xf32>
    %c23_126 = arith.constant 23 : index
    %c0_127 = arith.constant 0 : index
    %193 = vector.load %arg27[%c23_126, %c0_127] : memref<96x64xf32, #tpu.memory_space<vmem>>, vector<64x64xf32>
    %cst_128 = arith.constant 0.000000e+00 : f32
    %194 = vector.broadcast %cst_128 : f32 to vector<64x64xf32>
    %195 = arith.select %145, %193, %194 : vector<64x64xi1>, vector<64x64xf32>
    %196 = arith.truncf %195 : vector<64x64xf32> to vector<64x64xbf16>
    %c6_129 = arith.constant 6 : index
    %c0_130 = arith.constant 0 : index
    %c0_131 = arith.constant 0 : index
    %197 = vector.load %arg8[%c6_129, %c0_130, %c0_131] : memref<9x64x128xbf16, #tpu.memory_space<vmem>>, vector<1x64x128xbf16>
    %198 = vector.shape_cast %197 : vector<1x64x128xbf16> to vector<64x128xbf16>
    %cst_132 = arith.constant dense<0.000000e+00> : vector<64x128xf32>
    %199 = tpu.matmul %196, %198, %cst_132 {dimension_numbers = #tpu.dot_dimension_numbers<[1], [0], [0], [1], [0, 0, 1, 1], [], []>} : vector<64x64xbf16>, vector<64x128xbf16>, vector<64x128xf32> -> vector<64x128xf32>
    %200 = arith.addf %192, %199 : vector<64x128xf32>
    %c24_133 = arith.constant 24 : index
    %c0_134 = arith.constant 0 : index
    %201 = vector.load %arg27[%c24_133, %c0_134] : memref<96x64xf32, #tpu.memory_space<vmem>>, vector<64x64xf32>
    %202 = arith.truncf %201 : vector<64x64xf32> to vector<64x64xbf16>
    %c7_135 = arith.constant 7 : index
    %c0_136 = arith.constant 0 : index
    %c0_137 = arith.constant 0 : index
    %203 = vector.load %arg8[%c7_135, %c0_136, %c0_137] : memref<9x64x128xbf16, #tpu.memory_space<vmem>>, vector<1x64x128xbf16>
    %204 = vector.shape_cast %203 : vector<1x64x128xbf16> to vector<64x128xbf16>
    %cst_138 = arith.constant dense<0.000000e+00> : vector<64x128xf32>
    %205 = tpu.matmul %202, %204, %cst_138 {dimension_numbers = #tpu.dot_dimension_numbers<[1], [0], [0], [1], [0, 0, 1, 1], [], []>} : vector<64x64xbf16>, vector<64x128xbf16>, vector<64x128xf32> -> vector<64x128xf32>
    %206 = arith.addf %200, %205 : vector<64x128xf32>
    %c25_139 = arith.constant 25 : index
    %c0_140 = arith.constant 0 : index
    %207 = vector.load %arg27[%c25_139, %c0_140] : memref<96x64xf32, #tpu.memory_space<vmem>>, vector<64x64xf32>
    %cst_141 = arith.constant 0.000000e+00 : f32
    %208 = vector.broadcast %cst_141 : f32 to vector<64x64xf32>
    %209 = arith.select %147, %207, %208 : vector<64x64xi1>, vector<64x64xf32>
    %210 = arith.truncf %209 : vector<64x64xf32> to vector<64x64xbf16>
    %c8_142 = arith.constant 8 : index
    %c0_143 = arith.constant 0 : index
    %c0_144 = arith.constant 0 : index
    %211 = vector.load %arg8[%c8_142, %c0_143, %c0_144] : memref<9x64x128xbf16, #tpu.memory_space<vmem>>, vector<1x64x128xbf16>
    %212 = vector.shape_cast %211 : vector<1x64x128xbf16> to vector<64x128xbf16>
    %cst_145 = arith.constant dense<0.000000e+00> : vector<64x128xf32>
    %213 = tpu.matmul %210, %212, %cst_145 {dimension_numbers = #tpu.dot_dimension_numbers<[1], [0], [0], [1], [0, 0, 1, 1], [], []>} : vector<64x64xbf16>, vector<64x128xbf16>, vector<64x128xf32> -> vector<64x128xf32>
    %214 = arith.addf %206, %213 : vector<64x128xf32>
    %c0_146 = arith.constant 0 : index
    %c0_147 = arith.constant 0 : index
    %215 = vector.load %arg9[%c0_146, %c0_147] : memref<1x128xf32, #tpu.memory_space<vmem>>, vector<1x128xf32>
    %216 = vector.broadcast %215 : vector<1x128xf32> to vector<64x128xf32>
    %217 = arith.mulf %214, %216 : vector<64x128xf32>
    %c0_148 = arith.constant 0 : index
    %c0_149 = arith.constant 0 : index
    %218 = vector.load %arg10[%c0_148, %c0_149] : memref<1x128xf32, #tpu.memory_space<vmem>>, vector<1x128xf32>
    %219 = vector.broadcast %218 : vector<1x128xf32> to vector<64x128xf32>
    %220 = arith.addf %217, %219 : vector<64x128xf32>
    %cst_150 = arith.constant 0.000000e+00 : f32
    %221 = vector.broadcast %cst_150 : f32 to vector<64x128xf32>
    %222 = arith.maximumf %220, %221 : vector<64x128xf32>
    %223 = vector.shape_cast %222 : vector<64x128xf32> to vector<4x2x8x128xf32>
    %224 = vector.extract_strided_slice %223 {offsets = [0, 0, 0, 0], sizes = [4, 1, 8, 128], strides = [1, 1, 1, 1]} : vector<4x2x8x128xf32> to vector<4x1x8x128xf32>
    %225 = vector.shape_cast %224 : vector<4x1x8x128xf32> to vector<4x8x128xf32>
    %226 = vector.extract_strided_slice %223 {offsets = [0, 1, 0, 0], sizes = [4, 1, 8, 128], strides = [1, 1, 1, 1]} : vector<4x2x8x128xf32> to vector<4x1x8x128xf32>
    %227 = vector.shape_cast %226 : vector<4x1x8x128xf32> to vector<4x8x128xf32>
    %228 = arith.maximumf %225, %227 : vector<4x8x128xf32>
    %229 = vector.shape_cast %228 : vector<4x8x128xf32> to vector<32x128xf32>
    %c0_151 = arith.constant 0 : index
    %c0_152 = arith.constant 0 : index
    %230 = vector.load %arg29[%c0_151, %c0_152] : memref<32x128xf32, #tpu.memory_space<vmem>>, vector<32x128xf32>
    tpu.vector_store %arg29[%c0_151, %c0_152], %229 {strides = array<i32>} : memref<32x128xf32, #tpu.memory_space<vmem>>, vector<32x128xf32>,
    %c0_153 = arith.constant 0 : index
    %c0_154 = arith.constant 0 : index
    %231 = tpu.strided_load %arg29[%c0_153, %c0_154] {strides = array<i32: 2, 1>} : memref<32x128xf32, #tpu.memory_space<vmem>>, vector<16x128xf32>
    %c1_155 = arith.constant 1 : index
    %c0_156 = arith.constant 0 : index
    %232 = tpu.strided_load %arg29[%c1_155, %c0_156] {strides = array<i32: 2, 1>} : memref<32x128xf32, #tpu.memory_space<vmem>>, vector<16x128xf32>
    %233 = arith.maximumf %231, %232 : vector<16x128xf32>
    %cst_157 = arith.constant dense<0.000000e+00> : vector<128xf32>
    %234 = vector.multi_reduction <add>, %233, %cst_157 [0] : vector<16x128xf32> to vector<128xf32>
    %235 = vector.shape_cast %234 : vector<128xf32> to vector<1x128xf32>
    %cst_158 = arith.constant 1.600000e+01 : f32
    %236 = vector.broadcast %cst_158 : f32 to vector<1x128xf32>
    %237 = arith.divf %235, %236 : vector<1x128xf32>
    %238 = arith.truncf %237 : vector<1x128xf32> to vector<1x128xbf16>
    %c0_159 = arith.constant 0 : index
    %c0_160 = arith.constant 0 : index
    %239 = vector.load %arg11[%c0_159, %c0_160] : memref<128x64xbf16, #tpu.memory_space<vmem>>, vector<128x64xbf16>
    %cst_161 = arith.constant dense<0.000000e+00> : vector<1x64xf32>
    %240 = tpu.matmul %238, %239, %cst_161 {dimension_numbers = #tpu.dot_dimension_numbers<[1], [0], [0], [1], [0, 0, 1, 1], [], []>} : vector<1x128xbf16>, vector<128x64xbf16>, vector<1x64xf32> -> vector<1x64xf32>
    %c0_162 = arith.constant 0 : index
    %c0_163 = arith.constant 0 : index
    %241 = vector.load %arg12[%c0_162, %c0_163] : memref<1x64xf32, #tpu.memory_space<vmem>>, vector<1x64xf32>
    %242 = arith.addf %240, %241 : vector<1x64xf32>
    %cst_164 = arith.constant 0.000000e+00 : f32
    %243 = vector.broadcast %cst_164 : f32 to vector<1x64xf32>
    %244 = arith.maximumf %242, %243 : vector<1x64xf32>
    %245 = arith.truncf %244 : vector<1x64xf32> to vector<1x64xbf16>
    %c0_165 = arith.constant 0 : index
    %c0_166 = arith.constant 0 : index
    %246 = vector.load %arg13[%c0_165, %c0_166] : memref<64x128xbf16, #tpu.memory_space<vmem>>, vector<64x128xbf16>
    %cst_167 = arith.constant dense<0.000000e+00> : vector<1x128xf32>
    %247 = tpu.matmul %245, %246, %cst_167 {dimension_numbers = #tpu.dot_dimension_numbers<[1], [0], [0], [1], [0, 0, 1, 1], [], []>} : vector<1x64xbf16>, vector<64x128xbf16>, vector<1x128xf32> -> vector<1x128xf32>
    %c0_168 = arith.constant 0 : index
    %c0_169 = arith.constant 0 : index
    %248 = vector.load %arg14[%c0_168, %c0_169] : memref<1x128xf32, #tpu.memory_space<vmem>>, vector<1x128xf32>
    %249 = arith.addf %247, %248 : vector<1x128xf32>
    %cst_170 = arith.constant 0.000000e+00 : f32
    %250 = vector.broadcast %cst_170 : f32 to vector<1x128xf32>
    %251 = arith.subf %250, %249 : vector<1x128xf32>
    %252 = math.exp %251 : vector<1x128xf32>
    %cst_171 = arith.constant 1.000000e+00 : f32
    %253 = vector.broadcast %cst_171 : f32 to vector<1x128xf32>
    %254 = arith.addf %253, %252 : vector<1x128xf32>
    %cst_172 = arith.constant 1.000000e+00 : f32
    %255 = vector.broadcast %cst_172 : f32 to vector<1x128xf32>
    %256 = arith.divf %255, %254 : vector<1x128xf32>
    %257 = arith.mulf %237, %256 : vector<1x128xf32>
    %258 = arith.truncf %257 : vector<1x128xf32> to vector<1x128xbf16>
    %c0_173 = arith.constant 0 : index
    %c0_174 = arith.constant 0 : index
    %259 = vector.load %arg15[%c0_173, %c0_174] : memref<128x256xbf16, #tpu.memory_space<vmem>>, vector<128x256xbf16>
    %cst_175 = arith.constant dense<0.000000e+00> : vector<1x256xf32>
    %260 = tpu.matmul %258, %259, %cst_175 {dimension_numbers = #tpu.dot_dimension_numbers<[1], [0], [0], [1], [0, 0, 1, 1], [], []>} : vector<1x128xbf16>, vector<128x256xbf16>, vector<1x256xf32> -> vector<1x256xf32>
    %c0_176 = arith.constant 0 : index
    %c0_177 = arith.constant 0 : index
    %261 = vector.load %arg16[%c0_176, %c0_177] : memref<1x256xf32, #tpu.memory_space<vmem>>, vector<1x256xf32>
    %262 = arith.mulf %260, %261 : vector<1x256xf32>
    %c0_178 = arith.constant 0 : index
    %c0_179 = arith.constant 0 : index
    %263 = vector.load %arg17[%c0_178, %c0_179] : memref<1x256xf32, #tpu.memory_space<vmem>>, vector<1x256xf32>
    %264 = arith.addf %262, %263 : vector<1x256xf32>
    %cst_180 = arith.constant 0.000000e+00 : f32
    %265 = vector.broadcast %cst_180 : f32 to vector<1x256xf32>
    %266 = arith.maximumf %264, %265 : vector<1x256xf32>
    %267 = arith.truncf %266 : vector<1x256xf32> to vector<1x256xbf16>
    %c0_181 = arith.constant 0 : index
    %c0_182 = arith.constant 0 : index
    %268 = vector.load %arg18[%c0_181, %c0_182] : memref<256x128xbf16, #tpu.memory_space<vmem>>, vector<256x128xbf16>
    %cst_183 = arith.constant dense<0.000000e+00> : vector<1x128xf32>
    %269 = tpu.matmul %267, %268, %cst_183 {dimension_numbers = #tpu.dot_dimension_numbers<[1], [0], [0], [1], [0, 0, 1, 1], [], []>} : vector<1x256xbf16>, vector<256x128xbf16>, vector<1x128xf32> -> vector<1x128xf32>
    %c0_184 = arith.constant 0 : index
    %c0_185 = arith.constant 0 : index
    %270 = vector.load %arg19[%c0_184, %c0_185] : memref<1x128xf32, #tpu.memory_space<vmem>>, vector<1x128xf32>
    %271 = arith.mulf %269, %270 : vector<1x128xf32>
    %c0_186 = arith.constant 0 : index
    %c0_187 = arith.constant 0 : index
    %272 = vector.load %arg20[%c0_186, %c0_187] : memref<1x128xf32, #tpu.memory_space<vmem>>, vector<1x128xf32>
    %273 = arith.addf %271, %272 : vector<1x128xf32>
    %cst_188 = arith.constant 0.000000e+00 : f32
    %274 = vector.broadcast %cst_188 : f32 to vector<1x128xf32>
    %275 = arith.maximumf %273, %274 : vector<1x128xf32>
    %276 = arith.truncf %275 : vector<1x128xf32> to vector<1x128xbf16>
    %c0_189 = arith.constant 0 : index
    %c0_190 = arith.constant 0 : index
    %277 = vector.load %arg21[%c0_189, %c0_190] : memref<128x64xbf16, #tpu.memory_space<vmem>>, vector<128x64xbf16>
    %cst_191 = arith.constant dense<0.000000e+00> : vector<1x64xf32>
    %278 = tpu.matmul %276, %277, %cst_191 {dimension_numbers = #tpu.dot_dimension_numbers<[1], [0], [0], [1], [0, 0, 1, 1], [], []>} : vector<1x128xbf16>, vector<128x64xbf16>, vector<1x64xf32> -> vector<1x64xf32>
    %c0_192 = arith.constant 0 : index
    %c0_193 = arith.constant 0 : index
    %279 = vector.load %arg22[%c0_192, %c0_193] : memref<1x64xf32, #tpu.memory_space<vmem>>, vector<1x64xf32>
    %280 = arith.addf %278, %279 : vector<1x64xf32>
    %cst_194 = arith.constant 0.000000e+00 : f32
    %281 = vector.broadcast %cst_194 : f32 to vector<1x64xf32>
    %282 = arith.maximumf %280, %281 : vector<1x64xf32>
    %c0_195 = arith.constant 0 : index
    %c0_196 = arith.constant 0 : index
    %283 = vector.load %arg23[%c0_195, %c0_196] : memref<1x64xf32, #tpu.memory_space<vmem>>, vector<1x64xf32>
    %284 = arith.mulf %282, %283 : vector<1x64xf32>
    %cst_197 = arith.constant dense<0.000000e+00> : vector<1xf32>
    %285 = vector.multi_reduction <add>, %284, %cst_197 [1] : vector<1x64xf32> to vector<1xf32>
    %286 = vector.shape_cast %285 : vector<1xf32> to vector<1x1xf32>
    %c0_198 = arith.constant 0 : index
    %c0_199 = arith.constant 0 : index
    %287 = vector.load %arg24[%c0_198, %c0_199] : memref<1x1xf32, #tpu.memory_space<vmem>>, vector<1x1xf32>
    %288 = arith.addf %286, %287 : vector<1x1xf32>
    %289 = vector.shape_cast %288 : vector<1x1xf32> to vector<1x1x1xf32>
    %c0_200 = arith.constant 0 : index
    %c0_201 = arith.constant 0 : index
    %c0_202 = arith.constant 0 : index
    %290 = vector.load %arg25[%c0_200, %c0_201, %c0_202] : memref<1x1x1xf32, #tpu.memory_space<vmem>>, vector<1x1x1xf32>
    tpu.vector_store %arg25[%c0_200, %c0_201, %c0_202], %289 {strides = array<i32>} : memref<1x1x1xf32, #tpu.memory_space<vmem>>, vector<1x1x1xf32>,
    return
  }
  func.func @transform_0(%arg0: i32) -> (i32, i32, i32) {
    %c0_i32 = arith.constant 0 : i32
    %c0_i32_0 = arith.constant 0 : i32
    %c0_i32_1 = arith.constant 0 : i32
    return %arg0, %c0_i32, %c0_i32_0 : i32, i32, i32
  }
  func.func @transform_1(%arg0: i32) -> (i32, i32) {
    %c0_i32 = arith.constant 0 : i32
    %c0_i32_0 = arith.constant 0 : i32
    %c0_i32_1 = arith.constant 0 : i32
    return %c0_i32, %c0_i32_0 : i32, i32
  }
  func.func @transform_2(%arg0: i32) -> (i32, i32) {
    %c0_i32 = arith.constant 0 : i32
    %c0_i32_0 = arith.constant 0 : i32
    %c0_i32_1 = arith.constant 0 : i32
    return %c0_i32, %c0_i32_0 : i32, i32
  }
  func.func @transform_3(%arg0: i32) -> (i32, i32) {
    %c0_i32 = arith.constant 0 : i32
    %c0_i32_0 = arith.constant 0 : i32
    %c0_i32_1 = arith.constant 0 : i32
    return %c0_i32, %c0_i32_0 : i32, i32
  }
  func.func @transform_4(%arg0: i32) -> (i32, i32, i32) {
    %c0_i32 = arith.constant 0 : i32
    %c0_i32_0 = arith.constant 0 : i32
    %c0_i32_1 = arith.constant 0 : i32
    %c0_i32_2 = arith.constant 0 : i32
    return %c0_i32, %c0_i32_0, %c0_i32_1 : i32, i32, i32
  }
  func.func @transform_5(%arg0: i32) -> (i32, i32) {
    %c0_i32 = arith.constant 0 : i32
    %c0_i32_0 = arith.constant 0 : i32
    %c0_i32_1 = arith.constant 0 : i32
    return %c0_i32, %c0_i32_0 : i32, i32
  }
  func.func @transform_6(%arg0: i32) -> (i32, i32) {
    %c0_i32 = arith.constant 0 : i32
    %c0_i32_0 = arith.constant 0 : i32
    %c0_i32_1 = arith.constant 0 : i32
    return %c0_i32, %c0_i32_0 : i32, i32
  }
  func.func @transform_7(%arg0: i32) -> (i32, i32, i32) {
    %c0_i32 = arith.constant 0 : i32
    %c0_i32_0 = arith.constant 0 : i32
    %c0_i32_1 = arith.constant 0 : i32
    %c0_i32_2 = arith.constant 0 : i32
    return %c0_i32, %c0_i32_0, %c0_i32_1 : i32, i32, i32
  }
  func.func @transform_8(%arg0: i32) -> (i32, i32) {
    %c0_i32 = arith.constant 0 : i32
    %c0_i32_0 = arith.constant 0 : i32
    %c0_i32_1 = arith.constant 0 : i32
    return %c0_i32, %c0_i32_0 : i32, i32
  }
  func.func @transform_9(%arg0: i32) -> (i32, i32) {
    %c0_i32 = arith.constant 0 : i32
    %c0_i32_0 = arith.constant 0 : i32
    %c0_i32_1 = arith.constant 0 : i32
    return %c0_i32, %c0_i32_0 : i32, i32
  }
  func.func @transform_10(%arg0: i32) -> (i32, i32) {
    %c0_i32 = arith.constant 0 : i32
    %c0_i32_0 = arith.constant 0 : i32
    %c0_i32_1 = arith.constant 0 : i32
    return %c0_i32, %c0_i32_0 : i32, i32
  }
  func.func @transform_11(%arg0: i32) -> (i32, i32) {
    %c0_i32 = arith.constant 0 : i32
    %c0_i32_0 = arith.constant 0 : i32
    %c0_i32_1 = arith.constant 0 : i32
    return %c0_i32, %c0_i32_0 : i32, i32
  }
  func.func @transform_12(%arg0: i32) -> (i32, i32) {
    %c0_i32 = arith.constant 0 : i32
    %c0_i32_0 = arith.constant 0 : i32
    %c0_i32_1 = arith.constant 0 : i32
    return %c0_i32, %c0_i32_0 : i32, i32
  }
  func.func @transform_13(%arg0: i32) -> (i32, i32) {
    %c0_i32 = arith.constant 0 : i32
    %c0_i32_0 = arith.constant 0 : i32
    %c0_i32_1 = arith.constant 0 : i32
    return %c0_i32, %c0_i32_0 : i32, i32
  }
  func.func @transform_14(%arg0: i32) -> (i32, i32) {
    %c0_i32 = arith.constant 0 : i32
    %c0_i32_0 = arith.constant 0 : i32
    %c0_i32_1 = arith.constant 0 : i32
    return %c0_i32, %c0_i32_0 : i32, i32
  }
  func.func @transform_15(%arg0: i32) -> (i32, i32) {
    %c0_i32 = arith.constant 0 : i32
    %c0_i32_0 = arith.constant 0 : i32
    %c0_i32_1 = arith.constant 0 : i32
    return %c0_i32, %c0_i32_0 : i32, i32
  }
  func.func @transform_16(%arg0: i32) -> (i32, i32) {
    %c0_i32 = arith.constant 0 : i32
    %c0_i32_0 = arith.constant 0 : i32
    %c0_i32_1 = arith.constant 0 : i32
    return %c0_i32, %c0_i32_0 : i32, i32
  }
  func.func @transform_17(%arg0: i32) -> (i32, i32) {
    %c0_i32 = arith.constant 0 : i32
    %c0_i32_0 = arith.constant 0 : i32
    %c0_i32_1 = arith.constant 0 : i32
    return %c0_i32, %c0_i32_0 : i32, i32
  }
  func.func @transform_18(%arg0: i32) -> (i32, i32) {
    %c0_i32 = arith.constant 0 : i32
    %c0_i32_0 = arith.constant 0 : i32
    %c0_i32_1 = arith.constant 0 : i32
    return %c0_i32, %c0_i32_0 : i32, i32
  }
  func.func @transform_19(%arg0: i32) -> (i32, i32) {
    %c0_i32 = arith.constant 0 : i32
    %c0_i32_0 = arith.constant 0 : i32
    %c0_i32_1 = arith.constant 0 : i32
    return %c0_i32, %c0_i32_0 : i32, i32
  }
  func.func @transform_20(%arg0: i32) -> (i32, i32) {
    %c0_i32 = arith.constant 0 : i32
    %c0_i32_0 = arith.constant 0 : i32
    %c0_i32_1 = arith.constant 0 : i32
    return %c0_i32, %c0_i32_0 : i32, i32
  }
  func.func @transform_21(%arg0: i32) -> (i32, i32) {
    %c0_i32 = arith.constant 0 : i32
    %c0_i32_0 = arith.constant 0 : i32
    %c0_i32_1 = arith.constant 0 : i32
    return %c0_i32, %c0_i32_0 : i32, i32
  }
  func.func @transform_22(%arg0: i32) -> (i32, i32) {
    %c0_i32 = arith.constant 0 : i32
    %c0_i32_0 = arith.constant 0 : i32
    %c0_i32_1 = arith.constant 0 : i32
    return %c0_i32, %c0_i32_0 : i32, i32
  }
  func.func @transform_23(%arg0: i32) -> (i32, i32) {
    %c0_i32 = arith.constant 0 : i32
    %c0_i32_0 = arith.constant 0 : i32
    %c0_i32_1 = arith.constant 0 : i32
    return %c0_i32, %c0_i32_0 : i32, i32
  }
  func.func @transform_24(%arg0: i32) -> (i32, i32, i32) {
    %c0_i32 = arith.constant 0 : i32
    %c0_i32_0 = arith.constant 0 : i32
    %c0_i32_1 = arith.constant 0 : i32
    return %arg0, %c0_i32, %c0_i32_0 : i32, i32, i32
  }
}

</mosaic_0001>

<llo_original>
// kernel: improved_language_detection_cnn.1
$region0: #{improved_language_detection_cnn.1}
  #allocation0 [shape = 'u32[]', space=smem, size = 0x4, offset = 0x4, fixed_abs, tag = 'smem constant byte address 0x4 - core index']
  #allocation1 [shape = 'u32[144,128]{1,0:T(1,128)}', space=vmem, size = 0x12000, scoped, tag = 'internal scratch']
  #allocation2 [shape = 'f32[304,32]{1,0:T(8,128)}', space=vmem, size = 0x26000, scoped, tag = 'scratch operand']
  #allocation3 [shape = 'f32[96,64]{1,0:T(8,128)}', space=vmem, size = 0xc000, scoped, tag = 'scratch operand']
  #allocation4 [shape = 'f32[128,64]{1,0:T(8,128)}', space=vmem, size = 0x10000, scoped, tag = 'scratch operand']
  #allocation5 [shape = 'f32[32,128]{1,0:T(8,128)}', space=vmem, size = 0x4000, scoped, tag = 'scratch operand']
  #allocation6 [shape = 'f32[1,1]{1,0:T(1,128)S(1)}', space=vmem, size = 0x200, scoped, tag = 'scoped memory for improved_language_detection_cnn.1']
  %s0 = inlined_call_operand.vmem [shape: f32[2,256,9], index: 0, kind: input, shape index: {}]
  %s1 = inlined_call_operand.vmem [shape: f32[9,32], index: 1, kind: input, shape index: {}]
  %s2 = inlined_call_operand.vmem [shape: f32[1,32], index: 2, kind: input, shape index: {}]
  %s3 = inlined_call_operand.vmem [shape: f32[1,32], index: 3, kind: input, shape index: {}]
  %s4 = inlined_call_operand.vmem [shape: bf16[9,32,64], index: 4, kind: input, shape index: {}]
  %s5 = inlined_call_operand.vmem [shape: f32[1,64], index: 5, kind: input, shape index: {}]
  %s6 = inlined_call_operand.vmem [shape: f32[1,64], index: 6, kind: input, shape index: {}]
  %s7 = inlined_call_operand.vmem [shape: bf16[9,64,128], index: 7, kind: input, shape index: {}]
  %s8 = inlined_call_operand.vmem [shape: f32[1,128], index: 8, kind: input, shape index: {}]
  %s9 = inlined_call_operand.vmem [shape: f32[1,128], index: 9, kind: input, shape index: {}]
  %s10 = inlined_call_operand.vmem [shape: bf16[128,64], index: 10, kind: input, shape index: {}]
  %s11 = inlined_call_operand.vmem [shape: f32[1,64], index: 11, kind: input, shape index: {}]
  %s12 = inlined_call_operand.vmem [shape: bf16[64,128], index: 12, kind: input, shape index: {}]
  %s13 = inlined_call_operand.vmem [shape: f32[1,128], index: 13, kind: input, shape index: {}]
  %s14 = inlined_call_operand.vmem [shape: bf16[128,256], index: 14, kind: input, shape index: {}]
  %s15 = inlined_call_operand.vmem [shape: f32[1,256], index: 15, kind: input, shape index: {}]
  %s16 = inlined_call_operand.vmem [shape: f32[1,256], index: 16, kind: input, shape index: {}]
  %s17 = inlined_call_operand.vmem [shape: bf16[256,128], index: 17, kind: input, shape index: {}]
  %s18 = inlined_call_operand.vmem [shape: f32[1,128], index: 18, kind: input, shape index: {}]
  %s19 = inlined_call_operand.vmem [shape: f32[1,128], index: 19, kind: input, shape index: {}]
  %s20 = inlined_call_operand.vmem [shape: bf16[128,64], index: 20, kind: input, shape index: {}]
  %s21 = inlined_call_operand.vmem [shape: f32[1,64], index: 21, kind: input, shape index: {}]
  %s22 = inlined_call_operand.vmem [shape: f32[1,64], index: 22, kind: input, shape index: {}]
  %s23 = inlined_call_operand.<no memory space> [shape: f32[1,1], index: 23, kind: input, shape index: {}]
  %s24 = inlined_call_operand.vmem [shape: f32[2,1,1], index: 24, kind: output, shape index: {}]
  %s25 = sld [smem:[#allocation0]]
  $region129: #{improved_language_detection_cnn.1} parent=0
    _
  %s27 = ssub.s32 1, %s25
  %s28 = scalar_select 0, %s27, %s25
  %v29 = vstv %s23
  %30 = vst [vmem:[#allocation6] sm:$0x1] %v29
  loop: start=0, step=1, limit=4
  $region2: #{improved_language_detection_cnn.1} parent=0 // loop_pre_header
    _
  $region3: #{improved_language_detection_cnn.1} parent=0 // loop_header
    %s32 = sphi 0, %s36
    %p33 = scmp.ge.s32.totalorder %s32, 4
    %s42 = sphi 0, %s44
    %s45 = sphi 0, %s42
    %s46 = sphi 0, %s45
    %s62 = sphi 0, %s46
    %s66 = sphi 0, %s66
    %s68 = sphi 0, %s66
    %s69 = sphi 0, %s68
    %s83 = sphi 0, %s69
    %s87 = sphi 0, %s87
    %s89 = sphi 0, %s87
    %s90 = sphi 0, %s89
    %s104 = sphi 0, %s90
    %s108 = sphi 0, %s108
    %s110 = sphi 0, %s108
    %s111 = sphi 0, %s110
    %s125 = sphi 0, %s111
    %s129 = sphi 0, %s129
    %s131 = sphi 0, %s129
    %s132 = sphi 0, %s131
    %s146 = sphi 0, %s132
    %s150 = sphi 0, %s150
    %s152 = sphi 0, %s150
    %s153 = sphi 0, %s152
    %s167 = sphi 0, %s153
    %s171 = sphi 0, %s171
    %s173 = sphi 0, %s171
    %s174 = sphi 0, %s173
    %s188 = sphi 0, %s174
    %s192 = sphi 0, %s192
    %s194 = sphi 0, %s192
    %s195 = sphi 0, %s194
    %s209 = sphi 0, %s195
    %s213 = sphi 0, %s213
    %s215 = sphi 0, %s213
    %s216 = sphi 0, %s215
    %s230 = sphi 0, %s216
    %s234 = sphi 0, %s234
    %s236 = sphi 0, %s234
    %s237 = sphi 0, %s236
    %s251 = sphi 0, %s237
    %s255 = sphi 0, %s255
    %s257 = sphi 0, %s255
    %s258 = sphi 0, %s257
    %s272 = sphi 0, %s258
    %s276 = sphi 0, %s276
    %s278 = sphi 0, %s276
    %s279 = sphi 0, %s278
    %s293 = sphi 0, %s279
    %s297 = sphi 0, %s297
    %s299 = sphi 0, %s297
    %s300 = sphi 0, %s299
    %s314 = sphi 0, %s300
    %s318 = sphi 0, %s318
    %s320 = sphi 0, %s318
    %s321 = sphi 0, %s320
    %s335 = sphi 0, %s321
    %s339 = sphi 0, %s339
    %s341 = sphi 0, %s339
    %s342 = sphi 0, %s341
    %s356 = sphi 0, %s342
    %s360 = sphi 0, %s360
    %s362 = sphi 0, %s360
    %s363 = sphi 0, %s362
    %s377 = sphi 0, %s363
    %s381 = sphi 0, %s381
    %s383 = sphi 0, %s381
    %s384 = sphi 0, %s383
    %s398 = sphi 0, %s384
    %s402 = sphi 0, %s402
    %s404 = sphi 0, %s402
    %s405 = sphi 0, %s404
    %s419 = sphi 0, %s405
    %s423 = sphi 0, %s423
    %s425 = sphi 0, %s423
    %s426 = sphi 0, %s425
    %s440 = sphi 0, %s426
    %s444 = sphi 0, %s444
    %s446 = sphi 0, %s444
    %s447 = sphi 0, %s446
    %s461 = sphi 0, %s447
    %s465 = sphi 0, %s465
    %s467 = sphi 0, %s465
    %s468 = sphi 0, %s467
    %s482 = sphi 0, %s468
    %s486 = sphi 0, %s486
    %s488 = sphi 0, %s486
    %s489 = sphi 0, %s488
    %s503 = sphi 0, %s489
    %s507 = sphi 0, %s507
    %s509 = sphi 0, %s507
    %s510 = sphi 0, %s509
    %s524 = sphi 0, %s510
    %s528 = sphi 0, %s528
    %s530 = sphi 0, %s528
    %s531 = sphi 0, %s530
    %s545 = sphi 0, %s531
    %s551 = sphi 0, %s553
    %s554 = sphi 0, %s551
    %s555 = sphi 0, %s554
    %s571 = sphi 0, %s555
  $region4: #{improved_language_detection_cnn.1} parent=0 // loop_header_branch
    %35 = sbr.rel (%p33) target = $region8
  $region5: #{improved_language_detection_cnn.1} parent=0 // loop_body
    %s37 = ssub.s32 %s32, 1
    %s38 = ssub.s32 %s32, 2
    %s39 = sadd.s32 %s32, 1
    %s40 = ssub.s32 %s32, %s39
    %p41 = scmp.eq.s32.totalorder %s40, 0
    %s43 = sadd.s32 %s42, 1
    %s44 = scalar_select %p41, %s42, %s43
    %p47 = pneg %p41
    %p48 = scmp.eq.s32.totalorder %s32, 1
    %p49 = por %p47, %p48
    %p50 = scmp.ne.s32.totalorder %s42, %s45
    %p51 = scmp.eq.s32.totalorder %s32, 0
    %p52 = por %p50, %p51
    %p53 = scmp.ne.s32.totalorder %s42, %s45
    %p54 = scmp.eq.s32.totalorder %s37, 1
    %p55 = por %p53, %p54
    %p56 = scmp.ne.s32.totalorder %s45, %s46
    %p57 = scmp.eq.s32.totalorder %s37, 0
    %p58 = por %p56, %p57
    %p59 = scmp.ne.s32.totalorder %s45, %s46
    %p60 = scmp.eq.s32.totalorder %s38, 1
    %p61 = por %p59, %p60
    %p63 = scmp.ne.s32.totalorder %s46, %s62
    %p64 = scmp.eq.s32.totalorder %s38, 0
    %p65 = por %p63, %p64
    %s67 = sadd.s32 %s66, 1
    %p70 = scmp.eq.s32.totalorder %s32, 1
    %p71 = scmp.ne.s32.totalorder %s66, %s68
    %p72 = scmp.eq.s32.totalorder %s32, 0
    %p73 = por %p71, %p72
    %p74 = scmp.ne.s32.totalorder %s66, %s68
    %p75 = scmp.eq.s32.totalorder %s37, 1
    %p76 = por %p74, %p75
    %p77 = scmp.ne.s32.totalorder %s68, %s69
    %p78 = scmp.eq.s32.totalorder %s37, 0
    %p79 = por %p77, %p78
    %p80 = scmp.ne.s32.totalorder %s68, %s69
    %p81 = scmp.eq.s32.totalorder %s38, 1
    %p82 = por %p80, %p81
    %p84 = scmp.ne.s32.totalorder %s69, %s83
    %p85 = scmp.eq.s32.totalorder %s38, 0
    %p86 = por %p84, %p85
    %s88 = sadd.s32 %s87, 1
    %p91 = scmp.eq.s32.totalorder %s32, 1
    %p92 = scmp.ne.s32.totalorder %s87, %s89
    %p93 = scmp.eq.s32.totalorder %s32, 0
    %p94 = por %p92, %p93
    %p95 = scmp.ne.s32.totalorder %s87, %s89
    %p96 = scmp.eq.s32.totalorder %s37, 1
    %p97 = por %p95, %p96
    %p98 = scmp.ne.s32.totalorder %s89, %s90
    %p99 = scmp.eq.s32.totalorder %s37, 0
    %p100 = por %p98, %p99
    %p101 = scmp.ne.s32.totalorder %s89, %s90
    %p102 = scmp.eq.s32.totalorder %s38, 1
    %p103 = por %p101, %p102
    %p105 = scmp.ne.s32.totalorder %s90, %s104
    %p106 = scmp.eq.s32.totalorder %s38, 0
    %p107 = por %p105, %p106
    %s109 = sadd.s32 %s108, 1
    %p112 = scmp.eq.s32.totalorder %s32, 1
    %p113 = scmp.ne.s32.totalorder %s108, %s110
    %p114 = scmp.eq.s32.totalorder %s32, 0
    %p115 = por %p113, %p114
    %p116 = scmp.ne.s32.totalorder %s108, %s110
    %p117 = scmp.eq.s32.totalorder %s37, 1
    %p118 = por %p116, %p117
    %p119 = scmp.ne.s32.totalorder %s110, %s111
    %p120 = scmp.eq.s32.totalorder %s37, 0
    %p121 = por %p119, %p120
    %p122 = scmp.ne.s32.totalorder %s110, %s111
    %p123 = scmp.eq.s32.totalorder %s38, 1
    %p124 = por %p122, %p123
    %p126 = scmp.ne.s32.totalorder %s111, %s125
    %p127 = scmp.eq.s32.totalorder %s38, 0
    %p128 = por %p126, %p127
    %s130 = sadd.s32 %s129, 1
    %p133 = scmp.eq.s32.totalorder %s32, 1
    %p134 = scmp.ne.s32.totalorder %s129, %s131
    %p135 = scmp.eq.s32.totalorder %s32, 0
    %p136 = por %p134, %p135
    %p137 = scmp.ne.s32.totalorder %s129, %s131
    %p138 = scmp.eq.s32.totalorder %s37, 1
    %p139 = por %p137, %p138
    %p140 = scmp.ne.s32.totalorder %s131, %s132
    %p141 = scmp.eq.s32.totalorder %s37, 0
    %p142 = por %p140, %p141
    %p143 = scmp.ne.s32.totalorder %s131, %s132
    %p144 = scmp.eq.s32.totalorder %s38, 1
    %p145 = por %p143, %p144
    %p147 = scmp.ne.s32.totalorder %s132, %s146
    %p148 = scmp.eq.s32.totalorder %s38, 0
    %p149 = por %p147, %p148
    %s151 = sadd.s32 %s150, 1
    %p154 = scmp.eq.s32.totalorder %s32, 1
    %p155 = scmp.ne.s32.totalorder %s150, %s152
    %p156 = scmp.eq.s32.totalorder %s32, 0
    %p157 = por %p155, %p156
    %p158 = scmp.ne.s32.totalorder %s150, %s152
    %p159 = scmp.eq.s32.totalorder %s37, 1
    %p160 = por %p158, %p159
    %p161 = scmp.ne.s32.totalorder %s152, %s153
    %p162 = scmp.eq.s32.totalorder %s37, 0
    %p163 = por %p161, %p162
    %p164 = scmp.ne.s32.totalorder %s152, %s153
    %p165 = scmp.eq.s32.totalorder %s38, 1
    %p166 = por %p164, %p165
    %p168 = scmp.ne.s32.totalorder %s153, %s167
    %p169 = scmp.eq.s32.totalorder %s38, 0
    %p170 = por %p168, %p169
    %s172 = sadd.s32 %s171, 1
    %p175 = scmp.eq.s32.totalorder %s32, 1
    %p176 = scmp.ne.s32.totalorder %s171, %s173
    %p177 = scmp.eq.s32.totalorder %s32, 0
    %p178 = por %p176, %p177
    %p179 = scmp.ne.s32.totalorder %s171, %s173
    %p180 = scmp.eq.s32.totalorder %s37, 1
    %p181 = por %p179, %p180
    %p182 = scmp.ne.s32.totalorder %s173, %s174
    %p183 = scmp.eq.s32.totalorder %s37, 0
    %p184 = por %p182, %p183
    %p185 = scmp.ne.s32.totalorder %s173, %s174
    %p186 = scmp.eq.s32.totalorder %s38, 1
    %p187 = por %p185, %p186
    %p189 = scmp.ne.s32.totalorder %s174, %s188
    %p190 = scmp.eq.s32.totalorder %s38, 0
    %p191 = por %p189, %p190
    %s193 = sadd.s32 %s192, 1
    %p196 = scmp.eq.s32.totalorder %s32, 1
    %p197 = scmp.ne.s32.totalorder %s192, %s194
    %p198 = scmp.eq.s32.totalorder %s32, 0
    %p199 = por %p197, %p198
    %p200 = scmp.ne.s32.totalorder %s192, %s194
    %p201 = scmp.eq.s32.totalorder %s37, 1
    %p202 = por %p200, %p201
    %p203 = scmp.ne.s32.totalorder %s194, %s195
    %p204 = scmp.eq.s32.totalorder %s37, 0
    %p205 = por %p203, %p204
    %p206 = scmp.ne.s32.totalorder %s194, %s195
    %p207 = scmp.eq.s32.totalorder %s38, 1
    %p208 = por %p206, %p207
    %p210 = scmp.ne.s32.totalorder %s195, %s209
    %p211 = scmp.eq.s32.totalorder %s38, 0
    %p212 = por %p210, %p211
    %s214 = sadd.s32 %s213, 1
    %p217 = scmp.eq.s32.totalorder %s32, 1
    %p218 = scmp.ne.s32.totalorder %s213, %s215
    %p219 = scmp.eq.s32.totalorder %s32, 0
    %p220 = por %p218, %p219
    %p221 = scmp.ne.s32.totalorder %s213, %s215
    %p222 = scmp.eq.s32.totalorder %s37, 1
    %p223 = por %p221, %p222
    %p224 = scmp.ne.s32.totalorder %s215, %s216
    %p225 = scmp.eq.s32.totalorder %s37, 0
    %p226 = por %p224, %p225
    %p227 = scmp.ne.s32.totalorder %s215, %s216
    %p228 = scmp.eq.s32.totalorder %s38, 1
    %p229 = por %p227, %p228
    %p231 = scmp.ne.s32.totalorder %s216, %s230
    %p232 = scmp.eq.s32.totalorder %s38, 0
    %p233 = por %p231, %p232
    %s235 = sadd.s32 %s234, 1
    %p238 = scmp.eq.s32.totalorder %s32, 1
    %p239 = scmp.ne.s32.totalorder %s234, %s236
    %p240 = scmp.eq.s32.totalorder %s32, 0
    %p241 = por %p239, %p240
    %p242 = scmp.ne.s32.totalorder %s234, %s236
    %p243 = scmp.eq.s32.totalorder %s37, 1
    %p244 = por %p242, %p243
    %p245 = scmp.ne.s32.totalorder %s236, %s237
    %p246 = scmp.eq.s32.totalorder %s37, 0
    %p247 = por %p245, %p246
    %p248 = scmp.ne.s32.totalorder %s236, %s237
    %p249 = scmp.eq.s32.totalorder %s38, 1
    %p250 = por %p248, %p249
    %p252 = scmp.ne.s32.totalorder %s237, %s251
    %p253 = scmp.eq.s32.totalorder %s38, 0
    %p254 = por %p252, %p253
    %s256 = sadd.s32 %s255, 1
    %p259 = scmp.eq.s32.totalorder %s32, 1
    %p260 = scmp.ne.s32.totalorder %s255, %s257
    %p261 = scmp.eq.s32.totalorder %s32, 0
    %p262 = por %p260, %p261
    %p263 = scmp.ne.s32.totalorder %s255, %s257
    %p264 = scmp.eq.s32.totalorder %s37, 1
    %p265 = por %p263, %p264
    %p266 = scmp.ne.s32.totalorder %s257, %s258
    %p267 = scmp.eq.s32.totalorder %s37, 0
    %p268 = por %p266, %p267
    %p269 = scmp.ne.s32.totalorder %s257, %s258
    %p270 = scmp.eq.s32.totalorder %s38, 1
    %p271 = por %p269, %p270
    %p273 = scmp.ne.s32.totalorder %s258, %s272
    %p274 = scmp.eq.s32.totalorder %s38, 0
    %p275 = por %p273, %p274
    %s277 = sadd.s32 %s276, 1
    %p280 = scmp.eq.s32.totalorder %s32, 1
    %p281 = scmp.ne.s32.totalorder %s276, %s278
    %p282 = scmp.eq.s32.totalorder %s32, 0
    %p283 = por %p281, %p282
    %p284 = scmp.ne.s32.totalorder %s276, %s278
    %p285 = scmp.eq.s32.totalorder %s37, 1
    %p286 = por %p284, %p285
    %p287 = scmp.ne.s32.totalorder %s278, %s279
    %p288 = scmp.eq.s32.totalorder %s37, 0
    %p289 = por %p287, %p288
    %p290 = scmp.ne.s32.totalorder %s278, %s279
    %p291 = scmp.eq.s32.totalorder %s38, 1
    %p292 = por %p290, %p291
    %p294 = scmp.ne.s32.totalorder %s279, %s293
    %p295 = scmp.eq.s32.totalorder %s38, 0
    %p296 = por %p294, %p295
    %s298 = sadd.s32 %s297, 1
    %p301 = scmp.eq.s32.totalorder %s32, 1
    %p302 = scmp.ne.s32.totalorder %s297, %s299
    %p303 = scmp.eq.s32.totalorder %s32, 0
    %p304 = por %p302, %p303
    %p305 = scmp.ne.s32.totalorder %s297, %s299
    %p306 = scmp.eq.s32.totalorder %s37, 1
    %p307 = por %p305, %p306
    %p308 = scmp.ne.s32.totalorder %s299, %s300
    %p309 = scmp.eq.s32.totalorder %s37, 0
    %p310 = por %p308, %p309
    %p311 = scmp.ne.s32.totalorder %s299, %s300
    %p312 = scmp.eq.s32.totalorder %s38, 1
    %p313 = por %p311, %p312
    %p315 = scmp.ne.s32.totalorder %s300, %s314
    %p316 = scmp.eq.s32.totalorder %s38, 0
    %p317 = por %p315, %p316
    %s319 = sadd.s32 %s318, 1
    %p322 = scmp.eq.s32.totalorder %s32, 1
    %p323 = scmp.ne.s32.totalorder %s318, %s320
    %p324 = scmp.eq.s32.totalorder %s32, 0
    %p325 = por %p323, %p324
    %p326 = scmp.ne.s32.totalorder %s318, %s320
    %p327 = scmp.eq.s32.totalorder %s37, 1
    %p328 = por %p326, %p327
    %p329 = scmp.ne.s32.totalorder %s320, %s321
    %p330 = scmp.eq.s32.totalorder %s37, 0
    %p331 = por %p329, %p330
    %p332 = scmp.ne.s32.totalorder %s320, %s321
    %p333 = scmp.eq.s32.totalorder %s38, 1
    %p334 = por %p332, %p333
    %p336 = scmp.ne.s32.totalorder %s321, %s335
    %p337 = scmp.eq.s32.totalorder %s38, 0
    %p338 = por %p336, %p337
    %s340 = sadd.s32 %s339, 1
    %p343 = scmp.eq.s32.totalorder %s32, 1
    %p344 = scmp.ne.s32.totalorder %s339, %s341
    %p345 = scmp.eq.s32.totalorder %s32, 0
    %p346 = por %p344, %p345
    %p347 = scmp.ne.s32.totalorder %s339, %s341
    %p348 = scmp.eq.s32.totalorder %s37, 1
    %p349 = por %p347, %p348
    %p350 = scmp.ne.s32.totalorder %s341, %s342
    %p351 = scmp.eq.s32.totalorder %s37, 0
    %p352 = por %p350, %p351
    %p353 = scmp.ne.s32.totalorder %s341, %s342
    %p354 = scmp.eq.s32.totalorder %s38, 1
    %p355 = por %p353, %p354
    %p357 = scmp.ne.s32.totalorder %s342, %s356
    %p358 = scmp.eq.s32.totalorder %s38, 0
    %p359 = por %p357, %p358
    %s361 = sadd.s32 %s360, 1
    %p364 = scmp.eq.s32.totalorder %s32, 1
    %p365 = scmp.ne.s32.totalorder %s360, %s362
    %p366 = scmp.eq.s32.totalorder %s32, 0
    %p367 = por %p365, %p366
    %p368 = scmp.ne.s32.totalorder %s360, %s362
    %p369 = scmp.eq.s32.totalorder %s37, 1
    %p370 = por %p368, %p369
    %p371 = scmp.ne.s32.totalorder %s362, %s363
    %p372 = scmp.eq.s32.totalorder %s37, 0
    %p373 = por %p371, %p372
    %p374 = scmp.ne.s32.totalorder %s362, %s363
    %p375 = scmp.eq.s32.totalorder %s38, 1
    %p376 = por %p374, %p375
    %p378 = scmp.ne.s32.totalorder %s363, %s377
    %p379 = scmp.eq.s32.totalorder %s38, 0
    %p380 = por %p378, %p379
    %s382 = sadd.s32 %s381, 1
    %p385 = scmp.eq.s32.totalorder %s32, 1
    %p386 = scmp.ne.s32.totalorder %s381, %s383
    %p387 = scmp.eq.s32.totalorder %s32, 0
    %p388 = por %p386, %p387
    %p389 = scmp.ne.s32.totalorder %s381, %s383
    %p390 = scmp.eq.s32.totalorder %s37, 1
    %p391 = por %p389, %p390
    %p392 = scmp.ne.s32.totalorder %s383, %s384
    %p393 = scmp.eq.s32.totalorder %s37, 0
    %p394 = por %p392, %p393
    %p395 = scmp.ne.s32.totalorder %s383, %s384
    %p396 = scmp.eq.s32.totalorder %s38, 1
    %p397 = por %p395, %p396
    %p399 = scmp.ne.s32.totalorder %s384, %s398
    %p400 = scmp.eq.s32.totalorder %s38, 0
    %p401 = por %p399, %p400
    %s403 = sadd.s32 %s402, 1
    %p406 = scmp.eq.s32.totalorder %s32, 1
    %p407 = scmp.ne.s32.totalorder %s402, %s404
    %p408 = scmp.eq.s32.totalorder %s32, 0
    %p409 = por %p407, %p408
    %p410 = scmp.ne.s32.totalorder %s402, %s404
    %p411 = scmp.eq.s32.totalorder %s37, 1
    %p412 = por %p410, %p411
    %p413 = scmp.ne.s32.totalorder %s404, %s405
    %p414 = scmp.eq.s32.totalorder %s37, 0
    %p415 = por %p413, %p414
    %p416 = scmp.ne.s32.totalorder %s404, %s405
    %p417 = scmp.eq.s32.totalorder %s38, 1
    %p418 = por %p416, %p417
    %p420 = scmp.ne.s32.totalorder %s405, %s419
    %p421 = scmp.eq.s32.totalorder %s38, 0
    %p422 = por %p420, %p421
    %s424 = sadd.s32 %s423, 1
    %p427 = scmp.eq.s32.totalorder %s32, 1
    %p428 = scmp.ne.s32.totalorder %s423, %s425
    %p429 = scmp.eq.s32.totalorder %s32, 0
    %p430 = por %p428, %p429
    %p431 = scmp.ne.s32.totalorder %s423, %s425
    %p432 = scmp.eq.s32.totalorder %s37, 1
    %p433 = por %p431, %p432
    %p434 = scmp.ne.s32.totalorder %s425, %s426
    %p435 = scmp.eq.s32.totalorder %s37, 0
    %p436 = por %p434, %p435
    %p437 = scmp.ne.s32.totalorder %s425, %s426
    %p438 = scmp.eq.s32.totalorder %s38, 1
    %p439 = por %p437, %p438
    %p441 = scmp.ne.s32.totalorder %s426, %s440
    %p442 = scmp.eq.s32.totalorder %s38, 0
    %p443 = por %p441, %p442
    %s445 = sadd.s32 %s444, 1
    %p448 = scmp.eq.s32.totalorder %s32, 1
    %p449 = scmp.ne.s32.totalorder %s444, %s446
    %p450 = scmp.eq.s32.totalorder %s32, 0
    %p451 = por %p449, %p450
    %p452 = scmp.ne.s32.totalorder %s444, %s446
    %p453 = scmp.eq.s32.totalorder %s37, 1
    %p454 = por %p452, %p453
    %p455 = scmp.ne.s32.totalorder %s446, %s447
    %p456 = scmp.eq.s32.totalorder %s37, 0
    %p457 = por %p455, %p456
    %p458 = scmp.ne.s32.totalorder %s446, %s447
    %p459 = scmp.eq.s32.totalorder %s38, 1
    %p460 = por %p458, %p459
    %p462 = scmp.ne.s32.totalorder %s447, %s461
    %p463 = scmp.eq.s32.totalorder %s38, 0
    %p464 = por %p462, %p463
    %s466 = sadd.s32 %s465, 1
    %p469 = scmp.eq.s32.totalorder %s32, 1
    %p470 = scmp.ne.s32.totalorder %s465, %s467
    %p471 = scmp.eq.s32.totalorder %s32, 0
    %p472 = por %p470, %p471
    %p473 = scmp.ne.s32.totalorder %s465, %s467
    %p474 = scmp.eq.s32.totalorder %s37, 1
    %p475 = por %p473, %p474
    %p476 = scmp.ne.s32.totalorder %s467, %s468
    %p477 = scmp.eq.s32.totalorder %s37, 0
    %p478 = por %p476, %p477
    %p479 = scmp.ne.s32.totalorder %s467, %s468
    %p480 = scmp.eq.s32.totalorder %s38, 1
    %p481 = por %p479, %p480
    %p483 = scmp.ne.s32.totalorder %s468, %s482
    %p484 = scmp.eq.s32.totalorder %s38, 0
    %p485 = por %p483, %p484
    %s487 = sadd.s32 %s486, 1
    %p490 = scmp.eq.s32.totalorder %s32, 1
    %p491 = scmp.ne.s32.totalorder %s486, %s488
    %p492 = scmp.eq.s32.totalorder %s32, 0
    %p493 = por %p491, %p492
    %p494 = scmp.ne.s32.totalorder %s486, %s488
    %p495 = scmp.eq.s32.totalorder %s37, 1
    %p496 = por %p494, %p495
    %p497 = scmp.ne.s32.totalorder %s488, %s489
    %p498 = scmp.eq.s32.totalorder %s37, 0
    %p499 = por %p497, %p498
    %p500 = scmp.ne.s32.totalorder %s488, %s489
    %p501 = scmp.eq.s32.totalorder %s38, 1
    %p502 = por %p500, %p501
    %p504 = scmp.ne.s32.totalorder %s489, %s503
    %p505 = scmp.eq.s32.totalorder %s38, 0
    %p506 = por %p504, %p505
    %s508 = sadd.s32 %s507, 1
    %p511 = scmp.eq.s32.totalorder %s32, 1
    %p512 = scmp.ne.s32.totalorder %s507, %s509
    %p513 = scmp.eq.s32.totalorder %s32, 0
    %p514 = por %p512, %p513
    %p515 = scmp.ne.s32.totalorder %s507, %s509
    %p516 = scmp.eq.s32.totalorder %s37, 1
    %p517 = por %p515, %p516
    %p518 = scmp.ne.s32.totalorder %s509, %s510
    %p519 = scmp.eq.s32.totalorder %s37, 0
    %p520 = por %p518, %p519
    %p521 = scmp.ne.s32.totalorder %s509, %s510
    %p522 = scmp.eq.s32.totalorder %s38, 1
    %p523 = por %p521, %p522
    %p525 = scmp.ne.s32.totalorder %s510, %s524
    %p526 = scmp.eq.s32.totalorder %s38, 0
    %p527 = por %p525, %p526
    %s529 = sadd.s32 %s528, 1
    %p532 = scmp.eq.s32.totalorder %s32, 1
    %p533 = scmp.ne.s32.totalorder %s528, %s530
    %p534 = scmp.eq.s32.totalorder %s32, 0
    %p535 = por %p533, %p534
    %p536 = scmp.ne.s32.totalorder %s528, %s530
    %p537 = scmp.eq.s32.totalorder %s37, 1
    %p538 = por %p536, %p537
    %p539 = scmp.ne.s32.totalorder %s530, %s531
    %p540 = scmp.eq.s32.totalorder %s37, 0
    %p541 = por %p539, %p540
    %p542 = scmp.ne.s32.totalorder %s530, %s531
    %p543 = scmp.eq.s32.totalorder %s38, 1
    %p544 = por %p542, %p543
    %p546 = scmp.ne.s32.totalorder %s531, %s545
    %p547 = scmp.eq.s32.totalorder %s38, 0
    %p548 = por %p546, %p547
    %s549 = ssub.s32 %s32, %s39
    %p550 = scmp.eq.s32.totalorder %s549, 0
    %s552 = sadd.s32 %s551, 1
    %s553 = scalar_select %p550, %s551, %s552
    %p556 = pneg %p550
    %p557 = scmp.eq.s32.totalorder %s32, 1
    %p558 = por %p556, %p557
    %p559 = scmp.ne.s32.totalorder %s551, %s554
    %p560 = scmp.eq.s32.totalorder %s32, 0
    %p561 = por %p559, %p560
    %p562 = scmp.ne.s32.totalorder %s551, %s554
    %p563 = scmp.eq.s32.totalorder %s37, 1
    %p564 = por %p562, %p563
    %p565 = scmp.ne.s32.totalorder %s554, %s555
    %p566 = scmp.eq.s32.totalorder %s37, 0
    %p567 = por %p565, %p566
    %p568 = scmp.ne.s32.totalorder %s554, %s555
    %p569 = scmp.eq.s32.totalorder %s38, 1
    %p570 = por %p568, %p569
    %p572 = scmp.ne.s32.totalorder %s555, %s571
    %p573 = scmp.eq.s32.totalorder %s38, 0
    %p574 = por %p572, %p573
    %p575 = scmp.le.s32.totalorder 1, %s32
    %p576 = scmp.lt.s32.totalorder %s32, 3
    %p577 = pnand %p575, %p576
    %p578 = pneg %p577
    // Predicated region
    $region9: #{improved_language_detection_cnn.1} parent=5 // pred_check
      _
    $region10: #{improved_language_detection_cnn.1} parent=5 // pred_check_branch
      %580 = sbr.rel (%p577) target = $region12
    $region11: #{improved_language_detection_cnn.1} parent=5 // pred_region
      %s581 = ssub.s32 %s32, 1
      // Predicated region
      $region13: #{improved_language_detection_cnn.1} parent=11 // pred_check
        %p582 = pneg %p79
      $region14: #{improved_language_detection_cnn.1} parent=11 // pred_check_branch
        %584 = sbr.rel (%p582) target = $region16
      $region15: #{improved_language_detection_cnn.1} parent=11 // pred_region
        _
      $region16: #{improved_language_detection_cnn.1} parent=11 // pred_fallthru
        _
      // Predicated region
      $region17: #{improved_language_detection_cnn.1} parent=11 // pred_check
        %p585 = pneg %p100
      $region18: #{improved_language_detection_cnn.1} parent=11 // pred_check_branch
        %587 = sbr.rel (%p585) target = $region20
      $region19: #{improved_language_detection_cnn.1} parent=11 // pred_region
        _
      $region20: #{improved_language_detection_cnn.1} parent=11 // pred_fallthru
        _
      // Predicated region
      $region21: #{improved_language_detection_cnn.1} parent=11 // pred_check
        %p588 = pneg %p121
      $region22: #{improved_language_detection_cnn.1} parent=11 // pred_check_branch
        %590 = sbr.rel (%p588) target = $region24
      $region23: #{improved_language_detection_cnn.1} parent=11 // pred_region
        _
      $region24: #{improved_language_detection_cnn.1} parent=11 // pred_fallthru
        _
      // Predicated region
      $region25: #{improved_language_detection_cnn.1} parent=11 // pred_check
        %p591 = pneg %p142
      $region26: #{improved_language_detection_cnn.1} parent=11 // pred_check_branch
        %593 = sbr.rel (%p591) target = $region28
      $region27: #{improved_language_detection_cnn.1} parent=11 // pred_region
        _
      $region28: #{improved_language_detection_cnn.1} parent=11 // pred_fallthru
        _
      // Predicated region
      $region29: #{improved_language_detection_cnn.1} parent=11 // pred_check
        %p594 = pneg %p163
      $region30: #{improved_language_detection_cnn.1} parent=11 // pred_check_branch
        %596 = sbr.rel (%p594) target = $region32
      $region31: #{improved_language_detection_cnn.1} parent=11 // pred_region
        _
      $region32: #{improved_language_detection_cnn.1} parent=11 // pred_fallthru
        _
      // Predicated region
      $region33: #{improved_language_detection_cnn.1} parent=11 // pred_check
        %p597 = pneg %p184
      $region34: #{improved_language_detection_cnn.1} parent=11 // pred_check_branch
        %599 = sbr.rel (%p597) target = $region36
      $region35: #{improved_language_detection_cnn.1} parent=11 // pred_region
        _
      $region36: #{improved_language_detection_cnn.1} parent=11 // pred_fallthru
        _
      // Predicated region
      $region37: #{improved_language_detection_cnn.1} parent=11 // pred_check
        %p600 = pneg %p205
      $region38: #{improved_language_detection_cnn.1} parent=11 // pred_check_branch
        %602 = sbr.rel (%p600) target = $region40
      $region39: #{improved_language_detection_cnn.1} parent=11 // pred_region
        _
      $region40: #{improved_language_detection_cnn.1} parent=11 // pred_fallthru
        _
      // Predicated region
      $region41: #{improved_language_detection_cnn.1} parent=11 // pred_check
        %p603 = pneg %p226
      $region42: #{improved_language_detection_cnn.1} parent=11 // pred_check_branch
        %605 = sbr.rel (%p603) target = $region44
      $region43: #{improved_language_detection_cnn.1} parent=11 // pred_region
        _
      $region44: #{improved_language_detection_cnn.1} parent=11 // pred_fallthru
        _
      // Predicated region
      $region45: #{improved_language_detection_cnn.1} parent=11 // pred_check
        %p606 = pneg %p247
      $region46: #{improved_language_detection_cnn.1} parent=11 // pred_check_branch
        %608 = sbr.rel (%p606) target = $region48
      $region47: #{improved_language_detection_cnn.1} parent=11 // pred_region
        _
      $region48: #{improved_language_detection_cnn.1} parent=11 // pred_fallthru
        _
      // Predicated region
      $region49: #{improved_language_detection_cnn.1} parent=11 // pred_check
        %p609 = pneg %p268
      $region50: #{improved_language_detection_cnn.1} parent=11 // pred_check_branch
        %611 = sbr.rel (%p609) target = $region52
      $region51: #{improved_language_detection_cnn.1} parent=11 // pred_region
        _
      $region52: #{improved_language_detection_cnn.1} parent=11 // pred_fallthru
        _
      // Predicated region
      $region53: #{improved_language_detection_cnn.1} parent=11 // pred_check
        %p612 = pneg %p289
      $region54: #{improved_language_detection_cnn.1} parent=11 // pred_check_branch
        %614 = sbr.rel (%p612) target = $region56
      $region55: #{improved_language_detection_cnn.1} parent=11 // pred_region
        _
      $region56: #{improved_language_detection_cnn.1} parent=11 // pred_fallthru
        _
      // Predicated region
      $region57: #{improved_language_detection_cnn.1} parent=11 // pred_check
        %p615 = pneg %p310
      $region58: #{improved_language_detection_cnn.1} parent=11 // pred_check_branch
        %617 = sbr.rel (%p615) target = $region60
      $region59: #{improved_language_detection_cnn.1} parent=11 // pred_region
        _
      $region60: #{improved_language_detection_cnn.1} parent=11 // pred_fallthru
        _
      // Predicated region
      $region61: #{improved_language_detection_cnn.1} parent=11 // pred_check
        %p618 = pneg %p331
      $region62: #{improved_language_detection_cnn.1} parent=11 // pred_check_branch
        %620 = sbr.rel (%p618) target = $region64
      $region63: #{improved_language_detection_cnn.1} parent=11 // pred_region
        _
      $region64: #{improved_language_detection_cnn.1} parent=11 // pred_fallthru
        _
      // Predicated region
      $region65: #{improved_language_detection_cnn.1} parent=11 // pred_check
        %p621 = pneg %p352
      $region66: #{improved_language_detection_cnn.1} parent=11 // pred_check_branch
        %623 = sbr.rel (%p621) target = $region68
      $region67: #{improved_language_detection_cnn.1} parent=11 // pred_region
        _
      $region68: #{improved_language_detection_cnn.1} parent=11 // pred_fallthru
        _
      // Predicated region
      $region69: #{improved_language_detection_cnn.1} parent=11 // pred_check
        %p624 = pneg %p373
      $region70: #{improved_language_detection_cnn.1} parent=11 // pred_check_branch
        %626 = sbr.rel (%p624) target = $region72
      $region71: #{improved_language_detection_cnn.1} parent=11 // pred_region
        _
      $region72: #{improved_language_detection_cnn.1} parent=11 // pred_fallthru
        _
      // Predicated region
      $region73: #{improved_language_detection_cnn.1} parent=11 // pred_check
        %p627 = pneg %p394
      $region74: #{improved_language_detection_cnn.1} parent=11 // pred_check_branch
        %629 = sbr.rel (%p627) target = $region76
      $region75: #{improved_language_detection_cnn.1} parent=11 // pred_region
        _
      $region76: #{improved_language_detection_cnn.1} parent=11 // pred_fallthru
        _
      // Predicated region
      $region77: #{improved_language_detection_cnn.1} parent=11 // pred_check
        %p630 = pneg %p415
      $region78: #{improved_language_detection_cnn.1} parent=11 // pred_check_branch
        %632 = sbr.rel (%p630) target = $region80
      $region79: #{improved_language_detection_cnn.1} parent=11 // pred_region
        _
      $region80: #{improved_language_detection_cnn.1} parent=11 // pred_fallthru
        _
      // Predicated region
      $region81: #{improved_language_detection_cnn.1} parent=11 // pred_check
        %p633 = pneg %p436
      $region82: #{improved_language_detection_cnn.1} parent=11 // pred_check_branch
        %635 = sbr.rel (%p633) target = $region84
      $region83: #{improved_language_detection_cnn.1} parent=11 // pred_region
        _
      $region84: #{improved_language_detection_cnn.1} parent=11 // pred_fallthru
        _
      // Predicated region
      $region85: #{improved_language_detection_cnn.1} parent=11 // pred_check
        %p636 = pneg %p457
      $region86: #{improved_language_detection_cnn.1} parent=11 // pred_check_branch
        %638 = sbr.rel (%p636) target = $region88
      $region87: #{improved_language_detection_cnn.1} parent=11 // pred_region
        _
      $region88: #{improved_language_detection_cnn.1} parent=11 // pred_fallthru
        _
      // Predicated region
      $region89: #{improved_language_detection_cnn.1} parent=11 // pred_check
        %p639 = pneg %p478
      $region90: #{improved_language_detection_cnn.1} parent=11 // pred_check_branch
        %641 = sbr.rel (%p639) target = $region92
      $region91: #{improved_language_detection_cnn.1} parent=11 // pred_region
        _
      $region92: #{improved_language_detection_cnn.1} parent=11 // pred_fallthru
        _
      // Predicated region
      $region93: #{improved_language_detection_cnn.1} parent=11 // pred_check
        %p642 = pneg %p499
      $region94: #{improved_language_detection_cnn.1} parent=11 // pred_check_branch
        %644 = sbr.rel (%p642) target = $region96
      $region95: #{improved_language_detection_cnn.1} parent=11 // pred_region
        _
      $region96: #{improved_language_detection_cnn.1} parent=11 // pred_fallthru
        _
      // Predicated region
      $region97: #{improved_language_detection_cnn.1} parent=11 // pred_check
        %p645 = pneg %p520
      $region98: #{improved_language_detection_cnn.1} parent=11 // pred_check_branch
        %647 = sbr.rel (%p645) target = $region100
      $region99: #{improved_language_detection_cnn.1} parent=11 // pred_region
        _
      $region100: #{improved_language_detection_cnn.1} parent=11 // pred_fallthru
        _
      // Predicated region
      $region101: #{improved_language_detection_cnn.1} parent=11 // pred_check
        %p648 = pneg %p541
      $region102: #{improved_language_detection_cnn.1} parent=11 // pred_check_branch
        %650 = sbr.rel (%p648) target = $region104
      $region103: #{improved_language_detection_cnn.1} parent=11 // pred_region
        _
      $region104: #{improved_language_detection_cnn.1} parent=11 // pred_fallthru
        _
    $region12: #{improved_language_detection_cnn.1} parent=5 // pred_fallthru
      _
    %p651 = scmp.lt.s32.totalorder %s32, 2
    // Predicated region
    $region105: #{improved_language_detection_cnn.1} parent=5 // pred_check
      %p652 = pneg %p651
    $region106: #{improved_language_detection_cnn.1} parent=5 // pred_check_branch
      %654 = sbr.rel (%p652) target = $region108
    $region107: #{improved_language_detection_cnn.1} parent=5 // pred_region
      // Predicated region
      $region109: #{improved_language_detection_cnn.1} parent=107 // pred_check
        %p655 = pneg %p52
      $region110: #{improved_language_detection_cnn.1} parent=107 // pred_check_branch
        %657 = sbr.rel (%p655) target = $region112
      $region111: #{improved_language_detection_cnn.1} parent=107 // pred_region
        %p658 = scmp.lt.s32.totalorder %s32, 1
        %s659 = scalar_select %p658, %s32, 1
        %s660 = smul.addr %s659, 32
        %s661 = smul.addr %s660, 8
        %s662 = scalar_lea.vmem %s0, %s661
      $region112: #{improved_language_detection_cnn.1} parent=107 // pred_fallthru
        _
    $region108: #{improved_language_detection_cnn.1} parent=5 // pred_fallthru
      _
    %p663 = scmp.le.s32.totalorder 1, %s32
    %p664 = scmp.lt.s32.totalorder %s32, 3
    %p665 = pnand %p663, %p664
    %p666 = pneg %p665
    // Predicated region
    $region113: #{improved_language_detection_cnn.1} parent=5 // pred_check
      _
    $region114: #{improved_language_detection_cnn.1} parent=5 // pred_check_branch
      %668 = sbr.rel (%p665) target = $region116
    $region115: #{improved_language_detection_cnn.1} parent=5 // pred_region
      %s669 = ssub.s32 %s32, 1
      %p670 = scmp.lt.s32.totalorder %s37, 1
      %s671 = scalar_select %p670, %s37, 1
      %s672 = smul.addr %s671, 32
      %s673 = smul.addr %s672, 8
      %s674 = scalar_lea.vmem %s0, %s673
      %p675 = pneg %p58
      %p676 = pneg %p55
      %p677 = pneg %p79
      %p678 = pneg %p76
      %p679 = pneg %p100
      %p680 = pneg %p97
      %p681 = pneg %p121
      %p682 = pneg %p118
      %p683 = pneg %p142
      %p684 = pneg %p139
      %p685 = pneg %p163
      %p686 = pneg %p160
      %p687 = pneg %p184
      %p688 = pneg %p181
      %p689 = pneg %p205
      %p690 = pneg %p202
      %p691 = pneg %p226
      %p692 = pneg %p223
      %p693 = pneg %p247
      %p694 = pneg %p244
      %p695 = pneg %p268
      %p696 = pneg %p265
      %p697 = pneg %p289
      %p698 = pneg %p286
      %p699 = pneg %p310
      %p700 = pneg %p307
      %p701 = pneg %p331
      %p702 = pneg %p328
      %p703 = pneg %p352
      %p704 = pneg %p349
      %p705 = pneg %p373
      %p706 = pneg %p370
      %p707 = pneg %p394
      %p708 = pneg %p391
      %p709 = pneg %p415
      %p710 = pneg %p412
      %p711 = pneg %p436
      %p712 = pneg %p433
      %p713 = pneg %p457
      %p714 = pneg %p454
      %p715 = pneg %p478
      %p716 = pneg %p475
      %p717 = pneg %p499
      %p718 = pneg %p496
      %p719 = pneg %p520
      %p720 = pneg %p517
      %p721 = pneg %p541
      %p722 = pneg %p538
      %p723 = pneg %p567
      %p724 = pneg %p564
      %p725 = scmp.lt.s32.totalorder %s37, 1
      %s726 = scalar_select %p725, %s37, 1
      %s727 = scalar_lea.vmem %s24, %s726
      %p728 = scmp.lt.s32.totalorder %s37, 1
      %s729 = scalar_select %p728, %s37, 1
      %s730 = smul.addr %s729, 32
      %s731 = smul.addr %s730, 8
      %s732 = scalar_lea.vmem %s0, %s731
      %p733 = scmp.lt.s32.totalorder %s37, 1
      %s734 = scalar_select %p733, %s37, 1
      %s735 = scalar_lea.vmem %s24, %s734
      %vm737 = vcmask 261120
      %738 = vst.msk [vmem:[#allocation2] sm:$0xff] %vm737, 0.0
      %739 = vst.msk [vmem:[#allocation2 + $0x8] sm:$0xff] %vm737, 0.0
      %740 = vst.msk [vmem:[#allocation2 + $0x10] sm:$0xff] %vm737, 0.0
      %741 = vst.msk [vmem:[#allocation2 + $0x118] sm:$0xff] %vm737, 0.0
      %742 = vst.msk [vmem:[#allocation2 + $0x120] sm:$0xff] %vm737, 0.0
      %743 = vst.msk [vmem:[#allocation2 + $0x128] sm:$0xff] %vm737, 0.0
      %vm744 = vcmask 523264
      %745 = vst.msk [vmem:[#allocation3] sm:$0xff] %vm744, 0.0
      %746 = vst.msk [vmem:[#allocation3 + $0x8] sm:$0xff] %vm744, 0.0
      %747 = vst.msk [vmem:[#allocation3 + $0x50] sm:$0xff] %vm744, 0.0
      %748 = vst.msk [vmem:[#allocation3 + $0x58] sm:$0xff] %vm744, 0.0
      %v749 = vld [vmem:[%s732] sm:$0xff]
      %v750 = vld [vmem:[%s732 + $0x8] sm:$0xff]
      %v751 = vld [vmem:[%s732 + $0x10] sm:$0xff]
      %v752 = vld [vmem:[%s732 + $0x18] sm:$0xff]
      %v753 = vld [vmem:[%s732 + $0x20] sm:$0xff]
      %v754 = vld [vmem:[%s732 + $0x28] sm:$0xff]
      %v755 = vld [vmem:[%s732 + $0x30] sm:$0xff]
      %v756 = vld [vmem:[%s732 + $0x38] sm:$0xff]
      %v757 = vld [vmem:[%s732 + $0x40] sm:$0xff]
      %v758 = vld [vmem:[%s732 + $0x48] sm:$0xff]
      %v759 = vld [vmem:[%s732 + $0x50] sm:$0xff]
      %v760 = vld [vmem:[%s732 + $0x58] sm:$0xff]
      %v761 = vld [vmem:[%s732 + $0x60] sm:$0xff]
      %v762 = vld [vmem:[%s732 + $0x68] sm:$0xff]
      %v763 = vld [vmem:[%s732 + $0x70] sm:$0xff]
      %v764 = vld [vmem:[%s732 + $0x78] sm:$0xff]
      %v765 = vld [vmem:[%s732 + $0x80] sm:$0xff]
      %v766 = vld [vmem:[%s732 + $0x88] sm:$0xff]
      %v767 = vld [vmem:[%s732 + $0x90] sm:$0xff]
      %v768 = vld [vmem:[%s732 + $0x98] sm:$0xff]
      %v769 = vld [vmem:[%s732 + $0xa0] sm:$0xff]
      %v770 = vld [vmem:[%s732 + $0xa8] sm:$0xff]
      %v771 = vld [vmem:[%s732 + $0xb0] sm:$0xff]
      %v772 = vld [vmem:[%s732 + $0xb8] sm:$0xff]
      %v773 = vld [vmem:[%s732 + $0xc0] sm:$0xff]
      %v774 = vld [vmem:[%s732 + $0xc8] sm:$0xff]
      %v775 = vld [vmem:[%s732 + $0xd0] sm:$0xff]
      %v776 = vld [vmem:[%s732 + $0xd8] sm:$0xff]
      %v777 = vld [vmem:[%s732 + $0xe0] sm:$0xff]
      %v778 = vld [vmem:[%s732 + $0xe8] sm:$0xff]
      %v779 = vld [vmem:[%s732 + $0xf0] sm:$0xff]
      %v780 = vld [vmem:[%s732 + $0xf8] sm:$0xff]
      %v781 = vld [vmem:[%s1] sm:$0xff]
      %v782 = vld [vmem:[%s1 + $0x8] sm:$0x1]
      %vm783 = vcmask 72704
      %v785 = vsel %vm783, %v749, 0
      %v788 = vsel %vm783, %v750, 0
      %v791 = vsel %vm783, %v751, 0
      %v794 = vsel %vm783, %v752, 0
      %v797 = vsel %vm783, %v753, 0
      %v800 = vsel %vm783, %v754, 0
      %v803 = vsel %vm783, %v755, 0
      %v806 = vsel %vm783, %v756, 0
      %v809 = vsel %vm783, %v757, 0
      %v812 = vsel %vm783, %v758, 0
      %v815 = vsel %vm783, %v759, 0
      %v818 = vsel %vm783, %v760, 0
      %v821 = vsel %vm783, %v761, 0
      %v824 = vsel %vm783, %v762, 0
      %v827 = vsel %vm783, %v763, 0
      %v830 = vsel %vm783, %v764, 0
      %v833 = vsel %vm783, %v765, 0
      %v836 = vsel %vm783, %v766, 0
      %v839 = vsel %vm783, %v767, 0
      %v842 = vsel %vm783, %v768, 0
      %v845 = vsel %vm783, %v769, 0
      %v848 = vsel %vm783, %v770, 0
      %v851 = vsel %vm783, %v771, 0
      %v854 = vsel %vm783, %v772, 0
      %v857 = vsel %vm783, %v773, 0
      %v860 = vsel %vm783, %v774, 0
      %v863 = vsel %vm783, %v775, 0
      %v866 = vsel %vm783, %v776, 0
      %v869 = vsel %vm783, %v777, 0
      %v872 = vsel %vm783, %v778, 0
      %v875 = vsel %vm783, %v779, 0
      %v878 = vsel %vm783, %v780, 0
      %vm880 = vcmask 1040384
      %v882 = vsel %vm880, %v782, 0
      %884 = vmatprep.subr.mxu0 0.0
      %885 = vmatpush1.msra.mxu0 %v781
      %886 = vmatprep.subr.mxu0 0.0
      %887 = vmatpush1.msra.mxu0 %v882
      %888 = vmatprep.subr.mxu0 0.0
      %889 = vmatpush1.msra.mxu0 0.0
      %890 = vmatprep.subr.mxu0 0.0
      %891 = vmatpush1.msra.mxu0 0.0
      %892 = vmatprep.subr.mxu0 0.0
      %893 = vmatpush1.msra.mxu0 0.0
      %894 = vmatprep.subr.mxu0 0.0
      %895 = vmatpush1.msra.mxu0 0.0
      %896 = vmatprep.subr.mxu0 0.0
      %897 = vmatpush1.msra.mxu0 0.0
      %898 = vmatprep.subr.mxu0 0.0
      %899 = vmatpush1.msra.mxu0 0.0
      %900 = vmatprep.subr.mxu0 0.0
      %901 = vmatpush1.msra.mxu0 0.0
      %902 = vmatprep.subr.mxu0 0.0
      %903 = vmatpush1.msra.mxu0 0.0
      %904 = vmatprep.subr.mxu0 0.0
      %905 = vmatpush1.msra.mxu0 0.0
      %906 = vmatprep.subr.mxu0 0.0
      %907 = vmatpush1.msra.mxu0 0.0
      %908 = vmatprep.subr.mxu0 0.0
      %909 = vmatpush1.msra.mxu0 0.0
      %910 = vmatprep.subr.mxu0 0.0
      %911 = vmatpush1.msra.mxu0 0.0
      %912 = vmatprep.subr.mxu0 0.0
      %913 = vmatpush1.msra.mxu0 0.0
      %914 = vmatprep.subr.mxu0 0.0
      %915 = vmatpush1.msra.mxu0 0.0
      %916 = vmatprep.subr.mxu0 0.0
      %917 = vmatpush1.msra.mxu0 0.0
      %918 = vmatprep.subr.mxu0 0.0
      %919 = vmatpush1.msra.mxu0 0.0
      %920 = vmatprep.subr.mxu0 0.0
      %921 = vmatpush1.msra.mxu0 0.0
      %922 = vmatprep.subr.mxu0 0.0
      %923 = vmatpush1.msra.mxu0 0.0
      %924 = vmatprep.subr.mxu0 0.0
      %925 = vmatpush1.msra.mxu0 0.0
      %926 = vmatprep.subr.mxu0 0.0
      %927 = vmatpush1.msra.mxu0 0.0
      %928 = vmatprep.subr.mxu0 0.0
      %929 = vmatpush1.msra.mxu0 0.0
      %930 = vmatprep.subr.mxu0 0.0
      %931 = vmatpush1.msra.mxu0 0.0
      %932 = vmatprep.subr.mxu0 0.0
      %933 = vmatpush1.msra.mxu0 0.0
      %934 = vmatprep.subr.mxu0 0.0
      %935 = vmatpush1.msra.mxu0 0.0
      %936 = vmatprep.subr.mxu0 0.0
      %937 = vmatpush1.msra.mxu0 0.0
      %938 = vmatprep.subr.mxu0 0.0
      %939 = vmatpush1.msra.mxu0 0.0
      %940 = vmatprep.subr.mxu0 0.0
      %941 = vmatpush1.msra.mxu0 0.0
      %942 = vmatprep.subr.mxu0 0.0
      %943 = vmatpush1.msra.mxu0 0.0
      %944 = vmatprep.subr.mxu0 0.0
      %945 = vmatpush1.msra.mxu0 0.0
      %946 = vmatprep.subr.mxu0 0.0
      %947 = vmatpush1.msra.mxu0 0.0
      %948 = vmatprep.mubr.f32.mxu0 0.0
      %949 = vmatmul.mubr.f32.gmra.mrb[0].mxu0 %v785
      %v950 = vpop.f32.mrb[0].mxu0
      %v951 = vadd.f32 0.0, %v950
      %v952 = vpop.f32.mrb[0].mxu0
      %953 = vmatprep.mubr.f32.mxu0 0.0
      %954 = vmatmul.mubr.f32.gmra.mrb[0].mxu0 %v788
      %v955 = vpop.f32.mrb[0].mxu0
      %v956 = vadd.f32 0.0, %v955
      %v957 = vpop.f32.mrb[0].mxu0
      %958 = vmatprep.mubr.f32.mxu0 0.0
      %959 = vmatmul.mubr.f32.gmra.mrb[0].mxu0 %v791
      %v960 = vpop.f32.mrb[0].mxu0
      %v961 = vadd.f32 0.0, %v960
      %v962 = vpop.f32.mrb[0].mxu0
      %963 = vmatprep.mubr.f32.mxu0 0.0
      %964 = vmatmul.mubr.f32.gmra.mrb[0].mxu0 %v794
      %v965 = vpop.f32.mrb[0].mxu0
      %v966 = vadd.f32 0.0, %v965
      %v967 = vpop.f32.mrb[0].mxu0
      %968 = vmatprep.mubr.f32.mxu0 0.0
      %969 = vmatmul.mubr.f32.gmra.mrb[0].mxu0 %v797
      %v970 = vpop.f32.mrb[0].mxu0
      %v971 = vadd.f32 0.0, %v970
      %v972 = vpop.f32.mrb[0].mxu0
      %973 = vmatprep.mubr.f32.mxu0 0.0
      %974 = vmatmul.mubr.f32.gmra.mrb[0].mxu0 %v800
      %v975 = vpop.f32.mrb[0].mxu0
      %v976 = vadd.f32 0.0, %v975
      %v977 = vpop.f32.mrb[0].mxu0
      %978 = vmatprep.mubr.f32.mxu0 0.0
      %979 = vmatmul.mubr.f32.gmra.mrb[0].mxu0 %v803
      %v980 = vpop.f32.mrb[0].mxu0
      %v981 = vadd.f32 0.0, %v980
      %v982 = vpop.f32.mrb[0].mxu0
      %983 = vmatprep.mubr.f32.mxu0 0.0
      %984 = vmatmul.mubr.f32.gmra.mrb[0].mxu0 %v806
      %v985 = vpop.f32.mrb[0].mxu0
      %v986 = vadd.f32 0.0, %v985
      %v987 = vpop.f32.mrb[0].mxu0
      %988 = vmatprep.mubr.f32.mxu0 0.0
      %989 = vmatmul.mubr.f32.gmra.mrb[0].mxu0 %v809
      %v990 = vpop.f32.mrb[0].mxu0
      %v991 = vadd.f32 0.0, %v990
      %v992 = vpop.f32.mrb[0].mxu0
      %993 = vmatprep.mubr.f32.mxu0 0.0
      %994 = vmatmul.mubr.f32.gmra.mrb[0].mxu0 %v812
      %v995 = vpop.f32.mrb[0].mxu0
      %v996 = vadd.f32 0.0, %v995
      %v997 = vpop.f32.mrb[0].mxu0
      %998 = vmatprep.mubr.f32.mxu0 0.0
      %999 = vmatmul.mubr.f32.gmra.mrb[0].mxu0 %v815
      %v1000 = vpop.f32.mrb[0].mxu0
      %v1001 = vadd.f32 0.0, %v1000
      %v1002 = vpop.f32.mrb[0].mxu0
      %1003 = vmatprep.mubr.f32.mxu0 0.0
      %1004 = vmatmul.mubr.f32.gmra.mrb[0].mxu0 %v818
      %v1005 = vpop.f32.mrb[0].mxu0
      %v1006 = vadd.f32 0.0, %v1005
      %v1007 = vpop.f32.mrb[0].mxu0
      %1008 = vmatprep.mubr.f32.mxu0 0.0
      %1009 = vmatmul.mubr.f32.gmra.mrb[0].mxu0 %v821
      %v1010 = vpop.f32.mrb[0].mxu0
      %v1011 = vadd.f32 0.0, %v1010
      %v1012 = vpop.f32.mrb[0].mxu0
      %1013 = vmatprep.mubr.f32.mxu0 0.0
      %1014 = vmatmul.mubr.f32.gmra.mrb[0].mxu0 %v824
      %v1015 = vpop.f32.mrb[0].mxu0
      %v1016 = vadd.f32 0.0, %v1015
      %v1017 = vpop.f32.mrb[0].mxu0
      %1018 = vmatprep.mubr.f32.mxu0 0.0
      %1019 = vmatmul.mubr.f32.gmra.mrb[0].mxu0 %v827
      %v1020 = vpop.f32.mrb[0].mxu0
      %v1021 = vadd.f32 0.0, %v1020
      %v1022 = vpop.f32.mrb[0].mxu0
      %1023 = vmatprep.mubr.f32.mxu0 0.0
      %1024 = vmatmul.mubr.f32.gmra.mrb[0].mxu0 %v830
      %v1025 = vpop.f32.mrb[0].mxu0
      %v1026 = vadd.f32 0.0, %v1025
      %v1027 = vpop.f32.mrb[0].mxu0
      %1028 = vmatprep.mubr.f32.mxu0 0.0
      %1029 = vmatmul.mubr.f32.gmra.mrb[0].mxu0 %v833
      %v1030 = vpop.f32.mrb[0].mxu0
      %v1031 = vadd.f32 0.0, %v1030
      %v1032 = vpop.f32.mrb[0].mxu0
      %1033 = vmatprep.mubr.f32.mxu0 0.0
      %1034 = vmatmul.mubr.f32.gmra.mrb[0].mxu0 %v836
      %v1035 = vpop.f32.mrb[0].mxu0
      %v1036 = vadd.f32 0.0, %v1035
      %v1037 = vpop.f32.mrb[0].mxu0
      %1038 = vmatprep.mubr.f32.mxu0 0.0
      %1039 = vmatmul.mubr.f32.gmra.mrb[0].mxu0 %v839
      %v1040 = vpop.f32.mrb[0].mxu0
      %v1041 = vadd.f32 0.0, %v1040
      %v1042 = vpop.f32.mrb[0].mxu0
      %1043 = vmatprep.mubr.f32.mxu0 0.0
      %1044 = vmatmul.mubr.f32.gmra.mrb[0].mxu0 %v842
      %v1045 = vpop.f32.mrb[0].mxu0
      %v1046 = vadd.f32 0.0, %v1045
      %v1047 = vpop.f32.mrb[0].mxu0
      %1048 = vmatprep.mubr.f32.mxu0 0.0
      %1049 = vmatmul.mubr.f32.gmra.mrb[0].mxu0 %v845
      %v1050 = vpop.f32.mrb[0].mxu0
      %v1051 = vadd.f32 0.0, %v1050
      %v1052 = vpop.f32.mrb[0].mxu0
      %1053 = vmatprep.mubr.f32.mxu0 0.0
      %1054 = vmatmul.mubr.f32.gmra.mrb[0].mxu0 %v848
      %v1055 = vpop.f32.mrb[0].mxu0
      %v1056 = vadd.f32 0.0, %v1055
      %v1057 = vpop.f32.mrb[0].mxu0
      %1058 = vmatprep.mubr.f32.mxu0 0.0
      %1059 = vmatmul.mubr.f32.gmra.mrb[0].mxu0 %v851
      %v1060 = vpop.f32.mrb[0].mxu0
      %v1061 = vadd.f32 0.0, %v1060
      %v1062 = vpop.f32.mrb[0].mxu0
      %1063 = vmatprep.mubr.f32.mxu0 0.0
      %1064 = vmatmul.mubr.f32.gmra.mrb[0].mxu0 %v854
      %v1065 = vpop.f32.mrb[0].mxu0
      %v1066 = vadd.f32 0.0, %v1065
      %v1067 = vpop.f32.mrb[0].mxu0
      %1068 = vmatprep.mubr.f32.mxu0 0.0
      %1069 = vmatmul.mubr.f32.gmra.mrb[0].mxu0 %v857
      %v1070 = vpop.f32.mrb[0].mxu0
      %v1071 = vadd.f32 0.0, %v1070
      %v1072 = vpop.f32.mrb[0].mxu0
      %1073 = vmatprep.mubr.f32.mxu0 0.0
      %1074 = vmatmul.mubr.f32.gmra.mrb[0].mxu0 %v860
      %v1075 = vpop.f32.mrb[0].mxu0
      %v1076 = vadd.f32 0.0, %v1075
      %v1077 = vpop.f32.mrb[0].mxu0
      %1078 = vmatprep.mubr.f32.mxu0 0.0
      %1079 = vmatmul.mubr.f32.gmra.mrb[0].mxu0 %v863
      %v1080 = vpop.f32.mrb[0].mxu0
      %v1081 = vadd.f32 0.0, %v1080
      %v1082 = vpop.f32.mrb[0].mxu0
      %1083 = vmatprep.mubr.f32.mxu0 0.0
      %1084 = vmatmul.mubr.f32.gmra.mrb[0].mxu0 %v866
      %v1085 = vpop.f32.mrb[0].mxu0
      %v1086 = vadd.f32 0.0, %v1085
      %v1087 = vpop.f32.mrb[0].mxu0
      %1088 = vmatprep.mubr.f32.mxu0 0.0
      %1089 = vmatmul.mubr.f32.gmra.mrb[0].mxu0 %v869
      %v1090 = vpop.f32.mrb[0].mxu0
      %v1091 = vadd.f32 0.0, %v1090
      %v1092 = vpop.f32.mrb[0].mxu0
      %1093 = vmatprep.mubr.f32.mxu0 0.0
      %1094 = vmatmul.mubr.f32.gmra.mrb[0].mxu0 %v872
      %v1095 = vpop.f32.mrb[0].mxu0
      %v1096 = vadd.f32 0.0, %v1095
      %v1097 = vpop.f32.mrb[0].mxu0
      %1098 = vmatprep.mubr.f32.mxu0 0.0
      %1099 = vmatmul.mubr.f32.gmra.mrb[0].mxu0 %v875
      %v1100 = vpop.f32.mrb[0].mxu0
      %v1101 = vadd.f32 0.0, %v1100
      %v1102 = vpop.f32.mrb[0].mxu0
      %1103 = vmatprep.mubr.f32.mxu0 0.0
      %1104 = vmatmul.mubr.f32.gmra.mrb[0].mxu0 %v878
      %v1105 = vpop.f32.mrb[0].mxu0
      %v1106 = vadd.f32 0.0, %v1105
      %v1107 = vpop.f32.mrb[0].mxu0
      %1108 = vdwg.mxu0
      %v1109 = vld [vmem:[%s2] sm:$0x1]
      %v1111 = vlaneseq
      %v1112 = vshrl.u32 %v1111, 7
      %v1113 = vsub.s32 0, %v1112
      %v1114 = vrot.slane %v1109, %v1113
      %v1116 = vmul.f32 %v951, %v1114
      %v1117 = vmul.f32 %v956, %v1114
      %v1118 = vmul.f32 %v961, %v1114
      %v1119 = vmul.f32 %v966, %v1114
      %v1120 = vmul.f32 %v971, %v1114
      %v1121 = vmul.f32 %v976, %v1114
      %v1122 = vmul.f32 %v981, %v1114
      %v1123 = vmul.f32 %v986, %v1114
      %v1124 = vmul.f32 %v991, %v1114
      %v1125 = vmul.f32 %v996, %v1114
      %v1126 = vmul.f32 %v1001, %v1114
      %v1127 = vmul.f32 %v1006, %v1114
      %v1128 = vmul.f32 %v1011, %v1114
      %v1129 = vmul.f32 %v1016, %v1114
      %v1130 = vmul.f32 %v1021, %v1114
      %v1131 = vmul.f32 %v1026, %v1114
      %v1132 = vmul.f32 %v1031, %v1114
      %v1133 = vmul.f32 %v1036, %v1114
      %v1134 = vmul.f32 %v1041, %v1114
      %v1135 = vmul.f32 %v1046, %v1114
      %v1136 = vmul.f32 %v1051, %v1114
      %v1137 = vmul.f32 %v1056, %v1114
      %v1138 = vmul.f32 %v1061, %v1114
      %v1139 = vmul.f32 %v1066, %v1114
      %v1140 = vmul.f32 %v1071, %v1114
      %v1141 = vmul.f32 %v1076, %v1114
      %v1142 = vmul.f32 %v1081, %v1114
      %v1143 = vmul.f32 %v1086, %v1114
      %v1144 = vmul.f32 %v1091, %v1114
      %v1145 = vmul.f32 %v1096, %v1114
      %v1146 = vmul.f32 %v1101, %v1114
      %v1147 = vmul.f32 %v1106, %v1114
      %v1148 = vld [vmem:[%s3] sm:$0x1]
      %v1150 = vlaneseq
      %v1151 = vshrl.u32 %v1150, 7
      %v1152 = vsub.s32 0, %v1151
      %v1153 = vrot.slane %v1148, %v1152
      %v1155 = vadd.f32 %v1116, %v1153
      %v1156 = vadd.f32 %v1117, %v1153
      %v1157 = vadd.f32 %v1118, %v1153
      %v1158 = vadd.f32 %v1119, %v1153
      %v1159 = vadd.f32 %v1120, %v1153
      %v1160 = vadd.f32 %v1121, %v1153
      %v1161 = vadd.f32 %v1122, %v1153
      %v1162 = vadd.f32 %v1123, %v1153
      %v1163 = vadd.f32 %v1124, %v1153
      %v1164 = vadd.f32 %v1125, %v1153
      %v1165 = vadd.f32 %v1126, %v1153
      %v1166 = vadd.f32 %v1127, %v1153
      %v1167 = vadd.f32 %v1128, %v1153
      %v1168 = vadd.f32 %v1129, %v1153
      %v1169 = vadd.f32 %v1130, %v1153
      %v1170 = vadd.f32 %v1131, %v1153
      %v1171 = vadd.f32 %v1132, %v1153
      %v1172 = vadd.f32 %v1133, %v1153
      %v1173 = vadd.f32 %v1134, %v1153
      %v1174 = vadd.f32 %v1135, %v1153
      %v1175 = vadd.f32 %v1136, %v1153
      %v1176 = vadd.f32 %v1137, %v1153
      %v1177 = vadd.f32 %v1138, %v1153
      %v1178 = vadd.f32 %v1139, %v1153
      %v1179 = vadd.f32 %v1140, %v1153
      %v1180 = vadd.f32 %v1141, %v1153
      %v1181 = vadd.f32 %v1142, %v1153
      %v1182 = vadd.f32 %v1143, %v1153
      %v1183 = vadd.f32 %v1144, %v1153
      %v1184 = vadd.f32 %v1145, %v1153
      %v1185 = vadd.f32 %v1146, %v1153
      %v1186 = vadd.f32 %v1147, %v1153
      %v1187 = vmax.f32 %v1155, 0.0
      %v1188 = vmax.f32 %v1156, 0.0
      %v1189 = vmax.f32 %v1157, 0.0
      %v1190 = vmax.f32 %v1158, 0.0
      %v1191 = vmax.f32 %v1159, 0.0
      %v1192 = vmax.f32 %v1160, 0.0
      %v1193 = vmax.f32 %v1161, 0.0
      %v1194 = vmax.f32 %v1162, 0.0
      %v1195 = vmax.f32 %v1163, 0.0
      %v1196 = vmax.f32 %v1164, 0.0
      %v1197 = vmax.f32 %v1165, 0.0
      %v1198 = vmax.f32 %v1166, 0.0
      %v1199 = vmax.f32 %v1167, 0.0
      %v1200 = vmax.f32 %v1168, 0.0
      %v1201 = vmax.f32 %v1169, 0.0
      %v1202 = vmax.f32 %v1170, 0.0
      %v1203 = vmax.f32 %v1171, 0.0
      %v1204 = vmax.f32 %v1172, 0.0
      %v1205 = vmax.f32 %v1173, 0.0
      %v1206 = vmax.f32 %v1174, 0.0
      %v1207 = vmax.f32 %v1175, 0.0
      %v1208 = vmax.f32 %v1176, 0.0
      %v1209 = vmax.f32 %v1177, 0.0
      %v1210 = vmax.f32 %v1178, 0.0
      %v1211 = vmax.f32 %v1179, 0.0
      %v1212 = vmax.f32 %v1180, 0.0
      %v1213 = vmax.f32 %v1181, 0.0
      %v1214 = vmax.f32 %v1182, 0.0
      %v1215 = vmax.f32 %v1183, 0.0
      %v1216 = vmax.f32 %v1184, 0.0
      %v1217 = vmax.f32 %v1185, 0.0
      %v1218 = vmax.f32 %v1186, 0.0
      %1219 = vst.msk [vmem:[#allocation2 + $0x18] sm:$0xff] %vm737, %v1187
      %1220 = vst.msk [vmem:[#allocation2 + $0x20] sm:$0xff] %vm737, %v1188
      %1221 = vst.msk [vmem:[#allocation2 + $0x28] sm:$0xff] %vm737, %v1189
      %1222 = vst.msk [vmem:[#allocation2 + $0x30] sm:$0xff] %vm737, %v1190
      %1223 = vst.msk [vmem:[#allocation2 + $0x38] sm:$0xff] %vm737, %v1191
      %1224 = vst.msk [vmem:[#allocation2 + $0x40] sm:$0xff] %vm737, %v1192
      %1225 = vst.msk [vmem:[#allocation2 + $0x48] sm:$0xff] %vm737, %v1193
      %1226 = vst.msk [vmem:[#allocation2 + $0x50] sm:$0xff] %vm737, %v1194
      %1227 = vst.msk [vmem:[#allocation2 + $0x58] sm:$0xff] %vm737, %v1195
      %1228 = vst.msk [vmem:[#allocation2 + $0x60] sm:$0xff] %vm737, %v1196
      %1229 = vst.msk [vmem:[#allocation2 + $0x68] sm:$0xff] %vm737, %v1197
      %1230 = vst.msk [vmem:[#allocation2 + $0x70] sm:$0xff] %vm737, %v1198
      %1231 = vst.msk [vmem:[#allocation2 + $0x78] sm:$0xff] %vm737, %v1199
      %1232 = vst.msk [vmem:[#allocation2 + $0x80] sm:$0xff] %vm737, %v1200
      %1233 = vst.msk [vmem:[#allocation2 + $0x88] sm:$0xff] %vm737, %v1201
      %1234 = vst.msk [vmem:[#allocation2 + $0x90] sm:$0xff] %vm737, %v1202
      %1235 = vst.msk [vmem:[#allocation2 + $0x98] sm:$0xff] %vm737, %v1203
      %1236 = vst.msk [vmem:[#allocation2 + $0xa0] sm:$0xff] %vm737, %v1204
      %1237 = vst.msk [vmem:[#allocation2 + $0xa8] sm:$0xff] %vm737, %v1205
      %1238 = vst.msk [vmem:[#allocation2 + $0xb0] sm:$0xff] %vm737, %v1206
      %1239 = vst.msk [vmem:[#allocation2 + $0xb8] sm:$0xff] %vm737, %v1207
      %1240 = vst.msk [vmem:[#allocation2 + $0xc0] sm:$0xff] %vm737, %v1208
      %1241 = vst.msk [vmem:[#allocation2 + $0xc8] sm:$0xff] %vm737, %v1209
      %1242 = vst.msk [vmem:[#allocation2 + $0xd0] sm:$0xff] %vm737, %v1210
      %1243 = vst.msk [vmem:[#allocation2 + $0xd8] sm:$0xff] %vm737, %v1211
      %1244 = vst.msk [vmem:[#allocation2 + $0xe0] sm:$0xff] %vm737, %v1212
      %1245 = vst.msk [vmem:[#allocation2 + $0xe8] sm:$0xff] %vm737, %v1213
      %1246 = vst.msk [vmem:[#allocation2 + $0xf0] sm:$0xff] %vm737, %v1214
      %1247 = vst.msk [vmem:[#allocation2 + $0xf8] sm:$0xff] %vm737, %v1215
      %1248 = vst.msk [vmem:[#allocation2 + $0x100] sm:$0xff] %vm737, %v1216
      %1249 = vst.msk [vmem:[#allocation2 + $0x108] sm:$0xff] %vm737, %v1217
      %1250 = vst.msk [vmem:[#allocation2 + $0x110] sm:$0xff] %vm737, %v1218
      %v1251 = vlaneseq
      %v1252 = vshrl.u32 %v1251, 7
      %v1253 = vadd.s32 %v1252, 8
      %v1254 = vadd.s32 %v1252, 16
      %v1255 = vadd.s32 %v1252, 24
      %v1256 = vadd.s32 %v1252, 32
      %v1257 = vadd.s32 %v1252, 40
      %v1258 = vadd.s32 %v1252, 48
      %v1259 = vadd.s32 %v1252, 56
      %v1260 = vadd.s32 %v1252, 64
      %v1261 = vadd.s32 %v1252, 72
      %v1262 = vadd.s32 %v1252, 80
      %v1263 = vadd.s32 %v1252, 88
      %v1264 = vadd.s32 %v1252, 96
      %v1265 = vadd.s32 %v1252, 104
      %v1266 = vadd.s32 %v1252, 112
      %v1267 = vadd.s32 %v1252, 120
      %v1268 = vadd.s32 %v1252, 128
      %v1269 = vadd.s32 %v1252, 136
      %v1270 = vadd.s32 %v1252, 144
      %v1271 = vadd.s32 %v1252, 152
      %v1272 = vadd.s32 %v1252, 160
      %v1273 = vadd.s32 %v1252, 168
      %v1274 = vadd.s32 %v1252, 176
      %v1275 = vadd.s32 %v1252, 184
      %v1276 = vadd.s32 %v1252, 192
      %v1277 = vadd.s32 %v1252, 200
      %v1278 = vadd.s32 %v1252, 208
      %v1279 = vadd.s32 %v1252, 216
      %v1280 = vadd.s32 %v1252, 224
      %v1281 = vadd.s32 %v1252, 232
      %v1282 = vadd.s32 %v1252, 240
      %v1283 = vadd.s32 %v1252, 248
      %vm1284 = vcmp.lt.s32.totalorder %v1252, 0
      %v1285 = vsub.s32 0, %v1252
      %v1286 = vsel %vm1284, %v1285, %v1252
      %v1287 = vshrl.u32 %v1286, 4
      %v1288 = vand.u32 %v1286, 15
      %v1289 = vsub.s32 0, %v1288
      %v1290 = vsel %vm1284, %v1289, %v1288
      %vm1291 = vcmp.lt.s32.totalorder %v1253, 0
      %v1292 = vsub.s32 0, %v1253
      %v1293 = vsel %vm1291, %v1292, %v1253
      %v1294 = vshrl.u32 %v1293, 4
      %v1295 = vand.u32 %v1293, 15
      %v1296 = vsub.s32 0, %v1295
      %v1297 = vsel %vm1291, %v1296, %v1295
      %vm1298 = vcmp.lt.s32.totalorder %v1254, 0
      %v1299 = vsub.s32 0, %v1254
      %v1300 = vsel %vm1298, %v1299, %v1254
      %v1301 = vshrl.u32 %v1300, 4
      %v1302 = vand.u32 %v1300, 15
      %v1303 = vsub.s32 0, %v1302
      %v1304 = vsel %vm1298, %v1303, %v1302
      %vm1305 = vcmp.lt.s32.totalorder %v1255, 0
      %v1306 = vsub.s32 0, %v1255
      %v1307 = vsel %vm1305, %v1306, %v1255
      %v1308 = vshrl.u32 %v1307, 4
      %v1309 = vand.u32 %v1307, 15
      %v1310 = vsub.s32 0, %v1309
      %v1311 = vsel %vm1305, %v1310, %v1309
      %vm1312 = vcmp.lt.s32.totalorder %v1256, 0
      %v1313 = vsub.s32 0, %v1256
      %v1314 = vsel %vm1312, %v1313, %v1256
      %v1315 = vshrl.u32 %v1314, 4
      %v1316 = vand.u32 %v1314, 15
      %v1317 = vsub.s32 0, %v1316
      %v1318 = vsel %vm1312, %v1317, %v1316
      %vm1319 = vcmp.lt.s32.totalorder %v1257, 0
      %v1320 = vsub.s32 0, %v1257
      %v1321 = vsel %vm1319, %v1320, %v1257
      %v1322 = vshrl.u32 %v1321, 4
      %v1323 = vand.u32 %v1321, 15
      %v1324 = vsub.s32 0, %v1323
      %v1325 = vsel %vm1319, %v1324, %v1323
      %vm1326 = vcmp.lt.s32.totalorder %v1258, 0
      %v1327 = vsub.s32 0, %v1258
      %v1328 = vsel %vm1326, %v1327, %v1258
      %v1329 = vshrl.u32 %v1328, 4
      %v1330 = vand.u32 %v1328, 15
      %v1331 = vsub.s32 0, %v1330
      %v1332 = vsel %vm1326, %v1331, %v1330
      %vm1333 = vcmp.lt.s32.totalorder %v1259, 0
      %v1334 = vsub.s32 0, %v1259
      %v1335 = vsel %vm1333, %v1334, %v1259
      %v1336 = vshrl.u32 %v1335, 4
      %v1337 = vand.u32 %v1335, 15
      %v1338 = vsub.s32 0, %v1337
      %v1339 = vsel %vm1333, %v1338, %v1337
      %vm1340 = vcmp.lt.s32.totalorder %v1260, 0
      %v1341 = vsub.s32 0, %v1260
      %v1342 = vsel %vm1340, %v1341, %v1260
      %v1343 = vshrl.u32 %v1342, 4
      %v1344 = vand.u32 %v1342, 15
      %v1345 = vsub.s32 0, %v1344
      %v1346 = vsel %vm1340, %v1345, %v1344
      %vm1347 = vcmp.lt.s32.totalorder %v1261, 0
      %v1348 = vsub.s32 0, %v1261
      %v1349 = vsel %vm1347, %v1348, %v1261
      %v1350 = vshrl.u32 %v1349, 4
      %v1351 = vand.u32 %v1349, 15
      %v1352 = vsub.s32 0, %v1351
      %v1353 = vsel %vm1347, %v1352, %v1351
      %vm1354 = vcmp.lt.s32.totalorder %v1262, 0
      %v1355 = vsub.s32 0, %v1262
      %v1356 = vsel %vm1354, %v1355, %v1262
      %v1357 = vshrl.u32 %v1356, 4
      %v1358 = vand.u32 %v1356, 15
      %v1359 = vsub.s32 0, %v1358
      %v1360 = vsel %vm1354, %v1359, %v1358
      %vm1361 = vcmp.lt.s32.totalorder %v1263, 0
      %v1362 = vsub.s32 0, %v1263
      %v1363 = vsel %vm1361, %v1362, %v1263
      %v1364 = vshrl.u32 %v1363, 4
      %v1365 = vand.u32 %v1363, 15
      %v1366 = vsub.s32 0, %v1365
      %v1367 = vsel %vm1361, %v1366, %v1365
      %vm1368 = vcmp.lt.s32.totalorder %v1264, 0
      %v1369 = vsub.s32 0, %v1264
      %v1370 = vsel %vm1368, %v1369, %v1264
      %v1371 = vshrl.u32 %v1370, 4
      %v1372 = vand.u32 %v1370, 15
      %v1373 = vsub.s32 0, %v1372
      %v1374 = vsel %vm1368, %v1373, %v1372
      %vm1375 = vcmp.lt.s32.totalorder %v1265, 0
      %v1376 = vsub.s32 0, %v1265
      %v1377 = vsel %vm1375, %v1376, %v1265
      %v1378 = vshrl.u32 %v1377, 4
      %v1379 = vand.u32 %v1377, 15
      %v1380 = vsub.s32 0, %v1379
      %v1381 = vsel %vm1375, %v1380, %v1379
      %vm1382 = vcmp.lt.s32.totalorder %v1266, 0
      %v1383 = vsub.s32 0, %v1266
      %v1384 = vsel %vm1382, %v1383, %v1266
      %v1385 = vshrl.u32 %v1384, 4
      %v1386 = vand.u32 %v1384, 15
      %v1387 = vsub.s32 0, %v1386
      %v1388 = vsel %vm1382, %v1387, %v1386
      %vm1389 = vcmp.lt.s32.totalorder %v1267, 0
      %v1390 = vsub.s32 0, %v1267
      %v1391 = vsel %vm1389, %v1390, %v1267
      %v1392 = vshrl.u32 %v1391, 4
      %v1393 = vand.u32 %v1391, 15
      %v1394 = vsub.s32 0, %v1393
      %v1395 = vsel %vm1389, %v1394, %v1393
      %vm1396 = vcmp.lt.s32.totalorder %v1268, 0
      %v1397 = vsub.s32 0, %v1268
      %v1398 = vsel %vm1396, %v1397, %v1268
      %v1399 = vshrl.u32 %v1398, 4
      %v1400 = vand.u32 %v1398, 15
      %v1401 = vsub.s32 0, %v1400
      %v1402 = vsel %vm1396, %v1401, %v1400
      %vm1403 = vcmp.lt.s32.totalorder %v1269, 0
      %v1404 = vsub.s32 0, %v1269
      %v1405 = vsel %vm1403, %v1404, %v1269
      %v1406 = vshrl.u32 %v1405, 4
      %v1407 = vand.u32 %v1405, 15
      %v1408 = vsub.s32 0, %v1407
      %v1409 = vsel %vm1403, %v1408, %v1407
      %vm1410 = vcmp.lt.s32.totalorder %v1270, 0
      %v1411 = vsub.s32 0, %v1270
      %v1412 = vsel %vm1410, %v1411, %v1270
      %v1413 = vshrl.u32 %v1412, 4
      %v1414 = vand.u32 %v1412, 15
      %v1415 = vsub.s32 0, %v1414
      %v1416 = vsel %vm1410, %v1415, %v1414
      %vm1417 = vcmp.lt.s32.totalorder %v1271, 0
      %v1418 = vsub.s32 0, %v1271
      %v1419 = vsel %vm1417, %v1418, %v1271
      %v1420 = vshrl.u32 %v1419, 4
      %v1421 = vand.u32 %v1419, 15
      %v1422 = vsub.s32 0, %v1421
      %v1423 = vsel %vm1417, %v1422, %v1421
      %vm1424 = vcmp.lt.s32.totalorder %v1272, 0
      %v1425 = vsub.s32 0, %v1272
      %v1426 = vsel %vm1424, %v1425, %v1272
      %v1427 = vshrl.u32 %v1426, 4
      %v1428 = vand.u32 %v1426, 15
      %v1429 = vsub.s32 0, %v1428
      %v1430 = vsel %vm1424, %v1429, %v1428
      %vm1431 = vcmp.lt.s32.totalorder %v1273, 0
      %v1432 = vsub.s32 0, %v1273
      %v1433 = vsel %vm1431, %v1432, %v1273
      %v1434 = vshrl.u32 %v1433, 4
      %v1435 = vand.u32 %v1433, 15
      %v1436 = vsub.s32 0, %v1435
      %v1437 = vsel %vm1431, %v1436, %v1435
      %vm1438 = vcmp.lt.s32.totalorder %v1274, 0
      %v1439 = vsub.s32 0, %v1274
      %v1440 = vsel %vm1438, %v1439, %v1274
      %v1441 = vshrl.u32 %v1440, 4
      %v1442 = vand.u32 %v1440, 15
      %v1443 = vsub.s32 0, %v1442
      %v1444 = vsel %vm1438, %v1443, %v1442
      %vm1445 = vcmp.lt.s32.totalorder %v1275, 0
      %v1446 = vsub.s32 0, %v1275
      %v1447 = vsel %vm1445, %v1446, %v1275
      %v1448 = vshrl.u32 %v1447, 4
      %v1449 = vand.u32 %v1447, 15
      %v1450 = vsub.s32 0, %v1449
      %v1451 = vsel %vm1445, %v1450, %v1449
      %vm1452 = vcmp.lt.s32.totalorder %v1276, 0
      %v1453 = vsub.s32 0, %v1276
      %v1454 = vsel %vm1452, %v1453, %v1276
      %v1455 = vshrl.u32 %v1454, 4
      %v1456 = vand.u32 %v1454, 15
      %v1457 = vsub.s32 0, %v1456
      %v1458 = vsel %vm1452, %v1457, %v1456
      %vm1459 = vcmp.lt.s32.totalorder %v1277, 0
      %v1460 = vsub.s32 0, %v1277
      %v1461 = vsel %vm1459, %v1460, %v1277
      %v1462 = vshrl.u32 %v1461, 4
      %v1463 = vand.u32 %v1461, 15
      %v1464 = vsub.s32 0, %v1463
      %v1465 = vsel %vm1459, %v1464, %v1463
      %vm1466 = vcmp.lt.s32.totalorder %v1278, 0
      %v1467 = vsub.s32 0, %v1278
      %v1468 = vsel %vm1466, %v1467, %v1278
      %v1469 = vshrl.u32 %v1468, 4
      %v1470 = vand.u32 %v1468, 15
      %v1471 = vsub.s32 0, %v1470
      %v1472 = vsel %vm1466, %v1471, %v1470
      %vm1473 = vcmp.lt.s32.totalorder %v1279, 0
      %v1474 = vsub.s32 0, %v1279
      %v1475 = vsel %vm1473, %v1474, %v1279
      %v1476 = vshrl.u32 %v1475, 4
      %v1477 = vand.u32 %v1475, 15
      %v1478 = vsub.s32 0, %v1477
      %v1479 = vsel %vm1473, %v1478, %v1477
      %vm1480 = vcmp.lt.s32.totalorder %v1280, 0
      %v1481 = vsub.s32 0, %v1280
      %v1482 = vsel %vm1480, %v1481, %v1280
      %v1483 = vshrl.u32 %v1482, 4
      %v1484 = vand.u32 %v1482, 15
      %v1485 = vsub.s32 0, %v1484
      %v1486 = vsel %vm1480, %v1485, %v1484
      %vm1487 = vcmp.lt.s32.totalorder %v1281, 0
      %v1488 = vsub.s32 0, %v1281
      %v1489 = vsel %vm1487, %v1488, %v1281
      %v1490 = vshrl.u32 %v1489, 4
      %v1491 = vand.u32 %v1489, 15
      %v1492 = vsub.s32 0, %v1491
      %v1493 = vsel %vm1487, %v1492, %v1491
      %vm1494 = vcmp.lt.s32.totalorder %v1282, 0
      %v1495 = vsub.s32 0, %v1282
      %v1496 = vsel %vm1494, %v1495, %v1282
      %v1497 = vshrl.u32 %v1496, 4
      %v1498 = vand.u32 %v1496, 15
      %v1499 = vsub.s32 0, %v1498
      %v1500 = vsel %vm1494, %v1499, %v1498
      %vm1501 = vcmp.lt.s32.totalorder %v1283, 0
      %v1502 = vsub.s32 0, %v1283
      %v1503 = vsel %vm1501, %v1502, %v1283
      %v1504 = vshrl.u32 %v1503, 4
      %v1505 = vand.u32 %v1503, 15
      %v1506 = vsub.s32 0, %v1505
      %v1507 = vsel %vm1501, %v1506, %v1505
      %vm1508 = vcmp.ne.s32.totalorder %v1290, 0
      %vm1509 = vcmp.ne.s32.totalorder %v1297, 0
      %vm1510 = vcmp.ne.s32.totalorder %v1304, 0
      %vm1511 = vcmp.ne.s32.totalorder %v1311, 0
      %vm1512 = vcmp.ne.s32.totalorder %v1318, 0
      %vm1513 = vcmp.ne.s32.totalorder %v1325, 0
      %vm1514 = vcmp.ne.s32.totalorder %v1332, 0
      %vm1515 = vcmp.ne.s32.totalorder %v1339, 0
      %vm1516 = vcmp.ne.s32.totalorder %v1346, 0
      %vm1517 = vcmp.ne.s32.totalorder %v1353, 0
      %vm1518 = vcmp.ne.s32.totalorder %v1360, 0
      %vm1519 = vcmp.ne.s32.totalorder %v1367, 0
      %vm1520 = vcmp.ne.s32.totalorder %v1374, 0
      %vm1521 = vcmp.ne.s32.totalorder %v1381, 0
      %vm1522 = vcmp.ne.s32.totalorder %v1388, 0
      %vm1523 = vcmp.ne.s32.totalorder %v1395, 0
      %vm1524 = vcmp.ne.s32.totalorder %v1402, 0
      %vm1525 = vcmp.ne.s32.totalorder %v1409, 0
      %vm1526 = vcmp.ne.s32.totalorder %v1416, 0
      %vm1527 = vcmp.ne.s32.totalorder %v1423, 0
      %vm1528 = vcmp.ne.s32.totalorder %v1430, 0
      %vm1529 = vcmp.ne.s32.totalorder %v1437, 0
      %vm1530 = vcmp.ne.s32.totalorder %v1444, 0
      %vm1531 = vcmp.ne.s32.totalorder %v1451, 0
      %vm1532 = vcmp.ne.s32.totalorder %v1458, 0
      %vm1533 = vcmp.ne.s32.totalorder %v1465, 0
      %vm1534 = vcmp.ne.s32.totalorder %v1472, 0
      %vm1535 = vcmp.ne.s32.totalorder %v1479, 0
      %vm1536 = vcmp.ne.s32.totalorder %v1486, 0
      %vm1537 = vcmp.ne.s32.totalorder %v1493, 0
      %vm1538 = vcmp.ne.s32.totalorder %v1500, 0
      %vm1539 = vcmp.ne.s32.totalorder %v1507, 0
      %vm1540 = vcmp.lt.s32.totalorder %v1290, 0
      %vm1541 = vcmp.lt.s32.totalorder %v1297, 0
      %vm1542 = vcmp.lt.s32.totalorder %v1304, 0
      %vm1543 = vcmp.lt.s32.totalorder %v1311, 0
      %vm1544 = vcmp.lt.s32.totalorder %v1318, 0
      %vm1545 = vcmp.lt.s32.totalorder %v1325, 0
      %vm1546 = vcmp.lt.s32.totalorder %v1332, 0
      %vm1547 = vcmp.lt.s32.totalorder %v1339, 0
      %vm1548 = vcmp.lt.s32.totalorder %v1346, 0
      %vm1549 = vcmp.lt.s32.totalorder %v1353, 0
      %vm1550 = vcmp.lt.s32.totalorder %v1360, 0
      %vm1551 = vcmp.lt.s32.totalorder %v1367, 0
      %vm1552 = vcmp.lt.s32.totalorder %v1374, 0
      %vm1553 = vcmp.lt.s32.totalorder %v1381, 0
      %vm1554 = vcmp.lt.s32.totalorder %v1388, 0
      %vm1555 = vcmp.lt.s32.totalorder %v1395, 0
      %vm1556 = vcmp.lt.s32.totalorder %v1402, 0
      %vm1557 = vcmp.lt.s32.totalorder %v1409, 0
      %vm1558 = vcmp.lt.s32.totalorder %v1416, 0
      %vm1559 = vcmp.lt.s32.totalorder %v1423, 0
      %vm1560 = vcmp.lt.s32.totalorder %v1430, 0
      %vm1561 = vcmp.lt.s32.totalorder %v1437, 0
      %vm1562 = vcmp.lt.s32.totalorder %v1444, 0
      %vm1563 = vcmp.lt.s32.totalorder %v1451, 0
      %vm1564 = vcmp.lt.s32.totalorder %v1458, 0
      %vm1565 = vcmp.lt.s32.totalorder %v1465, 0
      %vm1566 = vcmp.lt.s32.totalorder %v1472, 0
      %vm1567 = vcmp.lt.s32.totalorder %v1479, 0
      %vm1568 = vcmp.lt.s32.totalorder %v1486, 0
      %vm1569 = vcmp.lt.s32.totalorder %v1493, 0
      %vm1570 = vcmp.lt.s32.totalorder %v1500, 0
      %vm1571 = vcmp.lt.s32.totalorder %v1507, 0
      %vm1572 = vmand %vm1540, %vm1508
      %vm1573 = vmand %vm1541, %vm1509
      %vm1574 = vmand %vm1542, %vm1510
      %vm1575 = vmand %vm1543, %vm1511
      %vm1576 = vmand %vm1544, %vm1512
      %vm1577 = vmand %vm1545, %vm1513
      %vm1578 = vmand %vm1546, %vm1514
      %vm1579 = vmand %vm1547, %vm1515
      %vm1580 = vmand %vm1548, %vm1516
      %vm1581 = vmand %vm1549, %vm1517
      %vm1582 = vmand %vm1550, %vm1518
      %vm1583 = vmand %vm1551, %vm1519
      %vm1584 = vmand %vm1552, %vm1520
      %vm1585 = vmand %vm1553, %vm1521
      %vm1586 = vmand %vm1554, %vm1522
      %vm1587 = vmand %vm1555, %vm1523
      %vm1588 = vmand %vm1556, %vm1524
      %vm1589 = vmand %vm1557, %vm1525
      %vm1590 = vmand %vm1558, %vm1526
      %vm1591 = vmand %vm1559, %vm1527
      %vm1592 = vmand %vm1560, %vm1528
      %vm1593 = vmand %vm1561, %vm1529
      %vm1594 = vmand %vm1562, %vm1530
      %vm1595 = vmand %vm1563, %vm1531
      %vm1596 = vmand %vm1564, %vm1532
      %vm1597 = vmand %vm1565, %vm1533
      %vm1598 = vmand %vm1566, %vm1534
      %vm1599 = vmand %vm1567, %vm1535
      %vm1600 = vmand %vm1568, %vm1536
      %vm1601 = vmand %vm1569, %vm1537
      %vm1602 = vmand %vm1570, %vm1538
      %vm1603 = vmand %vm1571, %vm1539
      %v1604 = vadd.s32 %v1290, 16
      %v1605 = vadd.s32 %v1297, 16
      %v1606 = vadd.s32 %v1304, 16
      %v1607 = vadd.s32 %v1311, 16
      %v1608 = vadd.s32 %v1318, 16
      %v1609 = vadd.s32 %v1325, 16
      %v1610 = vadd.s32 %v1332, 16
      %v1611 = vadd.s32 %v1339, 16
      %v1612 = vadd.s32 %v1346, 16
      %v1613 = vadd.s32 %v1353, 16
      %v1614 = vadd.s32 %v1360, 16
      %v1615 = vadd.s32 %v1367, 16
      %v1616 = vadd.s32 %v1374, 16
      %v1617 = vadd.s32 %v1381, 16
      %v1618 = vadd.s32 %v1388, 16
      %v1619 = vadd.s32 %v1395, 16
      %v1620 = vadd.s32 %v1402, 16
      %v1621 = vadd.s32 %v1409, 16
      %v1622 = vadd.s32 %v1416, 16
      %v1623 = vadd.s32 %v1423, 16
      %v1624 = vadd.s32 %v1430, 16
      %v1625 = vadd.s32 %v1437, 16
      %v1626 = vadd.s32 %v1444, 16
      %v1627 = vadd.s32 %v1451, 16
      %v1628 = vadd.s32 %v1458, 16
      %v1629 = vadd.s32 %v1465, 16
      %v1630 = vadd.s32 %v1472, 16
      %v1631 = vadd.s32 %v1479, 16
      %v1632 = vadd.s32 %v1486, 16
      %v1633 = vadd.s32 %v1493, 16
      %v1634 = vadd.s32 %v1500, 16
      %v1635 = vadd.s32 %v1507, 16
      %v1636 = vsel %vm1572, %v1604, %v1290
      %v1637 = vsel %vm1573, %v1605, %v1297
      %v1638 = vsel %vm1574, %v1606, %v1304
      %v1639 = vsel %vm1575, %v1607, %v1311
      %v1640 = vsel %vm1576, %v1608, %v1318
      %v1641 = vsel %vm1577, %v1609, %v1325
      %v1642 = vsel %vm1578, %v1610, %v1332
      %v1643 = vsel %vm1579, %v1611, %v1339
      %v1644 = vsel %vm1580, %v1612, %v1346
      %v1645 = vsel %vm1581, %v1613, %v1353
      %v1646 = vsel %vm1582, %v1614, %v1360
      %v1647 = vsel %vm1583, %v1615, %v1367
      %v1648 = vsel %vm1584, %v1616, %v1374
      %v1649 = vsel %vm1585, %v1617, %v1381
      %v1650 = vsel %vm1586, %v1618, %v1388
      %v1651 = vsel %vm1587, %v1619, %v1395
      %v1652 = vsel %vm1588, %v1620, %v1402
      %v1653 = vsel %vm1589, %v1621, %v1409
      %v1654 = vsel %vm1590, %v1622, %v1416
      %v1655 = vsel %vm1591, %v1623, %v1423
      %v1656 = vsel %vm1592, %v1624, %v1430
      %v1657 = vsel %vm1593, %v1625, %v1437
      %v1658 = vsel %vm1594, %v1626, %v1444
      %v1659 = vsel %vm1595, %v1627, %v1451
      %v1660 = vsel %vm1596, %v1628, %v1458
      %v1661 = vsel %vm1597, %v1629, %v1465
      %v1662 = vsel %vm1598, %v1630, %v1472
      %v1663 = vsel %vm1599, %v1631, %v1479
      %v1664 = vsel %vm1600, %v1632, %v1486
      %v1665 = vsel %vm1601, %v1633, %v1493
      %v1666 = vsel %vm1602, %v1634, %v1500
      %v1667 = vsel %vm1603, %v1635, %v1507
      %vm1668 = vcmp.ge.s32.totalorder %v1636, 1
      %vm1669 = vcmp.ge.s32.totalorder %v1637, 1
      %vm1670 = vcmp.ge.s32.totalorder %v1638, 1
      %vm1671 = vcmp.ge.s32.totalorder %v1639, 1
      %vm1672 = vcmp.ge.s32.totalorder %v1640, 1
      %vm1673 = vcmp.ge.s32.totalorder %v1641, 1
      %vm1674 = vcmp.ge.s32.totalorder %v1642, 1
      %vm1675 = vcmp.ge.s32.totalorder %v1643, 1
      %vm1676 = vcmp.ge.s32.totalorder %v1644, 1
      %vm1677 = vcmp.ge.s32.totalorder %v1645, 1
      %vm1678 = vcmp.ge.s32.totalorder %v1646, 1
      %vm1679 = vcmp.ge.s32.totalorder %v1647, 1
      %vm1680 = vcmp.ge.s32.totalorder %v1648, 1
      %vm1681 = vcmp.ge.s32.totalorder %v1649, 1
      %vm1682 = vcmp.ge.s32.totalorder %v1650, 1
      %vm1683 = vcmp.ge.s32.totalorder %v1651, 1
      %vm1684 = vcmp.ge.s32.totalorder %v1652, 1
      %vm1685 = vcmp.ge.s32.totalorder %v1653, 1
      %vm1686 = vcmp.ge.s32.totalorder %v1654, 1
      %vm1687 = vcmp.ge.s32.totalorder %v1655, 1
      %vm1688 = vcmp.ge.s32.totalorder %v1656, 1
      %vm1689 = vcmp.ge.s32.totalorder %v1657, 1
      %vm1690 = vcmp.ge.s32.totalorder %v1658, 1
      %vm1691 = vcmp.ge.s32.totalorder %v1659, 1
      %vm1692 = vcmp.ge.s32.totalorder %v1660, 1
      %vm1693 = vcmp.ge.s32.totalorder %v1661, 1
      %vm1694 = vcmp.ge.s32.totalorder %v1662, 1
      %vm1695 = vcmp.ge.s32.totalorder %v1663, 1
      %vm1696 = vcmp.ge.s32.totalorder %v1664, 1
      %vm1697 = vcmp.ge.s32.totalorder %v1665, 1
      %vm1698 = vcmp.ge.s32.totalorder %v1666, 1
      %vm1699 = vcmp.ge.s32.totalorder %v1667, 1
      %vm1700 = vcmp.lt.s32.totalorder %v1636, 15
      %vm1701 = vcmp.lt.s32.totalorder %v1637, 15
      %vm1702 = vcmp.lt.s32.totalorder %v1638, 15
      %vm1703 = vcmp.lt.s32.totalorder %v1639, 15
      %vm1704 = vcmp.lt.s32.totalorder %v1640, 15
      %vm1705 = vcmp.lt.s32.totalorder %v1641, 15
      %vm1706 = vcmp.lt.s32.totalorder %v1642, 15
      %vm1707 = vcmp.lt.s32.totalorder %v1643, 15
      %vm1708 = vcmp.lt.s32.totalorder %v1644, 15
      %vm1709 = vcmp.lt.s32.totalorder %v1645, 15
      %vm1710 = vcmp.lt.s32.totalorder %v1646, 15
      %vm1711 = vcmp.lt.s32.totalorder %v1647, 15
      %vm1712 = vcmp.lt.s32.totalorder %v1648, 15
      %vm1713 = vcmp.lt.s32.totalorder %v1649, 15
      %vm1714 = vcmp.lt.s32.totalorder %v1650, 15
      %vm1715 = vcmp.lt.s32.totalorder %v1651, 15
      %vm1716 = vcmp.lt.s32.totalorder %v1652, 15
      %vm1717 = vcmp.lt.s32.totalorder %v1653, 15
      %vm1718 = vcmp.lt.s32.totalorder %v1654, 15
      %vm1719 = vcmp.lt.s32.totalorder %v1655, 15
      %vm1720 = vcmp.lt.s32.totalorder %v1656, 15
      %vm1721 = vcmp.lt.s32.totalorder %v1657, 15
      %vm1722 = vcmp.lt.s32.totalorder %v1658, 15
      %vm1723 = vcmp.lt.s32.totalorder %v1659, 15
      %vm1724 = vcmp.lt.s32.totalorder %v1660, 15
      %vm1725 = vcmp.lt.s32.totalorder %v1661, 15
      %vm1726 = vcmp.lt.s32.totalorder %v1662, 15
      %vm1727 = vcmp.lt.s32.totalorder %v1663, 15
      %vm1728 = vcmp.lt.s32.totalorder %v1664, 15
      %vm1729 = vcmp.lt.s32.totalorder %v1665, 15
      %vm1730 = vcmp.lt.s32.totalorder %v1666, 15
      %vm1731 = vcmp.lt.s32.totalorder %v1667, 15
      %v1732 = vld [vmem:[#allocation2 + $0x7] sm:$0xff]
      %v1733 = vld [vmem:[#allocation2 + $0xf] sm:$0xff]
      %v1734 = vld [vmem:[#allocation2 + $0x17] sm:$0xff]
      %v1735 = vld [vmem:[#allocation2 + $0x1f] sm:$0xff]
      %v1736 = vld [vmem:[#allocation2 + $0x27] sm:$0xff]
      %v1737 = vld [vmem:[#allocation2 + $0x2f] sm:$0xff]
      %v1738 = vld [vmem:[#allocation2 + $0x37] sm:$0xff]
      %v1739 = vld [vmem:[#allocation2 + $0x3f] sm:$0xff]
      %v1740 = vld [vmem:[#allocation2 + $0x47] sm:$0xff]
      %v1741 = vld [vmem:[#allocation2 + $0x4f] sm:$0xff]
      %v1742 = vld [vmem:[#allocation2 + $0x57] sm:$0xff]
      %v1743 = vld [vmem:[#allocation2 + $0x5f] sm:$0xff]
      %v1744 = vld [vmem:[#allocation2 + $0x67] sm:$0xff]
      %v1745 = vld [vmem:[#allocation2 + $0x6f] sm:$0xff]
      %v1746 = vld [vmem:[#allocation2 + $0x77] sm:$0xff]
      %v1747 = vld [vmem:[#allocation2 + $0x7f] sm:$0xff]
      %v1748 = vld [vmem:[#allocation2 + $0x87] sm:$0xff]
      %v1749 = vld [vmem:[#allocation2 + $0x8f] sm:$0xff]
      %v1750 = vld [vmem:[#allocation2 + $0x97] sm:$0xff]
      %v1751 = vld [vmem:[#allocation2 + $0x9f] sm:$0xff]
      %v1752 = vld [vmem:[#allocation2 + $0xa7] sm:$0xff]
      %v1753 = vld [vmem:[#allocation2 + $0xaf] sm:$0xff]
      %v1754 = vld [vmem:[#allocation2 + $0xb7] sm:$0xff]
      %v1755 = vld [vmem:[#allocation2 + $0xbf] sm:$0xff]
      %v1756 = vld [vmem:[#allocation2 + $0xc7] sm:$0xff]
      %v1757 = vld [vmem:[#allocation2 + $0xcf] sm:$0xff]
      %v1758 = vld [vmem:[#allocation2 + $0xd7] sm:$0xff]
      %v1759 = vld [vmem:[#allocation2 + $0xdf] sm:$0xff]
      %v1760 = vld [vmem:[#allocation2 + $0xe7] sm:$0xff]
      %v1761 = vld [vmem:[#allocation2 + $0xef] sm:$0xff]
      %v1762 = vld [vmem:[#allocation2 + $0xf7] sm:$0xff]
      %v1763 = vld [vmem:[#allocation2 + $0xff] sm:$0xff]
      %v1764 = vsel %vm1668, %v1732, 0.0
      %v1765 = vsel %vm1669, %v1733, 0.0
      %v1766 = vsel %vm1670, %v1734, 0.0
      %v1767 = vsel %vm1671, %v1735, 0.0
      %v1768 = vsel %vm1672, %v1736, 0.0
      %v1769 = vsel %vm1673, %v1737, 0.0
      %v1770 = vsel %vm1674, %v1738, 0.0
      %v1771 = vsel %vm1675, %v1739, 0.0
      %v1772 = vsel %vm1676, %v1740, 0.0
      %v1773 = vsel %vm1677, %v1741, 0.0
      %v1774 = vsel %vm1678, %v1742, 0.0
      %v1775 = vsel %vm1679, %v1743, 0.0
      %v1776 = vsel %vm1680, %v1744, 0.0
      %v1777 = vsel %vm1681, %v1745, 0.0
      %v1778 = vsel %vm1682, %v1746, 0.0
      %v1779 = vsel %vm1683, %v1747, 0.0
      %v1780 = vsel %vm1684, %v1748, 0.0
      %v1781 = vsel %vm1685, %v1749, 0.0
      %v1782 = vsel %vm1686, %v1750, 0.0
      %v1783 = vsel %vm1687, %v1751, 0.0
      %v1784 = vsel %vm1688, %v1752, 0.0
      %v1785 = vsel %vm1689, %v1753, 0.0
      %v1786 = vsel %vm1690, %v1754, 0.0
      %v1787 = vsel %vm1691, %v1755, 0.0
      %v1788 = vsel %vm1692, %v1756, 0.0
      %v1789 = vsel %vm1693, %v1757, 0.0
      %v1790 = vsel %vm1694, %v1758, 0.0
      %v1791 = vsel %vm1695, %v1759, 0.0
      %v1792 = vsel %vm1696, %v1760, 0.0
      %v1793 = vsel %vm1697, %v1761, 0.0
      %v1794 = vsel %vm1698, %v1762, 0.0
      %v1795 = vsel %vm1699, %v1763, 0.0
      %v1796 = vpack.c.bf16 %v1765, %v1764
      %v1797 = vpack.c.bf16 %v1767, %v1766
      %v1798 = vpack.c.bf16 %v1769, %v1768
      %v1799 = vpack.c.bf16 %v1771, %v1770
      %v1800 = vpack.c.bf16 %v1773, %v1772
      %v1801 = vpack.c.bf16 %v1775, %v1774
      %v1802 = vpack.c.bf16 %v1777, %v1776
      %v1803 = vpack.c.bf16 %v1779, %v1778
      %v1804 = vpack.c.bf16 %v1781, %v1780
      %v1805 = vpack.c.bf16 %v1783, %v1782
      %v1806 = vpack.c.bf16 %v1785, %v1784
      %v1807 = vpack.c.bf16 %v1787, %v1786
      %v1808 = vpack.c.bf16 %v1789, %v1788
      %v1809 = vpack.c.bf16 %v1791, %v1790
      %v1810 = vpack.c.bf16 %v1793, %v1792
      %v1811 = vpack.c.bf16 %v1795, %v1794
      %v1812 = vld [vmem:[%s4] sm:$0xf]
      %v1813 = vld [vmem:[%s4 + $0x4] sm:$0xf]
      %v1814 = vld [vmem:[%s4 + $0x8] sm:$0xf]
      %v1815 = vld [vmem:[%s4 + $0xc] sm:$0xf]
      %v1816 = vld [vmem:[#allocation2 + $0x8] sm:$0xff]
      %v1817 = vld [vmem:[#allocation2 + $0x10] sm:$0xff]
      %v1818 = vld [vmem:[#allocation2 + $0x18] sm:$0xff]
      %v1819 = vld [vmem:[#allocation2 + $0x20] sm:$0xff]
      %v1820 = vld [vmem:[#allocation2 + $0x28] sm:$0xff]
      %v1821 = vld [vmem:[#allocation2 + $0x30] sm:$0xff]
      %v1822 = vld [vmem:[#allocation2 + $0x38] sm:$0xff]
      %v1823 = vld [vmem:[#allocation2 + $0x40] sm:$0xff]
      %v1824 = vld [vmem:[#allocation2 + $0x48] sm:$0xff]
      %v1825 = vld [vmem:[#allocation2 + $0x50] sm:$0xff]
      %v1826 = vld [vmem:[#allocation2 + $0x58] sm:$0xff]
      %v1827 = vld [vmem:[#allocation2 + $0x60] sm:$0xff]
      %v1828 = vld [vmem:[#allocation2 + $0x68] sm:$0xff]
      %v1829 = vld [vmem:[#allocation2 + $0x70] sm:$0xff]
      %v1830 = vld [vmem:[#allocation2 + $0x78] sm:$0xff]
      %v1831 = vld [vmem:[#allocation2 + $0x80] sm:$0xff]
      %v1832 = vld [vmem:[#allocation2 + $0x88] sm:$0xff]
      %v1833 = vld [vmem:[#allocation2 + $0x90] sm:$0xff]
      %v1834 = vld [vmem:[#allocation2 + $0x98] sm:$0xff]
      %v1835 = vld [vmem:[#allocation2 + $0xa0] sm:$0xff]
      %v1836 = vld [vmem:[#allocation2 + $0xa8] sm:$0xff]
      %v1837 = vld [vmem:[#allocation2 + $0xb0] sm:$0xff]
      %v1838 = vld [vmem:[#allocation2 + $0xb8] sm:$0xff]
      %v1839 = vld [vmem:[#allocation2 + $0xc0] sm:$0xff]
      %v1840 = vld [vmem:[#allocation2 + $0xc8] sm:$0xff]
      %v1841 = vld [vmem:[#allocation2 + $0xd0] sm:$0xff]
      %v1842 = vld [vmem:[#allocation2 + $0xd8] sm:$0xff]
      %v1843 = vld [vmem:[#allocation2 + $0xe0] sm:$0xff]
      %v1844 = vld [vmem:[#allocation2 + $0xe8] sm:$0xff]
      %v1845 = vld [vmem:[#allocation2 + $0xf0] sm:$0xff]
      %v1846 = vld [vmem:[#allocation2 + $0xf8] sm:$0xff]
      %v1847 = vld [vmem:[#allocation2 + $0x100] sm:$0xff]
      %v1848 = vpack.c.bf16 %v1817, %v1816
      %v1849 = vpack.c.bf16 %v1819, %v1818
      %v1850 = vpack.c.bf16 %v1821, %v1820
      %v1851 = vpack.c.bf16 %v1823, %v1822
      %v1852 = vpack.c.bf16 %v1825, %v1824
      %v1853 = vpack.c.bf16 %v1827, %v1826
      %v1854 = vpack.c.bf16 %v1829, %v1828
      %v1855 = vpack.c.bf16 %v1831, %v1830
      %v1856 = vpack.c.bf16 %v1833, %v1832
      %v1857 = vpack.c.bf16 %v1835, %v1834
      %v1858 = vpack.c.bf16 %v1837, %v1836
      %v1859 = vpack.c.bf16 %v1839, %v1838
      %v1860 = vpack.c.bf16 %v1841, %v1840
      %v1861 = vpack.c.bf16 %v1843, %v1842
      %v1862 = vpack.c.bf16 %v1845, %v1844
      %v1863 = vpack.c.bf16 %v1847, %v1846
      %s1864 = scalar_lea.vmem %s4, 16
      %v1865 = vld [vmem:[%s1864] sm:$0xf]
      %v1866 = vld [vmem:[%s1864 + $0x4] sm:$0xf]
      %v1867 = vld [vmem:[%s1864 + $0x8] sm:$0xf]
      %v1868 = vld [vmem:[%s1864 + $0xc] sm:$0xf]
      %v1873 = vunpack.c.l.b16 %v1865
      %v1874 = vunpack.c.l.b16 %v1866
      %v1875 = vunpack.c.l.b16 %v1867
      %v1876 = vunpack.c.l.b16 %v1868
      %v1877 = vpack.c.b16 %v1874, %v1873
      %v1878 = vpack.c.b16 %v1876, %v1875
      %v1882 = vsel %vm737, %v1848, 0
      %v1885 = vsel %vm737, %v1849, 0
      %v1888 = vsel %vm737, %v1850, 0
      %v1891 = vsel %vm737, %v1851, 0
      %v1894 = vsel %vm737, %v1852, 0
      %v1897 = vsel %vm737, %v1853, 0
      %v1900 = vsel %vm737, %v1854, 0
      %v1903 = vsel %vm737, %v1855, 0
      %v1906 = vsel %vm737, %v1856, 0
      %v1909 = vsel %vm737, %v1857, 0
      %v1912 = vsel %vm737, %v1858, 0
      %v1915 = vsel %vm737, %v1859, 0
      %v1918 = vsel %vm737, %v1860, 0
      %v1921 = vsel %vm737, %v1861, 0
      %v1924 = vsel %vm737, %v1862, 0
      %v1927 = vsel %vm737, %v1863, 0
      %1929 = vmatprep.subr.bf16.mxu0 0
      %1930 = vmatpush1.bf16.msra.mxu0 %v1877
      %1931 = vmatprep.subr.bf16.mxu0 0
      %1932 = vmatpush1.bf16.msra.mxu0 %v1878
      %1933 = vmatprep.subr.bf16.mxu0 0
      %1934 = vmatpush1.bf16.msra.mxu0 0
      %1935 = vmatprep.subr.bf16.mxu0 0
      %1936 = vmatpush1.bf16.msra.mxu0 0
      %1937 = vmatprep.subr.bf16.mxu0 0
      %1938 = vmatpush1.bf16.msra.mxu0 0
      %1939 = vmatprep.subr.bf16.mxu0 0
      %1940 = vmatpush1.bf16.msra.mxu0 0
      %1941 = vmatprep.subr.bf16.mxu0 0
      %1942 = vmatpush1.bf16.msra.mxu0 0
      %1943 = vmatprep.subr.bf16.mxu0 0
      %1944 = vmatpush1.bf16.msra.mxu0 0
      %1945 = vmatprep.subr.bf16.mxu0 0
      %1946 = vmatpush1.bf16.msra.mxu0 0
      %1947 = vmatprep.subr.bf16.mxu0 0
      %1948 = vmatpush1.bf16.msra.mxu0 0
      %1949 = vmatprep.subr.bf16.mxu0 0
      %1950 = vmatpush1.bf16.msra.mxu0 0
      %1951 = vmatprep.subr.bf16.mxu0 0
      %1952 = vmatpush1.bf16.msra.mxu0 0
      %1953 = vmatprep.subr.bf16.mxu0 0
      %1954 = vmatpush1.bf16.msra.mxu0 0
      %1955 = vmatprep.subr.bf16.mxu0 0
      %1956 = vmatpush1.bf16.msra.mxu0 0
      %1957 = vmatprep.subr.bf16.mxu0 0
      %1958 = vmatpush1.bf16.msra.mxu0 0
      %1959 = vmatprep.subr.bf16.mxu0 0
      %1960 = vmatpush1.bf16.msra.mxu0 0
      %1961 = vmatprep.mubr.bf16.mxu0 0
      %1962 = vmatmul.mubr.bf16.gmra.mrb[0].mxu0 %v1882
      %v1963 = vpop.f32.mrb[0].mxu0
      %v1964 = vadd.f32 0.0, %v1963
      %v1965 = vpop.f32.mrb[0].mxu0
      %v1966 = vpop.f32.mrb[0].mxu0
      %v1967 = vadd.f32 0.0, %v1966
      %v1968 = vpop.f32.mrb[0].mxu0
      %1969 = vmatprep.mubr.bf16.mxu0 0
      %1970 = vmatmul.mubr.bf16.gmra.mrb[0].mxu0 %v1885
      %v1971 = vpop.f32.mrb[0].mxu0
      %v1972 = vadd.f32 0.0, %v1971
      %v1973 = vpop.f32.mrb[0].mxu0
      %v1974 = vpop.f32.mrb[0].mxu0
      %v1975 = vadd.f32 0.0, %v1974
      %v1976 = vpop.f32.mrb[0].mxu0
      %1977 = vmatprep.mubr.bf16.mxu0 0
      %1978 = vmatmul.mubr.bf16.gmra.mrb[0].mxu0 %v1888
      %v1979 = vpop.f32.mrb[0].mxu0
      %v1980 = vadd.f32 0.0, %v1979
      %v1981 = vpop.f32.mrb[0].mxu0
      %v1982 = vpop.f32.mrb[0].mxu0
      %v1983 = vadd.f32 0.0, %v1982
      %v1984 = vpop.f32.mrb[0].mxu0
      %1985 = vmatprep.mubr.bf16.mxu0 0
      %1986 = vmatmul.mubr.bf16.gmra.mrb[0].mxu0 %v1891
      %v1987 = vpop.f32.mrb[0].mxu0
      %v1988 = vadd.f32 0.0, %v1987
      %v1989 = vpop.f32.mrb[0].mxu0
      %v1990 = vpop.f32.mrb[0].mxu0
      %v1991 = vadd.f32 0.0, %v1990
      %v1992 = vpop.f32.mrb[0].mxu0
      %1993 = vmatprep.mubr.bf16.mxu0 0
      %1994 = vmatmul.mubr.bf16.gmra.mrb[0].mxu0 %v1894
      %v1995 = vpop.f32.mrb[0].mxu0
      %v1996 = vadd.f32 0.0, %v1995
      %v1997 = vpop.f32.mrb[0].mxu0
      %v1998 = vpop.f32.mrb[0].mxu0
      %v1999 = vadd.f32 0.0, %v1998
      %v2000 = vpop.f32.mrb[0].mxu0
      %2001 = vmatprep.mubr.bf16.mxu0 0
      %2002 = vmatmul.mubr.bf16.gmra.mrb[0].mxu0 %v1897
      %v2003 = vpop.f32.mrb[0].mxu0
      %v2004 = vadd.f32 0.0, %v2003
      %v2005 = vpop.f32.mrb[0].mxu0
      %v2006 = vpop.f32.mrb[0].mxu0
      %v2007 = vadd.f32 0.0, %v2006
      %v2008 = vpop.f32.mrb[0].mxu0
      %2009 = vmatprep.mubr.bf16.mxu0 0
      %2010 = vmatmul.mubr.bf16.gmra.mrb[0].mxu0 %v1900
      %v2011 = vpop.f32.mrb[0].mxu0
      %v2012 = vadd.f32 0.0, %v2011
      %v2013 = vpop.f32.mrb[0].mxu0
      %v2014 = vpop.f32.mrb[0].mxu0
      %v2015 = vadd.f32 0.0, %v2014
      %v2016 = vpop.f32.mrb[0].mxu0
      %2017 = vmatprep.mubr.bf16.mxu0 0
      %2018 = vmatmul.mubr.bf16.gmra.mrb[0].mxu0 %v1903
      %v2019 = vpop.f32.mrb[0].mxu0
      %v2020 = vadd.f32 0.0, %v2019
      %v2021 = vpop.f32.mrb[0].mxu0
      %v2022 = vpop.f32.mrb[0].mxu0
      %v2023 = vadd.f32 0.0, %v2022
      %v2024 = vpop.f32.mrb[0].mxu0
      %2025 = vmatprep.mubr.bf16.mxu0 0
      %2026 = vmatmul.mubr.bf16.gmra.mrb[0].mxu0 %v1906
      %v2027 = vpop.f32.mrb[0].mxu0
      %v2028 = vadd.f32 0.0, %v2027
      %v2029 = vpop.f32.mrb[0].mxu0
      %v2030 = vpop.f32.mrb[0].mxu0
      %v2031 = vadd.f32 0.0, %v2030
      %v2032 = vpop.f32.mrb[0].mxu0
      %2033 = vmatprep.mubr.bf16.mxu0 0
      %2034 = vmatmul.mubr.bf16.gmra.mrb[0].mxu0 %v1909
      %v2035 = vpop.f32.mrb[0].mxu0
      %v2036 = vadd.f32 0.0, %v2035
      %v2037 = vpop.f32.mrb[0].mxu0
      %v2038 = vpop.f32.mrb[0].mxu0
      %v2039 = vadd.f32 0.0, %v2038
      %v2040 = vpop.f32.mrb[0].mxu0
      %2041 = vmatprep.mubr.bf16.mxu0 0
      %2042 = vmatmul.mubr.bf16.gmra.mrb[0].mxu0 %v1912
      %v2043 = vpop.f32.mrb[0].mxu0
      %v2044 = vadd.f32 0.0, %v2043
      %v2045 = vpop.f32.mrb[0].mxu0
      %v2046 = vpop.f32.mrb[0].mxu0
      %v2047 = vadd.f32 0.0, %v2046
      %v2048 = vpop.f32.mrb[0].mxu0
      %2049 = vmatprep.mubr.bf16.mxu0 0
      %2050 = vmatmul.mubr.bf16.gmra.mrb[0].mxu0 %v1915
      %v2051 = vpop.f32.mrb[0].mxu0
      %v2052 = vadd.f32 0.0, %v2051
      %v2053 = vpop.f32.mrb[0].mxu0
      %v2054 = vpop.f32.mrb[0].mxu0
      %v2055 = vadd.f32 0.0, %v2054
      %v2056 = vpop.f32.mrb[0].mxu0
      %2057 = vmatprep.mubr.bf16.mxu0 0
      %2058 = vmatmul.mubr.bf16.gmra.mrb[0].mxu0 %v1918
      %v2059 = vpop.f32.mrb[0].mxu0
      %v2060 = vadd.f32 0.0, %v2059
      %v2061 = vpop.f32.mrb[0].mxu0
      %v2062 = vpop.f32.mrb[0].mxu0
      %v2063 = vadd.f32 0.0, %v2062
      %v2064 = vpop.f32.mrb[0].mxu0
      %2065 = vmatprep.mubr.bf16.mxu0 0
      %2066 = vmatmul.mubr.bf16.gmra.mrb[0].mxu0 %v1921
      %v2067 = vpop.f32.mrb[0].mxu0
      %v2068 = vadd.f32 0.0, %v2067
      %v2069 = vpop.f32.mrb[0].mxu0
      %v2070 = vpop.f32.mrb[0].mxu0
      %v2071 = vadd.f32 0.0, %v2070
      %v2072 = vpop.f32.mrb[0].mxu0
      %2073 = vmatprep.mubr.bf16.mxu0 0
      %2074 = vmatmul.mubr.bf16.gmra.mrb[0].mxu0 %v1924
      %v2075 = vpop.f32.mrb[0].mxu0
      %v2076 = vadd.f32 0.0, %v2075
      %v2077 = vpop.f32.mrb[0].mxu0
      %v2078 = vpop.f32.mrb[0].mxu0
      %v2079 = vadd.f32 0.0, %v2078
      %v2080 = vpop.f32.mrb[0].mxu0
      %2081 = vmatprep.mubr.bf16.mxu0 0
      %2082 = vmatmul.mubr.bf16.gmra.mrb[0].mxu0 %v1927
      %v2083 = vpop.f32.mrb[0].mxu0
      %v2084 = vadd.f32 0.0, %v2083
      %v2085 = vpop.f32.mrb[0].mxu0
      %v2086 = vpop.f32.mrb[0].mxu0
      %v2087 = vadd.f32 0.0, %v2086
      %v2088 = vpop.f32.mrb[0].mxu0
      %2089 = vdwg.mxu0
      %v2094 = vunpack.c.l.b16 %v1812
      %v2095 = vunpack.c.l.b16 %v1813
      %v2096 = vunpack.c.l.b16 %v1814
      %v2097 = vunpack.c.l.b16 %v1815
      %v2098 = vpack.c.b16 %v2095, %v2094
      %v2099 = vpack.c.b16 %v2097, %v2096
      %v2103 = vsel %vm737, %v1796, 0
      %v2106 = vsel %vm737, %v1797, 0
      %v2109 = vsel %vm737, %v1798, 0
      %v2112 = vsel %vm737, %v1799, 0
      %v2115 = vsel %vm737, %v1800, 0
      %v2118 = vsel %vm737, %v1801, 0
      %v2121 = vsel %vm737, %v1802, 0
      %v2124 = vsel %vm737, %v1803, 0
      %v2127 = vsel %vm737, %v1804, 0
      %v2130 = vsel %vm737, %v1805, 0
      %v2133 = vsel %vm737, %v1806, 0
      %v2136 = vsel %vm737, %v1807, 0
      %v2139 = vsel %vm737, %v1808, 0
      %v2142 = vsel %vm737, %v1809, 0
      %v2145 = vsel %vm737, %v1810, 0
      %v2148 = vsel %vm737, %v1811, 0
      %2150 = vmatprep.subr.bf16.mxu0 0
      %2151 = vmatpush1.bf16.msra.mxu0 %v2098
      %2152 = vmatprep.subr.bf16.mxu0 0
      %2153 = vmatpush1.bf16.msra.mxu0 %v2099
      %2154 = vmatprep.subr.bf16.mxu0 0
      %2155 = vmatpush1.bf16.msra.mxu0 0
      %2156 = vmatprep.subr.bf16.mxu0 0
      %2157 = vmatpush1.bf16.msra.mxu0 0
      %2158 = vmatprep.subr.bf16.mxu0 0
      %2159 = vmatpush1.bf16.msra.mxu0 0
      %2160 = vmatprep.subr.bf16.mxu0 0
      %2161 = vmatpush1.bf16.msra.mxu0 0
      %2162 = vmatprep.subr.bf16.mxu0 0
      %2163 = vmatpush1.bf16.msra.mxu0 0
      %2164 = vmatprep.subr.bf16.mxu0 0
      %2165 = vmatpush1.bf16.msra.mxu0 0
      %2166 = vmatprep.subr.bf16.mxu0 0
      %2167 = vmatpush1.bf16.msra.mxu0 0
      %2168 = vmatprep.subr.bf16.mxu0 0
      %2169 = vmatpush1.bf16.msra.mxu0 0
      %2170 = vmatprep.subr.bf16.mxu0 0
      %2171 = vmatpush1.bf16.msra.mxu0 0
      %2172 = vmatprep.subr.bf16.mxu0 0
      %2173 = vmatpush1.bf16.msra.mxu0 0
      %2174 = vmatprep.subr.bf16.mxu0 0
      %2175 = vmatpush1.bf16.msra.mxu0 0
      %2176 = vmatprep.subr.bf16.mxu0 0
      %2177 = vmatpush1.bf16.msra.mxu0 0
      %2178 = vmatprep.subr.bf16.mxu0 0
      %2179 = vmatpush1.bf16.msra.mxu0 0
      %2180 = vmatprep.subr.bf16.mxu0 0
      %2181 = vmatpush1.bf16.msra.mxu0 0
      %2182 = vmatprep.mubr.bf16.mxu0 0
      %2183 = vmatmul.mubr.bf16.gmra.mrb[0].mxu0 %v2103
      %v2184 = vpop.f32.mrb[0].mxu0
      %v2185 = vadd.f32 %v1964, %v2184
      %v2186 = vpop.f32.mrb[0].mxu0
      %v2187 = vpop.f32.mrb[0].mxu0
      %v2188 = vadd.f32 %v1967, %v2187
      %v2189 = vpop.f32.mrb[0].mxu0
      %2190 = vmatprep.mubr.bf16.mxu0 0
      %2191 = vmatmul.mubr.bf16.gmra.mrb[0].mxu0 %v2106
      %v2192 = vpop.f32.mrb[0].mxu0
      %v2193 = vadd.f32 %v1972, %v2192
      %v2194 = vpop.f32.mrb[0].mxu0
      %v2195 = vpop.f32.mrb[0].mxu0
      %v2196 = vadd.f32 %v1975, %v2195
      %v2197 = vpop.f32.mrb[0].mxu0
      %2198 = vmatprep.mubr.bf16.mxu0 0
      %2199 = vmatmul.mubr.bf16.gmra.mrb[0].mxu0 %v2109
      %v2200 = vpop.f32.mrb[0].mxu0
      %v2201 = vadd.f32 %v1980, %v2200
      %v2202 = vpop.f32.mrb[0].mxu0
      %v2203 = vpop.f32.mrb[0].mxu0
      %v2204 = vadd.f32 %v1983, %v2203
      %v2205 = vpop.f32.mrb[0].mxu0
      %2206 = vmatprep.mubr.bf16.mxu0 0
      %2207 = vmatmul.mubr.bf16.gmra.mrb[0].mxu0 %v2112
      %v2208 = vpop.f32.mrb[0].mxu0
      %v2209 = vadd.f32 %v1988, %v2208
      %v2210 = vpop.f32.mrb[0].mxu0
      %v2211 = vpop.f32.mrb[0].mxu0
      %v2212 = vadd.f32 %v1991, %v2211
      %v2213 = vpop.f32.mrb[0].mxu0
      %2214 = vmatprep.mubr.bf16.mxu0 0
      %2215 = vmatmul.mubr.bf16.gmra.mrb[0].mxu0 %v2115
      %v2216 = vpop.f32.mrb[0].mxu0
      %v2217 = vadd.f32 %v1996, %v2216
      %v2218 = vpop.f32.mrb[0].mxu0
      %v2219 = vpop.f32.mrb[0].mxu0
      %v2220 = vadd.f32 %v1999, %v2219
      %v2221 = vpop.f32.mrb[0].mxu0
      %2222 = vmatprep.mubr.bf16.mxu0 0
      %2223 = vmatmul.mubr.bf16.gmra.mrb[0].mxu0 %v2118
      %v2224 = vpop.f32.mrb[0].mxu0
      %v2225 = vadd.f32 %v2004, %v2224
      %v2226 = vpop.f32.mrb[0].mxu0
      %v2227 = vpop.f32.mrb[0].mxu0
      %v2228 = vadd.f32 %v2007, %v2227
      %v2229 = vpop.f32.mrb[0].mxu0
      %2230 = vmatprep.mubr.bf16.mxu0 0
      %2231 = vmatmul.mubr.bf16.gmra.mrb[0].mxu0 %v2121
      %v2232 = vpop.f32.mrb[0].mxu0
      %v2233 = vadd.f32 %v2012, %v2232
      %v2234 = vpop.f32.mrb[0].mxu0
      %v2235 = vpop.f32.mrb[0].mxu0
      %v2236 = vadd.f32 %v2015, %v2235
      %v2237 = vpop.f32.mrb[0].mxu0
      %2238 = vmatprep.mubr.bf16.mxu0 0
      %2239 = vmatmul.mubr.bf16.gmra.mrb[0].mxu0 %v2124
      %v2240 = vpop.f32.mrb[0].mxu0
      %v2241 = vadd.f32 %v2020, %v2240
      %v2242 = vpop.f32.mrb[0].mxu0
      %v2243 = vpop.f32.mrb[0].mxu0
      %v2244 = vadd.f32 %v2023, %v2243
      %v2245 = vpop.f32.mrb[0].mxu0
      %2246 = vmatprep.mubr.bf16.mxu0 0
      %2247 = vmatmul.mubr.bf16.gmra.mrb[0].mxu0 %v2127
      %v2248 = vpop.f32.mrb[0].mxu0
      %v2249 = vadd.f32 %v2028, %v2248
      %v2250 = vpop.f32.mrb[0].mxu0
      %v2251 = vpop.f32.mrb[0].mxu0
      %v2252 = vadd.f32 %v2031, %v2251
      %v2253 = vpop.f32.mrb[0].mxu0
      %2254 = vmatprep.mubr.bf16.mxu0 0
      %2255 = vmatmul.mubr.bf16.gmra.mrb[0].mxu0 %v2130
      %v2256 = vpop.f32.mrb[0].mxu0
      %v2257 = vadd.f32 %v2036, %v2256
      %v2258 = vpop.f32.mrb[0].mxu0
      %v2259 = vpop.f32.mrb[0].mxu0
      %v2260 = vadd.f32 %v2039, %v2259
      %v2261 = vpop.f32.mrb[0].mxu0
      %2262 = vmatprep.mubr.bf16.mxu0 0
      %2263 = vmatmul.mubr.bf16.gmra.mrb[0].mxu0 %v2133
      %v2264 = vpop.f32.mrb[0].mxu0
      %v2265 = vadd.f32 %v2044, %v2264
      %v2266 = vpop.f32.mrb[0].mxu0
      %v2267 = vpop.f32.mrb[0].mxu0
      %v2268 = vadd.f32 %v2047, %v2267
      %v2269 = vpop.f32.mrb[0].mxu0
      %2270 = vmatprep.mubr.bf16.mxu0 0
      %2271 = vmatmul.mubr.bf16.gmra.mrb[0].mxu0 %v2136
      %v2272 = vpop.f32.mrb[0].mxu0
      %v2273 = vadd.f32 %v2052, %v2272
      %v2274 = vpop.f32.mrb[0].mxu0
      %v2275 = vpop.f32.mrb[0].mxu0
      %v2276 = vadd.f32 %v2055, %v2275
      %v2277 = vpop.f32.mrb[0].mxu0
      %2278 = vmatprep.mubr.bf16.mxu0 0
      %2279 = vmatmul.mubr.bf16.gmra.mrb[0].mxu0 %v2139
      %v2280 = vpop.f32.mrb[0].mxu0
      %v2281 = vadd.f32 %v2060, %v2280
      %v2282 = vpop.f32.mrb[0].mxu0
      %v2283 = vpop.f32.mrb[0].mxu0
      %v2284 = vadd.f32 %v2063, %v2283
      %v2285 = vpop.f32.mrb[0].mxu0
      %2286 = vmatprep.mubr.bf16.mxu0 0
      %2287 = vmatmul.mubr.bf16.gmra.mrb[0].mxu0 %v2142
      %v2288 = vpop.f32.mrb[0].mxu0
      %v2289 = vadd.f32 %v2068, %v2288
      %v2290 = vpop.f32.mrb[0].mxu0
      %v2291 = vpop.f32.mrb[0].mxu0
      %v2292 = vadd.f32 %v2071, %v2291
      %v2293 = vpop.f32.mrb[0].mxu0
      %2294 = vmatprep.mubr.bf16.mxu0 0
      %2295 = vmatmul.mubr.bf16.gmra.mrb[0].mxu0 %v2145
      %v2296 = vpop.f32.mrb[0].mxu0
      %v2297 = vadd.f32 %v2076, %v2296
      %v2298 = vpop.f32.mrb[0].mxu0
      %v2299 = vpop.f32.mrb[0].mxu0
      %v2300 = vadd.f32 %v2079, %v2299
      %v2301 = vpop.f32.mrb[0].mxu0
      %2302 = vmatprep.mubr.bf16.mxu0 0
      %2303 = vmatmul.mubr.bf16.gmra.mrb[0].mxu0 %v2148
      %v2304 = vpop.f32.mrb[0].mxu0
      %v2305 = vadd.f32 %v2084, %v2304
      %v2306 = vpop.f32.mrb[0].mxu0
      %v2307 = vpop.f32.mrb[0].mxu0
      %v2308 = vadd.f32 %v2087, %v2307
      %v2309 = vpop.f32.mrb[0].mxu0
      %2310 = vdwg.mxu0
      %v2311 = vld [vmem:[#allocation2 + $0x9] sm:$0xff]
      %v2312 = vld [vmem:[#allocation2 + $0x11] sm:$0xff]
      %v2313 = vld [vmem:[#allocation2 + $0x19] sm:$0xff]
      %v2314 = vld [vmem:[#allocation2 + $0x21] sm:$0xff]
      %v2315 = vld [vmem:[#allocation2 + $0x29] sm:$0xff]
      %v2316 = vld [vmem:[#allocation2 + $0x31] sm:$0xff]
      %v2317 = vld [vmem:[#allocation2 + $0x39] sm:$0xff]
      %v2318 = vld [vmem:[#allocation2 + $0x41] sm:$0xff]
      %v2319 = vld [vmem:[#allocation2 + $0x49] sm:$0xff]
      %v2320 = vld [vmem:[#allocation2 + $0x51] sm:$0xff]
      %v2321 = vld [vmem:[#allocation2 + $0x59] sm:$0xff]
      %v2322 = vld [vmem:[#allocation2 + $0x61] sm:$0xff]
      %v2323 = vld [vmem:[#allocation2 + $0x69] sm:$0xff]
      %v2324 = vld [vmem:[#allocation2 + $0x71] sm:$0xff]
      %v2325 = vld [vmem:[#allocation2 + $0x79] sm:$0xff]
      %v2326 = vld [vmem:[#allocation2 + $0x81] sm:$0xff]
      %v2327 = vld [vmem:[#allocation2 + $0x89] sm:$0xff]
      %v2328 = vld [vmem:[#allocation2 + $0x91] sm:$0xff]
      %v2329 = vld [vmem:[#allocation2 + $0x99] sm:$0xff]
      %v2330 = vld [vmem:[#allocation2 + $0xa1] sm:$0xff]
      %v2331 = vld [vmem:[#allocation2 + $0xa9] sm:$0xff]
      %v2332 = vld [vmem:[#allocation2 + $0xb1] sm:$0xff]
      %v2333 = vld [vmem:[#allocation2 + $0xb9] sm:$0xff]
      %v2334 = vld [vmem:[#allocation2 + $0xc1] sm:$0xff]
      %v2335 = vld [vmem:[#allocation2 + $0xc9] sm:$0xff]
      %v2336 = vld [vmem:[#allocation2 + $0xd1] sm:$0xff]
      %v2337 = vld [vmem:[#allocation2 + $0xd9] sm:$0xff]
      %v2338 = vld [vmem:[#allocation2 + $0xe1] sm:$0xff]
      %v2339 = vld [vmem:[#allocation2 + $0xe9] sm:$0xff]
      %v2340 = vld [vmem:[#allocation2 + $0xf1] sm:$0xff]
      %v2341 = vld [vmem:[#allocation2 + $0xf9] sm:$0xff]
      %v2342 = vld [vmem:[#allocation2 + $0x101] sm:$0xff]
      %v2343 = vsel %vm1700, %v2311, 0.0
      %v2344 = vsel %vm1701, %v2312, 0.0
      %v2345 = vsel %vm1702, %v2313, 0.0
      %v2346 = vsel %vm1703, %v2314, 0.0
      %v2347 = vsel %vm1704, %v2315, 0.0
      %v2348 = vsel %vm1705, %v2316, 0.0
      %v2349 = vsel %vm1706, %v2317, 0.0
      %v2350 = vsel %vm1707, %v2318, 0.0
      %v2351 = vsel %vm1708, %v2319, 0.0
      %v2352 = vsel %vm1709, %v2320, 0.0
      %v2353 = vsel %vm1710, %v2321, 0.0
      %v2354 = vsel %vm1711, %v2322, 0.0
      %v2355 = vsel %vm1712, %v2323, 0.0
      %v2356 = vsel %vm1713, %v2324, 0.0
      %v2357 = vsel %vm1714, %v2325, 0.0
      %v2358 = vsel %vm1715, %v2326, 0.0
      %v2359 = vsel %vm1716, %v2327, 0.0
      %v2360 = vsel %vm1717, %v2328, 0.0
      %v2361 = vsel %vm1718, %v2329, 0.0
      %v2362 = vsel %vm1719, %v2330, 0.0
      %v2363 = vsel %vm1720, %v2331, 0.0
      %v2364 = vsel %vm1721, %v2332, 0.0
      %v2365 = vsel %vm1722, %v2333, 0.0
      %v2366 = vsel %vm1723, %v2334, 0.0
      %v2367 = vsel %vm1724, %v2335, 0.0
      %v2368 = vsel %vm1725, %v2336, 0.0
      %v2369 = vsel %vm1726, %v2337, 0.0
      %v2370 = vsel %vm1727, %v2338, 0.0
      %v2371 = vsel %vm1728, %v2339, 0.0
      %v2372 = vsel %vm1729, %v2340, 0.0
      %v2373 = vsel %vm1730, %v2341, 0.0
      %v2374 = vsel %vm1731, %v2342, 0.0
      %v2375 = vpack.c.bf16 %v2344, %v2343
      %v2376 = vpack.c.bf16 %v2346, %v2345
      %v2377 = vpack.c.bf16 %v2348, %v2347
      %v2378 = vpack.c.bf16 %v2350, %v2349
      %v2379 = vpack.c.bf16 %v2352, %v2351
      %v2380 = vpack.c.bf16 %v2354, %v2353
      %v2381 = vpack.c.bf16 %v2356, %v2355
      %v2382 = vpack.c.bf16 %v2358, %v2357
      %v2383 = vpack.c.bf16 %v2360, %v2359
      %v2384 = vpack.c.bf16 %v2362, %v2361
      %v2385 = vpack.c.bf16 %v2364, %v2363
      %v2386 = vpack.c.bf16 %v2366, %v2365
      %v2387 = vpack.c.bf16 %v2368, %v2367
      %v2388 = vpack.c.bf16 %v2370, %v2369
      %v2389 = vpack.c.bf16 %v2372, %v2371
      %v2390 = vpack.c.bf16 %v2374, %v2373
      %s2391 = scalar_lea.vmem %s4, 32
      %v2392 = vld [vmem:[%s2391] sm:$0xf]
      %v2393 = vld [vmem:[%s2391 + $0x4] sm:$0xf]
      %v2394 = vld [vmem:[%s2391 + $0x8] sm:$0xf]
      %v2395 = vld [vmem:[%s2391 + $0xc] sm:$0xf]
      %v2400 = vunpack.c.l.b16 %v2392
      %v2401 = vunpack.c.l.b16 %v2393
      %v2402 = vunpack.c.l.b16 %v2394
      %v2403 = vunpack.c.l.b16 %v2395
      %v2404 = vpack.c.b16 %v2401, %v2400
      %v2405 = vpack.c.b16 %v2403, %v2402
      %v2409 = vsel %vm737, %v2375, 0
      %v2412 = vsel %vm737, %v2376, 0
      %v2415 = vsel %vm737, %v2377, 0
      %v2418 = vsel %vm737, %v2378, 0
      %v2421 = vsel %vm737, %v2379, 0
      %v2424 = vsel %vm737, %v2380, 0
      %v2427 = vsel %vm737, %v2381, 0
      %v2430 = vsel %vm737, %v2382, 0
      %v2433 = vsel %vm737, %v2383, 0
      %v2436 = vsel %vm737, %v2384, 0
      %v2439 = vsel %vm737, %v2385, 0
      %v2442 = vsel %vm737, %v2386, 0
      %v2445 = vsel %vm737, %v2387, 0
      %v2448 = vsel %vm737, %v2388, 0
      %v2451 = vsel %vm737, %v2389, 0
      %v2454 = vsel %vm737, %v2390, 0
      %2456 = vmatprep.subr.bf16.mxu0 0
      %2457 = vmatpush1.bf16.msra.mxu0 %v2404
      %2458 = vmatprep.subr.bf16.mxu0 0
      %2459 = vmatpush1.bf16.msra.mxu0 %v2405
      %2460 = vmatprep.subr.bf16.mxu0 0
      %2461 = vmatpush1.bf16.msra.mxu0 0
      %2462 = vmatprep.subr.bf16.mxu0 0
      %2463 = vmatpush1.bf16.msra.mxu0 0
      %2464 = vmatprep.subr.bf16.mxu0 0
      %2465 = vmatpush1.bf16.msra.mxu0 0
      %2466 = vmatprep.subr.bf16.mxu0 0
      %2467 = vmatpush1.bf16.msra.mxu0 0
      %2468 = vmatprep.subr.bf16.mxu0 0
      %2469 = vmatpush1.bf16.msra.mxu0 0
      %2470 = vmatprep.subr.bf16.mxu0 0
      %2471 = vmatpush1.bf16.msra.mxu0 0
      %2472 = vmatprep.subr.bf16.mxu0 0
      %2473 = vmatpush1.bf16.msra.mxu0 0
      %2474 = vmatprep.subr.bf16.mxu0 0
      %2475 = vmatpush1.bf16.msra.mxu0 0
      %2476 = vmatprep.subr.bf16.mxu0 0
      %2477 = vmatpush1.bf16.msra.mxu0 0
      %2478 = vmatprep.subr.bf16.mxu0 0
      %2479 = vmatpush1.bf16.msra.mxu0 0
      %2480 = vmatprep.subr.bf16.mxu0 0
      %2481 = vmatpush1.bf16.msra.mxu0 0
      %2482 = vmatprep.subr.bf16.mxu0 0
      %2483 = vmatpush1.bf16.msra.mxu0 0
      %2484 = vmatprep.subr.bf16.mxu0 0
      %2485 = vmatpush1.bf16.msra.mxu0 0
      %2486 = vmatprep.subr.bf16.mxu0 0
      %2487 = vmatpush1.bf16.msra.mxu0 0
      %2488 = vmatprep.mubr.bf16.mxu0 0
      %2489 = vmatmul.mubr.bf16.gmra.mrb[0].mxu0 %v2409
      %v2490 = vpop.f32.mrb[0].mxu0
      %v2491 = vadd.f32 0.0, %v2490
      %v2492 = vpop.f32.mrb[0].mxu0
      %v2493 = vpop.f32.mrb[0].mxu0
      %v2494 = vadd.f32 0.0, %v2493
      %v2495 = vpop.f32.mrb[0].mxu0
      %2496 = vmatprep.mubr.bf16.mxu0 0
      %2497 = vmatmul.mubr.bf16.gmra.mrb[0].mxu0 %v2412
      %v2498 = vpop.f32.mrb[0].mxu0
      %v2499 = vadd.f32 0.0, %v2498
      %v2500 = vpop.f32.mrb[0].mxu0
      %v2501 = vpop.f32.mrb[0].mxu0
      %v2502 = vadd.f32 0.0, %v2501
      %v2503 = vpop.f32.mrb[0].mxu0
      %2504 = vmatprep.mubr.bf16.mxu0 0
      %2505 = vmatmul.mubr.bf16.gmra.mrb[0].mxu0 %v2415
      %v2506 = vpop.f32.mrb[0].mxu0
      %v2507 = vadd.f32 0.0, %v2506
      %v2508 = vpop.f32.mrb[0].mxu0
      %v2509 = vpop.f32.mrb[0].mxu0
      %v2510 = vadd.f32 0.0, %v2509
      %v2511 = vpop.f32.mrb[0].mxu0
      %2512 = vmatprep.mubr.bf16.mxu0 0
      %2513 = vmatmul.mubr.bf16.gmra.mrb[0].mxu0 %v2418
      %v2514 = vpop.f32.mrb[0].mxu0
      %v2515 = vadd.f32 0.0, %v2514
      %v2516 = vpop.f32.mrb[0].mxu0
      %v2517 = vpop.f32.mrb[0].mxu0
      %v2518 = vadd.f32 0.0, %v2517
      %v2519 = vpop.f32.mrb[0].mxu0
      %2520 = vmatprep.mubr.bf16.mxu0 0
      %2521 = vmatmul.mubr.bf16.gmra.mrb[0].mxu0 %v2421
      %v2522 = vpop.f32.mrb[0].mxu0
      %v2523 = vadd.f32 0.0, %v2522
      %v2524 = vpop.f32.mrb[0].mxu0
      %v2525 = vpop.f32.mrb[0].mxu0
      %v2526 = vadd.f32 0.0, %v2525
      %v2527 = vpop.f32.mrb[0].mxu0
      %2528 = vmatprep.mubr.bf16.mxu0 0
      %2529 = vmatmul.mubr.bf16.gmra.mrb[0].mxu0 %v2424
      %v2530 = vpop.f32.mrb[0].mxu0
      %v2531 = vadd.f32 0.0, %v2530
      %v2532 = vpop.f32.mrb[0].mxu0
      %v2533 = vpop.f32.mrb[0].mxu0
      %v2534 = vadd.f32 0.0, %v2533
      %v2535 = vpop.f32.mrb[0].mxu0
      %2536 = vmatprep.mubr.bf16.mxu0 0
      %2537 = vmatmul.mubr.bf16.gmra.mrb[0].mxu0 %v2427
      %v2538 = vpop.f32.mrb[0].mxu0
      %v2539 = vadd.f32 0.0, %v2538
      %v2540 = vpop.f32.mrb[0].mxu0
      %v2541 = vpop.f32.mrb[0].mxu0
      %v2542 = vadd.f32 0.0, %v2541
      %v2543 = vpop.f32.mrb[0].mxu0
      %2544 = vmatprep.mubr.bf16.mxu0 0
      %2545 = vmatmul.mubr.bf16.gmra.mrb[0].mxu0 %v2430
      %v2546 = vpop.f32.mrb[0].mxu0
      %v2547 = vadd.f32 0.0, %v2546
      %v2548 = vpop.f32.mrb[0].mxu0
      %v2549 = vpop.f32.mrb[0].mxu0
      %v2550 = vadd.f32 0.0, %v2549
      %v2551 = vpop.f32.mrb[0].mxu0
      %2552 = vmatprep.mubr.bf16.mxu0 0
      %2553 = vmatmul.mubr.bf16.gmra.mrb[0].mxu0 %v2433
      %v2554 = vpop.f32.mrb[0].mxu0
      %v2555 = vadd.f32 0.0, %v2554
      %v2556 = vpop.f32.mrb[0].mxu0
      %v2557 = vpop.f32.mrb[0].mxu0
      %v2558 = vadd.f32 0.0, %v2557
      %v2559 = vpop.f32.mrb[0].mxu0
      %2560 = vmatprep.mubr.bf16.mxu0 0
      %2561 = vmatmul.mubr.bf16.gmra.mrb[0].mxu0 %v2436
      %v2562 = vpop.f32.mrb[0].mxu0
      %v2563 = vadd.f32 0.0, %v2562
      %v2564 = vpop.f32.mrb[0].mxu0
      %v2565 = vpop.f32.mrb[0].mxu0
      %v2566 = vadd.f32 0.0, %v2565
      %v2567 = vpop.f32.mrb[0].mxu0
      %2568 = vmatprep.mubr.bf16.mxu0 0
      %2569 = vmatmul.mubr.bf16.gmra.mrb[0].mxu0 %v2439
      %v2570 = vpop.f32.mrb[0].mxu0
      %v2571 = vadd.f32 0.0, %v2570
      %v2572 = vpop.f32.mrb[0].mxu0
      %v2573 = vpop.f32.mrb[0].mxu0
      %v2574 = vadd.f32 0.0, %v2573
      %v2575 = vpop.f32.mrb[0].mxu0
      %2576 = vmatprep.mubr.bf16.mxu0 0
      %2577 = vmatmul.mubr.bf16.gmra.mrb[0].mxu0 %v2442
      %v2578 = vpop.f32.mrb[0].mxu0
      %v2579 = vadd.f32 0.0, %v2578
      %v2580 = vpop.f32.mrb[0].mxu0
      %v2581 = vpop.f32.mrb[0].mxu0
      %v2582 = vadd.f32 0.0, %v2581
      %v2583 = vpop.f32.mrb[0].mxu0
      %2584 = vmatprep.mubr.bf16.mxu0 0
      %2585 = vmatmul.mubr.bf16.gmra.mrb[0].mxu0 %v2445
      %v2586 = vpop.f32.mrb[0].mxu0
      %v2587 = vadd.f32 0.0, %v2586
      %v2588 = vpop.f32.mrb[0].mxu0
      %v2589 = vpop.f32.mrb[0].mxu0
      %v2590 = vadd.f32 0.0, %v2589
      %v2591 = vpop.f32.mrb[0].mxu0
      %2592 = vmatprep.mubr.bf16.mxu0 0
      %2593 = vmatmul.mubr.bf16.gmra.mrb[0].mxu0 %v2448
      %v2594 = vpop.f32.mrb[0].mxu0
      %v2595 = vadd.f32 0.0, %v2594
      %v2596 = vpop.f32.mrb[0].mxu0
      %v2597 = vpop.f32.mrb[0].mxu0
      %v2598 = vadd.f32 0.0, %v2597
      %v2599 = vpop.f32.mrb[0].mxu0
      %2600 = vmatprep.mubr.bf16.mxu0 0
      %2601 = vmatmul.mubr.bf16.gmra.mrb[0].mxu0 %v2451
      %v2602 = vpop.f32.mrb[0].mxu0
      %v2603 = vadd.f32 0.0, %v2602
      %v2604 = vpop.f32.mrb[0].mxu0
      %v2605 = vpop.f32.mrb[0].mxu0
      %v2606 = vadd.f32 0.0, %v2605
      %v2607 = vpop.f32.mrb[0].mxu0
      %2608 = vmatprep.mubr.bf16.mxu0 0
      %2609 = vmatmul.mubr.bf16.gmra.mrb[0].mxu0 %v2454
      %v2610 = vpop.f32.mrb[0].mxu0
      %v2611 = vadd.f32 0.0, %v2610
      %v2612 = vpop.f32.mrb[0].mxu0
      %v2613 = vpop.f32.mrb[0].mxu0
      %v2614 = vadd.f32 0.0, %v2613
      %v2615 = vpop.f32.mrb[0].mxu0
      %2616 = vdwg.mxu0
      %v2617 = vadd.f32 %v2185, %v2491
      %v2618 = vadd.f32 %v2188, %v2494
      %v2619 = vadd.f32 %v2193, %v2499
      %v2620 = vadd.f32 %v2196, %v2502
      %v2621 = vadd.f32 %v2201, %v2507
      %v2622 = vadd.f32 %v2204, %v2510
      %v2623 = vadd.f32 %v2209, %v2515
      %v2624 = vadd.f32 %v2212, %v2518
      %v2625 = vadd.f32 %v2217, %v2523
      %v2626 = vadd.f32 %v2220, %v2526
      %v2627 = vadd.f32 %v2225, %v2531
      %v2628 = vadd.f32 %v2228, %v2534
      %v2629 = vadd.f32 %v2233, %v2539
      %v2630 = vadd.f32 %v2236, %v2542
      %v2631 = vadd.f32 %v2241, %v2547
      %v2632 = vadd.f32 %v2244, %v2550
      %v2633 = vadd.f32 %v2249, %v2555
      %v2634 = vadd.f32 %v2252, %v2558
      %v2635 = vadd.f32 %v2257, %v2563
      %v2636 = vadd.f32 %v2260, %v2566
      %v2637 = vadd.f32 %v2265, %v2571
      %v2638 = vadd.f32 %v2268, %v2574
      %v2639 = vadd.f32 %v2273, %v2579
      %v2640 = vadd.f32 %v2276, %v2582
      %v2641 = vadd.f32 %v2281, %v2587
      %v2642 = vadd.f32 %v2284, %v2590
      %v2643 = vadd.f32 %v2289, %v2595
      %v2644 = vadd.f32 %v2292, %v2598
      %v2645 = vadd.f32 %v2297, %v2603
      %v2646 = vadd.f32 %v2300, %v2606
      %v2647 = vadd.f32 %v2305, %v2611
      %v2648 = vadd.f32 %v2308, %v2614
      %v2649 = vld [vmem:[#allocation2 + $0x17] sm:$0xff]
      %v2650 = vld [vmem:[#allocation2 + $0x1f] sm:$0xff]
      %v2651 = vld [vmem:[#allocation2 + $0x27] sm:$0xff]
      %v2652 = vld [vmem:[#allocation2 + $0x2f] sm:$0xff]
      %v2653 = vld [vmem:[#allocation2 + $0x37] sm:$0xff]
      %v2654 = vld [vmem:[#allocation2 + $0x3f] sm:$0xff]
      %v2655 = vld [vmem:[#allocation2 + $0x47] sm:$0xff]
      %v2656 = vld [vmem:[#allocation2 + $0x4f] sm:$0xff]
      %v2657 = vld [vmem:[#allocation2 + $0x57] sm:$0xff]
      %v2658 = vld [vmem:[#allocation2 + $0x5f] sm:$0xff]
      %v2659 = vld [vmem:[#allocation2 + $0x67] sm:$0xff]
      %v2660 = vld [vmem:[#allocation2 + $0x6f] sm:$0xff]
      %v2661 = vld [vmem:[#allocation2 + $0x77] sm:$0xff]
      %v2662 = vld [vmem:[#allocation2 + $0x7f] sm:$0xff]
      %v2663 = vld [vmem:[#allocation2 + $0x87] sm:$0xff]
      %v2664 = vld [vmem:[#allocation2 + $0x8f] sm:$0xff]
      %v2665 = vld [vmem:[#allocation2 + $0x97] sm:$0xff]
      %v2666 = vld [vmem:[#allocation2 + $0x9f] sm:$0xff]
      %v2667 = vld [vmem:[#allocation2 + $0xa7] sm:$0xff]
      %v2668 = vld [vmem:[#allocation2 + $0xaf] sm:$0xff]
      %v2669 = vld [vmem:[#allocation2 + $0xb7] sm:$0xff]
      %v2670 = vld [vmem:[#allocation2 + $0xbf] sm:$0xff]
      %v2671 = vld [vmem:[#allocation2 + $0xc7] sm:$0xff]
      %v2672 = vld [vmem:[#allocation2 + $0xcf] sm:$0xff]
      %v2673 = vld [vmem:[#allocation2 + $0xd7] sm:$0xff]
      %v2674 = vld [vmem:[#allocation2 + $0xdf] sm:$0xff]
      %v2675 = vld [vmem:[#allocation2 + $0xe7] sm:$0xff]
      %v2676 = vld [vmem:[#allocation2 + $0xef] sm:$0xff]
      %v2677 = vld [vmem:[#allocation2 + $0xf7] sm:$0xff]
      %v2678 = vld [vmem:[#allocation2 + $0xff] sm:$0xff]
      %v2679 = vld [vmem:[#allocation2 + $0x107] sm:$0xff]
      %v2680 = vld [vmem:[#allocation2 + $0x10f] sm:$0xff]
      %v2681 = vsel %vm1668, %v2649, 0.0
      %v2682 = vsel %vm1669, %v2650, 0.0
      %v2683 = vsel %vm1670, %v2651, 0.0
      %v2684 = vsel %vm1671, %v2652, 0.0
      %v2685 = vsel %vm1672, %v2653, 0.0
      %v2686 = vsel %vm1673, %v2654, 0.0
      %v2687 = vsel %vm1674, %v2655, 0.0
      %v2688 = vsel %vm1675, %v2656, 0.0
      %v2689 = vsel %vm1676, %v2657, 0.0
      %v2690 = vsel %vm1677, %v2658, 0.0
      %v2691 = vsel %vm1678, %v2659, 0.0
      %v2692 = vsel %vm1679, %v2660, 0.0
      %v2693 = vsel %vm1680, %v2661, 0.0
      %v2694 = vsel %vm1681, %v2662, 0.0
      %v2695 = vsel %vm1682, %v2663, 0.0
      %v2696 = vsel %vm1683, %v2664, 0.0
      %v2697 = vsel %vm1684, %v2665, 0.0
      %v2698 = vsel %vm1685, %v2666, 0.0
      %v2699 = vsel %vm1686, %v2667, 0.0
      %v2700 = vsel %vm1687, %v2668, 0.0
      %v2701 = vsel %vm1688, %v2669, 0.0
      %v2702 = vsel %vm1689, %v2670, 0.0
      %v2703 = vsel %vm1690, %v2671, 0.0
      %v2704 = vsel %vm1691, %v2672, 0.0
      %v2705 = vsel %vm1692, %v2673, 0.0
      %v2706 = vsel %vm1693, %v2674, 0.0
      %v2707 = vsel %vm1694, %v2675, 0.0
      %v2708 = vsel %vm1695, %v2676, 0.0
      %v2709 = vsel %vm1696, %v2677, 0.0
      %v2710 = vsel %vm1697, %v2678, 0.0
      %v2711 = vsel %vm1698, %v2679, 0.0
      %v2712 = vsel %vm1699, %v2680, 0.0
      %v2713 = vpack.c.bf16 %v2682, %v2681
      %v2714 = vpack.c.bf16 %v2684, %v2683
      %v2715 = vpack.c.bf16 %v2686, %v2685
      %v2716 = vpack.c.bf16 %v2688, %v2687
      %v2717 = vpack.c.bf16 %v2690, %v2689
      %v2718 = vpack.c.bf16 %v2692, %v2691
      %v2719 = vpack.c.bf16 %v2694, %v2693
      %v2720 = vpack.c.bf16 %v2696, %v2695
      %v2721 = vpack.c.bf16 %v2698, %v2697
      %v2722 = vpack.c.bf16 %v2700, %v2699
      %v2723 = vpack.c.bf16 %v2702, %v2701
      %v2724 = vpack.c.bf16 %v2704, %v2703
      %v2725 = vpack.c.bf16 %v2706, %v2705
      %v2726 = vpack.c.bf16 %v2708, %v2707
      %v2727 = vpack.c.bf16 %v2710, %v2709
      %v2728 = vpack.c.bf16 %v2712, %v2711
      %s2729 = scalar_lea.vmem %s4, 48
      %v2730 = vld [vmem:[%s2729] sm:$0xf]
      %v2731 = vld [vmem:[%s2729 + $0x4] sm:$0xf]
      %v2732 = vld [vmem:[%s2729 + $0x8] sm:$0xf]
      %v2733 = vld [vmem:[%s2729 + $0xc] sm:$0xf]
      %v2738 = vunpack.c.l.b16 %v2730
      %v2739 = vunpack.c.l.b16 %v2731
      %v2740 = vunpack.c.l.b16 %v2732
      %v2741 = vunpack.c.l.b16 %v2733
      %v2742 = vpack.c.b16 %v2739, %v2738
      %v2743 = vpack.c.b16 %v2741, %v2740
      %v2747 = vsel %vm737, %v2713, 0
      %v2750 = vsel %vm737, %v2714, 0
      %v2753 = vsel %vm737, %v2715, 0
      %v2756 = vsel %vm737, %v2716, 0
      %v2759 = vsel %vm737, %v2717, 0
      %v2762 = vsel %vm737, %v2718, 0
      %v2765 = vsel %vm737, %v2719, 0
      %v2768 = vsel %vm737, %v2720, 0
      %v2771 = vsel %vm737, %v2721, 0
      %v2774 = vsel %vm737, %v2722, 0
      %v2777 = vsel %vm737, %v2723, 0
      %v2780 = vsel %vm737, %v2724, 0
      %v2783 = vsel %vm737, %v2725, 0
      %v2786 = vsel %vm737, %v2726, 0
      %v2789 = vsel %vm737, %v2727, 0
      %v2792 = vsel %vm737, %v2728, 0
      %2794 = vmatprep.subr.bf16.mxu0 0
      %2795 = vmatpush1.bf16.msra.mxu0 %v2742
      %2796 = vmatprep.subr.bf16.mxu0 0
      %2797 = vmatpush1.bf16.msra.mxu0 %v2743
      %2798 = vmatprep.subr.bf16.mxu0 0
      %2799 = vmatpush1.bf16.msra.mxu0 0
      %2800 = vmatprep.subr.bf16.mxu0 0
      %2801 = vmatpush1.bf16.msra.mxu0 0
      %2802 = vmatprep.subr.bf16.mxu0 0
      %2803 = vmatpush1.bf16.msra.mxu0 0
      %2804 = vmatprep.subr.bf16.mxu0 0
      %2805 = vmatpush1.bf16.msra.mxu0 0
      %2806 = vmatprep.subr.bf16.mxu0 0
      %2807 = vmatpush1.bf16.msra.mxu0 0
      %2808 = vmatprep.subr.bf16.mxu0 0
      %2809 = vmatpush1.bf16.msra.mxu0 0
      %2810 = vmatprep.subr.bf16.mxu0 0
      %2811 = vmatpush1.bf16.msra.mxu0 0
      %2812 = vmatprep.subr.bf16.mxu0 0
      %2813 = vmatpush1.bf16.msra.mxu0 0
      %2814 = vmatprep.subr.bf16.mxu0 0
      %2815 = vmatpush1.bf16.msra.mxu0 0
      %2816 = vmatprep.subr.bf16.mxu0 0
      %2817 = vmatpush1.bf16.msra.mxu0 0
      %2818 = vmatprep.subr.bf16.mxu0 0
      %2819 = vmatpush1.bf16.msra.mxu0 0
      %2820 = vmatprep.subr.bf16.mxu0 0
      %2821 = vmatpush1.bf16.msra.mxu0 0
      %2822 = vmatprep.subr.bf16.mxu0 0
      %2823 = vmatpush1.bf16.msra.mxu0 0
      %2824 = vmatprep.subr.bf16.mxu0 0
      %2825 = vmatpush1.bf16.msra.mxu0 0
      %2826 = vmatprep.mubr.bf16.mxu0 0
      %2827 = vmatmul.mubr.bf16.gmra.mrb[0].mxu0 %v2747
      %v2828 = vpop.f32.mrb[0].mxu0
      %v2829 = vadd.f32 0.0, %v2828
      %v2830 = vpop.f32.mrb[0].mxu0
      %v2831 = vpop.f32.mrb[0].mxu0
      %v2832 = vadd.f32 0.0, %v2831
      %v2833 = vpop.f32.mrb[0].mxu0
      %2834 = vmatprep.mubr.bf16.mxu0 0
      %2835 = vmatmul.mubr.bf16.gmra.mrb[0].mxu0 %v2750
      %v2836 = vpop.f32.mrb[0].mxu0
      %v2837 = vadd.f32 0.0, %v2836
      %v2838 = vpop.f32.mrb[0].mxu0
      %v2839 = vpop.f32.mrb[0].mxu0
      %v2840 = vadd.f32 0.0, %v2839
      %v2841 = vpop.f32.mrb[0].mxu0
      %2842 = vmatprep.mubr.bf16.mxu0 0
      %2843 = vmatmul.mubr.bf16.gmra.mrb[0].mxu0 %v2753
      %v2844 = vpop.f32.mrb[0].mxu0
      %v2845 = vadd.f32 0.0, %v2844
      %v2846 = vpop.f32.mrb[0].mxu0
      %v2847 = vpop.f32.mrb[0].mxu0
      %v2848 = vadd.f32 0.0, %v2847
      %v2849 = vpop.f32.mrb[0].mxu0
      %2850 = vmatprep.mubr.bf16.mxu0 0
      %2851 = vmatmul.mubr.bf16.gmra.mrb[0].mxu0 %v2756
      %v2852 = vpop.f32.mrb[0].mxu0
      %v2853 = vadd.f32 0.0, %v2852
      %v2854 = vpop.f32.mrb[0].mxu0
      %v2855 = vpop.f32.mrb[0].mxu0
      %v2856 = vadd.f32 0.0, %v2855
      %v2857 = vpop.f32.mrb[0].mxu0
      %2858 = vmatprep.mubr.bf16.mxu0 0
      %2859 = vmatmul.mubr.bf16.gmra.mrb[0].mxu0 %v2759
      %v2860 = vpop.f32.mrb[0].mxu0
      %v2861 = vadd.f32 0.0, %v2860
      %v2862 = vpop.f32.mrb[0].mxu0
      %v2863 = vpop.f32.mrb[0].mxu0
      %v2864 = vadd.f32 0.0, %v2863
      %v2865 = vpop.f32.mrb[0].mxu0
      %2866 = vmatprep.mubr.bf16.mxu0 0
      %2867 = vmatmul.mubr.bf16.gmra.mrb[0].mxu0 %v2762
      %v2868 = vpop.f32.mrb[0].mxu0
      %v2869 = vadd.f32 0.0, %v2868
      %v2870 = vpop.f32.mrb[0].mxu0
      %v2871 = vpop.f32.mrb[0].mxu0
      %v2872 = vadd.f32 0.0, %v2871
      %v2873 = vpop.f32.mrb[0].mxu0
      %2874 = vmatprep.mubr.bf16.mxu0 0
      %2875 = vmatmul.mubr.bf16.gmra.mrb[0].mxu0 %v2765
      %v2876 = vpop.f32.mrb[0].mxu0
      %v2877 = vadd.f32 0.0, %v2876
      %v2878 = vpop.f32.mrb[0].mxu0
      %v2879 = vpop.f32.mrb[0].mxu0
      %v2880 = vadd.f32 0.0, %v2879
      %v2881 = vpop.f32.mrb[0].mxu0
      %2882 = vmatprep.mubr.bf16.mxu0 0
      %2883 = vmatmul.mubr.bf16.gmra.mrb[0].mxu0 %v2768
      %v2884 = vpop.f32.mrb[0].mxu0
      %v2885 = vadd.f32 0.0, %v2884
      %v2886 = vpop.f32.mrb[0].mxu0
      %v2887 = vpop.f32.mrb[0].mxu0
      %v2888 = vadd.f32 0.0, %v2887
      %v2889 = vpop.f32.mrb[0].mxu0
      %2890 = vmatprep.mubr.bf16.mxu0 0
      %2891 = vmatmul.mubr.bf16.gmra.mrb[0].mxu0 %v2771
      %v2892 = vpop.f32.mrb[0].mxu0
      %v2893 = vadd.f32 0.0, %v2892
      %v2894 = vpop.f32.mrb[0].mxu0
      %v2895 = vpop.f32.mrb[0].mxu0
      %v2896 = vadd.f32 0.0, %v2895
      %v2897 = vpop.f32.mrb[0].mxu0
      %2898 = vmatprep.mubr.bf16.mxu0 0
      %2899 = vmatmul.mubr.bf16.gmra.mrb[0].mxu0 %v2774
      %v2900 = vpop.f32.mrb[0].mxu0
      %v2901 = vadd.f32 0.0, %v2900
      %v2902 = vpop.f32.mrb[0].mxu0
      %v2903 = vpop.f32.mrb[0].mxu0
      %v2904 = vadd.f32 0.0, %v2903
      %v2905 = vpop.f32.mrb[0].mxu0
      %2906 = vmatprep.mubr.bf16.mxu0 0
      %2907 = vmatmul.mubr.bf16.gmra.mrb[0].mxu0 %v2777
      %v2908 = vpop.f32.mrb[0].mxu0
      %v2909 = vadd.f32 0.0, %v2908
      %v2910 = vpop.f32.mrb[0].mxu0
      %v2911 = vpop.f32.mrb[0].mxu0
      %v2912 = vadd.f32 0.0, %v2911
      %v2913 = vpop.f32.mrb[0].mxu0
      %2914 = vmatprep.mubr.bf16.mxu0 0
      %2915 = vmatmul.mubr.bf16.gmra.mrb[0].mxu0 %v2780
      %v2916 = vpop.f32.mrb[0].mxu0
      %v2917 = vadd.f32 0.0, %v2916
      %v2918 = vpop.f32.mrb[0].mxu0
      %v2919 = vpop.f32.mrb[0].mxu0
      %v2920 = vadd.f32 0.0, %v2919
      %v2921 = vpop.f32.mrb[0].mxu0
      %2922 = vmatprep.mubr.bf16.mxu0 0
      %2923 = vmatmul.mubr.bf16.gmra.mrb[0].mxu0 %v2783
      %v2924 = vpop.f32.mrb[0].mxu0
      %v2925 = vadd.f32 0.0, %v2924
      %v2926 = vpop.f32.mrb[0].mxu0
      %v2927 = vpop.f32.mrb[0].mxu0
      %v2928 = vadd.f32 0.0, %v2927
      %v2929 = vpop.f32.mrb[0].mxu0
      %2930 = vmatprep.mubr.bf16.mxu0 0
      %2931 = vmatmul.mubr.bf16.gmra.mrb[0].mxu0 %v2786
      %v2932 = vpop.f32.mrb[0].mxu0
      %v2933 = vadd.f32 0.0, %v2932
      %v2934 = vpop.f32.mrb[0].mxu0
      %v2935 = vpop.f32.mrb[0].mxu0
      %v2936 = vadd.f32 0.0, %v2935
      %v2937 = vpop.f32.mrb[0].mxu0
      %2938 = vmatprep.mubr.bf16.mxu0 0
      %2939 = vmatmul.mubr.bf16.gmra.mrb[0].mxu0 %v2789
      %v2940 = vpop.f32.mrb[0].mxu0
      %v2941 = vadd.f32 0.0, %v2940
      %v2942 = vpop.f32.mrb[0].mxu0
      %v2943 = vpop.f32.mrb[0].mxu0
      %v2944 = vadd.f32 0.0, %v2943
      %v2945 = vpop.f32.mrb[0].mxu0
      %2946 = vmatprep.mubr.bf16.mxu0 0
      %2947 = vmatmul.mubr.bf16.gmra.mrb[0].mxu0 %v2792
      %v2948 = vpop.f32.mrb[0].mxu0
      %v2949 = vadd.f32 0.0, %v2948
      %v2950 = vpop.f32.mrb[0].mxu0
      %v2951 = vpop.f32.mrb[0].mxu0
      %v2952 = vadd.f32 0.0, %v2951
      %v2953 = vpop.f32.mrb[0].mxu0
      %2954 = vdwg.mxu0
      %v2955 = vadd.f32 %v2617, %v2829
      %v2956 = vadd.f32 %v2618, %v2832
      %v2957 = vadd.f32 %v2619, %v2837
      %v2958 = vadd.f32 %v2620, %v2840
      %v2959 = vadd.f32 %v2621, %v2845
      %v2960 = vadd.f32 %v2622, %v2848
      %v2961 = vadd.f32 %v2623, %v2853
      %v2962 = vadd.f32 %v2624, %v2856
      %v2963 = vadd.f32 %v2625, %v2861
      %v2964 = vadd.f32 %v2626, %v2864
      %v2965 = vadd.f32 %v2627, %v2869
      %v2966 = vadd.f32 %v2628, %v2872
      %v2967 = vadd.f32 %v2629, %v2877
      %v2968 = vadd.f32 %v2630, %v2880
      %v2969 = vadd.f32 %v2631, %v2885
      %v2970 = vadd.f32 %v2632, %v2888
      %v2971 = vadd.f32 %v2633, %v2893
      %v2972 = vadd.f32 %v2634, %v2896
      %v2973 = vadd.f32 %v2635, %v2901
      %v2974 = vadd.f32 %v2636, %v2904
      %v2975 = vadd.f32 %v2637, %v2909
      %v2976 = vadd.f32 %v2638, %v2912
      %v2977 = vadd.f32 %v2639, %v2917
      %v2978 = vadd.f32 %v2640, %v2920
      %v2979 = vadd.f32 %v2641, %v2925
      %v2980 = vadd.f32 %v2642, %v2928
      %v2981 = vadd.f32 %v2643, %v2933
      %v2982 = vadd.f32 %v2644, %v2936
      %v2983 = vadd.f32 %v2645, %v2941
      %v2984 = vadd.f32 %v2646, %v2944
      %v2985 = vadd.f32 %v2647, %v2949
      %v2986 = vadd.f32 %v2648, %v2952
      %v2987 = vld [vmem:[#allocation2 + $0x18] sm:$0xff]
      %v2988 = vld [vmem:[#allocation2 + $0x20] sm:$0xff]
      %v2989 = vld [vmem:[#allocation2 + $0x28] sm:$0xff]
      %v2990 = vld [vmem:[#allocation2 + $0x30] sm:$0xff]
      %v2991 = vld [vmem:[#allocation2 + $0x38] sm:$0xff]
      %v2992 = vld [vmem:[#allocation2 + $0x40] sm:$0xff]
      %v2993 = vld [vmem:[#allocation2 + $0x48] sm:$0xff]
      %v2994 = vld [vmem:[#allocation2 + $0x50] sm:$0xff]
      %v2995 = vld [vmem:[#allocation2 + $0x58] sm:$0xff]
      %v2996 = vld [vmem:[#allocation2 + $0x60] sm:$0xff]
      %v2997 = vld [vmem:[#allocation2 + $0x68] sm:$0xff]
      %v2998 = vld [vmem:[#allocation2 + $0x70] sm:$0xff]
      %v2999 = vld [vmem:[#allocation2 + $0x78] sm:$0xff]
      %v3000 = vld [vmem:[#allocation2 + $0x80] sm:$0xff]
      %v3001 = vld [vmem:[#allocation2 + $0x88] sm:$0xff]
      %v3002 = vld [vmem:[#allocation2 + $0x90] sm:$0xff]
      %v3003 = vld [vmem:[#allocation2 + $0x98] sm:$0xff]
      %v3004 = vld [vmem:[#allocation2 + $0xa0] sm:$0xff]
      %v3005 = vld [vmem:[#allocation2 + $0xa8] sm:$0xff]
      %v3006 = vld [vmem:[#allocation2 + $0xb0] sm:$0xff]
      %v3007 = vld [vmem:[#allocation2 + $0xb8] sm:$0xff]
      %v3008 = vld [vmem:[#allocation2 + $0xc0] sm:$0xff]
      %v3009 = vld [vmem:[#allocation2 + $0xc8] sm:$0xff]
      %v3010 = vld [vmem:[#allocation2 + $0xd0] sm:$0xff]
      %v3011 = vld [vmem:[#allocation2 + $0xd8] sm:$0xff]
      %v3012 = vld [vmem:[#allocation2 + $0xe0] sm:$0xff]
      %v3013 = vld [vmem:[#allocation2 + $0xe8] sm:$0xff]
      %v3014 = vld [vmem:[#allocation2 + $0xf0] sm:$0xff]
      %v3015 = vld [vmem:[#allocation2 + $0xf8] sm:$0xff]
      %v3016 = vld [vmem:[#allocation2 + $0x100] sm:$0xff]
      %v3017 = vld [vmem:[#allocation2 + $0x108] sm:$0xff]
      %v3018 = vld [vmem:[#allocation2 + $0x110] sm:$0xff]
      %v3019 = vpack.c.bf16 %v2988, %v2987
      %v3020 = vpack.c.bf16 %v2990, %v2989
      %v3021 = vpack.c.bf16 %v2992, %v2991
      %v3022 = vpack.c.bf16 %v2994, %v2993
      %v3023 = vpack.c.bf16 %v2996, %v2995
      %v3024 = vpack.c.bf16 %v2998, %v2997
      %v3025 = vpack.c.bf16 %v3000, %v2999
      %v3026 = vpack.c.bf16 %v3002, %v3001
      %v3027 = vpack.c.bf16 %v3004, %v3003
      %v3028 = vpack.c.bf16 %v3006, %v3005
      %v3029 = vpack.c.bf16 %v3008, %v3007
      %v3030 = vpack.c.bf16 %v3010, %v3009
      %v3031 = vpack.c.bf16 %v3012, %v3011
      %v3032 = vpack.c.bf16 %v3014, %v3013
      %v3033 = vpack.c.bf16 %v3016, %v3015
      %v3034 = vpack.c.bf16 %v3018, %v3017
      %s3035 = scalar_lea.vmem %s4, 64
      %v3036 = vld [vmem:[%s3035] sm:$0xf]
      %v3037 = vld [vmem:[%s3035 + $0x4] sm:$0xf]
      %v3038 = vld [vmem:[%s3035 + $0x8] sm:$0xf]
      %v3039 = vld [vmem:[%s3035 + $0xc] sm:$0xf]
      %v3044 = vunpack.c.l.b16 %v3036
      %v3045 = vunpack.c.l.b16 %v3037
      %v3046 = vunpack.c.l.b16 %v3038
      %v3047 = vunpack.c.l.b16 %v3039
      %v3048 = vpack.c.b16 %v3045, %v3044
      %v3049 = vpack.c.b16 %v3047, %v3046
      %v3053 = vsel %vm737, %v3019, 0
      %v3056 = vsel %vm737, %v3020, 0
      %v3059 = vsel %vm737, %v3021, 0
      %v3062 = vsel %vm737, %v3022, 0
      %v3065 = vsel %vm737, %v3023, 0
      %v3068 = vsel %vm737, %v3024, 0
      %v3071 = vsel %vm737, %v3025, 0
      %v3074 = vsel %vm737, %v3026, 0
      %v3077 = vsel %vm737, %v3027, 0
      %v3080 = vsel %vm737, %v3028, 0
      %v3083 = vsel %vm737, %v3029, 0
      %v3086 = vsel %vm737, %v3030, 0
      %v3089 = vsel %vm737, %v3031, 0
      %v3092 = vsel %vm737, %v3032, 0
      %v3095 = vsel %vm737, %v3033, 0
      %v3098 = vsel %vm737, %v3034, 0
      %3100 = vmatprep.subr.bf16.mxu0 0
      %3101 = vmatpush1.bf16.msra.mxu0 %v3048
      %3102 = vmatprep.subr.bf16.mxu0 0
      %3103 = vmatpush1.bf16.msra.mxu0 %v3049
      %3104 = vmatprep.subr.bf16.mxu0 0
      %3105 = vmatpush1.bf16.msra.mxu0 0
      %3106 = vmatprep.subr.bf16.mxu0 0
      %3107 = vmatpush1.bf16.msra.mxu0 0
      %3108 = vmatprep.subr.bf16.mxu0 0
      %3109 = vmatpush1.bf16.msra.mxu0 0
      %3110 = vmatprep.subr.bf16.mxu0 0
      %3111 = vmatpush1.bf16.msra.mxu0 0
      %3112 = vmatprep.subr.bf16.mxu0 0
      %3113 = vmatpush1.bf16.msra.mxu0 0
      %3114 = vmatprep.subr.bf16.mxu0 0
      %3115 = vmatpush1.bf16.msra.mxu0 0
      %3116 = vmatprep.subr.bf16.mxu0 0
      %3117 = vmatpush1.bf16.msra.mxu0 0
      %3118 = vmatprep.subr.bf16.mxu0 0
      %3119 = vmatpush1.bf16.msra.mxu0 0
      %3120 = vmatprep.subr.bf16.mxu0 0
      %3121 = vmatpush1.bf16.msra.mxu0 0
      %3122 = vmatprep.subr.bf16.mxu0 0
      %3123 = vmatpush1.bf16.msra.mxu0 0
      %3124 = vmatprep.subr.bf16.mxu0 0
      %3125 = vmatpush1.bf16.msra.mxu0 0
      %3126 = vmatprep.subr.bf16.mxu0 0
      %3127 = vmatpush1.bf16.msra.mxu0 0
      %3128 = vmatprep.subr.bf16.mxu0 0
      %3129 = vmatpush1.bf16.msra.mxu0 0
      %3130 = vmatprep.subr.bf16.mxu0 0
      %3131 = vmatpush1.bf16.msra.mxu0 0
      %3132 = vmatprep.mubr.bf16.mxu0 0
      %3133 = vmatmul.mubr.bf16.gmra.mrb[0].mxu0 %v3053
      %v3134 = vpop.f32.mrb[0].mxu0
      %v3135 = vadd.f32 0.0, %v3134
      %v3136 = vpop.f32.mrb[0].mxu0
      %v3137 = vpop.f32.mrb[0].mxu0
      %v3138 = vadd.f32 0.0, %v3137
      %v3139 = vpop.f32.mrb[0].mxu0
      %3140 = vmatprep.mubr.bf16.mxu0 0
      %3141 = vmatmul.mubr.bf16.gmra.mrb[0].mxu0 %v3056
      %v3142 = vpop.f32.mrb[0].mxu0
      %v3143 = vadd.f32 0.0, %v3142
      %v3144 = vpop.f32.mrb[0].mxu0
      %v3145 = vpop.f32.mrb[0].mxu0
      %v3146 = vadd.f32 0.0, %v3145
      %v3147 = vpop.f32.mrb[0].mxu0
      %3148 = vmatprep.mubr.bf16.mxu0 0
      %3149 = vmatmul.mubr.bf16.gmra.mrb[0].mxu0 %v3059
      %v3150 = vpop.f32.mrb[0].mxu0
      %v3151 = vadd.f32 0.0, %v3150
      %v3152 = vpop.f32.mrb[0].mxu0
      %v3153 = vpop.f32.mrb[0].mxu0
      %v3154 = vadd.f32 0.0, %v3153
      %v3155 = vpop.f32.mrb[0].mxu0
      %3156 = vmatprep.mubr.bf16.mxu0 0
      %3157 = vmatmul.mubr.bf16.gmra.mrb[0].mxu0 %v3062
      %v3158 = vpop.f32.mrb[0].mxu0
      %v3159 = vadd.f32 0.0, %v3158
      %v3160 = vpop.f32.mrb[0].mxu0
      %v3161 = vpop.f32.mrb[0].mxu0
      %v3162 = vadd.f32 0.0, %v3161
      %v3163 = vpop.f32.mrb[0].mxu0
      %3164 = vmatprep.mubr.bf16.mxu0 0
      %3165 = vmatmul.mubr.bf16.gmra.mrb[0].mxu0 %v3065
      %v3166 = vpop.f32.mrb[0].mxu0
      %v3167 = vadd.f32 0.0, %v3166
      %v3168 = vpop.f32.mrb[0].mxu0
      %v3169 = vpop.f32.mrb[0].mxu0
      %v3170 = vadd.f32 0.0, %v3169
      %v3171 = vpop.f32.mrb[0].mxu0
      %3172 = vmatprep.mubr.bf16.mxu0 0
      %3173 = vmatmul.mubr.bf16.gmra.mrb[0].mxu0 %v3068
      %v3174 = vpop.f32.mrb[0].mxu0
      %v3175 = vadd.f32 0.0, %v3174
      %v3176 = vpop.f32.mrb[0].mxu0
      %v3177 = vpop.f32.mrb[0].mxu0
      %v3178 = vadd.f32 0.0, %v3177
      %v3179 = vpop.f32.mrb[0].mxu0
      %3180 = vmatprep.mubr.bf16.mxu0 0
      %3181 = vmatmul.mubr.bf16.gmra.mrb[0].mxu0 %v3071
      %v3182 = vpop.f32.mrb[0].mxu0
      %v3183 = vadd.f32 0.0, %v3182
      %v3184 = vpop.f32.mrb[0].mxu0
      %v3185 = vpop.f32.mrb[0].mxu0
      %v3186 = vadd.f32 0.0, %v3185
      %v3187 = vpop.f32.mrb[0].mxu0
      %3188 = vmatprep.mubr.bf16.mxu0 0
      %3189 = vmatmul.mubr.bf16.gmra.mrb[0].mxu0 %v3074
      %v3190 = vpop.f32.mrb[0].mxu0
      %v3191 = vadd.f32 0.0, %v3190
      %v3192 = vpop.f32.mrb[0].mxu0
      %v3193 = vpop.f32.mrb[0].mxu0
      %v3194 = vadd.f32 0.0, %v3193
      %v3195 = vpop.f32.mrb[0].mxu0
      %3196 = vmatprep.mubr.bf16.mxu0 0
      %3197 = vmatmul.mubr.bf16.gmra.mrb[0].mxu0 %v3077
      %v3198 = vpop.f32.mrb[0].mxu0
      %v3199 = vadd.f32 0.0, %v3198
      %v3200 = vpop.f32.mrb[0].mxu0
      %v3201 = vpop.f32.mrb[0].mxu0
      %v3202 = vadd.f32 0.0, %v3201
      %v3203 = vpop.f32.mrb[0].mxu0
      %3204 = vmatprep.mubr.bf16.mxu0 0
      %3205 = vmatmul.mubr.bf16.gmra.mrb[0].mxu0 %v3080
      %v3206 = vpop.f32.mrb[0].mxu0
      %v3207 = vadd.f32 0.0, %v3206
      %v3208 = vpop.f32.mrb[0].mxu0
      %v3209 = vpop.f32.mrb[0].mxu0
      %v3210 = vadd.f32 0.0, %v3209
      %v3211 = vpop.f32.mrb[0].mxu0
      %3212 = vmatprep.mubr.bf16.mxu0 0
      %3213 = vmatmul.mubr.bf16.gmra.mrb[0].mxu0 %v3083
      %v3214 = vpop.f32.mrb[0].mxu0
      %v3215 = vadd.f32 0.0, %v3214
      %v3216 = vpop.f32.mrb[0].mxu0
      %v3217 = vpop.f32.mrb[0].mxu0
      %v3218 = vadd.f32 0.0, %v3217
      %v3219 = vpop.f32.mrb[0].mxu0
      %3220 = vmatprep.mubr.bf16.mxu0 0
      %3221 = vmatmul.mubr.bf16.gmra.mrb[0].mxu0 %v3086
      %v3222 = vpop.f32.mrb[0].mxu0
      %v3223 = vadd.f32 0.0, %v3222
      %v3224 = vpop.f32.mrb[0].mxu0
      %v3225 = vpop.f32.mrb[0].mxu0
      %v3226 = vadd.f32 0.0, %v3225
      %v3227 = vpop.f32.mrb[0].mxu0
      %3228 = vmatprep.mubr.bf16.mxu0 0
      %3229 = vmatmul.mubr.bf16.gmra.mrb[0].mxu0 %v3089
      %v3230 = vpop.f32.mrb[0].mxu0
      %v3231 = vadd.f32 0.0, %v3230
      %v3232 = vpop.f32.mrb[0].mxu0
      %v3233 = vpop.f32.mrb[0].mxu0
      %v3234 = vadd.f32 0.0, %v3233
      %v3235 = vpop.f32.mrb[0].mxu0
      %3236 = vmatprep.mubr.bf16.mxu0 0
      %3237 = vmatmul.mubr.bf16.gmra.mrb[0].mxu0 %v3092
      %v3238 = vpop.f32.mrb[0].mxu0
      %v3239 = vadd.f32 0.0, %v3238
      %v3240 = vpop.f32.mrb[0].mxu0
      %v3241 = vpop.f32.mrb[0].mxu0
      %v3242 = vadd.f32 0.0, %v3241
      %v3243 = vpop.f32.mrb[0].mxu0
      %3244 = vmatprep.mubr.bf16.mxu0 0
      %3245 = vmatmul.mubr.bf16.gmra.mrb[0].mxu0 %v3095
      %v3246 = vpop.f32.mrb[0].mxu0
      %v3247 = vadd.f32 0.0, %v3246
      %v3248 = vpop.f32.mrb[0].mxu0
      %v3249 = vpop.f32.mrb[0].mxu0
      %v3250 = vadd.f32 0.0, %v3249
      %v3251 = vpop.f32.mrb[0].mxu0
      %3252 = vmatprep.mubr.bf16.mxu0 0
      %3253 = vmatmul.mubr.bf16.gmra.mrb[0].mxu0 %v3098
      %v3254 = vpop.f32.mrb[0].mxu0
      %v3255 = vadd.f32 0.0, %v3254
      %v3256 = vpop.f32.mrb[0].mxu0
      %v3257 = vpop.f32.mrb[0].mxu0
      %v3258 = vadd.f32 0.0, %v3257
      %v3259 = vpop.f32.mrb[0].mxu0
      %3260 = vdwg.mxu0
      %v3261 = vadd.f32 %v2955, %v3135
      %v3262 = vadd.f32 %v2956, %v3138
      %v3263 = vadd.f32 %v2957, %v3143
      %v3264 = vadd.f32 %v2958, %v3146
      %v3265 = vadd.f32 %v2959, %v3151
      %v3266 = vadd.f32 %v2960, %v3154
      %v3267 = vadd.f32 %v2961, %v3159
      %v3268 = vadd.f32 %v2962, %v3162
      %v3269 = vadd.f32 %v2963, %v3167
      %v3270 = vadd.f32 %v2964, %v3170
      %v3271 = vadd.f32 %v2965, %v3175
      %v3272 = vadd.f32 %v2966, %v3178
      %v3273 = vadd.f32 %v2967, %v3183
      %v3274 = vadd.f32 %v2968, %v3186
      %v3275 = vadd.f32 %v2969, %v3191
      %v3276 = vadd.f32 %v2970, %v3194
      %v3277 = vadd.f32 %v2971, %v3199
      %v3278 = vadd.f32 %v2972, %v3202
      %v3279 = vadd.f32 %v2973, %v3207
      %v3280 = vadd.f32 %v2974, %v3210
      %v3281 = vadd.f32 %v2975, %v3215
      %v3282 = vadd.f32 %v2976, %v3218
      %v3283 = vadd.f32 %v2977, %v3223
      %v3284 = vadd.f32 %v2978, %v3226
      %v3285 = vadd.f32 %v2979, %v3231
      %v3286 = vadd.f32 %v2980, %v3234
      %v3287 = vadd.f32 %v2981, %v3239
      %v3288 = vadd.f32 %v2982, %v3242
      %v3289 = vadd.f32 %v2983, %v3247
      %v3290 = vadd.f32 %v2984, %v3250
      %v3291 = vadd.f32 %v2985, %v3255
      %v3292 = vadd.f32 %v2986, %v3258
      %v3293 = vld [vmem:[#allocation2 + $0x19] sm:$0xff]
      %v3294 = vld [vmem:[#allocation2 + $0x21] sm:$0xff]
      %v3295 = vld [vmem:[#allocation2 + $0x29] sm:$0xff]
      %v3296 = vld [vmem:[#allocation2 + $0x31] sm:$0xff]
      %v3297 = vld [vmem:[#allocation2 + $0x39] sm:$0xff]
      %v3298 = vld [vmem:[#allocation2 + $0x41] sm:$0xff]
      %v3299 = vld [vmem:[#allocation2 + $0x49] sm:$0xff]
      %v3300 = vld [vmem:[#allocation2 + $0x51] sm:$0xff]
      %v3301 = vld [vmem:[#allocation2 + $0x59] sm:$0xff]
      %v3302 = vld [vmem:[#allocation2 + $0x61] sm:$0xff]
      %v3303 = vld [vmem:[#allocation2 + $0x69] sm:$0xff]
      %v3304 = vld [vmem:[#allocation2 + $0x71] sm:$0xff]
      %v3305 = vld [vmem:[#allocation2 + $0x79] sm:$0xff]
      %v3306 = vld [vmem:[#allocation2 + $0x81] sm:$0xff]
      %v3307 = vld [vmem:[#allocation2 + $0x89] sm:$0xff]
      %v3308 = vld [vmem:[#allocation2 + $0x91] sm:$0xff]
      %v3309 = vld [vmem:[#allocation2 + $0x99] sm:$0xff]
      %v3310 = vld [vmem:[#allocation2 + $0xa1] sm:$0xff]
      %v3311 = vld [vmem:[#allocation2 + $0xa9] sm:$0xff]
      %v3312 = vld [vmem:[#allocation2 + $0xb1] sm:$0xff]
      %v3313 = vld [vmem:[#allocation2 + $0xb9] sm:$0xff]
      %v3314 = vld [vmem:[#allocation2 + $0xc1] sm:$0xff]
      %v3315 = vld [vmem:[#allocation2 + $0xc9] sm:$0xff]
      %v3316 = vld [vmem:[#allocation2 + $0xd1] sm:$0xff]
      %v3317 = vld [vmem:[#allocation2 + $0xd9] sm:$0xff]
      %v3318 = vld [vmem:[#allocation2 + $0xe1] sm:$0xff]
      %v3319 = vld [vmem:[#allocation2 + $0xe9] sm:$0xff]
      %v3320 = vld [vmem:[#allocation2 + $0xf1] sm:$0xff]
      %v3321 = vld [vmem:[#allocation2 + $0xf9] sm:$0xff]
      %v3322 = vld [vmem:[#allocation2 + $0x101] sm:$0xff]
      %v3323 = vld [vmem:[#allocation2 + $0x109] sm:$0xff]
      %v3324 = vld [vmem:[#allocation2 + $0x111] sm:$0xff]
      %v3325 = vsel %vm1700, %v3293, 0.0
      %v3326 = vsel %vm1701, %v3294, 0.0
      %v3327 = vsel %vm1702, %v3295, 0.0
      %v3328 = vsel %vm1703, %v3296, 0.0
      %v3329 = vsel %vm1704, %v3297, 0.0
      %v3330 = vsel %vm1705, %v3298, 0.0
      %v3331 = vsel %vm1706, %v3299, 0.0
      %v3332 = vsel %vm1707, %v3300, 0.0
      %v3333 = vsel %vm1708, %v3301, 0.0
      %v3334 = vsel %vm1709, %v3302, 0.0
      %v3335 = vsel %vm1710, %v3303, 0.0
      %v3336 = vsel %vm1711, %v3304, 0.0
      %v3337 = vsel %vm1712, %v3305, 0.0
      %v3338 = vsel %vm1713, %v3306, 0.0
      %v3339 = vsel %vm1714, %v3307, 0.0
      %v3340 = vsel %vm1715, %v3308, 0.0
      %v3341 = vsel %vm1716, %v3309, 0.0
      %v3342 = vsel %vm1717, %v3310, 0.0
      %v3343 = vsel %vm1718, %v3311, 0.0
      %v3344 = vsel %vm1719, %v3312, 0.0
      %v3345 = vsel %vm1720, %v3313, 0.0
      %v3346 = vsel %vm1721, %v3314, 0.0
      %v3347 = vsel %vm1722, %v3315, 0.0
      %v3348 = vsel %vm1723, %v3316, 0.0
      %v3349 = vsel %vm1724, %v3317, 0.0
      %v3350 = vsel %vm1725, %v3318, 0.0
      %v3351 = vsel %vm1726, %v3319, 0.0
      %v3352 = vsel %vm1727, %v3320, 0.0
      %v3353 = vsel %vm1728, %v3321, 0.0
      %v3354 = vsel %vm1729, %v3322, 0.0
      %v3355 = vsel %vm1730, %v3323, 0.0
      %v3356 = vsel %vm1731, %v3324, 0.0
      %v3357 = vpack.c.bf16 %v3326, %v3325
      %v3358 = vpack.c.bf16 %v3328, %v3327
      %v3359 = vpack.c.bf16 %v3330, %v3329
      %v3360 = vpack.c.bf16 %v3332, %v3331
      %v3361 = vpack.c.bf16 %v3334, %v3333
      %v3362 = vpack.c.bf16 %v3336, %v3335
      %v3363 = vpack.c.bf16 %v3338, %v3337
      %v3364 = vpack.c.bf16 %v3340, %v3339
      %v3365 = vpack.c.bf16 %v3342, %v3341
      %v3366 = vpack.c.bf16 %v3344, %v3343
      %v3367 = vpack.c.bf16 %v3346, %v3345
      %v3368 = vpack.c.bf16 %v3348, %v3347
      %v3369 = vpack.c.bf16 %v3350, %v3349
      %v3370 = vpack.c.bf16 %v3352, %v3351
      %v3371 = vpack.c.bf16 %v3354, %v3353
      %v3372 = vpack.c.bf16 %v3356, %v3355
      %s3373 = scalar_lea.vmem %s4, 80
      %v3374 = vld [vmem:[%s3373] sm:$0xf]
      %v3375 = vld [vmem:[%s3373 + $0x4] sm:$0xf]
      %v3376 = vld [vmem:[%s3373 + $0x8] sm:$0xf]
      %v3377 = vld [vmem:[%s3373 + $0xc] sm:$0xf]
      %v3382 = vunpack.c.l.b16 %v3374
      %v3383 = vunpack.c.l.b16 %v3375
      %v3384 = vunpack.c.l.b16 %v3376
      %v3385 = vunpack.c.l.b16 %v3377
      %v3386 = vpack.c.b16 %v3383, %v3382
      %v3387 = vpack.c.b16 %v3385, %v3384
      %v3391 = vsel %vm737, %v3357, 0
      %v3394 = vsel %vm737, %v3358, 0
      %v3397 = vsel %vm737, %v3359, 0
      %v3400 = vsel %vm737, %v3360, 0
      %v3403 = vsel %vm737, %v3361, 0
      %v3406 = vsel %vm737, %v3362, 0
      %v3409 = vsel %vm737, %v3363, 0
      %v3412 = vsel %vm737, %v3364, 0
      %v3415 = vsel %vm737, %v3365, 0
      %v3418 = vsel %vm737, %v3366, 0
      %v3421 = vsel %vm737, %v3367, 0
      %v3424 = vsel %vm737, %v3368, 0
      %v3427 = vsel %vm737, %v3369, 0
      %v3430 = vsel %vm737, %v3370, 0
      %v3433 = vsel %vm737, %v3371, 0
      %v3436 = vsel %vm737, %v3372, 0
      %3438 = vmatprep.subr.bf16.mxu0 0
      %3439 = vmatpush1.bf16.msra.mxu0 %v3386
      %3440 = vmatprep.subr.bf16.mxu0 0
      %3441 = vmatpush1.bf16.msra.mxu0 %v3387
      %3442 = vmatprep.subr.bf16.mxu0 0
      %3443 = vmatpush1.bf16.msra.mxu0 0
      %3444 = vmatprep.subr.bf16.mxu0 0
      %3445 = vmatpush1.bf16.msra.mxu0 0
      %3446 = vmatprep.subr.bf16.mxu0 0
      %3447 = vmatpush1.bf16.msra.mxu0 0
      %3448 = vmatprep.subr.bf16.mxu0 0
      %3449 = vmatpush1.bf16.msra.mxu0 0
      %3450 = vmatprep.subr.bf16.mxu0 0
      %3451 = vmatpush1.bf16.msra.mxu0 0
      %3452 = vmatprep.subr.bf16.mxu0 0
      %3453 = vmatpush1.bf16.msra.mxu0 0
      %3454 = vmatprep.subr.bf16.mxu0 0
      %3455 = vmatpush1.bf16.msra.mxu0 0
      %3456 = vmatprep.subr.bf16.mxu0 0
      %3457 = vmatpush1.bf16.msra.mxu0 0
      %3458 = vmatprep.subr.bf16.mxu0 0
      %3459 = vmatpush1.bf16.msra.mxu0 0
      %3460 = vmatprep.subr.bf16.mxu0 0
      %3461 = vmatpush1.bf16.msra.mxu0 0
      %3462 = vmatprep.subr.bf16.mxu0 0
      %3463 = vmatpush1.bf16.msra.mxu0 0
      %3464 = vmatprep.subr.bf16.mxu0 0
      %3465 = vmatpush1.bf16.msra.mxu0 0
      %3466 = vmatprep.subr.bf16.mxu0 0
      %3467 = vmatpush1.bf16.msra.mxu0 0
      %3468 = vmatprep.subr.bf16.mxu0 0
      %3469 = vmatpush1.bf16.msra.mxu0 0
      %3470 = vmatprep.mubr.bf16.mxu0 0
      %3471 = vmatmul.mubr.bf16.gmra.mrb[0].mxu0 %v3391
      %v3472 = vpop.f32.mrb[0].mxu0
      %v3473 = vadd.f32 0.0, %v3472
      %v3474 = vpop.f32.mrb[0].mxu0
      %v3475 = vpop.f32.mrb[0].mxu0
      %v3476 = vadd.f32 0.0, %v3475
      %v3477 = vpop.f32.mrb[0].mxu0
      %3478 = vmatprep.mubr.bf16.mxu0 0
      %3479 = vmatmul.mubr.bf16.gmra.mrb[0].mxu0 %v3394
      %v3480 = vpop.f32.mrb[0].mxu0
      %v3481 = vadd.f32 0.0, %v3480
      %v3482 = vpop.f32.mrb[0].mxu0
      %v3483 = vpop.f32.mrb[0].mxu0
      %v3484 = vadd.f32 0.0, %v3483
      %v3485 = vpop.f32.mrb[0].mxu0
      %3486 = vmatprep.mubr.bf16.mxu0 0
      %3487 = vmatmul.mubr.bf16.gmra.mrb[0].mxu0 %v3397
      %v3488 = vpop.f32.mrb[0].mxu0
      %v3489 = vadd.f32 0.0, %v3488
      %v3490 = vpop.f32.mrb[0].mxu0
      %v3491 = vpop.f32.mrb[0].mxu0
      %v3492 = vadd.f32 0.0, %v3491
      %v3493 = vpop.f32.mrb[0].mxu0
      %3494 = vmatprep.mubr.bf16.mxu0 0
      %3495 = vmatmul.mubr.bf16.gmra.mrb[0].mxu0 %v3400
      %v3496 = vpop.f32.mrb[0].mxu0
      %v3497 = vadd.f32 0.0, %v3496
      %v3498 = vpop.f32.mrb[0].mxu0
      %v3499 = vpop.f32.mrb[0].mxu0
      %v3500 = vadd.f32 0.0, %v3499
      %v3501 = vpop.f32.mrb[0].mxu0
      %3502 = vmatprep.mubr.bf16.mxu0 0
      %3503 = vmatmul.mubr.bf16.gmra.mrb[0].mxu0 %v3403
      %v3504 = vpop.f32.mrb[0].mxu0
      %v3505 = vadd.f32 0.0, %v3504
      %v3506 = vpop.f32.mrb[0].mxu0
      %v3507 = vpop.f32.mrb[0].mxu0
      %v3508 = vadd.f32 0.0, %v3507
      %v3509 = vpop.f32.mrb[0].mxu0
      %3510 = vmatprep.mubr.bf16.mxu0 0
      %3511 = vmatmul.mubr.bf16.gmra.mrb[0].mxu0 %v3406
      %v3512 = vpop.f32.mrb[0].mxu0
      %v3513 = vadd.f32 0.0, %v3512
      %v3514 = vpop.f32.mrb[0].mxu0
      %v3515 = vpop.f32.mrb[0].mxu0
      %v3516 = vadd.f32 0.0, %v3515
      %v3517 = vpop.f32.mrb[0].mxu0
      %3518 = vmatprep.mubr.bf16.mxu0 0
      %3519 = vmatmul.mubr.bf16.gmra.mrb[0].mxu0 %v3409
      %v3520 = vpop.f32.mrb[0].mxu0
      %v3521 = vadd.f32 0.0, %v3520
      %v3522 = vpop.f32.mrb[0].mxu0
      %v3523 = vpop.f32.mrb[0].mxu0
      %v3524 = vadd.f32 0.0, %v3523
      %v3525 = vpop.f32.mrb[0].mxu0
      %3526 = vmatprep.mubr.bf16.mxu0 0
      %3527 = vmatmul.mubr.bf16.gmra.mrb[0].mxu0 %v3412
      %v3528 = vpop.f32.mrb[0].mxu0
      %v3529 = vadd.f32 0.0, %v3528
      %v3530 = vpop.f32.mrb[0].mxu0
      %v3531 = vpop.f32.mrb[0].mxu0
      %v3532 = vadd.f32 0.0, %v3531
      %v3533 = vpop.f32.mrb[0].mxu0
      %3534 = vmatprep.mubr.bf16.mxu0 0
      %3535 = vmatmul.mubr.bf16.gmra.mrb[0].mxu0 %v3415
      %v3536 = vpop.f32.mrb[0].mxu0
      %v3537 = vadd.f32 0.0, %v3536
      %v3538 = vpop.f32.mrb[0].mxu0
      %v3539 = vpop.f32.mrb[0].mxu0
      %v3540 = vadd.f32 0.0, %v3539
      %v3541 = vpop.f32.mrb[0].mxu0
      %3542 = vmatprep.mubr.bf16.mxu0 0
      %3543 = vmatmul.mubr.bf16.gmra.mrb[0].mxu0 %v3418
      %v3544 = vpop.f32.mrb[0].mxu0
      %v3545 = vadd.f32 0.0, %v3544
      %v3546 = vpop.f32.mrb[0].mxu0
      %v3547 = vpop.f32.mrb[0].mxu0
      %v3548 = vadd.f32 0.0, %v3547
      %v3549 = vpop.f32.mrb[0].mxu0
      %3550 = vmatprep.mubr.bf16.mxu0 0
      %3551 = vmatmul.mubr.bf16.gmra.mrb[0].mxu0 %v3421
      %v3552 = vpop.f32.mrb[0].mxu0
      %v3553 = vadd.f32 0.0, %v3552
      %v3554 = vpop.f32.mrb[0].mxu0
      %v3555 = vpop.f32.mrb[0].mxu0
      %v3556 = vadd.f32 0.0, %v3555
      %v3557 = vpop.f32.mrb[0].mxu0
      %3558 = vmatprep.mubr.bf16.mxu0 0
      %3559 = vmatmul.mubr.bf16.gmra.mrb[0].mxu0 %v3424
      %v3560 = vpop.f32.mrb[0].mxu0
      %v3561 = vadd.f32 0.0, %v3560
      %v3562 = vpop.f32.mrb[0].mxu0
      %v3563 = vpop.f32.mrb[0].mxu0
      %v3564 = vadd.f32 0.0, %v3563
      %v3565 = vpop.f32.mrb[0].mxu0
      %3566 = vmatprep.mubr.bf16.mxu0 0
      %3567 = vmatmul.mubr.bf16.gmra.mrb[0].mxu0 %v3427
      %v3568 = vpop.f32.mrb[0].mxu0
      %v3569 = vadd.f32 0.0, %v3568
      %v3570 = vpop.f32.mrb[0].mxu0
      %v3571 = vpop.f32.mrb[0].mxu0
      %v3572 = vadd.f32 0.0, %v3571
      %v3573 = vpop.f32.mrb[0].mxu0
      %3574 = vmatprep.mubr.bf16.mxu0 0
      %3575 = vmatmul.mubr.bf16.gmra.mrb[0].mxu0 %v3430
      %v3576 = vpop.f32.mrb[0].mxu0
      %v3577 = vadd.f32 0.0, %v3576
      %v3578 = vpop.f32.mrb[0].mxu0
      %v3579 = vpop.f32.mrb[0].mxu0
      %v3580 = vadd.f32 0.0, %v3579
      %v3581 = vpop.f32.mrb[0].mxu0
      %3582 = vmatprep.mubr.bf16.mxu0 0
      %3583 = vmatmul.mubr.bf16.gmra.mrb[0].mxu0 %v3433
      %v3584 = vpop.f32.mrb[0].mxu0
      %v3585 = vadd.f32 0.0, %v3584
      %v3586 = vpop.f32.mrb[0].mxu0
      %v3587 = vpop.f32.mrb[0].mxu0
      %v3588 = vadd.f32 0.0, %v3587
      %v3589 = vpop.f32.mrb[0].mxu0
      %3590 = vmatprep.mubr.bf16.mxu0 0
      %3591 = vmatmul.mubr.bf16.gmra.mrb[0].mxu0 %v3436
      %v3592 = vpop.f32.mrb[0].mxu0
      %v3593 = vadd.f32 0.0, %v3592
      %v3594 = vpop.f32.mrb[0].mxu0
      %v3595 = vpop.f32.mrb[0].mxu0
      %v3596 = vadd.f32 0.0, %v3595
      %v3597 = vpop.f32.mrb[0].mxu0
      %3598 = vdwg.mxu0
      %v3599 = vadd.f32 %v3261, %v3473
      %v3600 = vadd.f32 %v3262, %v3476
      %v3601 = vadd.f32 %v3263, %v3481
      %v3602 = vadd.f32 %v3264, %v3484
      %v3603 = vadd.f32 %v3265, %v3489
      %v3604 = vadd.f32 %v3266, %v3492
      %v3605 = vadd.f32 %v3267, %v3497
      %v3606 = vadd.f32 %v3268, %v3500
      %v3607 = vadd.f32 %v3269, %v3505
      %v3608 = vadd.f32 %v3270, %v3508
      %v3609 = vadd.f32 %v3271, %v3513
      %v3610 = vadd.f32 %v3272, %v3516
      %v3611 = vadd.f32 %v3273, %v3521
      %v3612 = vadd.f32 %v3274, %v3524
      %v3613 = vadd.f32 %v3275, %v3529
      %v3614 = vadd.f32 %v3276, %v3532
      %v3615 = vadd.f32 %v3277, %v3537
      %v3616 = vadd.f32 %v3278, %v3540
      %v3617 = vadd.f32 %v3279, %v3545
      %v3618 = vadd.f32 %v3280, %v3548
      %v3619 = vadd.f32 %v3281, %v3553
      %v3620 = vadd.f32 %v3282, %v3556
      %v3621 = vadd.f32 %v3283, %v3561
      %v3622 = vadd.f32 %v3284, %v3564
      %v3623 = vadd.f32 %v3285, %v3569
      %v3624 = vadd.f32 %v3286, %v3572
      %v3625 = vadd.f32 %v3287, %v3577
      %v3626 = vadd.f32 %v3288, %v3580
      %v3627 = vadd.f32 %v3289, %v3585
      %v3628 = vadd.f32 %v3290, %v3588
      %v3629 = vadd.f32 %v3291, %v3593
      %v3630 = vadd.f32 %v3292, %v3596
      %v3631 = vld [vmem:[#allocation2 + $0x27] sm:$0xff]
      %v3632 = vld [vmem:[#allocation2 + $0x2f] sm:$0xff]
      %v3633 = vld [vmem:[#allocation2 + $0x37] sm:$0xff]
      %v3634 = vld [vmem:[#allocation2 + $0x3f] sm:$0xff]
      %v3635 = vld [vmem:[#allocation2 + $0x47] sm:$0xff]
      %v3636 = vld [vmem:[#allocation2 + $0x4f] sm:$0xff]
      %v3637 = vld [vmem:[#allocation2 + $0x57] sm:$0xff]
      %v3638 = vld [vmem:[#allocation2 + $0x5f] sm:$0xff]
      %v3639 = vld [vmem:[#allocation2 + $0x67] sm:$0xff]
      %v3640 = vld [vmem:[#allocation2 + $0x6f] sm:$0xff]
      %v3641 = vld [vmem:[#allocation2 + $0x77] sm:$0xff]
      %v3642 = vld [vmem:[#allocation2 + $0x7f] sm:$0xff]
      %v3643 = vld [vmem:[#allocation2 + $0x87] sm:$0xff]
      %v3644 = vld [vmem:[#allocation2 + $0x8f] sm:$0xff]
      %v3645 = vld [vmem:[#allocation2 + $0x97] sm:$0xff]
      %v3646 = vld [vmem:[#allocation2 + $0x9f] sm:$0xff]
      %v3647 = vld [vmem:[#allocation2 + $0xa7] sm:$0xff]
      %v3648 = vld [vmem:[#allocation2 + $0xaf] sm:$0xff]
      %v3649 = vld [vmem:[#allocation2 + $0xb7] sm:$0xff]
      %v3650 = vld [vmem:[#allocation2 + $0xbf] sm:$0xff]
      %v3651 = vld [vmem:[#allocation2 + $0xc7] sm:$0xff]
      %v3652 = vld [vmem:[#allocation2 + $0xcf] sm:$0xff]
      %v3653 = vld [vmem:[#allocation2 + $0xd7] sm:$0xff]
      %v3654 = vld [vmem:[#allocation2 + $0xdf] sm:$0xff]
      %v3655 = vld [vmem:[#allocation2 + $0xe7] sm:$0xff]
      %v3656 = vld [vmem:[#allocation2 + $0xef] sm:$0xff]
      %v3657 = vld [vmem:[#allocation2 + $0xf7] sm:$0xff]
      %v3658 = vld [vmem:[#allocation2 + $0xff] sm:$0xff]
      %v3659 = vld [vmem:[#allocation2 + $0x107] sm:$0xff]
      %v3660 = vld [vmem:[#allocation2 + $0x10f] sm:$0xff]
      %v3661 = vld [vmem:[#allocation2 + $0x117] sm:$0xff]
      %v3662 = vld [vmem:[#allocation2 + $0x11f] sm:$0xff]
      %v3663 = vsel %vm1668, %v3631, 0.0
      %v3664 = vsel %vm1669, %v3632, 0.0
      %v3665 = vsel %vm1670, %v3633, 0.0
      %v3666 = vsel %vm1671, %v3634, 0.0
      %v3667 = vsel %vm1672, %v3635, 0.0
      %v3668 = vsel %vm1673, %v3636, 0.0
      %v3669 = vsel %vm1674, %v3637, 0.0
      %v3670 = vsel %vm1675, %v3638, 0.0
      %v3671 = vsel %vm1676, %v3639, 0.0
      %v3672 = vsel %vm1677, %v3640, 0.0
      %v3673 = vsel %vm1678, %v3641, 0.0
      %v3674 = vsel %vm1679, %v3642, 0.0
      %v3675 = vsel %vm1680, %v3643, 0.0
      %v3676 = vsel %vm1681, %v3644, 0.0
      %v3677 = vsel %vm1682, %v3645, 0.0
      %v3678 = vsel %vm1683, %v3646, 0.0
      %v3679 = vsel %vm1684, %v3647, 0.0
      %v3680 = vsel %vm1685, %v3648, 0.0
      %v3681 = vsel %vm1686, %v3649, 0.0
      %v3682 = vsel %vm1687, %v3650, 0.0
      %v3683 = vsel %vm1688, %v3651, 0.0
      %v3684 = vsel %vm1689, %v3652, 0.0
      %v3685 = vsel %vm1690, %v3653, 0.0
      %v3686 = vsel %vm1691, %v3654, 0.0
      %v3687 = vsel %vm1692, %v3655, 0.0
      %v3688 = vsel %vm1693, %v3656, 0.0
      %v3689 = vsel %vm1694, %v3657, 0.0
      %v3690 = vsel %vm1695, %v3658, 0.0
      %v3691 = vsel %vm1696, %v3659, 0.0
      %v3692 = vsel %vm1697, %v3660, 0.0
      %v3693 = vsel %vm1698, %v3661, 0.0
      %v3694 = vsel %vm1699, %v3662, 0.0
      %v3695 = vpack.c.bf16 %v3664, %v3663
      %v3696 = vpack.c.bf16 %v3666, %v3665
      %v3697 = vpack.c.bf16 %v3668, %v3667
      %v3698 = vpack.c.bf16 %v3670, %v3669
      %v3699 = vpack.c.bf16 %v3672, %v3671
      %v3700 = vpack.c.bf16 %v3674, %v3673
      %v3701 = vpack.c.bf16 %v3676, %v3675
      %v3702 = vpack.c.bf16 %v3678, %v3677
      %v3703 = vpack.c.bf16 %v3680, %v3679
      %v3704 = vpack.c.bf16 %v3682, %v3681
      %v3705 = vpack.c.bf16 %v3684, %v3683
      %v3706 = vpack.c.bf16 %v3686, %v3685
      %v3707 = vpack.c.bf16 %v3688, %v3687
      %v3708 = vpack.c.bf16 %v3690, %v3689
      %v3709 = vpack.c.bf16 %v3692, %v3691
      %v3710 = vpack.c.bf16 %v3694, %v3693
      %s3711 = scalar_lea.vmem %s4, 96
      %v3712 = vld [vmem:[%s3711] sm:$0xf]
      %v3713 = vld [vmem:[%s3711 + $0x4] sm:$0xf]
      %v3714 = vld [vmem:[%s3711 + $0x8] sm:$0xf]
      %v3715 = vld [vmem:[%s3711 + $0xc] sm:$0xf]
      %v3720 = vunpack.c.l.b16 %v3712
      %v3721 = vunpack.c.l.b16 %v3713
      %v3722 = vunpack.c.l.b16 %v3714
      %v3723 = vunpack.c.l.b16 %v3715
      %v3724 = vpack.c.b16 %v3721, %v3720
      %v3725 = vpack.c.b16 %v3723, %v3722
      %v3729 = vsel %vm737, %v3695, 0
      %v3732 = vsel %vm737, %v3696, 0
      %v3735 = vsel %vm737, %v3697, 0
      %v3738 = vsel %vm737, %v3698, 0
      %v3741 = vsel %vm737, %v3699, 0
      %v3744 = vsel %vm737, %v3700, 0
      %v3747 = vsel %vm737, %v3701, 0
      %v3750 = vsel %vm737, %v3702, 0
      %v3753 = vsel %vm737, %v3703, 0
      %v3756 = vsel %vm737, %v3704, 0
      %v3759 = vsel %vm737, %v3705, 0
      %v3762 = vsel %vm737, %v3706, 0
      %v3765 = vsel %vm737, %v3707, 0
      %v3768 = vsel %vm737, %v3708, 0
      %v3771 = vsel %vm737, %v3709, 0
      %v3774 = vsel %vm737, %v3710, 0
      %3776 = vmatprep.subr.bf16.mxu0 0
      %3777 = vmatpush1.bf16.msra.mxu0 %v3724
      %3778 = vmatprep.subr.bf16.mxu0 0
      %3779 = vmatpush1.bf16.msra.mxu0 %v3725
      %3780 = vmatprep.subr.bf16.mxu0 0
      %3781 = vmatpush1.bf16.msra.mxu0 0
      %3782 = vmatprep.subr.bf16.mxu0 0
      %3783 = vmatpush1.bf16.msra.mxu0 0
      %3784 = vmatprep.subr.bf16.mxu0 0
      %3785 = vmatpush1.bf16.msra.mxu0 0
      %3786 = vmatprep.subr.bf16.mxu0 0
      %3787 = vmatpush1.bf16.msra.mxu0 0
      %3788 = vmatprep.subr.bf16.mxu0 0
      %3789 = vmatpush1.bf16.msra.mxu0 0
      %3790 = vmatprep.subr.bf16.mxu0 0
      %3791 = vmatpush1.bf16.msra.mxu0 0
      %3792 = vmatprep.subr.bf16.mxu0 0
      %3793 = vmatpush1.bf16.msra.mxu0 0
      %3794 = vmatprep.subr.bf16.mxu0 0
      %3795 = vmatpush1.bf16.msra.mxu0 0
      %3796 = vmatprep.subr.bf16.mxu0 0
      %3797 = vmatpush1.bf16.msra.mxu0 0
      %3798 = vmatprep.subr.bf16.mxu0 0
      %3799 = vmatpush1.bf16.msra.mxu0 0
      %3800 = vmatprep.subr.bf16.mxu0 0
      %3801 = vmatpush1.bf16.msra.mxu0 0
      %3802 = vmatprep.subr.bf16.mxu0 0
      %3803 = vmatpush1.bf16.msra.mxu0 0
      %3804 = vmatprep.subr.bf16.mxu0 0
      %3805 = vmatpush1.bf16.msra.mxu0 0
      %3806 = vmatprep.subr.bf16.mxu0 0
      %3807 = vmatpush1.bf16.msra.mxu0 0
      %3808 = vmatprep.mubr.bf16.mxu0 0
      %3809 = vmatmul.mubr.bf16.gmra.mrb[0].mxu0 %v3729
      %v3810 = vpop.f32.mrb[0].mxu0
      %v3811 = vadd.f32 0.0, %v3810
      %v3812 = vpop.f32.mrb[0].mxu0
      %v3813 = vpop.f32.mrb[0].mxu0
      %v3814 = vadd.f32 0.0, %v3813
      %v3815 = vpop.f32.mrb[0].mxu0
      %3816 = vmatprep.mubr.bf16.mxu0 0
      %3817 = vmatmul.mubr.bf16.gmra.mrb[0].mxu0 %v3732
      %v3818 = vpop.f32.mrb[0].mxu0
      %v3819 = vadd.f32 0.0, %v3818
      %v3820 = vpop.f32.mrb[0].mxu0
      %v3821 = vpop.f32.mrb[0].mxu0
      %v3822 = vadd.f32 0.0, %v3821
      %v3823 = vpop.f32.mrb[0].mxu0
      %3824 = vmatprep.mubr.bf16.mxu0 0
      %3825 = vmatmul.mubr.bf16.gmra.mrb[0].mxu0 %v3735
      %v3826 = vpop.f32.mrb[0].mxu0
      %v3827 = vadd.f32 0.0, %v3826
      %v3828 = vpop.f32.mrb[0].mxu0
      %v3829 = vpop.f32.mrb[0].mxu0
      %v3830 = vadd.f32 0.0, %v3829
      %v3831 = vpop.f32.mrb[0].mxu0
      %3832 = vmatprep.mubr.bf16.mxu0 0
      %3833 = vmatmul.mubr.bf16.gmra.mrb[0].mxu0 %v3738
      %v3834 = vpop.f32.mrb[0].mxu0
      %v3835 = vadd.f32 0.0, %v3834
      %v3836 = vpop.f32.mrb[0].mxu0
      %v3837 = vpop.f32.mrb[0].mxu0
      %v3838 = vadd.f32 0.0, %v3837
      %v3839 = vpop.f32.mrb[0].mxu0
      %3840 = vmatprep.mubr.bf16.mxu0 0
      %3841 = vmatmul.mubr.bf16.gmra.mrb[0].mxu0 %v3741
      %v3842 = vpop.f32.mrb[0].mxu0
      %v3843 = vadd.f32 0.0, %v3842
      %v3844 = vpop.f32.mrb[0].mxu0
      %v3845 = vpop.f32.mrb[0].mxu0
      %v3846 = vadd.f32 0.0, %v3845
      %v3847 = vpop.f32.mrb[0].mxu0
      %3848 = vmatprep.mubr.bf16.mxu0 0
      %3849 = vmatmul.mubr.bf16.gmra.mrb[0].mxu0 %v3744
      %v3850 = vpop.f32.mrb[0].mxu0
      %v3851 = vadd.f32 0.0, %v3850
      %v3852 = vpop.f32.mrb[0].mxu0
      %v3853 = vpop.f32.mrb[0].mxu0
      %v3854 = vadd.f32 0.0, %v3853
      %v3855 = vpop.f32.mrb[0].mxu0
      %3856 = vmatprep.mubr.bf16.mxu0 0
      %3857 = vmatmul.mubr.bf16.gmra.mrb[0].mxu0 %v3747
      %v3858 = vpop.f32.mrb[0].mxu0
      %v3859 = vadd.f32 0.0, %v3858
      %v3860 = vpop.f32.mrb[0].mxu0
      %v3861 = vpop.f32.mrb[0].mxu0
      %v3862 = vadd.f32 0.0, %v3861
      %v3863 = vpop.f32.mrb[0].mxu0
      %3864 = vmatprep.mubr.bf16.mxu0 0
      %3865 = vmatmul.mubr.bf16.gmra.mrb[0].mxu0 %v3750
      %v3866 = vpop.f32.mrb[0].mxu0
      %v3867 = vadd.f32 0.0, %v3866
      %v3868 = vpop.f32.mrb[0].mxu0
      %v3869 = vpop.f32.mrb[0].mxu0
      %v3870 = vadd.f32 0.0, %v3869
      %v3871 = vpop.f32.mrb[0].mxu0
      %3872 = vmatprep.mubr.bf16.mxu0 0
      %3873 = vmatmul.mubr.bf16.gmra.mrb[0].mxu0 %v3753
      %v3874 = vpop.f32.mrb[0].mxu0
      %v3875 = vadd.f32 0.0, %v3874
      %v3876 = vpop.f32.mrb[0].mxu0
      %v3877 = vpop.f32.mrb[0].mxu0
      %v3878 = vadd.f32 0.0, %v3877
      %v3879 = vpop.f32.mrb[0].mxu0
      %3880 = vmatprep.mubr.bf16.mxu0 0
      %3881 = vmatmul.mubr.bf16.gmra.mrb[0].mxu0 %v3756
      %v3882 = vpop.f32.mrb[0].mxu0
      %v3883 = vadd.f32 0.0, %v3882
      %v3884 = vpop.f32.mrb[0].mxu0
      %v3885 = vpop.f32.mrb[0].mxu0
      %v3886 = vadd.f32 0.0, %v3885
      %v3887 = vpop.f32.mrb[0].mxu0
      %3888 = vmatprep.mubr.bf16.mxu0 0
      %3889 = vmatmul.mubr.bf16.gmra.mrb[0].mxu0 %v3759
      %v3890 = vpop.f32.mrb[0].mxu0
      %v3891 = vadd.f32 0.0, %v3890
      %v3892 = vpop.f32.mrb[0].mxu0
      %v3893 = vpop.f32.mrb[0].mxu0
      %v3894 = vadd.f32 0.0, %v3893
      %v3895 = vpop.f32.mrb[0].mxu0
      %3896 = vmatprep.mubr.bf16.mxu0 0
      %3897 = vmatmul.mubr.bf16.gmra.mrb[0].mxu0 %v3762
      %v3898 = vpop.f32.mrb[0].mxu0
      %v3899 = vadd.f32 0.0, %v3898
      %v3900 = vpop.f32.mrb[0].mxu0
      %v3901 = vpop.f32.mrb[0].mxu0
      %v3902 = vadd.f32 0.0, %v3901
      %v3903 = vpop.f32.mrb[0].mxu0
      %3904 = vmatprep.mubr.bf16.mxu0 0
      %3905 = vmatmul.mubr.bf16.gmra.mrb[0].mxu0 %v3765
      %v3906 = vpop.f32.mrb[0].mxu0
      %v3907 = vadd.f32 0.0, %v3906
      %v3908 = vpop.f32.mrb[0].mxu0
      %v3909 = vpop.f32.mrb[0].mxu0
      %v3910 = vadd.f32 0.0, %v3909
      %v3911 = vpop.f32.mrb[0].mxu0
      %3912 = vmatprep.mubr.bf16.mxu0 0
      %3913 = vmatmul.mubr.bf16.gmra.mrb[0].mxu0 %v3768
      %v3914 = vpop.f32.mrb[0].mxu0
      %v3915 = vadd.f32 0.0, %v3914
      %v3916 = vpop.f32.mrb[0].mxu0
      %v3917 = vpop.f32.mrb[0].mxu0
      %v3918 = vadd.f32 0.0, %v3917
      %v3919 = vpop.f32.mrb[0].mxu0
      %3920 = vmatprep.mubr.bf16.mxu0 0
      %3921 = vmatmul.mubr.bf16.gmra.mrb[0].mxu0 %v3771
      %v3922 = vpop.f32.mrb[0].mxu0
      %v3923 = vadd.f32 0.0, %v3922
      %v3924 = vpop.f32.mrb[0].mxu0
      %v3925 = vpop.f32.mrb[0].mxu0
      %v3926 = vadd.f32 0.0, %v3925
      %v3927 = vpop.f32.mrb[0].mxu0
      %3928 = vmatprep.mubr.bf16.mxu0 0
      %3929 = vmatmul.mubr.bf16.gmra.mrb[0].mxu0 %v3774
      %v3930 = vpop.f32.mrb[0].mxu0
      %v3931 = vadd.f32 0.0, %v3930
      %v3932 = vpop.f32.mrb[0].mxu0
      %v3933 = vpop.f32.mrb[0].mxu0
      %v3934 = vadd.f32 0.0, %v3933
      %v3935 = vpop.f32.mrb[0].mxu0
      %3936 = vdwg.mxu0
      %v3937 = vadd.f32 %v3599, %v3811
      %v3938 = vadd.f32 %v3600, %v3814
      %v3939 = vadd.f32 %v3601, %v3819
      %v3940 = vadd.f32 %v3602, %v3822
      %v3941 = vadd.f32 %v3603, %v3827
      %v3942 = vadd.f32 %v3604, %v3830
      %v3943 = vadd.f32 %v3605, %v3835
      %v3944 = vadd.f32 %v3606, %v3838
      %v3945 = vadd.f32 %v3607, %v3843
      %v3946 = vadd.f32 %v3608, %v3846
      %v3947 = vadd.f32 %v3609, %v3851
      %v3948 = vadd.f32 %v3610, %v3854
      %v3949 = vadd.f32 %v3611, %v3859
      %v3950 = vadd.f32 %v3612, %v3862
      %v3951 = vadd.f32 %v3613, %v3867
      %v3952 = vadd.f32 %v3614, %v3870
      %v3953 = vadd.f32 %v3615, %v3875
      %v3954 = vadd.f32 %v3616, %v3878
      %v3955 = vadd.f32 %v3617, %v3883
      %v3956 = vadd.f32 %v3618, %v3886
      %v3957 = vadd.f32 %v3619, %v3891
      %v3958 = vadd.f32 %v3620, %v3894
      %v3959 = vadd.f32 %v3621, %v3899
      %v3960 = vadd.f32 %v3622, %v3902
      %v3961 = vadd.f32 %v3623, %v3907
      %v3962 = vadd.f32 %v3624, %v3910
      %v3963 = vadd.f32 %v3625, %v3915
      %v3964 = vadd.f32 %v3626, %v3918
      %v3965 = vadd.f32 %v3627, %v3923
      %v3966 = vadd.f32 %v3628, %v3926
      %v3967 = vadd.f32 %v3629, %v3931
      %v3968 = vadd.f32 %v3630, %v3934
      %v3969 = vld [vmem:[#allocation2 + $0x28] sm:$0xff]
      %v3970 = vld [vmem:[#allocation2 + $0x30] sm:$0xff]
      %v3971 = vld [vmem:[#allocation2 + $0x38] sm:$0xff]
      %v3972 = vld [vmem:[#allocation2 + $0x40] sm:$0xff]
      %v3973 = vld [vmem:[#allocation2 + $0x48] sm:$0xff]
      %v3974 = vld [vmem:[#allocation2 + $0x50] sm:$0xff]
      %v3975 = vld [vmem:[#allocation2 + $0x58] sm:$0xff]
      %v3976 = vld [vmem:[#allocation2 + $0x60] sm:$0xff]
      %v3977 = vld [vmem:[#allocation2 + $0x68] sm:$0xff]
      %v3978 = vld [vmem:[#allocation2 + $0x70] sm:$0xff]
      %v3979 = vld [vmem:[#allocation2 + $0x78] sm:$0xff]
      %v3980 = vld [vmem:[#allocation2 + $0x80] sm:$0xff]
      %v3981 = vld [vmem:[#allocation2 + $0x88] sm:$0xff]
      %v3982 = vld [vmem:[#allocation2 + $0x90] sm:$0xff]
      %v3983 = vld [vmem:[#allocation2 + $0x98] sm:$0xff]
      %v3984 = vld [vmem:[#allocation2 + $0xa0] sm:$0xff]
      %v3985 = vld [vmem:[#allocation2 + $0xa8] sm:$0xff]
      %v3986 = vld [vmem:[#allocation2 + $0xb0] sm:$0xff]
      %v3987 = vld [vmem:[#allocation2 + $0xb8] sm:$0xff]
      %v3988 = vld [vmem:[#allocation2 + $0xc0] sm:$0xff]
      %v3989 = vld [vmem:[#allocation2 + $0xc8] sm:$0xff]
      %v3990 = vld [vmem:[#allocation2 + $0xd0] sm:$0xff]
      %v3991 = vld [vmem:[#allocation2 + $0xd8] sm:$0xff]
      %v3992 = vld [vmem:[#allocation2 + $0xe0] sm:$0xff]
      %v3993 = vld [vmem:[#allocation2 + $0xe8] sm:$0xff]
      %v3994 = vld [vmem:[#allocation2 + $0xf0] sm:$0xff]
      %v3995 = vld [vmem:[#allocation2 + $0xf8] sm:$0xff]
      %v3996 = vld [vmem:[#allocation2 + $0x100] sm:$0xff]
      %v3997 = vld [vmem:[#allocation2 + $0x108] sm:$0xff]
      %v3998 = vld [vmem:[#allocation2 + $0x110] sm:$0xff]
      %v3999 = vld [vmem:[#allocation2 + $0x118] sm:$0xff]
      %v4000 = vld [vmem:[#allocation2 + $0x120] sm:$0xff]
      %v4001 = vpack.c.bf16 %v3970, %v3969
      %v4002 = vpack.c.bf16 %v3972, %v3971
      %v4003 = vpack.c.bf16 %v3974, %v3973
      %v4004 = vpack.c.bf16 %v3976, %v3975
      %v4005 = vpack.c.bf16 %v3978, %v3977
      %v4006 = vpack.c.bf16 %v3980, %v3979
      %v4007 = vpack.c.bf16 %v3982, %v3981
      %v4008 = vpack.c.bf16 %v3984, %v3983
      %v4009 = vpack.c.bf16 %v3986, %v3985
      %v4010 = vpack.c.bf16 %v3988, %v3987
      %v4011 = vpack.c.bf16 %v3990, %v3989
      %v4012 = vpack.c.bf16 %v3992, %v3991
      %v4013 = vpack.c.bf16 %v3994, %v3993
      %v4014 = vpack.c.bf16 %v3996, %v3995
      %v4015 = vpack.c.bf16 %v3998, %v3997
      %v4016 = vpack.c.bf16 %v4000, %v3999
      %s4017 = scalar_lea.vmem %s4, 112
      %v4018 = vld [vmem:[%s4017] sm:$0xf]
      %v4019 = vld [vmem:[%s4017 + $0x4] sm:$0xf]
      %v4020 = vld [vmem:[%s4017 + $0x8] sm:$0xf]
      %v4021 = vld [vmem:[%s4017 + $0xc] sm:$0xf]
      %v4026 = vunpack.c.l.b16 %v4018
      %v4027 = vunpack.c.l.b16 %v4019
      %v4028 = vunpack.c.l.b16 %v4020
      %v4029 = vunpack.c.l.b16 %v4021
      %v4030 = vpack.c.b16 %v4027, %v4026
      %v4031 = vpack.c.b16 %v4029, %v4028
      %v4035 = vsel %vm737, %v4001, 0
      %v4038 = vsel %vm737, %v4002, 0
      %v4041 = vsel %vm737, %v4003, 0
      %v4044 = vsel %vm737, %v4004, 0
      %v4047 = vsel %vm737, %v4005, 0
      %v4050 = vsel %vm737, %v4006, 0
      %v4053 = vsel %vm737, %v4007, 0
      %v4056 = vsel %vm737, %v4008, 0
      %v4059 = vsel %vm737, %v4009, 0
      %v4062 = vsel %vm737, %v4010, 0
      %v4065 = vsel %vm737, %v4011, 0
      %v4068 = vsel %vm737, %v4012, 0
      %v4071 = vsel %vm737, %v4013, 0
      %v4074 = vsel %vm737, %v4014, 0
      %v4077 = vsel %vm737, %v4015, 0
      %v4080 = vsel %vm737, %v4016, 0
      %4082 = vmatprep.subr.bf16.mxu0 0
      %4083 = vmatpush1.bf16.msra.mxu0 %v4030
      %4084 = vmatprep.subr.bf16.mxu0 0
      %4085 = vmatpush1.bf16.msra.mxu0 %v4031
      %4086 = vmatprep.subr.bf16.mxu0 0
      %4087 = vmatpush1.bf16.msra.mxu0 0
      %4088 = vmatprep.subr.bf16.mxu0 0
      %4089 = vmatpush1.bf16.msra.mxu0 0
      %4090 = vmatprep.subr.bf16.mxu0 0
      %4091 = vmatpush1.bf16.msra.mxu0 0
      %4092 = vmatprep.subr.bf16.mxu0 0
      %4093 = vmatpush1.bf16.msra.mxu0 0
      %4094 = vmatprep.subr.bf16.mxu0 0
      %4095 = vmatpush1.bf16.msra.mxu0 0
      %4096 = vmatprep.subr.bf16.mxu0 0
      %4097 = vmatpush1.bf16.msra.mxu0 0
      %4098 = vmatprep.subr.bf16.mxu0 0
      %4099 = vmatpush1.bf16.msra.mxu0 0
      %4100 = vmatprep.subr.bf16.mxu0 0
      %4101 = vmatpush1.bf16.msra.mxu0 0
      %4102 = vmatprep.subr.bf16.mxu0 0
      %4103 = vmatpush1.bf16.msra.mxu0 0
      %4104 = vmatprep.subr.bf16.mxu0 0
      %4105 = vmatpush1.bf16.msra.mxu0 0
      %4106 = vmatprep.subr.bf16.mxu0 0
      %4107 = vmatpush1.bf16.msra.mxu0 0
      %4108 = vmatprep.subr.bf16.mxu0 0
      %4109 = vmatpush1.bf16.msra.mxu0 0
      %4110 = vmatprep.subr.bf16.mxu0 0
      %4111 = vmatpush1.bf16.msra.mxu0 0
      %4112 = vmatprep.subr.bf16.mxu0 0
      %4113 = vmatpush1.bf16.msra.mxu0 0
      %4114 = vmatprep.mubr.bf16.mxu0 0
      %4115 = vmatmul.mubr.bf16.gmra.mrb[0].mxu0 %v4035
      %v4116 = vpop.f32.mrb[0].mxu0
      %v4117 = vadd.f32 0.0, %v4116
      %v4118 = vpop.f32.mrb[0].mxu0
      %v4119 = vpop.f32.mrb[0].mxu0
      %v4120 = vadd.f32 0.0, %v4119
      %v4121 = vpop.f32.mrb[0].mxu0
      %4122 = vmatprep.mubr.bf16.mxu0 0
      %4123 = vmatmul.mubr.bf16.gmra.mrb[0].mxu0 %v4038
      %v4124 = vpop.f32.mrb[0].mxu0
      %v4125 = vadd.f32 0.0, %v4124
      %v4126 = vpop.f32.mrb[0].mxu0
      %v4127 = vpop.f32.mrb[0].mxu0
      %v4128 = vadd.f32 0.0, %v4127
      %v4129 = vpop.f32.mrb[0].mxu0
      %4130 = vmatprep.mubr.bf16.mxu0 0
      %4131 = vmatmul.mubr.bf16.gmra.mrb[0].mxu0 %v4041
      %v4132 = vpop.f32.mrb[0].mxu0
      %v4133 = vadd.f32 0.0, %v4132
      %v4134 = vpop.f32.mrb[0].mxu0
      %v4135 = vpop.f32.mrb[0].mxu0
      %v4136 = vadd.f32 0.0, %v4135
      %v4137 = vpop.f32.mrb[0].mxu0
      %4138 = vmatprep.mubr.bf16.mxu0 0
      %4139 = vmatmul.mubr.bf16.gmra.mrb[0].mxu0 %v4044
      %v4140 = vpop.f32.mrb[0].mxu0
      %v4141 = vadd.f32 0.0, %v4140
      %v4142 = vpop.f32.mrb[0].mxu0
      %v4143 = vpop.f32.mrb[0].mxu0
      %v4144 = vadd.f32 0.0, %v4143
      %v4145 = vpop.f32.mrb[0].mxu0
      %4146 = vmatprep.mubr.bf16.mxu0 0
      %4147 = vmatmul.mubr.bf16.gmra.mrb[0].mxu0 %v4047
      %v4148 = vpop.f32.mrb[0].mxu0
      %v4149 = vadd.f32 0.0, %v4148
      %v4150 = vpop.f32.mrb[0].mxu0
      %v4151 = vpop.f32.mrb[0].mxu0
      %v4152 = vadd.f32 0.0, %v4151
      %v4153 = vpop.f32.mrb[0].mxu0
      %4154 = vmatprep.mubr.bf16.mxu0 0
      %4155 = vmatmul.mubr.bf16.gmra.mrb[0].mxu0 %v4050
      %v4156 = vpop.f32.mrb[0].mxu0
      %v4157 = vadd.f32 0.0, %v4156
      %v4158 = vpop.f32.mrb[0].mxu0
      %v4159 = vpop.f32.mrb[0].mxu0
      %v4160 = vadd.f32 0.0, %v4159
      %v4161 = vpop.f32.mrb[0].mxu0
      %4162 = vmatprep.mubr.bf16.mxu0 0
      %4163 = vmatmul.mubr.bf16.gmra.mrb[0].mxu0 %v4053
      %v4164 = vpop.f32.mrb[0].mxu0
      %v4165 = vadd.f32 0.0, %v4164
      %v4166 = vpop.f32.mrb[0].mxu0
      %v4167 = vpop.f32.mrb[0].mxu0
      %v4168 = vadd.f32 0.0, %v4167
      %v4169 = vpop.f32.mrb[0].mxu0
      %4170 = vmatprep.mubr.bf16.mxu0 0
      %4171 = vmatmul.mubr.bf16.gmra.mrb[0].mxu0 %v4056
      %v4172 = vpop.f32.mrb[0].mxu0
      %v4173 = vadd.f32 0.0, %v4172
      %v4174 = vpop.f32.mrb[0].mxu0
      %v4175 = vpop.f32.mrb[0].mxu0
      %v4176 = vadd.f32 0.0, %v4175
      %v4177 = vpop.f32.mrb[0].mxu0
      %4178 = vmatprep.mubr.bf16.mxu0 0
      %4179 = vmatmul.mubr.bf16.gmra.mrb[0].mxu0 %v4059
      %v4180 = vpop.f32.mrb[0].mxu0
      %v4181 = vadd.f32 0.0, %v4180
      %v4182 = vpop.f32.mrb[0].mxu0
      %v4183 = vpop.f32.mrb[0].mxu0
      %v4184 = vadd.f32 0.0, %v4183
      %v4185 = vpop.f32.mrb[0].mxu0
      %4186 = vmatprep.mubr.bf16.mxu0 0
      %4187 = vmatmul.mubr.bf16.gmra.mrb[0].mxu0 %v4062
      %v4188 = vpop.f32.mrb[0].mxu0
      %v4189 = vadd.f32 0.0, %v4188
      %v4190 = vpop.f32.mrb[0].mxu0
      %v4191 = vpop.f32.mrb[0].mxu0
      %v4192 = vadd.f32 0.0, %v4191
      %v4193 = vpop.f32.mrb[0].mxu0
      %4194 = vmatprep.mubr.bf16.mxu0 0
      %4195 = vmatmul.mubr.bf16.gmra.mrb[0].mxu0 %v4065
      %v4196 = vpop.f32.mrb[0].mxu0
      %v4197 = vadd.f32 0.0, %v4196
      %v4198 = vpop.f32.mrb[0].mxu0
      %v4199 = vpop.f32.mrb[0].mxu0
      %v4200 = vadd.f32 0.0, %v4199
      %v4201 = vpop.f32.mrb[0].mxu0
      %4202 = vmatprep.mubr.bf16.mxu0 0
      %4203 = vmatmul.mubr.bf16.gmra.mrb[0].mxu0 %v4068
      %v4204 = vpop.f32.mrb[0].mxu0
      %v4205 = vadd.f32 0.0, %v4204
      %v4206 = vpop.f32.mrb[0].mxu0
      %v4207 = vpop.f32.mrb[0].mxu0
      %v4208 = vadd.f32 0.0, %v4207
      %v4209 = vpop.f32.mrb[0].mxu0
      %4210 = vmatprep.mubr.bf16.mxu0 0
      %4211 = vmatmul.mubr.bf16.gmra.mrb[0].mxu0 %v4071
      %v4212 = vpop.f32.mrb[0].mxu0
      %v4213 = vadd.f32 0.0, %v4212
      %v4214 = vpop.f32.mrb[0].mxu0
      %v4215 = vpop.f32.mrb[0].mxu0
      %v4216 = vadd.f32 0.0, %v4215
      %v4217 = vpop.f32.mrb[0].mxu0
      %4218 = vmatprep.mubr.bf16.mxu0 0
      %4219 = vmatmul.mubr.bf16.gmra.mrb[0].mxu0 %v4074
      %v4220 = vpop.f32.mrb[0].mxu0
      %v4221 = vadd.f32 0.0, %v4220
      %v4222 = vpop.f32.mrb[0].mxu0
      %v4223 = vpop.f32.mrb[0].mxu0
      %v4224 = vadd.f32 0.0, %v4223
      %v4225 = vpop.f32.mrb[0].mxu0
      %4226 = vmatprep.mubr.bf16.mxu0 0
      %4227 = vmatmul.mubr.bf16.gmra.mrb[0].mxu0 %v4077
      %v4228 = vpop.f32.mrb[0].mxu0
      %v4229 = vadd.f32 0.0, %v4228
      %v4230 = vpop.f32.mrb[0].mxu0
      %v4231 = vpop.f32.mrb[0].mxu0
      %v4232 = vadd.f32 0.0, %v4231
      %v4233 = vpop.f32.mrb[0].mxu0
      %4234 = vmatprep.mubr.bf16.mxu0 0
      %4235 = vmatmul.mubr.bf16.gmra.mrb[0].mxu0 %v4080
      %v4236 = vpop.f32.mrb[0].mxu0
      %v4237 = vadd.f32 0.0, %v4236
      %v4238 = vpop.f32.mrb[0].mxu0
      %v4239 = vpop.f32.mrb[0].mxu0
      %v4240 = vadd.f32 0.0, %v4239
      %v4241 = vpop.f32.mrb[0].mxu0
      %4242 = vdwg.mxu0
      %v4243 = vadd.f32 %v3937, %v4117
      %v4244 = vadd.f32 %v3938, %v4120
      %v4245 = vadd.f32 %v3939, %v4125
      %v4246 = vadd.f32 %v3940, %v4128
      %v4247 = vadd.f32 %v3941, %v4133
      %v4248 = vadd.f32 %v3942, %v4136
      %v4249 = vadd.f32 %v3943, %v4141
      %v4250 = vadd.f32 %v3944, %v4144
      %v4251 = vadd.f32 %v3945, %v4149
      %v4252 = vadd.f32 %v3946, %v4152
      %v4253 = vadd.f32 %v3947, %v4157
      %v4254 = vadd.f32 %v3948, %v4160
      %v4255 = vadd.f32 %v3949, %v4165
      %v4256 = vadd.f32 %v3950, %v4168
      %v4257 = vadd.f32 %v3951, %v4173
      %v4258 = vadd.f32 %v3952, %v4176
      %v4259 = vadd.f32 %v3953, %v4181
      %v4260 = vadd.f32 %v3954, %v4184
      %v4261 = vadd.f32 %v3955, %v4189
      %v4262 = vadd.f32 %v3956, %v4192
      %v4263 = vadd.f32 %v3957, %v4197
      %v4264 = vadd.f32 %v3958, %v4200
      %v4265 = vadd.f32 %v3959, %v4205
      %v4266 = vadd.f32 %v3960, %v4208
      %v4267 = vadd.f32 %v3961, %v4213
      %v4268 = vadd.f32 %v3962, %v4216
      %v4269 = vadd.f32 %v3963, %v4221
      %v4270 = vadd.f32 %v3964, %v4224
      %v4271 = vadd.f32 %v3965, %v4229
      %v4272 = vadd.f32 %v3966, %v4232
      %v4273 = vadd.f32 %v3967, %v4237
      %v4274 = vadd.f32 %v3968, %v4240
      %v4275 = vld [vmem:[#allocation2 + $0x29] sm:$0xff]
      %v4276 = vld [vmem:[#allocation2 + $0x31] sm:$0xff]
      %v4277 = vld [vmem:[#allocation2 + $0x39] sm:$0xff]
      %v4278 = vld [vmem:[#allocation2 + $0x41] sm:$0xff]
      %v4279 = vld [vmem:[#allocation2 + $0x49] sm:$0xff]
      %v4280 = vld [vmem:[#allocation2 + $0x51] sm:$0xff]
      %v4281 = vld [vmem:[#allocation2 + $0x59] sm:$0xff]
      %v4282 = vld [vmem:[#allocation2 + $0x61] sm:$0xff]
      %v4283 = vld [vmem:[#allocation2 + $0x69] sm:$0xff]
      %v4284 = vld [vmem:[#allocation2 + $0x71] sm:$0xff]
      %v4285 = vld [vmem:[#allocation2 + $0x79] sm:$0xff]
      %v4286 = vld [vmem:[#allocation2 + $0x81] sm:$0xff]
      %v4287 = vld [vmem:[#allocation2 + $0x89] sm:$0xff]
      %v4288 = vld [vmem:[#allocation2 + $0x91] sm:$0xff]
      %v4289 = vld [vmem:[#allocation2 + $0x99] sm:$0xff]
      %v4290 = vld [vmem:[#allocation2 + $0xa1] sm:$0xff]
      %v4291 = vld [vmem:[#allocation2 + $0xa9] sm:$0xff]
      %v4292 = vld [vmem:[#allocation2 + $0xb1] sm:$0xff]
      %v4293 = vld [vmem:[#allocation2 + $0xb9] sm:$0xff]
      %v4294 = vld [vmem:[#allocation2 + $0xc1] sm:$0xff]
      %v4295 = vld [vmem:[#allocation2 + $0xc9] sm:$0xff]
      %v4296 = vld [vmem:[#allocation2 + $0xd1] sm:$0xff]
      %v4297 = vld [vmem:[#allocation2 + $0xd9] sm:$0xff]
      %v4298 = vld [vmem:[#allocation2 + $0xe1] sm:$0xff]
      %v4299 = vld [vmem:[#allocation2 + $0xe9] sm:$0xff]
      %v4300 = vld [vmem:[#allocation2 + $0xf1] sm:$0xff]
      %v4301 = vld [vmem:[#allocation2 + $0xf9] sm:$0xff]
      %v4302 = vld [vmem:[#allocation2 + $0x101] sm:$0xff]
      %v4303 = vld [vmem:[#allocation2 + $0x109] sm:$0xff]
      %v4304 = vld [vmem:[#allocation2 + $0x111] sm:$0xff]
      %v4305 = vld [vmem:[#allocation2 + $0x119] sm:$0xff]
      %v4306 = vld [vmem:[#allocation2 + $0x121] sm:$0xff]
      %v4307 = vsel %vm1700, %v4275, 0.0
      %v4308 = vsel %vm1701, %v4276, 0.0
      %v4309 = vsel %vm1702, %v4277, 0.0
      %v4310 = vsel %vm1703, %v4278, 0.0
      %v4311 = vsel %vm1704, %v4279, 0.0
      %v4312 = vsel %vm1705, %v4280, 0.0
      %v4313 = vsel %vm1706, %v4281, 0.0
      %v4314 = vsel %vm1707, %v4282, 0.0
      %v4315 = vsel %vm1708, %v4283, 0.0
      %v4316 = vsel %vm1709, %v4284, 0.0
      %v4317 = vsel %vm1710, %v4285, 0.0
      %v4318 = vsel %vm1711, %v4286, 0.0
      %v4319 = vsel %vm1712, %v4287, 0.0
      %v4320 = vsel %vm1713, %v4288, 0.0
      %v4321 = vsel %vm1714, %v4289, 0.0
      %v4322 = vsel %vm1715, %v4290, 0.0
      %v4323 = vsel %vm1716, %v4291, 0.0
      %v4324 = vsel %vm1717, %v4292, 0.0
      %v4325 = vsel %vm1718, %v4293, 0.0
      %v4326 = vsel %vm1719, %v4294, 0.0
      %v4327 = vsel %vm1720, %v4295, 0.0
      %v4328 = vsel %vm1721, %v4296, 0.0
      %v4329 = vsel %vm1722, %v4297, 0.0
      %v4330 = vsel %vm1723, %v4298, 0.0
      %v4331 = vsel %vm1724, %v4299, 0.0
      %v4332 = vsel %vm1725, %v4300, 0.0
      %v4333 = vsel %vm1726, %v4301, 0.0
      %v4334 = vsel %vm1727, %v4302, 0.0
      %v4335 = vsel %vm1728, %v4303, 0.0
      %v4336 = vsel %vm1729, %v4304, 0.0
      %v4337 = vsel %vm1730, %v4305, 0.0
      %v4338 = vsel %vm1731, %v4306, 0.0
      %v4339 = vpack.c.bf16 %v4308, %v4307
      %v4340 = vpack.c.bf16 %v4310, %v4309
      %v4341 = vpack.c.bf16 %v4312, %v4311
      %v4342 = vpack.c.bf16 %v4314, %v4313
      %v4343 = vpack.c.bf16 %v4316, %v4315
      %v4344 = vpack.c.bf16 %v4318, %v4317
      %v4345 = vpack.c.bf16 %v4320, %v4319
      %v4346 = vpack.c.bf16 %v4322, %v4321
      %v4347 = vpack.c.bf16 %v4324, %v4323
      %v4348 = vpack.c.bf16 %v4326, %v4325
      %v4349 = vpack.c.bf16 %v4328, %v4327
      %v4350 = vpack.c.bf16 %v4330, %v4329
      %v4351 = vpack.c.bf16 %v4332, %v4331
      %v4352 = vpack.c.bf16 %v4334, %v4333
      %v4353 = vpack.c.bf16 %v4336, %v4335
      %v4354 = vpack.c.bf16 %v4338, %v4337
      %s4355 = scalar_lea.vmem %s4, 128
      %v4356 = vld [vmem:[%s4355] sm:$0xf]
      %v4357 = vld [vmem:[%s4355 + $0x4] sm:$0xf]
      %v4358 = vld [vmem:[%s4355 + $0x8] sm:$0xf]
      %v4359 = vld [vmem:[%s4355 + $0xc] sm:$0xf]
      %v4364 = vunpack.c.l.b16 %v4356
      %v4365 = vunpack.c.l.b16 %v4357
      %v4366 = vunpack.c.l.b16 %v4358
      %v4367 = vunpack.c.l.b16 %v4359
      %v4368 = vpack.c.b16 %v4365, %v4364
      %v4369 = vpack.c.b16 %v4367, %v4366
      %v4373 = vsel %vm737, %v4339, 0
      %v4376 = vsel %vm737, %v4340, 0
      %v4379 = vsel %vm737, %v4341, 0
      %v4382 = vsel %vm737, %v4342, 0
      %v4385 = vsel %vm737, %v4343, 0
      %v4388 = vsel %vm737, %v4344, 0
      %v4391 = vsel %vm737, %v4345, 0
      %v4394 = vsel %vm737, %v4346, 0
      %v4397 = vsel %vm737, %v4347, 0
      %v4400 = vsel %vm737, %v4348, 0
      %v4403 = vsel %vm737, %v4349, 0
      %v4406 = vsel %vm737, %v4350, 0
      %v4409 = vsel %vm737, %v4351, 0
      %v4412 = vsel %vm737, %v4352, 0
      %v4415 = vsel %vm737, %v4353, 0
      %v4418 = vsel %vm737, %v4354, 0
      %4420 = vmatprep.subr.bf16.mxu0 0
      %4421 = vmatpush1.bf16.msra.mxu0 %v4368
      %4422 = vmatprep.subr.bf16.mxu0 0
      %4423 = vmatpush1.bf16.msra.mxu0 %v4369
      %4424 = vmatprep.subr.bf16.mxu0 0
      %4425 = vmatpush1.bf16.msra.mxu0 0
      %4426 = vmatprep.subr.bf16.mxu0 0
      %4427 = vmatpush1.bf16.msra.mxu0 0
      %4428 = vmatprep.subr.bf16.mxu0 0
      %4429 = vmatpush1.bf16.msra.mxu0 0
      %4430 = vmatprep.subr.bf16.mxu0 0
      %4431 = vmatpush1.bf16.msra.mxu0 0
      %4432 = vmatprep.subr.bf16.mxu0 0
      %4433 = vmatpush1.bf16.msra.mxu0 0
      %4434 = vmatprep.subr.bf16.mxu0 0
      %4435 = vmatpush1.bf16.msra.mxu0 0
      %4436 = vmatprep.subr.bf16.mxu0 0
      %4437 = vmatpush1.bf16.msra.mxu0 0
      %4438 = vmatprep.subr.bf16.mxu0 0
      %4439 = vmatpush1.bf16.msra.mxu0 0
      %4440 = vmatprep.subr.bf16.mxu0 0
      %4441 = vmatpush1.bf16.msra.mxu0 0
      %4442 = vmatprep.subr.bf16.mxu0 0
      %4443 = vmatpush1.bf16.msra.mxu0 0
      %4444 = vmatprep.subr.bf16.mxu0 0
      %4445 = vmatpush1.bf16.msra.mxu0 0
      %4446 = vmatprep.subr.bf16.mxu0 0
      %4447 = vmatpush1.bf16.msra.mxu0 0
      %4448 = vmatprep.subr.bf16.mxu0 0
      %4449 = vmatpush1.bf16.msra.mxu0 0
      %4450 = vmatprep.subr.bf16.mxu0 0
      %4451 = vmatpush1.bf16.msra.mxu0 0
      %4452 = vmatprep.mubr.bf16.mxu0 0
      %4453 = vmatmul.mubr.bf16.gmra.mrb[0].mxu0 %v4373
      %v4454 = vpop.f32.mrb[0].mxu0
      %v4455 = vadd.f32 0.0, %v4454
      %v4456 = vpop.f32.mrb[0].mxu0
      %v4457 = vpop.f32.mrb[0].mxu0
      %v4458 = vadd.f32 0.0, %v4457
      %v4459 = vpop.f32.mrb[0].mxu0
      %4460 = vmatprep.mubr.bf16.mxu0 0
      %4461 = vmatmul.mubr.bf16.gmra.mrb[0].mxu0 %v4376
      %v4462 = vpop.f32.mrb[0].mxu0
      %v4463 = vadd.f32 0.0, %v4462
      %v4464 = vpop.f32.mrb[0].mxu0
      %v4465 = vpop.f32.mrb[0].mxu0
      %v4466 = vadd.f32 0.0, %v4465
      %v4467 = vpop.f32.mrb[0].mxu0
      %4468 = vmatprep.mubr.bf16.mxu0 0
      %4469 = vmatmul.mubr.bf16.gmra.mrb[0].mxu0 %v4379
      %v4470 = vpop.f32.mrb[0].mxu0
      %v4471 = vadd.f32 0.0, %v4470
      %v4472 = vpop.f32.mrb[0].mxu0
      %v4473 = vpop.f32.mrb[0].mxu0
      %v4474 = vadd.f32 0.0, %v4473
      %v4475 = vpop.f32.mrb[0].mxu0
      %4476 = vmatprep.mubr.bf16.mxu0 0
      %4477 = vmatmul.mubr.bf16.gmra.mrb[0].mxu0 %v4382
      %v4478 = vpop.f32.mrb[0].mxu0
      %v4479 = vadd.f32 0.0, %v4478
      %v4480 = vpop.f32.mrb[0].mxu0
      %v4481 = vpop.f32.mrb[0].mxu0
      %v4482 = vadd.f32 0.0, %v4481
      %v4483 = vpop.f32.mrb[0].mxu0
      %4484 = vmatprep.mubr.bf16.mxu0 0
      %4485 = vmatmul.mubr.bf16.gmra.mrb[0].mxu0 %v4385
      %v4486 = vpop.f32.mrb[0].mxu0
      %v4487 = vadd.f32 0.0, %v4486
      %v4488 = vpop.f32.mrb[0].mxu0
      %v4489 = vpop.f32.mrb[0].mxu0
      %v4490 = vadd.f32 0.0, %v4489
      %v4491 = vpop.f32.mrb[0].mxu0
      %4492 = vmatprep.mubr.bf16.mxu0 0
      %4493 = vmatmul.mubr.bf16.gmra.mrb[0].mxu0 %v4388
      %v4494 = vpop.f32.mrb[0].mxu0
      %v4495 = vadd.f32 0.0, %v4494
      %v4496 = vpop.f32.mrb[0].mxu0
      %v4497 = vpop.f32.mrb[0].mxu0
      %v4498 = vadd.f32 0.0, %v4497
      %v4499 = vpop.f32.mrb[0].mxu0
      %4500 = vmatprep.mubr.bf16.mxu0 0
      %4501 = vmatmul.mubr.bf16.gmra.mrb[0].mxu0 %v4391
      %v4502 = vpop.f32.mrb[0].mxu0
      %v4503 = vadd.f32 0.0, %v4502
      %v4504 = vpop.f32.mrb[0].mxu0
      %v4505 = vpop.f32.mrb[0].mxu0
      %v4506 = vadd.f32 0.0, %v4505
      %v4507 = vpop.f32.mrb[0].mxu0
      %4508 = vmatprep.mubr.bf16.mxu0 0
      %4509 = vmatmul.mubr.bf16.gmra.mrb[0].mxu0 %v4394
      %v4510 = vpop.f32.mrb[0].mxu0
      %v4511 = vadd.f32 0.0, %v4510
      %v4512 = vpop.f32.mrb[0].mxu0
      %v4513 = vpop.f32.mrb[0].mxu0
      %v4514 = vadd.f32 0.0, %v4513
      %v4515 = vpop.f32.mrb[0].mxu0
      %4516 = vmatprep.mubr.bf16.mxu0 0
      %4517 = vmatmul.mubr.bf16.gmra.mrb[0].mxu0 %v4397
      %v4518 = vpop.f32.mrb[0].mxu0
      %v4519 = vadd.f32 0.0, %v4518
      %v4520 = vpop.f32.mrb[0].mxu0
      %v4521 = vpop.f32.mrb[0].mxu0
      %v4522 = vadd.f32 0.0, %v4521
      %v4523 = vpop.f32.mrb[0].mxu0
      %4524 = vmatprep.mubr.bf16.mxu0 0
      %4525 = vmatmul.mubr.bf16.gmra.mrb[0].mxu0 %v4400
      %v4526 = vpop.f32.mrb[0].mxu0
      %v4527 = vadd.f32 0.0, %v4526
      %v4528 = vpop.f32.mrb[0].mxu0
      %v4529 = vpop.f32.mrb[0].mxu0
      %v4530 = vadd.f32 0.0, %v4529
      %v4531 = vpop.f32.mrb[0].mxu0
      %4532 = vmatprep.mubr.bf16.mxu0 0
      %4533 = vmatmul.mubr.bf16.gmra.mrb[0].mxu0 %v4403
      %v4534 = vpop.f32.mrb[0].mxu0
      %v4535 = vadd.f32 0.0, %v4534
      %v4536 = vpop.f32.mrb[0].mxu0
      %v4537 = vpop.f32.mrb[0].mxu0
      %v4538 = vadd.f32 0.0, %v4537
      %v4539 = vpop.f32.mrb[0].mxu0
      %4540 = vmatprep.mubr.bf16.mxu0 0
      %4541 = vmatmul.mubr.bf16.gmra.mrb[0].mxu0 %v4406
      %v4542 = vpop.f32.mrb[0].mxu0
      %v4543 = vadd.f32 0.0, %v4542
      %v4544 = vpop.f32.mrb[0].mxu0
      %v4545 = vpop.f32.mrb[0].mxu0
      %v4546 = vadd.f32 0.0, %v4545
      %v4547 = vpop.f32.mrb[0].mxu0
      %4548 = vmatprep.mubr.bf16.mxu0 0
      %4549 = vmatmul.mubr.bf16.gmra.mrb[0].mxu0 %v4409
      %v4550 = vpop.f32.mrb[0].mxu0
      %v4551 = vadd.f32 0.0, %v4550
      %v4552 = vpop.f32.mrb[0].mxu0
      %v4553 = vpop.f32.mrb[0].mxu0
      %v4554 = vadd.f32 0.0, %v4553
      %v4555 = vpop.f32.mrb[0].mxu0
      %4556 = vmatprep.mubr.bf16.mxu0 0
      %4557 = vmatmul.mubr.bf16.gmra.mrb[0].mxu0 %v4412
      %v4558 = vpop.f32.mrb[0].mxu0
      %v4559 = vadd.f32 0.0, %v4558
      %v4560 = vpop.f32.mrb[0].mxu0
      %v4561 = vpop.f32.mrb[0].mxu0
      %v4562 = vadd.f32 0.0, %v4561
      %v4563 = vpop.f32.mrb[0].mxu0
      %4564 = vmatprep.mubr.bf16.mxu0 0
      %4565 = vmatmul.mubr.bf16.gmra.mrb[0].mxu0 %v4415
      %v4566 = vpop.f32.mrb[0].mxu0
      %v4567 = vadd.f32 0.0, %v4566
      %v4568 = vpop.f32.mrb[0].mxu0
      %v4569 = vpop.f32.mrb[0].mxu0
      %v4570 = vadd.f32 0.0, %v4569
      %v4571 = vpop.f32.mrb[0].mxu0
      %4572 = vmatprep.mubr.bf16.mxu0 0
      %4573 = vmatmul.mubr.bf16.gmra.mrb[0].mxu0 %v4418
      %v4574 = vpop.f32.mrb[0].mxu0
      %v4575 = vadd.f32 0.0, %v4574
      %v4576 = vpop.f32.mrb[0].mxu0
      %v4577 = vpop.f32.mrb[0].mxu0
      %v4578 = vadd.f32 0.0, %v4577
      %v4579 = vpop.f32.mrb[0].mxu0
      %4580 = vdwg.mxu0
      %v4581 = vadd.f32 %v4243, %v4455
      %v4582 = vadd.f32 %v4244, %v4458
      %v4583 = vadd.f32 %v4245, %v4463
      %v4584 = vadd.f32 %v4246, %v4466
      %v4585 = vadd.f32 %v4247, %v4471
      %v4586 = vadd.f32 %v4248, %v4474
      %v4587 = vadd.f32 %v4249, %v4479
      %v4588 = vadd.f32 %v4250, %v4482
      %v4589 = vadd.f32 %v4251, %v4487
      %v4590 = vadd.f32 %v4252, %v4490
      %v4591 = vadd.f32 %v4253, %v4495
      %v4592 = vadd.f32 %v4254, %v4498
      %v4593 = vadd.f32 %v4255, %v4503
      %v4594 = vadd.f32 %v4256, %v4506
      %v4595 = vadd.f32 %v4257, %v4511
      %v4596 = vadd.f32 %v4258, %v4514
      %v4597 = vadd.f32 %v4259, %v4519
      %v4598 = vadd.f32 %v4260, %v4522
      %v4599 = vadd.f32 %v4261, %v4527
      %v4600 = vadd.f32 %v4262, %v4530
      %v4601 = vadd.f32 %v4263, %v4535
      %v4602 = vadd.f32 %v4264, %v4538
      %v4603 = vadd.f32 %v4265, %v4543
      %v4604 = vadd.f32 %v4266, %v4546
      %v4605 = vadd.f32 %v4267, %v4551
      %v4606 = vadd.f32 %v4268, %v4554
      %v4607 = vadd.f32 %v4269, %v4559
      %v4608 = vadd.f32 %v4270, %v4562
      %v4609 = vadd.f32 %v4271, %v4567
      %v4610 = vadd.f32 %v4272, %v4570
      %v4611 = vadd.f32 %v4273, %v4575
      %v4612 = vadd.f32 %v4274, %v4578
      %v4613 = vld [vmem:[%s5] sm:$0x1]
      %v4615 = vlaneseq
      %v4616 = vshrl.u32 %v4615, 7
      %v4617 = vsub.s32 0, %v4616
      %v4618 = vrot.slane %v4613, %v4617
      %v4620 = vmul.f32 %v4581, %v4618
      %v4621 = vmul.f32 %v4582, %v4618
      %v4622 = vmul.f32 %v4583, %v4618
      %v4623 = vmul.f32 %v4584, %v4618
      %v4624 = vmul.f32 %v4585, %v4618
      %v4625 = vmul.f32 %v4586, %v4618
      %v4626 = vmul.f32 %v4587, %v4618
      %v4627 = vmul.f32 %v4588, %v4618
      %v4628 = vmul.f32 %v4589, %v4618
      %v4629 = vmul.f32 %v4590, %v4618
      %v4630 = vmul.f32 %v4591, %v4618
      %v4631 = vmul.f32 %v4592, %v4618
      %v4632 = vmul.f32 %v4593, %v4618
      %v4633 = vmul.f32 %v4594, %v4618
      %v4634 = vmul.f32 %v4595, %v4618
      %v4635 = vmul.f32 %v4596, %v4618
      %v4636 = vmul.f32 %v4597, %v4618
      %v4637 = vmul.f32 %v4598, %v4618
      %v4638 = vmul.f32 %v4599, %v4618
      %v4639 = vmul.f32 %v4600, %v4618
      %v4640 = vmul.f32 %v4601, %v4618
      %v4641 = vmul.f32 %v4602, %v4618
      %v4642 = vmul.f32 %v4603, %v4618
      %v4643 = vmul.f32 %v4604, %v4618
      %v4644 = vmul.f32 %v4605, %v4618
      %v4645 = vmul.f32 %v4606, %v4618
      %v4646 = vmul.f32 %v4607, %v4618
      %v4647 = vmul.f32 %v4608, %v4618
      %v4648 = vmul.f32 %v4609, %v4618
      %v4649 = vmul.f32 %v4610, %v4618
      %v4650 = vmul.f32 %v4611, %v4618
      %v4651 = vmul.f32 %v4612, %v4618
      %v4652 = vld [vmem:[%s6] sm:$0x1]
      %v4654 = vlaneseq
      %v4655 = vshrl.u32 %v4654, 7
      %v4656 = vsub.s32 0, %v4655
      %v4657 = vrot.slane %v4652, %v4656
      %v4659 = vadd.f32 %v4620, %v4657
      %v4660 = vadd.f32 %v4621, %v4657
      %v4661 = vadd.f32 %v4622, %v4657
      %v4662 = vadd.f32 %v4623, %v4657
      %v4663 = vadd.f32 %v4624, %v4657
      %v4664 = vadd.f32 %v4625, %v4657
      %v4665 = vadd.f32 %v4626, %v4657
      %v4666 = vadd.f32 %v4627, %v4657
      %v4667 = vadd.f32 %v4628, %v4657
      %v4668 = vadd.f32 %v4629, %v4657
      %v4669 = vadd.f32 %v4630, %v4657
      %v4670 = vadd.f32 %v4631, %v4657
      %v4671 = vadd.f32 %v4632, %v4657
      %v4672 = vadd.f32 %v4633, %v4657
      %v4673 = vadd.f32 %v4634, %v4657
      %v4674 = vadd.f32 %v4635, %v4657
      %v4675 = vadd.f32 %v4636, %v4657
      %v4676 = vadd.f32 %v4637, %v4657
      %v4677 = vadd.f32 %v4638, %v4657
      %v4678 = vadd.f32 %v4639, %v4657
      %v4679 = vadd.f32 %v4640, %v4657
      %v4680 = vadd.f32 %v4641, %v4657
      %v4681 = vadd.f32 %v4642, %v4657
      %v4682 = vadd.f32 %v4643, %v4657
      %v4683 = vadd.f32 %v4644, %v4657
      %v4684 = vadd.f32 %v4645, %v4657
      %v4685 = vadd.f32 %v4646, %v4657
      %v4686 = vadd.f32 %v4647, %v4657
      %v4687 = vadd.f32 %v4648, %v4657
      %v4688 = vadd.f32 %v4649, %v4657
      %v4689 = vadd.f32 %v4650, %v4657
      %v4690 = vadd.f32 %v4651, %v4657
      %v4691 = vmax.f32 %v4659, 0.0
      %v4692 = vmax.f32 %v4660, 0.0
      %v4693 = vmax.f32 %v4661, 0.0
      %v4694 = vmax.f32 %v4662, 0.0
      %v4695 = vmax.f32 %v4663, 0.0
      %v4696 = vmax.f32 %v4664, 0.0
      %v4697 = vmax.f32 %v4665, 0.0
      %v4698 = vmax.f32 %v4666, 0.0
      %v4699 = vmax.f32 %v4667, 0.0
      %v4700 = vmax.f32 %v4668, 0.0
      %v4701 = vmax.f32 %v4669, 0.0
      %v4702 = vmax.f32 %v4670, 0.0
      %v4703 = vmax.f32 %v4671, 0.0
      %v4704 = vmax.f32 %v4672, 0.0
      %v4705 = vmax.f32 %v4673, 0.0
      %v4706 = vmax.f32 %v4674, 0.0
      %v4707 = vmax.f32 %v4675, 0.0
      %v4708 = vmax.f32 %v4676, 0.0
      %v4709 = vmax.f32 %v4677, 0.0
      %v4710 = vmax.f32 %v4678, 0.0
      %v4711 = vmax.f32 %v4679, 0.0
      %v4712 = vmax.f32 %v4680, 0.0
      %v4713 = vmax.f32 %v4681, 0.0
      %v4714 = vmax.f32 %v4682, 0.0
      %v4715 = vmax.f32 %v4683, 0.0
      %v4716 = vmax.f32 %v4684, 0.0
      %v4717 = vmax.f32 %v4685, 0.0
      %v4718 = vmax.f32 %v4686, 0.0
      %v4719 = vmax.f32 %v4687, 0.0
      %v4720 = vmax.f32 %v4688, 0.0
      %v4721 = vmax.f32 %v4689, 0.0
      %v4722 = vmax.f32 %v4690, 0.0
      %v4723 = vmax.f32 %v4691, %v4693
      %v4724 = vmax.f32 %v4692, %v4694
      %v4725 = vmax.f32 %v4695, %v4697
      %v4726 = vmax.f32 %v4696, %v4698
      %v4727 = vmax.f32 %v4699, %v4701
      %v4728 = vmax.f32 %v4700, %v4702
      %v4729 = vmax.f32 %v4703, %v4705
      %v4730 = vmax.f32 %v4704, %v4706
      %v4731 = vmax.f32 %v4707, %v4709
      %v4732 = vmax.f32 %v4708, %v4710
      %v4733 = vmax.f32 %v4711, %v4713
      %v4734 = vmax.f32 %v4712, %v4714
      %v4735 = vmax.f32 %v4715, %v4717
      %v4736 = vmax.f32 %v4716, %v4718
      %v4737 = vmax.f32 %v4719, %v4721
      %v4738 = vmax.f32 %v4720, %v4722
      %4739 = vst.msk [vmem:[#allocation4] sm:$0xff] %vm744, %v4723
      %4740 = vst.msk [vmem:[#allocation4 + $0x8] sm:$0xff] %vm744, %v4724
      %4741 = vst.msk [vmem:[#allocation4 + $0x10] sm:$0xff] %vm744, %v4725
      %4742 = vst.msk [vmem:[#allocation4 + $0x18] sm:$0xff] %vm744, %v4726
      %4743 = vst.msk [vmem:[#allocation4 + $0x20] sm:$0xff] %vm744, %v4727
      %4744 = vst.msk [vmem:[#allocation4 + $0x28] sm:$0xff] %vm744, %v4728
      %4745 = vst.msk [vmem:[#allocation4 + $0x30] sm:$0xff] %vm744, %v4729
      %4746 = vst.msk [vmem:[#allocation4 + $0x38] sm:$0xff] %vm744, %v4730
      %4747 = vst.msk [vmem:[#allocation4 + $0x40] sm:$0xff] %vm744, %v4731
      %4748 = vst.msk [vmem:[#allocation4 + $0x48] sm:$0xff] %vm744, %v4732
      %4749 = vst.msk [vmem:[#allocation4 + $0x50] sm:$0xff] %vm744, %v4733
      %4750 = vst.msk [vmem:[#allocation4 + $0x58] sm:$0xff] %vm744, %v4734
      %4751 = vst.msk [vmem:[#allocation4 + $0x60] sm:$0xff] %vm744, %v4735
      %4752 = vst.msk [vmem:[#allocation4 + $0x68] sm:$0xff] %vm744, %v4736
      %4753 = vst.msk [vmem:[#allocation4 + $0x70] sm:$0xff] %vm744, %v4737
      %4754 = vst.msk [vmem:[#allocation4 + $0x78] sm:$0xff] %vm744, %v4738
      %v4755 = vld [vmem:[#allocation4] ss:$2 sm:$0xff]
      %s4756 = scalar_lea.vmem [#allocation4], 16
      %v4757 = vld [vmem:[%s4756] ss:$2 sm:$0xff]
      %s4758 = scalar_lea.vmem [#allocation4], 32
      %v4759 = vld [vmem:[%s4758] ss:$2 sm:$0xff]
      %s4760 = scalar_lea.vmem [#allocation4], 48
      %v4761 = vld [vmem:[%s4760] ss:$2 sm:$0xff]
      %s4762 = scalar_lea.vmem [#allocation4], 64
      %v4763 = vld [vmem:[%s4762] ss:$2 sm:$0xff]
      %s4764 = scalar_lea.vmem [#allocation4], 80
      %v4765 = vld [vmem:[%s4764] ss:$2 sm:$0xff]
      %s4766 = scalar_lea.vmem [#allocation4], 96
      %v4767 = vld [vmem:[%s4766] ss:$2 sm:$0xff]
      %s4768 = scalar_lea.vmem [#allocation4], 112
      %v4769 = vld [vmem:[%s4768] ss:$2 sm:$0xff]
      %s4770 = scalar_lea.vmem [#allocation4], 1
      %v4771 = vld [vmem:[%s4770] ss:$2 sm:$0xff]
      %s4772 = scalar_lea.vmem [#allocation4], 17
      %v4773 = vld [vmem:[%s4772] ss:$2 sm:$0xff]
      %s4774 = scalar_lea.vmem [#allocation4], 33
      %v4775 = vld [vmem:[%s4774] ss:$2 sm:$0xff]
      %s4776 = scalar_lea.vmem [#allocation4], 49
      %v4777 = vld [vmem:[%s4776] ss:$2 sm:$0xff]
      %s4778 = scalar_lea.vmem [#allocation4], 65
      %v4779 = vld [vmem:[%s4778] ss:$2 sm:$0xff]
      %s4780 = scalar_lea.vmem [#allocation4], 81
      %v4781 = vld [vmem:[%s4780] ss:$2 sm:$0xff]
      %s4782 = scalar_lea.vmem [#allocation4], 97
      %v4783 = vld [vmem:[%s4782] ss:$2 sm:$0xff]
      %s4784 = scalar_lea.vmem [#allocation4], 113
      %v4785 = vld [vmem:[%s4784] ss:$2 sm:$0xff]
      %v4786 = vmax.f32 %v4755, %v4771
      %v4787 = vmax.f32 %v4757, %v4773
      %v4788 = vmax.f32 %v4759, %v4775
      %v4789 = vmax.f32 %v4761, %v4777
      %v4790 = vmax.f32 %v4763, %v4779
      %v4791 = vmax.f32 %v4765, %v4781
      %v4792 = vmax.f32 %v4767, %v4783
      %v4793 = vmax.f32 %v4769, %v4785
      %4794 = vst.msk [vmem:[#allocation3 + $0x10] sm:$0xff] %vm744, %v4786
      %4795 = vst.msk [vmem:[#allocation3 + $0x18] sm:$0xff] %vm744, %v4787
      %4796 = vst.msk [vmem:[#allocation3 + $0x20] sm:$0xff] %vm744, %v4788
      %4797 = vst.msk [vmem:[#allocation3 + $0x28] sm:$0xff] %vm744, %v4789
      %4798 = vst.msk [vmem:[#allocation3 + $0x30] sm:$0xff] %vm744, %v4790
      %4799 = vst.msk [vmem:[#allocation3 + $0x38] sm:$0xff] %vm744, %v4791
      %4800 = vst.msk [vmem:[#allocation3 + $0x40] sm:$0xff] %vm744, %v4792
      %4801 = vst.msk [vmem:[#allocation3 + $0x48] sm:$0xff] %vm744, %v4793
      %vm4802 = vcmp.lt.s32.totalorder %v1252, 0
      %v4803 = vsub.s32 0, %v1252
      %v4804 = vsel %vm4802, %v4803, %v1252
      %v4805 = vshrl.u32 %v4804, 3
      %v4806 = vand.u32 %v4804, 7
      %v4807 = vsub.s32 0, %v4806
      %v4808 = vsel %vm4802, %v4807, %v4806
      %vm4809 = vcmp.lt.s32.totalorder %v1253, 0
      %v4810 = vsub.s32 0, %v1253
      %v4811 = vsel %vm4809, %v4810, %v1253
      %v4812 = vshrl.u32 %v4811, 3
      %v4813 = vand.u32 %v4811, 7
      %v4814 = vsub.s32 0, %v4813
      %v4815 = vsel %vm4809, %v4814, %v4813
      %vm4816 = vcmp.lt.s32.totalorder %v1254, 0
      %v4817 = vsub.s32 0, %v1254
      %v4818 = vsel %vm4816, %v4817, %v1254
      %v4819 = vshrl.u32 %v4818, 3
      %v4820 = vand.u32 %v4818, 7
      %v4821 = vsub.s32 0, %v4820
      %v4822 = vsel %vm4816, %v4821, %v4820
      %vm4823 = vcmp.lt.s32.totalorder %v1255, 0
      %v4824 = vsub.s32 0, %v1255
      %v4825 = vsel %vm4823, %v4824, %v1255
      %v4826 = vshrl.u32 %v4825, 3
      %v4827 = vand.u32 %v4825, 7
      %v4828 = vsub.s32 0, %v4827
      %v4829 = vsel %vm4823, %v4828, %v4827
      %vm4830 = vcmp.lt.s32.totalorder %v1256, 0
      %v4831 = vsub.s32 0, %v1256
      %v4832 = vsel %vm4830, %v4831, %v1256
      %v4833 = vshrl.u32 %v4832, 3
      %v4834 = vand.u32 %v4832, 7
      %v4835 = vsub.s32 0, %v4834
      %v4836 = vsel %vm4830, %v4835, %v4834
      %vm4837 = vcmp.lt.s32.totalorder %v1257, 0
      %v4838 = vsub.s32 0, %v1257
      %v4839 = vsel %vm4837, %v4838, %v1257
      %v4840 = vshrl.u32 %v4839, 3
      %v4841 = vand.u32 %v4839, 7
      %v4842 = vsub.s32 0, %v4841
      %v4843 = vsel %vm4837, %v4842, %v4841
      %vm4844 = vcmp.lt.s32.totalorder %v1258, 0
      %v4845 = vsub.s32 0, %v1258
      %v4846 = vsel %vm4844, %v4845, %v1258
      %v4847 = vshrl.u32 %v4846, 3
      %v4848 = vand.u32 %v4846, 7
      %v4849 = vsub.s32 0, %v4848
      %v4850 = vsel %vm4844, %v4849, %v4848
      %vm4851 = vcmp.lt.s32.totalorder %v1259, 0
      %v4852 = vsub.s32 0, %v1259
      %v4853 = vsel %vm4851, %v4852, %v1259
      %v4854 = vshrl.u32 %v4853, 3
      %v4855 = vand.u32 %v4853, 7
      %v4856 = vsub.s32 0, %v4855
      %v4857 = vsel %vm4851, %v4856, %v4855
      %vm4858 = vcmp.ne.s32.totalorder %v4808, 0
      %vm4859 = vcmp.ne.s32.totalorder %v4815, 0
      %vm4860 = vcmp.ne.s32.totalorder %v4822, 0
      %vm4861 = vcmp.ne.s32.totalorder %v4829, 0
      %vm4862 = vcmp.ne.s32.totalorder %v4836, 0
      %vm4863 = vcmp.ne.s32.totalorder %v4843, 0
      %vm4864 = vcmp.ne.s32.totalorder %v4850, 0
      %vm4865 = vcmp.ne.s32.totalorder %v4857, 0
      %vm4866 = vcmp.lt.s32.totalorder %v4808, 0
      %vm4867 = vcmp.lt.s32.totalorder %v4815, 0
      %vm4868 = vcmp.lt.s32.totalorder %v4822, 0
      %vm4869 = vcmp.lt.s32.totalorder %v4829, 0
      %vm4870 = vcmp.lt.s32.totalorder %v4836, 0
      %vm4871 = vcmp.lt.s32.totalorder %v4843, 0
      %vm4872 = vcmp.lt.s32.totalorder %v4850, 0
      %vm4873 = vcmp.lt.s32.totalorder %v4857, 0
      %vm4874 = vmand %vm4866, %vm4858
      %vm4875 = vmand %vm4867, %vm4859
      %vm4876 = vmand %vm4868, %vm4860
      %vm4877 = vmand %vm4869, %vm4861
      %vm4878 = vmand %vm4870, %vm4862
      %vm4879 = vmand %vm4871, %vm4863
      %vm4880 = vmand %vm4872, %vm4864
      %vm4881 = vmand %vm4873, %vm4865
      %v4882 = vadd.s32 %v4808, 8
      %v4883 = vadd.s32 %v4815, 8
      %v4884 = vadd.s32 %v4822, 8
      %v4885 = vadd.s32 %v4829, 8
      %v4886 = vadd.s32 %v4836, 8
      %v4887 = vadd.s32 %v4843, 8
      %v4888 = vadd.s32 %v4850, 8
      %v4889 = vadd.s32 %v4857, 8
      %v4890 = vsel %vm4874, %v4882, %v4808
      %v4891 = vsel %vm4875, %v4883, %v4815
      %v4892 = vsel %vm4876, %v4884, %v4822
      %v4893 = vsel %vm4877, %v4885, %v4829
      %v4894 = vsel %vm4878, %v4886, %v4836
      %v4895 = vsel %vm4879, %v4887, %v4843
      %v4896 = vsel %vm4880, %v4888, %v4850
      %v4897 = vsel %vm4881, %v4889, %v4857
      %vm4898 = vcmp.ge.s32.totalorder %v4890, 1
      %vm4899 = vcmp.ge.s32.totalorder %v4891, 1
      %vm4900 = vcmp.ge.s32.totalorder %v4892, 1
      %vm4901 = vcmp.ge.s32.totalorder %v4893, 1
      %vm4902 = vcmp.ge.s32.totalorder %v4894, 1
      %vm4903 = vcmp.ge.s32.totalorder %v4895, 1
      %vm4904 = vcmp.ge.s32.totalorder %v4896, 1
      %vm4905 = vcmp.ge.s32.totalorder %v4897, 1
      %vm4906 = vcmp.lt.s32.totalorder %v4890, 7
      %vm4907 = vcmp.lt.s32.totalorder %v4891, 7
      %vm4908 = vcmp.lt.s32.totalorder %v4892, 7
      %vm4909 = vcmp.lt.s32.totalorder %v4893, 7
      %vm4910 = vcmp.lt.s32.totalorder %v4894, 7
      %vm4911 = vcmp.lt.s32.totalorder %v4895, 7
      %vm4912 = vcmp.lt.s32.totalorder %v4896, 7
      %vm4913 = vcmp.lt.s32.totalorder %v4897, 7
      %v4914 = vld [vmem:[#allocation3 + $0x7] sm:$0xff]
      %v4915 = vld [vmem:[#allocation3 + $0xf] sm:$0xff]
      %v4916 = vld [vmem:[#allocation3 + $0x17] sm:$0xff]
      %v4917 = vld [vmem:[#allocation3 + $0x1f] sm:$0xff]
      %v4918 = vld [vmem:[#allocation3 + $0x27] sm:$0xff]
      %v4919 = vld [vmem:[#allocation3 + $0x2f] sm:$0xff]
      %v4920 = vld [vmem:[#allocation3 + $0x37] sm:$0xff]
      %v4921 = vld [vmem:[#allocation3 + $0x3f] sm:$0xff]
      %v4922 = vsel %vm4898, %v4914, 0.0
      %v4923 = vsel %vm4899, %v4915, 0.0
      %v4924 = vsel %vm4900, %v4916, 0.0
      %v4925 = vsel %vm4901, %v4917, 0.0
      %v4926 = vsel %vm4902, %v4918, 0.0
      %v4927 = vsel %vm4903, %v4919, 0.0
      %v4928 = vsel %vm4904, %v4920, 0.0
      %v4929 = vsel %vm4905, %v4921, 0.0
      %v4930 = vpack.c.bf16 %v4923, %v4922
      %v4931 = vpack.c.bf16 %v4925, %v4924
      %v4932 = vpack.c.bf16 %v4927, %v4926
      %v4933 = vpack.c.bf16 %v4929, %v4928
      %v4934 = vld [vmem:[%s7] sm:$0xf]
      %v4935 = vld [vmem:[%s7 + $0x4] sm:$0xf]
      %v4936 = vld [vmem:[%s7 + $0x8] sm:$0xf]
      %v4937 = vld [vmem:[%s7 + $0xc] sm:$0xf]
      %v4938 = vld [vmem:[%s7 + $0x10] sm:$0xf]
      %v4939 = vld [vmem:[%s7 + $0x14] sm:$0xf]
      %v4940 = vld [vmem:[%s7 + $0x18] sm:$0xf]
      %v4941 = vld [vmem:[%s7 + $0x1c] sm:$0xf]
      %v4942 = vld [vmem:[#allocation3 + $0x8] sm:$0xff]
      %v4943 = vld [vmem:[#allocation3 + $0x10] sm:$0xff]
      %v4944 = vld [vmem:[#allocation3 + $0x18] sm:$0xff]
      %v4945 = vld [vmem:[#allocation3 + $0x20] sm:$0xff]
      %v4946 = vld [vmem:[#allocation3 + $0x28] sm:$0xff]
      %v4947 = vld [vmem:[#allocation3 + $0x30] sm:$0xff]
      %v4948 = vld [vmem:[#allocation3 + $0x38] sm:$0xff]
      %v4949 = vld [vmem:[#allocation3 + $0x40] sm:$0xff]
      %v4950 = vpack.c.bf16 %v4943, %v4942
      %v4951 = vpack.c.bf16 %v4945, %v4944
      %v4952 = vpack.c.bf16 %v4947, %v4946
      %v4953 = vpack.c.bf16 %v4949, %v4948
      %s4954 = scalar_lea.vmem %s7, 32
      %v4955 = vld [vmem:[%s4954] sm:$0xf]
      %v4956 = vld [vmem:[%s4954 + $0x4] sm:$0xf]
      %v4957 = vld [vmem:[%s4954 + $0x8] sm:$0xf]
      %v4958 = vld [vmem:[%s4954 + $0xc] sm:$0xf]
      %v4959 = vld [vmem:[%s4954 + $0x10] sm:$0xf]
      %v4960 = vld [vmem:[%s4954 + $0x14] sm:$0xf]
      %v4961 = vld [vmem:[%s4954 + $0x18] sm:$0xf]
      %v4962 = vld [vmem:[%s4954 + $0x1c] sm:$0xf]
      %v4971 = vunpack.c.l.b16 %v4955
      %v4972 = vunpack.c.l.b16 %v4956
      %v4973 = vunpack.c.l.b16 %v4957
      %v4974 = vunpack.c.l.b16 %v4958
      %v4975 = vunpack.c.l.b16 %v4959
      %v4976 = vunpack.c.l.b16 %v4960
      %v4977 = vunpack.c.l.b16 %v4961
      %v4978 = vunpack.c.l.b16 %v4962
      %v4979 = vpack.c.b16 %v4972, %v4971
      %v4980 = vpack.c.b16 %v4974, %v4973
      %v4981 = vpack.c.b16 %v4976, %v4975
      %v4982 = vpack.c.b16 %v4978, %v4977
      %v4988 = vsel %vm744, %v4950, 0
      %v4991 = vsel %vm744, %v4951, 0
      %v4994 = vsel %vm744, %v4952, 0
      %v4997 = vsel %vm744, %v4953, 0
      %4999 = vmatprep.subr.bf16.mxu0 0
      %5000 = vmatpush1.bf16.msra.mxu0 %v4979
      %5001 = vmatprep.subr.bf16.mxu0 0
      %5002 = vmatpush1.bf16.msra.mxu0 %v4980
      %5003 = vmatprep.subr.bf16.mxu0 0
      %5004 = vmatpush1.bf16.msra.mxu0 %v4981
      %5005 = vmatprep.subr.bf16.mxu0 0
      %5006 = vmatpush1.bf16.msra.mxu0 %v4982
      %5007 = vmatprep.subr.bf16.mxu0 0
      %5008 = vmatpush1.bf16.msra.mxu0 0
      %5009 = vmatprep.subr.bf16.mxu0 0
      %5010 = vmatpush1.bf16.msra.mxu0 0
      %5011 = vmatprep.subr.bf16.mxu0 0
      %5012 = vmatpush1.bf16.msra.mxu0 0
      %5013 = vmatprep.subr.bf16.mxu0 0
      %5014 = vmatpush1.bf16.msra.mxu0 0
      %5015 = vmatprep.subr.bf16.mxu0 0
      %5016 = vmatpush1.bf16.msra.mxu0 0
      %5017 = vmatprep.subr.bf16.mxu0 0
      %5018 = vmatpush1.bf16.msra.mxu0 0
      %5019 = vmatprep.subr.bf16.mxu0 0
      %5020 = vmatpush1.bf16.msra.mxu0 0
      %5021 = vmatprep.subr.bf16.mxu0 0
      %5022 = vmatpush1.bf16.msra.mxu0 0
      %5023 = vmatprep.subr.bf16.mxu0 0
      %5024 = vmatpush1.bf16.msra.mxu0 0
      %5025 = vmatprep.subr.bf16.mxu0 0
      %5026 = vmatpush1.bf16.msra.mxu0 0
      %5027 = vmatprep.subr.bf16.mxu0 0
      %5028 = vmatpush1.bf16.msra.mxu0 0
      %5029 = vmatprep.subr.bf16.mxu0 0
      %5030 = vmatpush1.bf16.msra.mxu0 0
      %5031 = vmatprep.mubr.bf16.mxu0 0
      %5032 = vmatmul.mubr.bf16.gmra.mrb[0].mxu0 %v4988
      %v5033 = vpop.f32.mrb[0].mxu0
      %v5034 = vadd.f32 0.0, %v5033
      %v5035 = vpop.f32.mrb[0].mxu0
      %v5036 = vpop.f32.mrb[0].mxu0
      %v5037 = vadd.f32 0.0, %v5036
      %v5038 = vpop.f32.mrb[0].mxu0
      %5039 = vmatprep.mubr.bf16.mxu0 0
      %5040 = vmatmul.mubr.bf16.gmra.mrb[0].mxu0 %v4991
      %v5041 = vpop.f32.mrb[0].mxu0
      %v5042 = vadd.f32 0.0, %v5041
      %v5043 = vpop.f32.mrb[0].mxu0
      %v5044 = vpop.f32.mrb[0].mxu0
      %v5045 = vadd.f32 0.0, %v5044
      %v5046 = vpop.f32.mrb[0].mxu0
      %5047 = vmatprep.mubr.bf16.mxu0 0
      %5048 = vmatmul.mubr.bf16.gmra.mrb[0].mxu0 %v4994
      %v5049 = vpop.f32.mrb[0].mxu0
      %v5050 = vadd.f32 0.0, %v5049
      %v5051 = vpop.f32.mrb[0].mxu0
      %v5052 = vpop.f32.mrb[0].mxu0
      %v5053 = vadd.f32 0.0, %v5052
      %v5054 = vpop.f32.mrb[0].mxu0
      %5055 = vmatprep.mubr.bf16.mxu0 0
      %5056 = vmatmul.mubr.bf16.gmra.mrb[0].mxu0 %v4997
      %v5057 = vpop.f32.mrb[0].mxu0
      %v5058 = vadd.f32 0.0, %v5057
      %v5059 = vpop.f32.mrb[0].mxu0
      %v5060 = vpop.f32.mrb[0].mxu0
      %v5061 = vadd.f32 0.0, %v5060
      %v5062 = vpop.f32.mrb[0].mxu0
      %5063 = vdwg.mxu0
      %v5072 = vunpack.c.l.b16 %v4934
      %v5073 = vunpack.c.l.b16 %v4935
      %v5074 = vunpack.c.l.b16 %v4936
      %v5075 = vunpack.c.l.b16 %v4937
      %v5076 = vunpack.c.l.b16 %v4938
      %v5077 = vunpack.c.l.b16 %v4939
      %v5078 = vunpack.c.l.b16 %v4940
      %v5079 = vunpack.c.l.b16 %v4941
      %v5080 = vpack.c.b16 %v5073, %v5072
      %v5081 = vpack.c.b16 %v5075, %v5074
      %v5082 = vpack.c.b16 %v5077, %v5076
      %v5083 = vpack.c.b16 %v5079, %v5078
      %v5089 = vsel %vm744, %v4930, 0
      %v5092 = vsel %vm744, %v4931, 0
      %v5095 = vsel %vm744, %v4932, 0
      %v5098 = vsel %vm744, %v4933, 0
      %5100 = vmatprep.subr.bf16.mxu0 0
      %5101 = vmatpush1.bf16.msra.mxu0 %v5080
      %5102 = vmatprep.subr.bf16.mxu0 0
      %5103 = vmatpush1.bf16.msra.mxu0 %v5081
      %5104 = vmatprep.subr.bf16.mxu0 0
      %5105 = vmatpush1.bf16.msra.mxu0 %v5082
      %5106 = vmatprep.subr.bf16.mxu0 0
      %5107 = vmatpush1.bf16.msra.mxu0 %v5083
      %5108 = vmatprep.subr.bf16.mxu0 0
      %5109 = vmatpush1.bf16.msra.mxu0 0
      %5110 = vmatprep.subr.bf16.mxu0 0
      %5111 = vmatpush1.bf16.msra.mxu0 0
      %5112 = vmatprep.subr.bf16.mxu0 0
      %5113 = vmatpush1.bf16.msra.mxu0 0
      %5114 = vmatprep.subr.bf16.mxu0 0
      %5115 = vmatpush1.bf16.msra.mxu0 0
      %5116 = vmatprep.subr.bf16.mxu0 0
      %5117 = vmatpush1.bf16.msra.mxu0 0
      %5118 = vmatprep.subr.bf16.mxu0 0
      %5119 = vmatpush1.bf16.msra.mxu0 0
      %5120 = vmatprep.subr.bf16.mxu0 0
      %5121 = vmatpush1.bf16.msra.mxu0 0
      %5122 = vmatprep.subr.bf16.mxu0 0
      %5123 = vmatpush1.bf16.msra.mxu0 0
      %5124 = vmatprep.subr.bf16.mxu0 0
      %5125 = vmatpush1.bf16.msra.mxu0 0
      %5126 = vmatprep.subr.bf16.mxu0 0
      %5127 = vmatpush1.bf16.msra.mxu0 0
      %5128 = vmatprep.subr.bf16.mxu0 0
      %5129 = vmatpush1.bf16.msra.mxu0 0
      %5130 = vmatprep.subr.bf16.mxu0 0
      %5131 = vmatpush1.bf16.msra.mxu0 0
      %5132 = vmatprep.mubr.bf16.mxu0 0
      %5133 = vmatmul.mubr.bf16.gmra.mrb[0].mxu0 %v5089
      %v5134 = vpop.f32.mrb[0].mxu0
      %v5135 = vadd.f32 %v5034, %v5134
      %v5136 = vpop.f32.mrb[0].mxu0
      %v5137 = vpop.f32.mrb[0].mxu0
      %v5138 = vadd.f32 %v5037, %v5137
      %v5139 = vpop.f32.mrb[0].mxu0
      %5140 = vmatprep.mubr.bf16.mxu0 0
      %5141 = vmatmul.mubr.bf16.gmra.mrb[0].mxu0 %v5092
      %v5142 = vpop.f32.mrb[0].mxu0
      %v5143 = vadd.f32 %v5042, %v5142
      %v5144 = vpop.f32.mrb[0].mxu0
      %v5145 = vpop.f32.mrb[0].mxu0
      %v5146 = vadd.f32 %v5045, %v5145
      %v5147 = vpop.f32.mrb[0].mxu0
      %5148 = vmatprep.mubr.bf16.mxu0 0
      %5149 = vmatmul.mubr.bf16.gmra.mrb[0].mxu0 %v5095
      %v5150 = vpop.f32.mrb[0].mxu0
      %v5151 = vadd.f32 %v5050, %v5150
      %v5152 = vpop.f32.mrb[0].mxu0
      %v5153 = vpop.f32.mrb[0].mxu0
      %v5154 = vadd.f32 %v5053, %v5153
      %v5155 = vpop.f32.mrb[0].mxu0
      %5156 = vmatprep.mubr.bf16.mxu0 0
      %5157 = vmatmul.mubr.bf16.gmra.mrb[0].mxu0 %v5098
      %v5158 = vpop.f32.mrb[0].mxu0
      %v5159 = vadd.f32 %v5058, %v5158
      %v5160 = vpop.f32.mrb[0].mxu0
      %v5161 = vpop.f32.mrb[0].mxu0
      %v5162 = vadd.f32 %v5061, %v5161
      %v5163 = vpop.f32.mrb[0].mxu0
      %5164 = vdwg.mxu0
      %v5165 = vld [vmem:[#allocation3 + $0x9] sm:$0xff]
      %v5166 = vld [vmem:[#allocation3 + $0x11] sm:$0xff]
      %v5167 = vld [vmem:[#allocation3 + $0x19] sm:$0xff]
      %v5168 = vld [vmem:[#allocation3 + $0x21] sm:$0xff]
      %v5169 = vld [vmem:[#allocation3 + $0x29] sm:$0xff]
      %v5170 = vld [vmem:[#allocation3 + $0x31] sm:$0xff]
      %v5171 = vld [vmem:[#allocation3 + $0x39] sm:$0xff]
      %v5172 = vld [vmem:[#allocation3 + $0x41] sm:$0xff]
      %v5173 = vsel %vm4906, %v5165, 0.0
      %v5174 = vsel %vm4907, %v5166, 0.0
      %v5175 = vsel %vm4908, %v5167, 0.0
      %v5176 = vsel %vm4909, %v5168, 0.0
      %v5177 = vsel %vm4910, %v5169, 0.0
      %v5178 = vsel %vm4911, %v5170, 0.0
      %v5179 = vsel %vm4912, %v5171, 0.0
      %v5180 = vsel %vm4913, %v5172, 0.0
      %v5181 = vpack.c.bf16 %v5174, %v5173
      %v5182 = vpack.c.bf16 %v5176, %v5175
      %v5183 = vpack.c.bf16 %v5178, %v5177
      %v5184 = vpack.c.bf16 %v5180, %v5179
      %s5185 = scalar_lea.vmem %s7, 64
      %v5186 = vld [vmem:[%s5185] sm:$0xf]
      %v5187 = vld [vmem:[%s5185 + $0x4] sm:$0xf]
      %v5188 = vld [vmem:[%s5185 + $0x8] sm:$0xf]
      %v5189 = vld [vmem:[%s5185 + $0xc] sm:$0xf]
      %v5190 = vld [vmem:[%s5185 + $0x10] sm:$0xf]
      %v5191 = vld [vmem:[%s5185 + $0x14] sm:$0xf]
      %v5192 = vld [vmem:[%s5185 + $0x18] sm:$0xf]
      %v5193 = vld [vmem:[%s5185 + $0x1c] sm:$0xf]
      %v5202 = vunpack.c.l.b16 %v5186
      %v5203 = vunpack.c.l.b16 %v5187
      %v5204 = vunpack.c.l.b16 %v5188
      %v5205 = vunpack.c.l.b16 %v5189
      %v5206 = vunpack.c.l.b16 %v5190
      %v5207 = vunpack.c.l.b16 %v5191
      %v5208 = vunpack.c.l.b16 %v5192
      %v5209 = vunpack.c.l.b16 %v5193
      %v5210 = vpack.c.b16 %v5203, %v5202
      %v5211 = vpack.c.b16 %v5205, %v5204
      %v5212 = vpack.c.b16 %v5207, %v5206
      %v5213 = vpack.c.b16 %v5209, %v5208
      %v5219 = vsel %vm744, %v5181, 0
      %v5222 = vsel %vm744, %v5182, 0
      %v5225 = vsel %vm744, %v5183, 0
      %v5228 = vsel %vm744, %v5184, 0
      %5230 = vmatprep.subr.bf16.mxu0 0
      %5231 = vmatpush1.bf16.msra.mxu0 %v5210
      %5232 = vmatprep.subr.bf16.mxu0 0
      %5233 = vmatpush1.bf16.msra.mxu0 %v5211
      %5234 = vmatprep.subr.bf16.mxu0 0
      %5235 = vmatpush1.bf16.msra.mxu0 %v5212
      %5236 = vmatprep.subr.bf16.mxu0 0
      %5237 = vmatpush1.bf16.msra.mxu0 %v5213
      %5238 = vmatprep.subr.bf16.mxu0 0
      %5239 = vmatpush1.bf16.msra.mxu0 0
      %5240 = vmatprep.subr.bf16.mxu0 0
      %5241 = vmatpush1.bf16.msra.mxu0 0
      %5242 = vmatprep.subr.bf16.mxu0 0
      %5243 = vmatpush1.bf16.msra.mxu0 0
      %5244 = vmatprep.subr.bf16.mxu0 0
      %5245 = vmatpush1.bf16.msra.mxu0 0
      %5246 = vmatprep.subr.bf16.mxu0 0
      %5247 = vmatpush1.bf16.msra.mxu0 0
      %5248 = vmatprep.subr.bf16.mxu0 0
      %5249 = vmatpush1.bf16.msra.mxu0 0
      %5250 = vmatprep.subr.bf16.mxu0 0
      %5251 = vmatpush1.bf16.msra.mxu0 0
      %5252 = vmatprep.subr.bf16.mxu0 0
      %5253 = vmatpush1.bf16.msra.mxu0 0
      %5254 = vmatprep.subr.bf16.mxu0 0
      %5255 = vmatpush1.bf16.msra.mxu0 0
      %5256 = vmatprep.subr.bf16.mxu0 0
      %5257 = vmatpush1.bf16.msra.mxu0 0
      %5258 = vmatprep.subr.bf16.mxu0 0
      %5259 = vmatpush1.bf16.msra.mxu0 0
      %5260 = vmatprep.subr.bf16.mxu0 0
      %5261 = vmatpush1.bf16.msra.mxu0 0
      %5262 = vmatprep.mubr.bf16.mxu0 0
      %5263 = vmatmul.mubr.bf16.gmra.mrb[0].mxu0 %v5219
      %v5264 = vpop.f32.mrb[0].mxu0
      %v5265 = vadd.f32 0.0, %v5264
      %v5266 = vpop.f32.mrb[0].mxu0
      %v5267 = vpop.f32.mrb[0].mxu0
      %v5268 = vadd.f32 0.0, %v5267
      %v5269 = vpop.f32.mrb[0].mxu0
      %5270 = vmatprep.mubr.bf16.mxu0 0
      %5271 = vmatmul.mubr.bf16.gmra.mrb[0].mxu0 %v5222
      %v5272 = vpop.f32.mrb[0].mxu0
      %v5273 = vadd.f32 0.0, %v5272
      %v5274 = vpop.f32.mrb[0].mxu0
      %v5275 = vpop.f32.mrb[0].mxu0
      %v5276 = vadd.f32 0.0, %v5275
      %v5277 = vpop.f32.mrb[0].mxu0
      %5278 = vmatprep.mubr.bf16.mxu0 0
      %5279 = vmatmul.mubr.bf16.gmra.mrb[0].mxu0 %v5225
      %v5280 = vpop.f32.mrb[0].mxu0
      %v5281 = vadd.f32 0.0, %v5280
      %v5282 = vpop.f32.mrb[0].mxu0
      %v5283 = vpop.f32.mrb[0].mxu0
      %v5284 = vadd.f32 0.0, %v5283
      %v5285 = vpop.f32.mrb[0].mxu0
      %5286 = vmatprep.mubr.bf16.mxu0 0
      %5287 = vmatmul.mubr.bf16.gmra.mrb[0].mxu0 %v5228
      %v5288 = vpop.f32.mrb[0].mxu0
      %v5289 = vadd.f32 0.0, %v5288
      %v5290 = vpop.f32.mrb[0].mxu0
      %v5291 = vpop.f32.mrb[0].mxu0
      %v5292 = vadd.f32 0.0, %v5291
      %v5293 = vpop.f32.mrb[0].mxu0
      %5294 = vdwg.mxu0
      %v5295 = vadd.f32 %v5135, %v5265
      %v5296 = vadd.f32 %v5138, %v5268
      %v5297 = vadd.f32 %v5143, %v5273
      %v5298 = vadd.f32 %v5146, %v5276
      %v5299 = vadd.f32 %v5151, %v5281
      %v5300 = vadd.f32 %v5154, %v5284
      %v5301 = vadd.f32 %v5159, %v5289
      %v5302 = vadd.f32 %v5162, %v5292
      %v5303 = vld [vmem:[#allocation3 + $0xf] sm:$0xff]
      %v5304 = vld [vmem:[#allocation3 + $0x17] sm:$0xff]
      %v5305 = vld [vmem:[#allocation3 + $0x1f] sm:$0xff]
      %v5306 = vld [vmem:[#allocation3 + $0x27] sm:$0xff]
      %v5307 = vld [vmem:[#allocation3 + $0x2f] sm:$0xff]
      %v5308 = vld [vmem:[#allocation3 + $0x37] sm:$0xff]
      %v5309 = vld [vmem:[#allocation3 + $0x3f] sm:$0xff]
      %v5310 = vld [vmem:[#allocation3 + $0x47] sm:$0xff]
      %v5311 = vsel %vm4898, %v5303, 0.0
      %v5312 = vsel %vm4899, %v5304, 0.0
      %v5313 = vsel %vm4900, %v5305, 0.0
      %v5314 = vsel %vm4901, %v5306, 0.0
      %v5315 = vsel %vm4902, %v5307, 0.0
      %v5316 = vsel %vm4903, %v5308, 0.0
      %v5317 = vsel %vm4904, %v5309, 0.0
      %v5318 = vsel %vm4905, %v5310, 0.0
      %v5319 = vpack.c.bf16 %v5312, %v5311
      %v5320 = vpack.c.bf16 %v5314, %v5313
      %v5321 = vpack.c.bf16 %v5316, %v5315
      %v5322 = vpack.c.bf16 %v5318, %v5317
      %s5323 = scalar_lea.vmem %s7, 96
      %v5324 = vld [vmem:[%s5323] sm:$0xf]
      %v5325 = vld [vmem:[%s5323 + $0x4] sm:$0xf]
      %v5326 = vld [vmem:[%s5323 + $0x8] sm:$0xf]
      %v5327 = vld [vmem:[%s5323 + $0xc] sm:$0xf]
      %v5328 = vld [vmem:[%s5323 + $0x10] sm:$0xf]
      %v5329 = vld [vmem:[%s5323 + $0x14] sm:$0xf]
      %v5330 = vld [vmem:[%s5323 + $0x18] sm:$0xf]
      %v5331 = vld [vmem:[%s5323 + $0x1c] sm:$0xf]
      %v5340 = vunpack.c.l.b16 %v5324
      %v5341 = vunpack.c.l.b16 %v5325
      %v5342 = vunpack.c.l.b16 %v5326
      %v5343 = vunpack.c.l.b16 %v5327
      %v5344 = vunpack.c.l.b16 %v5328
      %v5345 = vunpack.c.l.b16 %v5329
      %v5346 = vunpack.c.l.b16 %v5330
      %v5347 = vunpack.c.l.b16 %v5331
      %v5348 = vpack.c.b16 %v5341, %v5340
      %v5349 = vpack.c.b16 %v5343, %v5342
      %v5350 = vpack.c.b16 %v5345, %v5344
      %v5351 = vpack.c.b16 %v5347, %v5346
      %v5357 = vsel %vm744, %v5319, 0
      %v5360 = vsel %vm744, %v5320, 0
      %v5363 = vsel %vm744, %v5321, 0
      %v5366 = vsel %vm744, %v5322, 0
      %5368 = vmatprep.subr.bf16.mxu0 0
      %5369 = vmatpush1.bf16.msra.mxu0 %v5348
      %5370 = vmatprep.subr.bf16.mxu0 0
      %5371 = vmatpush1.bf16.msra.mxu0 %v5349
      %5372 = vmatprep.subr.bf16.mxu0 0
      %5373 = vmatpush1.bf16.msra.mxu0 %v5350
      %5374 = vmatprep.subr.bf16.mxu0 0
      %5375 = vmatpush1.bf16.msra.mxu0 %v5351
      %5376 = vmatprep.subr.bf16.mxu0 0
      %5377 = vmatpush1.bf16.msra.mxu0 0
      %5378 = vmatprep.subr.bf16.mxu0 0
      %5379 = vmatpush1.bf16.msra.mxu0 0
      %5380 = vmatprep.subr.bf16.mxu0 0
      %5381 = vmatpush1.bf16.msra.mxu0 0
      %5382 = vmatprep.subr.bf16.mxu0 0
      %5383 = vmatpush1.bf16.msra.mxu0 0
      %5384 = vmatprep.subr.bf16.mxu0 0
      %5385 = vmatpush1.bf16.msra.mxu0 0
      %5386 = vmatprep.subr.bf16.mxu0 0
      %5387 = vmatpush1.bf16.msra.mxu0 0
      %5388 = vmatprep.subr.bf16.mxu0 0
      %5389 = vmatpush1.bf16.msra.mxu0 0
      %5390 = vmatprep.subr.bf16.mxu0 0
      %5391 = vmatpush1.bf16.msra.mxu0 0
      %5392 = vmatprep.subr.bf16.mxu0 0
      %5393 = vmatpush1.bf16.msra.mxu0 0
      %5394 = vmatprep.subr.bf16.mxu0 0
      %5395 = vmatpush1.bf16.msra.mxu0 0
      %5396 = vmatprep.subr.bf16.mxu0 0
      %5397 = vmatpush1.bf16.msra.mxu0 0
      %5398 = vmatprep.subr.bf16.mxu0 0
      %5399 = vmatpush1.bf16.msra.mxu0 0
      %5400 = vmatprep.mubr.bf16.mxu0 0
      %5401 = vmatmul.mubr.bf16.gmra.mrb[0].mxu0 %v5357
      %v5402 = vpop.f32.mrb[0].mxu0
      %v5403 = vadd.f32 0.0, %v5402
      %v5404 = vpop.f32.mrb[0].mxu0
      %v5405 = vpop.f32.mrb[0].mxu0
      %v5406 = vadd.f32 0.0, %v5405
      %v5407 = vpop.f32.mrb[0].mxu0
      %5408 = vmatprep.mubr.bf16.mxu0 0
      %5409 = vmatmul.mubr.bf16.gmra.mrb[0].mxu0 %v5360
      %v5410 = vpop.f32.mrb[0].mxu0
      %v5411 = vadd.f32 0.0, %v5410
      %v5412 = vpop.f32.mrb[0].mxu0
      %v5413 = vpop.f32.mrb[0].mxu0
      %v5414 = vadd.f32 0.0, %v5413
      %v5415 = vpop.f32.mrb[0].mxu0
      %5416 = vmatprep.mubr.bf16.mxu0 0
      %5417 = vmatmul.mubr.bf16.gmra.mrb[0].mxu0 %v5363
      %v5418 = vpop.f32.mrb[0].mxu0
      %v5419 = vadd.f32 0.0, %v5418
      %v5420 = vpop.f32.mrb[0].mxu0
      %v5421 = vpop.f32.mrb[0].mxu0
      %v5422 = vadd.f32 0.0, %v5421
      %v5423 = vpop.f32.mrb[0].mxu0
      %5424 = vmatprep.mubr.bf16.mxu0 0
      %5425 = vmatmul.mubr.bf16.gmra.mrb[0].mxu0 %v5366
      %v5426 = vpop.f32.mrb[0].mxu0
      %v5427 = vadd.f32 0.0, %v5426
      %v5428 = vpop.f32.mrb[0].mxu0
      %v5429 = vpop.f32.mrb[0].mxu0
      %v5430 = vadd.f32 0.0, %v5429
      %v5431 = vpop.f32.mrb[0].mxu0
      %5432 = vdwg.mxu0
      %v5433 = vadd.f32 %v5295, %v5403
      %v5434 = vadd.f32 %v5296, %v5406
      %v5435 = vadd.f32 %v5297, %v5411
      %v5436 = vadd.f32 %v5298, %v5414
      %v5437 = vadd.f32 %v5299, %v5419
      %v5438 = vadd.f32 %v5300, %v5422
      %v5439 = vadd.f32 %v5301, %v5427
      %v5440 = vadd.f32 %v5302, %v5430
      %v5441 = vld [vmem:[#allocation3 + $0x10] sm:$0xff]
      %v5442 = vld [vmem:[#allocation3 + $0x18] sm:$0xff]
      %v5443 = vld [vmem:[#allocation3 + $0x20] sm:$0xff]
      %v5444 = vld [vmem:[#allocation3 + $0x28] sm:$0xff]
      %v5445 = vld [vmem:[#allocation3 + $0x30] sm:$0xff]
      %v5446 = vld [vmem:[#allocation3 + $0x38] sm:$0xff]
      %v5447 = vld [vmem:[#allocation3 + $0x40] sm:$0xff]
      %v5448 = vld [vmem:[#allocation3 + $0x48] sm:$0xff]
      %v5449 = vpack.c.bf16 %v5442, %v5441
      %v5450 = vpack.c.bf16 %v5444, %v5443
      %v5451 = vpack.c.bf16 %v5446, %v5445
      %v5452 = vpack.c.bf16 %v5448, %v5447
      %s5453 = scalar_lea.vmem %s7, 128
      %v5454 = vld [vmem:[%s5453] sm:$0xf]
      %v5455 = vld [vmem:[%s5453 + $0x4] sm:$0xf]
      %v5456 = vld [vmem:[%s5453 + $0x8] sm:$0xf]
      %v5457 = vld [vmem:[%s5453 + $0xc] sm:$0xf]
      %v5458 = vld [vmem:[%s5453 + $0x10] sm:$0xf]
      %v5459 = vld [vmem:[%s5453 + $0x14] sm:$0xf]
      %v5460 = vld [vmem:[%s5453 + $0x18] sm:$0xf]
      %v5461 = vld [vmem:[%s5453 + $0x1c] sm:$0xf]
      %v5470 = vunpack.c.l.b16 %v5454
      %v5471 = vunpack.c.l.b16 %v5455
      %v5472 = vunpack.c.l.b16 %v5456
      %v5473 = vunpack.c.l.b16 %v5457
      %v5474 = vunpack.c.l.b16 %v5458
      %v5475 = vunpack.c.l.b16 %v5459
      %v5476 = vunpack.c.l.b16 %v5460
      %v5477 = vunpack.c.l.b16 %v5461
      %v5478 = vpack.c.b16 %v5471, %v5470
      %v5479 = vpack.c.b16 %v5473, %v5472
      %v5480 = vpack.c.b16 %v5475, %v5474
      %v5481 = vpack.c.b16 %v5477, %v5476
      %v5487 = vsel %vm744, %v5449, 0
      %v5490 = vsel %vm744, %v5450, 0
      %v5493 = vsel %vm744, %v5451, 0
      %v5496 = vsel %vm744, %v5452, 0
      %5498 = vmatprep.subr.bf16.mxu0 0
      %5499 = vmatpush1.bf16.msra.mxu0 %v5478
      %5500 = vmatprep.subr.bf16.mxu0 0
      %5501 = vmatpush1.bf16.msra.mxu0 %v5479
      %5502 = vmatprep.subr.bf16.mxu0 0
      %5503 = vmatpush1.bf16.msra.mxu0 %v5480
      %5504 = vmatprep.subr.bf16.mxu0 0
      %5505 = vmatpush1.bf16.msra.mxu0 %v5481
      %5506 = vmatprep.subr.bf16.mxu0 0
      %5507 = vmatpush1.bf16.msra.mxu0 0
      %5508 = vmatprep.subr.bf16.mxu0 0
      %5509 = vmatpush1.bf16.msra.mxu0 0
      %5510 = vmatprep.subr.bf16.mxu0 0
      %5511 = vmatpush1.bf16.msra.mxu0 0
      %5512 = vmatprep.subr.bf16.mxu0 0
      %5513 = vmatpush1.bf16.msra.mxu0 0
      %5514 = vmatprep.subr.bf16.mxu0 0
      %5515 = vmatpush1.bf16.msra.mxu0 0
      %5516 = vmatprep.subr.bf16.mxu0 0
      %5517 = vmatpush1.bf16.msra.mxu0 0
      %5518 = vmatprep.subr.bf16.mxu0 0
      %5519 = vmatpush1.bf16.msra.mxu0 0
      %5520 = vmatprep.subr.bf16.mxu0 0
      %5521 = vmatpush1.bf16.msra.mxu0 0
      %5522 = vmatprep.subr.bf16.mxu0 0
      %5523 = vmatpush1.bf16.msra.mxu0 0
      %5524 = vmatprep.subr.bf16.mxu0 0
      %5525 = vmatpush1.bf16.msra.mxu0 0
      %5526 = vmatprep.subr.bf16.mxu0 0
      %5527 = vmatpush1.bf16.msra.mxu0 0
      %5528 = vmatprep.subr.bf16.mxu0 0
      %5529 = vmatpush1.bf16.msra.mxu0 0
      %5530 = vmatprep.mubr.bf16.mxu0 0
      %5531 = vmatmul.mubr.bf16.gmra.mrb[0].mxu0 %v5487
      %v5532 = vpop.f32.mrb[0].mxu0
      %v5533 = vadd.f32 0.0, %v5532
      %v5534 = vpop.f32.mrb[0].mxu0
      %v5535 = vpop.f32.mrb[0].mxu0
      %v5536 = vadd.f32 0.0, %v5535
      %v5537 = vpop.f32.mrb[0].mxu0
      %5538 = vmatprep.mubr.bf16.mxu0 0
      %5539 = vmatmul.mubr.bf16.gmra.mrb[0].mxu0 %v5490
      %v5540 = vpop.f32.mrb[0].mxu0
      %v5541 = vadd.f32 0.0, %v5540
      %v5542 = vpop.f32.mrb[0].mxu0
      %v5543 = vpop.f32.mrb[0].mxu0
      %v5544 = vadd.f32 0.0, %v5543
      %v5545 = vpop.f32.mrb[0].mxu0
      %5546 = vmatprep.mubr.bf16.mxu0 0
      %5547 = vmatmul.mubr.bf16.gmra.mrb[0].mxu0 %v5493
      %v5548 = vpop.f32.mrb[0].mxu0
      %v5549 = vadd.f32 0.0, %v5548
      %v5550 = vpop.f32.mrb[0].mxu0
      %v5551 = vpop.f32.mrb[0].mxu0
      %v5552 = vadd.f32 0.0, %v5551
      %v5553 = vpop.f32.mrb[0].mxu0
      %5554 = vmatprep.mubr.bf16.mxu0 0
      %5555 = vmatmul.mubr.bf16.gmra.mrb[0].mxu0 %v5496
      %v5556 = vpop.f32.mrb[0].mxu0
      %v5557 = vadd.f32 0.0, %v5556
      %v5558 = vpop.f32.mrb[0].mxu0
      %v5559 = vpop.f32.mrb[0].mxu0
      %v5560 = vadd.f32 0.0, %v5559
      %v5561 = vpop.f32.mrb[0].mxu0
      %5562 = vdwg.mxu0
      %v5563 = vadd.f32 %v5433, %v5533
      %v5564 = vadd.f32 %v5434, %v5536
      %v5565 = vadd.f32 %v5435, %v5541
      %v5566 = vadd.f32 %v5436, %v5544
      %v5567 = vadd.f32 %v5437, %v5549
      %v5568 = vadd.f32 %v5438, %v5552
      %v5569 = vadd.f32 %v5439, %v5557
      %v5570 = vadd.f32 %v5440, %v5560
      %v5571 = vld [vmem:[#allocation3 + $0x11] sm:$0xff]
      %v5572 = vld [vmem:[#allocation3 + $0x19] sm:$0xff]
      %v5573 = vld [vmem:[#allocation3 + $0x21] sm:$0xff]
      %v5574 = vld [vmem:[#allocation3 + $0x29] sm:$0xff]
      %v5575 = vld [vmem:[#allocation3 + $0x31] sm:$0xff]
      %v5576 = vld [vmem:[#allocation3 + $0x39] sm:$0xff]
      %v5577 = vld [vmem:[#allocation3 + $0x41] sm:$0xff]
      %v5578 = vld [vmem:[#allocation3 + $0x49] sm:$0xff]
      %v5579 = vsel %vm4906, %v5571, 0.0
      %v5580 = vsel %vm4907, %v5572, 0.0
      %v5581 = vsel %vm4908, %v5573, 0.0
      %v5582 = vsel %vm4909, %v5574, 0.0
      %v5583 = vsel %vm4910, %v5575, 0.0
      %v5584 = vsel %vm4911, %v5576, 0.0
      %v5585 = vsel %vm4912, %v5577, 0.0
      %v5586 = vsel %vm4913, %v5578, 0.0
      %v5587 = vpack.c.bf16 %v5580, %v5579
      %v5588 = vpack.c.bf16 %v5582, %v5581
      %v5589 = vpack.c.bf16 %v5584, %v5583
      %v5590 = vpack.c.bf16 %v5586, %v5585
      %s5591 = scalar_lea.vmem %s7, 160
      %v5592 = vld [vmem:[%s5591] sm:$0xf]
      %v5593 = vld [vmem:[%s5591 + $0x4] sm:$0xf]
      %v5594 = vld [vmem:[%s5591 + $0x8] sm:$0xf]
      %v5595 = vld [vmem:[%s5591 + $0xc] sm:$0xf]
      %v5596 = vld [vmem:[%s5591 + $0x10] sm:$0xf]
      %v5597 = vld [vmem:[%s5591 + $0x14] sm:$0xf]
      %v5598 = vld [vmem:[%s5591 + $0x18] sm:$0xf]
      %v5599 = vld [vmem:[%s5591 + $0x1c] sm:$0xf]
      %v5608 = vunpack.c.l.b16 %v5592
      %v5609 = vunpack.c.l.b16 %v5593
      %v5610 = vunpack.c.l.b16 %v5594
      %v5611 = vunpack.c.l.b16 %v5595
      %v5612 = vunpack.c.l.b16 %v5596
      %v5613 = vunpack.c.l.b16 %v5597
      %v5614 = vunpack.c.l.b16 %v5598
      %v5615 = vunpack.c.l.b16 %v5599
      %v5616 = vpack.c.b16 %v5609, %v5608
      %v5617 = vpack.c.b16 %v5611, %v5610
      %v5618 = vpack.c.b16 %v5613, %v5612
      %v5619 = vpack.c.b16 %v5615, %v5614
      %v5625 = vsel %vm744, %v5587, 0
      %v5628 = vsel %vm744, %v5588, 0
      %v5631 = vsel %vm744, %v5589, 0
      %v5634 = vsel %vm744, %v5590, 0
      %5636 = vmatprep.subr.bf16.mxu0 0
      %5637 = vmatpush1.bf16.msra.mxu0 %v5616
      %5638 = vmatprep.subr.bf16.mxu0 0
      %5639 = vmatpush1.bf16.msra.mxu0 %v5617
      %5640 = vmatprep.subr.bf16.mxu0 0
      %5641 = vmatpush1.bf16.msra.mxu0 %v5618
      %5642 = vmatprep.subr.bf16.mxu0 0
      %5643 = vmatpush1.bf16.msra.mxu0 %v5619
      %5644 = vmatprep.subr.bf16.mxu0 0
      %5645 = vmatpush1.bf16.msra.mxu0 0
      %5646 = vmatprep.subr.bf16.mxu0 0
      %5647 = vmatpush1.bf16.msra.mxu0 0
      %5648 = vmatprep.subr.bf16.mxu0 0
      %5649 = vmatpush1.bf16.msra.mxu0 0
      %5650 = vmatprep.subr.bf16.mxu0 0
      %5651 = vmatpush1.bf16.msra.mxu0 0
      %5652 = vmatprep.subr.bf16.mxu0 0
      %5653 = vmatpush1.bf16.msra.mxu0 0
      %5654 = vmatprep.subr.bf16.mxu0 0
      %5655 = vmatpush1.bf16.msra.mxu0 0
      %5656 = vmatprep.subr.bf16.mxu0 0
      %5657 = vmatpush1.bf16.msra.mxu0 0
      %5658 = vmatprep.subr.bf16.mxu0 0
      %5659 = vmatpush1.bf16.msra.mxu0 0
      %5660 = vmatprep.subr.bf16.mxu0 0
      %5661 = vmatpush1.bf16.msra.mxu0 0
      %5662 = vmatprep.subr.bf16.mxu0 0
      %5663 = vmatpush1.bf16.msra.mxu0 0
      %5664 = vmatprep.subr.bf16.mxu0 0
      %5665 = vmatpush1.bf16.msra.mxu0 0
      %5666 = vmatprep.subr.bf16.mxu0 0
      %5667 = vmatpush1.bf16.msra.mxu0 0
      %5668 = vmatprep.mubr.bf16.mxu0 0
      %5669 = vmatmul.mubr.bf16.gmra.mrb[0].mxu0 %v5625
      %v5670 = vpop.f32.mrb[0].mxu0
      %v5671 = vadd.f32 0.0, %v5670
      %v5672 = vpop.f32.mrb[0].mxu0
      %v5673 = vpop.f32.mrb[0].mxu0
      %v5674 = vadd.f32 0.0, %v5673
      %v5675 = vpop.f32.mrb[0].mxu0
      %5676 = vmatprep.mubr.bf16.mxu0 0
      %5677 = vmatmul.mubr.bf16.gmra.mrb[0].mxu0 %v5628
      %v5678 = vpop.f32.mrb[0].mxu0
      %v5679 = vadd.f32 0.0, %v5678
      %v5680 = vpop.f32.mrb[0].mxu0
      %v5681 = vpop.f32.mrb[0].mxu0
      %v5682 = vadd.f32 0.0, %v5681
      %v5683 = vpop.f32.mrb[0].mxu0
      %5684 = vmatprep.mubr.bf16.mxu0 0
      %5685 = vmatmul.mubr.bf16.gmra.mrb[0].mxu0 %v5631
      %v5686 = vpop.f32.mrb[0].mxu0
      %v5687 = vadd.f32 0.0, %v5686
      %v5688 = vpop.f32.mrb[0].mxu0
      %v5689 = vpop.f32.mrb[0].mxu0
      %v5690 = vadd.f32 0.0, %v5689
      %v5691 = vpop.f32.mrb[0].mxu0
      %5692 = vmatprep.mubr.bf16.mxu0 0
      %5693 = vmatmul.mubr.bf16.gmra.mrb[0].mxu0 %v5634
      %v5694 = vpop.f32.mrb[0].mxu0
      %v5695 = vadd.f32 0.0, %v5694
      %v5696 = vpop.f32.mrb[0].mxu0
      %v5697 = vpop.f32.mrb[0].mxu0
      %v5698 = vadd.f32 0.0, %v5697
      %v5699 = vpop.f32.mrb[0].mxu0
      %5700 = vdwg.mxu0
      %v5701 = vadd.f32 %v5563, %v5671
      %v5702 = vadd.f32 %v5564, %v5674
      %v5703 = vadd.f32 %v5565, %v5679
      %v5704 = vadd.f32 %v5566, %v5682
      %v5705 = vadd.f32 %v5567, %v5687
      %v5706 = vadd.f32 %v5568, %v5690
      %v5707 = vadd.f32 %v5569, %v5695
      %v5708 = vadd.f32 %v5570, %v5698
      %v5709 = vld [vmem:[#allocation3 + $0x17] sm:$0xff]
      %v5710 = vld [vmem:[#allocation3 + $0x1f] sm:$0xff]
      %v5711 = vld [vmem:[#allocation3 + $0x27] sm:$0xff]
      %v5712 = vld [vmem:[#allocation3 + $0x2f] sm:$0xff]
      %v5713 = vld [vmem:[#allocation3 + $0x37] sm:$0xff]
      %v5714 = vld [vmem:[#allocation3 + $0x3f] sm:$0xff]
      %v5715 = vld [vmem:[#allocation3 + $0x47] sm:$0xff]
      %v5716 = vld [vmem:[#allocation3 + $0x4f] sm:$0xff]
      %v5717 = vsel %vm4898, %v5709, 0.0
      %v5718 = vsel %vm4899, %v5710, 0.0
      %v5719 = vsel %vm4900, %v5711, 0.0
      %v5720 = vsel %vm4901, %v5712, 0.0
      %v5721 = vsel %vm4902, %v5713, 0.0
      %v5722 = vsel %vm4903, %v5714, 0.0
      %v5723 = vsel %vm4904, %v5715, 0.0
      %v5724 = vsel %vm4905, %v5716, 0.0
      %v5725 = vpack.c.bf16 %v5718, %v5717
      %v5726 = vpack.c.bf16 %v5720, %v5719
      %v5727 = vpack.c.bf16 %v5722, %v5721
      %v5728 = vpack.c.bf16 %v5724, %v5723
      %s5729 = scalar_lea.vmem %s7, 192
      %v5730 = vld [vmem:[%s5729] sm:$0xf]
      %v5731 = vld [vmem:[%s5729 + $0x4] sm:$0xf]
      %v5732 = vld [vmem:[%s5729 + $0x8] sm:$0xf]
      %v5733 = vld [vmem:[%s5729 + $0xc] sm:$0xf]
      %v5734 = vld [vmem:[%s5729 + $0x10] sm:$0xf]
      %v5735 = vld [vmem:[%s5729 + $0x14] sm:$0xf]
      %v5736 = vld [vmem:[%s5729 + $0x18] sm:$0xf]
      %v5737 = vld [vmem:[%s5729 + $0x1c] sm:$0xf]
      %v5746 = vunpack.c.l.b16 %v5730
      %v5747 = vunpack.c.l.b16 %v5731
      %v5748 = vunpack.c.l.b16 %v5732
      %v5749 = vunpack.c.l.b16 %v5733
      %v5750 = vunpack.c.l.b16 %v5734
      %v5751 = vunpack.c.l.b16 %v5735
      %v5752 = vunpack.c.l.b16 %v5736
      %v5753 = vunpack.c.l.b16 %v5737
      %v5754 = vpack.c.b16 %v5747, %v5746
      %v5755 = vpack.c.b16 %v5749, %v5748
      %v5756 = vpack.c.b16 %v5751, %v5750
      %v5757 = vpack.c.b16 %v5753, %v5752
      %v5763 = vsel %vm744, %v5725, 0
      %v5766 = vsel %vm744, %v5726, 0
      %v5769 = vsel %vm744, %v5727, 0
      %v5772 = vsel %vm744, %v5728, 0
      %5774 = vmatprep.subr.bf16.mxu0 0
      %5775 = vmatpush1.bf16.msra.mxu0 %v5754
      %5776 = vmatprep.subr.bf16.mxu0 0
      %5777 = vmatpush1.bf16.msra.mxu0 %v5755
      %5778 = vmatprep.subr.bf16.mxu0 0
      %5779 = vmatpush1.bf16.msra.mxu0 %v5756
      %5780 = vmatprep.subr.bf16.mxu0 0
      %5781 = vmatpush1.bf16.msra.mxu0 %v5757
      %5782 = vmatprep.subr.bf16.mxu0 0
      %5783 = vmatpush1.bf16.msra.mxu0 0
      %5784 = vmatprep.subr.bf16.mxu0 0
      %5785 = vmatpush1.bf16.msra.mxu0 0
      %5786 = vmatprep.subr.bf16.mxu0 0
      %5787 = vmatpush1.bf16.msra.mxu0 0
      %5788 = vmatprep.subr.bf16.mxu0 0
      %5789 = vmatpush1.bf16.msra.mxu0 0
      %5790 = vmatprep.subr.bf16.mxu0 0
      %5791 = vmatpush1.bf16.msra.mxu0 0
      %5792 = vmatprep.subr.bf16.mxu0 0
      %5793 = vmatpush1.bf16.msra.mxu0 0
      %5794 = vmatprep.subr.bf16.mxu0 0
      %5795 = vmatpush1.bf16.msra.mxu0 0
      %5796 = vmatprep.subr.bf16.mxu0 0
      %5797 = vmatpush1.bf16.msra.mxu0 0
      %5798 = vmatprep.subr.bf16.mxu0 0
      %5799 = vmatpush1.bf16.msra.mxu0 0
      %5800 = vmatprep.subr.bf16.mxu0 0
      %5801 = vmatpush1.bf16.msra.mxu0 0
      %5802 = vmatprep.subr.bf16.mxu0 0
      %5803 = vmatpush1.bf16.msra.mxu0 0
      %5804 = vmatprep.subr.bf16.mxu0 0
      %5805 = vmatpush1.bf16.msra.mxu0 0
      %5806 = vmatprep.mubr.bf16.mxu0 0
      %5807 = vmatmul.mubr.bf16.gmra.mrb[0].mxu0 %v5763
      %v5808 = vpop.f32.mrb[0].mxu0
      %v5809 = vadd.f32 0.0, %v5808
      %v5810 = vpop.f32.mrb[0].mxu0
      %v5811 = vpop.f32.mrb[0].mxu0
      %v5812 = vadd.f32 0.0, %v5811
      %v5813 = vpop.f32.mrb[0].mxu0
      %5814 = vmatprep.mubr.bf16.mxu0 0
      %5815 = vmatmul.mubr.bf16.gmra.mrb[0].mxu0 %v5766
      %v5816 = vpop.f32.mrb[0].mxu0
      %v5817 = vadd.f32 0.0, %v5816
      %v5818 = vpop.f32.mrb[0].mxu0
      %v5819 = vpop.f32.mrb[0].mxu0
      %v5820 = vadd.f32 0.0, %v5819
      %v5821 = vpop.f32.mrb[0].mxu0
      %5822 = vmatprep.mubr.bf16.mxu0 0
      %5823 = vmatmul.mubr.bf16.gmra.mrb[0].mxu0 %v5769
      %v5824 = vpop.f32.mrb[0].mxu0
      %v5825 = vadd.f32 0.0, %v5824
      %v5826 = vpop.f32.mrb[0].mxu0
      %v5827 = vpop.f32.mrb[0].mxu0
      %v5828 = vadd.f32 0.0, %v5827
      %v5829 = vpop.f32.mrb[0].mxu0
      %5830 = vmatprep.mubr.bf16.mxu0 0
      %5831 = vmatmul.mubr.bf16.gmra.mrb[0].mxu0 %v5772
      %v5832 = vpop.f32.mrb[0].mxu0
      %v5833 = vadd.f32 0.0, %v5832
      %v5834 = vpop.f32.mrb[0].mxu0
      %v5835 = vpop.f32.mrb[0].mxu0
      %v5836 = vadd.f32 0.0, %v5835
      %v5837 = vpop.f32.mrb[0].mxu0
      %5838 = vdwg.mxu0
      %v5839 = vadd.f32 %v5701, %v5809
      %v5840 = vadd.f32 %v5702, %v5812
      %v5841 = vadd.f32 %v5703, %v5817
      %v5842 = vadd.f32 %v5704, %v5820
      %v5843 = vadd.f32 %v5705, %v5825
      %v5844 = vadd.f32 %v5706, %v5828
      %v5845 = vadd.f32 %v5707, %v5833
      %v5846 = vadd.f32 %v5708, %v5836
      %v5847 = vld [vmem:[#allocation3 + $0x18] sm:$0xff]
      %v5848 = vld [vmem:[#allocation3 + $0x20] sm:$0xff]
      %v5849 = vld [vmem:[#allocation3 + $0x28] sm:$0xff]
      %v5850 = vld [vmem:[#allocation3 + $0x30] sm:$0xff]
      %v5851 = vld [vmem:[#allocation3 + $0x38] sm:$0xff]
      %v5852 = vld [vmem:[#allocation3 + $0x40] sm:$0xff]
      %v5853 = vld [vmem:[#allocation3 + $0x48] sm:$0xff]
      %v5854 = vld [vmem:[#allocation3 + $0x50] sm:$0xff]
      %v5855 = vpack.c.bf16 %v5848, %v5847
      %v5856 = vpack.c.bf16 %v5850, %v5849
      %v5857 = vpack.c.bf16 %v5852, %v5851
      %v5858 = vpack.c.bf16 %v5854, %v5853
      %s5859 = scalar_lea.vmem %s7, 224
      %v5860 = vld [vmem:[%s5859] sm:$0xf]
      %v5861 = vld [vmem:[%s5859 + $0x4] sm:$0xf]
      %v5862 = vld [vmem:[%s5859 + $0x8] sm:$0xf]
      %v5863 = vld [vmem:[%s5859 + $0xc] sm:$0xf]
      %v5864 = vld [vmem:[%s5859 + $0x10] sm:$0xf]
      %v5865 = vld [vmem:[%s5859 + $0x14] sm:$0xf]
      %v5866 = vld [vmem:[%s5859 + $0x18] sm:$0xf]
      %v5867 = vld [vmem:[%s5859 + $0x1c] sm:$0xf]
      %v5876 = vunpack.c.l.b16 %v5860
      %v5877 = vunpack.c.l.b16 %v5861
      %v5878 = vunpack.c.l.b16 %v5862
      %v5879 = vunpack.c.l.b16 %v5863
      %v5880 = vunpack.c.l.b16 %v5864
      %v5881 = vunpack.c.l.b16 %v5865
      %v5882 = vunpack.c.l.b16 %v5866
      %v5883 = vunpack.c.l.b16 %v5867
      %v5884 = vpack.c.b16 %v5877, %v5876
      %v5885 = vpack.c.b16 %v5879, %v5878
      %v5886 = vpack.c.b16 %v5881, %v5880
      %v5887 = vpack.c.b16 %v5883, %v5882
      %v5893 = vsel %vm744, %v5855, 0
      %v5896 = vsel %vm744, %v5856, 0
      %v5899 = vsel %vm744, %v5857, 0
      %v5902 = vsel %vm744, %v5858, 0
      %5904 = vmatprep.subr.bf16.mxu0 0
      %5905 = vmatpush1.bf16.msra.mxu0 %v5884
      %5906 = vmatprep.subr.bf16.mxu0 0
      %5907 = vmatpush1.bf16.msra.mxu0 %v5885
      %5908 = vmatprep.subr.bf16.mxu0 0
      %5909 = vmatpush1.bf16.msra.mxu0 %v5886
      %5910 = vmatprep.subr.bf16.mxu0 0
      %5911 = vmatpush1.bf16.msra.mxu0 %v5887
      %5912 = vmatprep.subr.bf16.mxu0 0
      %5913 = vmatpush1.bf16.msra.mxu0 0
      %5914 = vmatprep.subr.bf16.mxu0 0
      %5915 = vmatpush1.bf16.msra.mxu0 0
      %5916 = vmatprep.subr.bf16.mxu0 0
      %5917 = vmatpush1.bf16.msra.mxu0 0
      %5918 = vmatprep.subr.bf16.mxu0 0
      %5919 = vmatpush1.bf16.msra.mxu0 0
      %5920 = vmatprep.subr.bf16.mxu0 0
      %5921 = vmatpush1.bf16.msra.mxu0 0
      %5922 = vmatprep.subr.bf16.mxu0 0
      %5923 = vmatpush1.bf16.msra.mxu0 0
      %5924 = vmatprep.subr.bf16.mxu0 0
      %5925 = vmatpush1.bf16.msra.mxu0 0
      %5926 = vmatprep.subr.bf16.mxu0 0
      %5927 = vmatpush1.bf16.msra.mxu0 0
      %5928 = vmatprep.subr.bf16.mxu0 0
      %5929 = vmatpush1.bf16.msra.mxu0 0
      %5930 = vmatprep.subr.bf16.mxu0 0
      %5931 = vmatpush1.bf16.msra.mxu0 0
      %5932 = vmatprep.subr.bf16.mxu0 0
      %5933 = vmatpush1.bf16.msra.mxu0 0
      %5934 = vmatprep.subr.bf16.mxu0 0
      %5935 = vmatpush1.bf16.msra.mxu0 0
      %5936 = vmatprep.mubr.bf16.mxu0 0
      %5937 = vmatmul.mubr.bf16.gmra.mrb[0].mxu0 %v5893
      %v5938 = vpop.f32.mrb[0].mxu0
      %v5939 = vadd.f32 0.0, %v5938
      %v5940 = vpop.f32.mrb[0].mxu0
      %v5941 = vpop.f32.mrb[0].mxu0
      %v5942 = vadd.f32 0.0, %v5941
      %v5943 = vpop.f32.mrb[0].mxu0
      %5944 = vmatprep.mubr.bf16.mxu0 0
      %5945 = vmatmul.mubr.bf16.gmra.mrb[0].mxu0 %v5896
      %v5946 = vpop.f32.mrb[0].mxu0
      %v5947 = vadd.f32 0.0, %v5946
      %v5948 = vpop.f32.mrb[0].mxu0
      %v5949 = vpop.f32.mrb[0].mxu0
      %v5950 = vadd.f32 0.0, %v5949
      %v5951 = vpop.f32.mrb[0].mxu0
      %5952 = vmatprep.mubr.bf16.mxu0 0
      %5953 = vmatmul.mubr.bf16.gmra.mrb[0].mxu0 %v5899
      %v5954 = vpop.f32.mrb[0].mxu0
      %v5955 = vadd.f32 0.0, %v5954
      %v5956 = vpop.f32.mrb[0].mxu0
      %v5957 = vpop.f32.mrb[0].mxu0
      %v5958 = vadd.f32 0.0, %v5957
      %v5959 = vpop.f32.mrb[0].mxu0
      %5960 = vmatprep.mubr.bf16.mxu0 0
      %5961 = vmatmul.mubr.bf16.gmra.mrb[0].mxu0 %v5902
      %v5962 = vpop.f32.mrb[0].mxu0
      %v5963 = vadd.f32 0.0, %v5962
      %v5964 = vpop.f32.mrb[0].mxu0
      %v5965 = vpop.f32.mrb[0].mxu0
      %v5966 = vadd.f32 0.0, %v5965
      %v5967 = vpop.f32.mrb[0].mxu0
      %5968 = vdwg.mxu0
      %v5969 = vadd.f32 %v5839, %v5939
      %v5970 = vadd.f32 %v5840, %v5942
      %v5971 = vadd.f32 %v5841, %v5947
      %v5972 = vadd.f32 %v5842, %v5950
      %v5973 = vadd.f32 %v5843, %v5955
      %v5974 = vadd.f32 %v5844, %v5958
      %v5975 = vadd.f32 %v5845, %v5963
      %v5976 = vadd.f32 %v5846, %v5966
      %v5977 = vld [vmem:[#allocation3 + $0x19] sm:$0xff]
      %v5978 = vld [vmem:[#allocation3 + $0x21] sm:$0xff]
      %v5979 = vld [vmem:[#allocation3 + $0x29] sm:$0xff]
      %v5980 = vld [vmem:[#allocation3 + $0x31] sm:$0xff]
      %v5981 = vld [vmem:[#allocation3 + $0x39] sm:$0xff]
      %v5982 = vld [vmem:[#allocation3 + $0x41] sm:$0xff]
      %v5983 = vld [vmem:[#allocation3 + $0x49] sm:$0xff]
      %v5984 = vld [vmem:[#allocation3 + $0x51] sm:$0xff]
      %v5985 = vsel %vm4906, %v5977, 0.0
      %v5986 = vsel %vm4907, %v5978, 0.0
      %v5987 = vsel %vm4908, %v5979, 0.0
      %v5988 = vsel %vm4909, %v5980, 0.0
      %v5989 = vsel %vm4910, %v5981, 0.0
      %v5990 = vsel %vm4911, %v5982, 0.0
      %v5991 = vsel %vm4912, %v5983, 0.0
      %v5992 = vsel %vm4913, %v5984, 0.0
      %v5993 = vpack.c.bf16 %v5986, %v5985
      %v5994 = vpack.c.bf16 %v5988, %v5987
      %v5995 = vpack.c.bf16 %v5990, %v5989
      %v5996 = vpack.c.bf16 %v5992, %v5991
      %s5997 = scalar_lea.vmem %s7, 256
      %v5998 = vld [vmem:[%s5997] sm:$0xf]
      %v5999 = vld [vmem:[%s5997 + $0x4] sm:$0xf]
      %v6000 = vld [vmem:[%s5997 + $0x8] sm:$0xf]
      %v6001 = vld [vmem:[%s5997 + $0xc] sm:$0xf]
      %v6002 = vld [vmem:[%s5997 + $0x10] sm:$0xf]
      %v6003 = vld [vmem:[%s5997 + $0x14] sm:$0xf]
      %v6004 = vld [vmem:[%s5997 + $0x18] sm:$0xf]
      %v6005 = vld [vmem:[%s5997 + $0x1c] sm:$0xf]
      %v6014 = vunpack.c.l.b16 %v5998
      %v6015 = vunpack.c.l.b16 %v5999
      %v6016 = vunpack.c.l.b16 %v6000
      %v6017 = vunpack.c.l.b16 %v6001
      %v6018 = vunpack.c.l.b16 %v6002
      %v6019 = vunpack.c.l.b16 %v6003
      %v6020 = vunpack.c.l.b16 %v6004
      %v6021 = vunpack.c.l.b16 %v6005
      %v6022 = vpack.c.b16 %v6015, %v6014
      %v6023 = vpack.c.b16 %v6017, %v6016
      %v6024 = vpack.c.b16 %v6019, %v6018
      %v6025 = vpack.c.b16 %v6021, %v6020
      %v6031 = vsel %vm744, %v5993, 0
      %v6034 = vsel %vm744, %v5994, 0
      %v6037 = vsel %vm744, %v5995, 0
      %v6040 = vsel %vm744, %v5996, 0
      %6042 = vmatprep.subr.bf16.mxu0 0
      %6043 = vmatpush1.bf16.msra.mxu0 %v6022
      %6044 = vmatprep.subr.bf16.mxu0 0
      %6045 = vmatpush1.bf16.msra.mxu0 %v6023
      %6046 = vmatprep.subr.bf16.mxu0 0
      %6047 = vmatpush1.bf16.msra.mxu0 %v6024
      %6048 = vmatprep.subr.bf16.mxu0 0
      %6049 = vmatpush1.bf16.msra.mxu0 %v6025
      %6050 = vmatprep.subr.bf16.mxu0 0
      %6051 = vmatpush1.bf16.msra.mxu0 0
      %6052 = vmatprep.subr.bf16.mxu0 0
      %6053 = vmatpush1.bf16.msra.mxu0 0
      %6054 = vmatprep.subr.bf16.mxu0 0
      %6055 = vmatpush1.bf16.msra.mxu0 0
      %6056 = vmatprep.subr.bf16.mxu0 0
      %6057 = vmatpush1.bf16.msra.mxu0 0
      %6058 = vmatprep.subr.bf16.mxu0 0
      %6059 = vmatpush1.bf16.msra.mxu0 0
      %6060 = vmatprep.subr.bf16.mxu0 0
      %6061 = vmatpush1.bf16.msra.mxu0 0
      %6062 = vmatprep.subr.bf16.mxu0 0
      %6063 = vmatpush1.bf16.msra.mxu0 0
      %6064 = vmatprep.subr.bf16.mxu0 0
      %6065 = vmatpush1.bf16.msra.mxu0 0
      %6066 = vmatprep.subr.bf16.mxu0 0
      %6067 = vmatpush1.bf16.msra.mxu0 0
      %6068 = vmatprep.subr.bf16.mxu0 0
      %6069 = vmatpush1.bf16.msra.mxu0 0
      %6070 = vmatprep.subr.bf16.mxu0 0
      %6071 = vmatpush1.bf16.msra.mxu0 0
      %6072 = vmatprep.subr.bf16.mxu0 0
      %6073 = vmatpush1.bf16.msra.mxu0 0
      %6074 = vmatprep.mubr.bf16.mxu0 0
      %6075 = vmatmul.mubr.bf16.gmra.mrb[0].mxu0 %v6031
      %v6076 = vpop.f32.mrb[0].mxu0
      %v6077 = vadd.f32 0.0, %v6076
      %v6078 = vpop.f32.mrb[0].mxu0
      %v6079 = vpop.f32.mrb[0].mxu0
      %v6080 = vadd.f32 0.0, %v6079
      %v6081 = vpop.f32.mrb[0].mxu0
      %6082 = vmatprep.mubr.bf16.mxu0 0
      %6083 = vmatmul.mubr.bf16.gmra.mrb[0].mxu0 %v6034
      %v6084 = vpop.f32.mrb[0].mxu0
      %v6085 = vadd.f32 0.0, %v6084
      %v6086 = vpop.f32.mrb[0].mxu0
      %v6087 = vpop.f32.mrb[0].mxu0
      %v6088 = vadd.f32 0.0, %v6087
      %v6089 = vpop.f32.mrb[0].mxu0
      %6090 = vmatprep.mubr.bf16.mxu0 0
      %6091 = vmatmul.mubr.bf16.gmra.mrb[0].mxu0 %v6037
      %v6092 = vpop.f32.mrb[0].mxu0
      %v6093 = vadd.f32 0.0, %v6092
      %v6094 = vpop.f32.mrb[0].mxu0
      %v6095 = vpop.f32.mrb[0].mxu0
      %v6096 = vadd.f32 0.0, %v6095
      %v6097 = vpop.f32.mrb[0].mxu0
      %6098 = vmatprep.mubr.bf16.mxu0 0
      %6099 = vmatmul.mubr.bf16.gmra.mrb[0].mxu0 %v6040
      %v6100 = vpop.f32.mrb[0].mxu0
      %v6101 = vadd.f32 0.0, %v6100
      %v6102 = vpop.f32.mrb[0].mxu0
      %v6103 = vpop.f32.mrb[0].mxu0
      %v6104 = vadd.f32 0.0, %v6103
      %v6105 = vpop.f32.mrb[0].mxu0
      %6106 = vdwg.mxu0
      %v6107 = vadd.f32 %v5969, %v6077
      %v6108 = vadd.f32 %v5970, %v6080
      %v6109 = vadd.f32 %v5971, %v6085
      %v6110 = vadd.f32 %v5972, %v6088
      %v6111 = vadd.f32 %v5973, %v6093
      %v6112 = vadd.f32 %v5974, %v6096
      %v6113 = vadd.f32 %v5975, %v6101
      %v6114 = vadd.f32 %v5976, %v6104
      %v6115 = vld [vmem:[%s8] sm:$0x1]
      %v6117 = vlaneseq
      %v6118 = vshrl.u32 %v6117, 7
      %v6119 = vsub.s32 0, %v6118
      %v6120 = vrot.slane %v6115, %v6119
      %v6122 = vmul.f32 %v6107, %v6120
      %v6123 = vmul.f32 %v6108, %v6120
      %v6124 = vmul.f32 %v6109, %v6120
      %v6125 = vmul.f32 %v6110, %v6120
      %v6126 = vmul.f32 %v6111, %v6120
      %v6127 = vmul.f32 %v6112, %v6120
      %v6128 = vmul.f32 %v6113, %v6120
      %v6129 = vmul.f32 %v6114, %v6120
      %v6130 = vld [vmem:[%s9] sm:$0x1]
      %v6132 = vlaneseq
      %v6133 = vshrl.u32 %v6132, 7
      %v6134 = vsub.s32 0, %v6133
      %v6135 = vrot.slane %v6130, %v6134
      %v6137 = vadd.f32 %v6122, %v6135
      %v6138 = vadd.f32 %v6123, %v6135
      %v6139 = vadd.f32 %v6124, %v6135
      %v6140 = vadd.f32 %v6125, %v6135
      %v6141 = vadd.f32 %v6126, %v6135
      %v6142 = vadd.f32 %v6127, %v6135
      %v6143 = vadd.f32 %v6128, %v6135
      %v6144 = vadd.f32 %v6129, %v6135
      %v6145 = vmax.f32 %v6137, 0.0
      %v6146 = vmax.f32 %v6138, 0.0
      %v6147 = vmax.f32 %v6139, 0.0
      %v6148 = vmax.f32 %v6140, 0.0
      %v6149 = vmax.f32 %v6141, 0.0
      %v6150 = vmax.f32 %v6142, 0.0
      %v6151 = vmax.f32 %v6143, 0.0
      %v6152 = vmax.f32 %v6144, 0.0
      %v6153 = vmax.f32 %v6145, %v6146
      %v6154 = vmax.f32 %v6147, %v6148
      %v6155 = vmax.f32 %v6149, %v6150
      %v6156 = vmax.f32 %v6151, %v6152
      %6157 = vst [vmem:[#allocation5] sm:$0xff] %v6153
      %6158 = vst [vmem:[#allocation5 + $0x8] sm:$0xff] %v6154
      %6159 = vst [vmem:[#allocation5 + $0x10] sm:$0xff] %v6155
      %6160 = vst [vmem:[#allocation5 + $0x18] sm:$0xff] %v6156
      %v6161 = vld [vmem:[#allocation5] ss:$2 sm:$0xff]
      %s6162 = scalar_lea.vmem [#allocation5], 16
      %v6163 = vld [vmem:[%s6162] ss:$2 sm:$0xff]
      %s6164 = scalar_lea.vmem [#allocation5], 1
      %v6165 = vld [vmem:[%s6164] ss:$2 sm:$0xff]
      %s6166 = scalar_lea.vmem [#allocation5], 17
      %v6167 = vld [vmem:[%s6166] ss:$2 sm:$0xff]
      %v6168 = vmax.f32 %v6161, %v6165
      %v6169 = vmax.f32 %v6163, %v6167
      %v6170 = vadd.f32 %v6168, %v6169
      %v6171 = vrot.slane %v6170, 4
      %v6172 = vadd.f32 %v6170, %v6171
      %v6173 = vrot.slane %v6172, 2
      %v6174 = vadd.f32 %v6172, %v6173
      %v6175 = vrot.slane %v6174, 1
      %v6176 = vadd.f32 %v6174, %v6175
      %v6177 = vrcp.pop 16.0
      %v6178 = vmul.f32 %v6176, %v6177
      %v6179 = vpack.c.bf16 %v6178, %v6178
      %v6180 = vld [vmem:[%s10] sm:$0xf]
      %v6181 = vld [vmem:[%s10 + $0x4] sm:$0xf]
      %v6182 = vld [vmem:[%s10 + $0x8] sm:$0xf]
      %v6183 = vld [vmem:[%s10 + $0xc] sm:$0xf]
      %v6184 = vld [vmem:[%s10 + $0x10] sm:$0xf]
      %v6185 = vld [vmem:[%s10 + $0x14] sm:$0xf]
      %v6186 = vld [vmem:[%s10 + $0x18] sm:$0xf]
      %v6187 = vld [vmem:[%s10 + $0x1c] sm:$0xf]
      %v6188 = vld [vmem:[%s10 + $0x20] sm:$0xf]
      %v6189 = vld [vmem:[%s10 + $0x24] sm:$0xf]
      %v6190 = vld [vmem:[%s10 + $0x28] sm:$0xf]
      %v6191 = vld [vmem:[%s10 + $0x2c] sm:$0xf]
      %v6192 = vld [vmem:[%s10 + $0x30] sm:$0xf]
      %v6193 = vld [vmem:[%s10 + $0x34] sm:$0xf]
      %v6194 = vld [vmem:[%s10 + $0x38] sm:$0xf]
      %v6195 = vld [vmem:[%s10 + $0x3c] sm:$0xf]
      %v6196 = vld [vmem:[%s11] sm:$0x1]
      %v6213 = vunpack.c.l.b16 %v6180
      %v6214 = vunpack.c.l.b16 %v6181
      %v6215 = vunpack.c.l.b16 %v6182
      %v6216 = vunpack.c.l.b16 %v6183
      %v6217 = vunpack.c.l.b16 %v6184
      %v6218 = vunpack.c.l.b16 %v6185
      %v6219 = vunpack.c.l.b16 %v6186
      %v6220 = vunpack.c.l.b16 %v6187
      %v6221 = vunpack.c.l.b16 %v6188
      %v6222 = vunpack.c.l.b16 %v6189
      %v6223 = vunpack.c.l.b16 %v6190
      %v6224 = vunpack.c.l.b16 %v6191
      %v6225 = vunpack.c.l.b16 %v6192
      %v6226 = vunpack.c.l.b16 %v6193
      %v6227 = vunpack.c.l.b16 %v6194
      %v6228 = vunpack.c.l.b16 %v6195
      %v6229 = vpack.c.b16 %v6214, %v6213
      %v6230 = vpack.c.b16 %v6216, %v6215
      %v6231 = vpack.c.b16 %v6218, %v6217
      %v6232 = vpack.c.b16 %v6220, %v6219
      %v6233 = vpack.c.b16 %v6222, %v6221
      %v6234 = vpack.c.b16 %v6224, %v6223
      %v6235 = vpack.c.b16 %v6226, %v6225
      %v6236 = vpack.c.b16 %v6228, %v6227
      %6245 = vmatprep.subr.bf16.mxu0 0
      %6246 = vmatpush1.bf16.msra.mxu0 %v6229
      %6247 = vmatprep.subr.bf16.mxu0 0
      %6248 = vmatpush1.bf16.msra.mxu0 %v6230
      %6249 = vmatprep.subr.bf16.mxu0 0
      %6250 = vmatpush1.bf16.msra.mxu0 %v6231
      %6251 = vmatprep.subr.bf16.mxu0 0
      %6252 = vmatpush1.bf16.msra.mxu0 %v6232
      %6253 = vmatprep.subr.bf16.mxu0 0
      %6254 = vmatpush1.bf16.msra.mxu0 %v6233
      %6255 = vmatprep.subr.bf16.mxu0 0
      %6256 = vmatpush1.bf16.msra.mxu0 %v6234
      %6257 = vmatprep.subr.bf16.mxu0 0
      %6258 = vmatpush1.bf16.msra.mxu0 %v6235
      %6259 = vmatprep.subr.bf16.mxu0 0
      %6260 = vmatpush1.bf16.msra.mxu0 %v6236
      %6261 = vmatprep.subr.bf16.mxu0 0
      %6262 = vmatpush1.bf16.msra.mxu0 0
      %6263 = vmatprep.subr.bf16.mxu0 0
      %6264 = vmatpush1.bf16.msra.mxu0 0
      %6265 = vmatprep.subr.bf16.mxu0 0
      %6266 = vmatpush1.bf16.msra.mxu0 0
      %6267 = vmatprep.subr.bf16.mxu0 0
      %6268 = vmatpush1.bf16.msra.mxu0 0
      %6269 = vmatprep.subr.bf16.mxu0 0
      %6270 = vmatpush1.bf16.msra.mxu0 0
      %6271 = vmatprep.subr.bf16.mxu0 0
      %6272 = vmatpush1.bf16.msra.mxu0 0
      %6273 = vmatprep.subr.bf16.mxu0 0
      %6274 = vmatpush1.bf16.msra.mxu0 0
      %6275 = vmatprep.subr.bf16.mxu0 0
      %6276 = vmatpush1.bf16.msra.mxu0 0
      %6277 = vmatprep.mubr.bf16.mxu0 0
      %6278 = vmatmul.mubr.bf16.gmra.mrb[0].mxu0 %v6179
      %v6279 = vpop.f32.mrb[0].mxu0
      %v6280 = vadd.f32 %v6196, %v6279
      %v6281 = vpop.f32.mrb[0].mxu0
      %v6282 = vpop.f32.mrb[0].mxu0
      %v6283 = vpop.f32.mrb[0].mxu0
      %6284 = vdwg.mxu0
      %v6285 = vmax.f32 %v6280, 0.0
      %v6286 = vpack.c.bf16 %v6285, %v6285
      %v6287 = vld [vmem:[%s12] sm:$0xf]
      %v6288 = vld [vmem:[%s12 + $0x4] sm:$0xf]
      %v6289 = vld [vmem:[%s12 + $0x8] sm:$0xf]
      %v6290 = vld [vmem:[%s12 + $0xc] sm:$0xf]
      %v6291 = vld [vmem:[%s12 + $0x10] sm:$0xf]
      %v6292 = vld [vmem:[%s12 + $0x14] sm:$0xf]
      %v6293 = vld [vmem:[%s12 + $0x18] sm:$0xf]
      %v6294 = vld [vmem:[%s12 + $0x1c] sm:$0xf]
      %v6295 = vld [vmem:[%s13] sm:$0x1]
      %v6304 = vunpack.c.l.b16 %v6287
      %v6305 = vunpack.c.l.b16 %v6288
      %v6306 = vunpack.c.l.b16 %v6289
      %v6307 = vunpack.c.l.b16 %v6290
      %v6308 = vunpack.c.l.b16 %v6291
      %v6309 = vunpack.c.l.b16 %v6292
      %v6310 = vunpack.c.l.b16 %v6293
      %v6311 = vunpack.c.l.b16 %v6294
      %v6312 = vpack.c.b16 %v6305, %v6304
      %v6313 = vpack.c.b16 %v6307, %v6306
      %v6314 = vpack.c.b16 %v6309, %v6308
      %v6315 = vpack.c.b16 %v6311, %v6310
      %v6321 = vsel %vm744, %v6286, 0
      %6323 = vmatprep.subr.bf16.mxu0 0
      %6324 = vmatpush1.bf16.msra.mxu0 %v6312
      %6325 = vmatprep.subr.bf16.mxu0 0
      %6326 = vmatpush1.bf16.msra.mxu0 %v6313
      %6327 = vmatprep.subr.bf16.mxu0 0
      %6328 = vmatpush1.bf16.msra.mxu0 %v6314
      %6329 = vmatprep.subr.bf16.mxu0 0
      %6330 = vmatpush1.bf16.msra.mxu0 %v6315
      %6331 = vmatprep.subr.bf16.mxu0 0
      %6332 = vmatpush1.bf16.msra.mxu0 0
      %6333 = vmatprep.subr.bf16.mxu0 0
      %6334 = vmatpush1.bf16.msra.mxu0 0
      %6335 = vmatprep.subr.bf16.mxu0 0
      %6336 = vmatpush1.bf16.msra.mxu0 0
      %6337 = vmatprep.subr.bf16.mxu0 0
      %6338 = vmatpush1.bf16.msra.mxu0 0
      %6339 = vmatprep.subr.bf16.mxu0 0
      %6340 = vmatpush1.bf16.msra.mxu0 0
      %6341 = vmatprep.subr.bf16.mxu0 0
      %6342 = vmatpush1.bf16.msra.mxu0 0
      %6343 = vmatprep.subr.bf16.mxu0 0
      %6344 = vmatpush1.bf16.msra.mxu0 0
      %6345 = vmatprep.subr.bf16.mxu0 0
      %6346 = vmatpush1.bf16.msra.mxu0 0
      %6347 = vmatprep.subr.bf16.mxu0 0
      %6348 = vmatpush1.bf16.msra.mxu0 0
      %6349 = vmatprep.subr.bf16.mxu0 0
      %6350 = vmatpush1.bf16.msra.mxu0 0
      %6351 = vmatprep.subr.bf16.mxu0 0
      %6352 = vmatpush1.bf16.msra.mxu0 0
      %6353 = vmatprep.subr.bf16.mxu0 0
      %6354 = vmatpush1.bf16.msra.mxu0 0
      %6355 = vmatprep.mubr.bf16.mxu0 0
      %6356 = vmatmul.mubr.bf16.gmra.mrb[0].mxu0 %v6321
      %v6357 = vpop.f32.mrb[0].mxu0
      %v6358 = vadd.f32 %v6295, %v6357
      %v6359 = vpop.f32.mrb[0].mxu0
      %v6360 = vpop.f32.mrb[0].mxu0
      %v6361 = vpop.f32.mrb[0].mxu0
      %6362 = vdwg.mxu0
      %v6363 = vsub.f32 0.0, %v6358
      %v6364 = vmul.f32 %v6363, 1.442695
      %v6365 = vpow.pop %v6364
      %v6366 = vadd.f32 %v6365, 1.0
      %v6367 = vrcp.pop %v6366
      %v6368 = vmul.f32 1.0, %v6367
      %v6369 = vmul.f32 %v6178, %v6368
      %v6370 = vpack.c.bf16 %v6369, %v6369
      %v6371 = vld [vmem:[%s14] sm:$0xff]
      %v6372 = vld [vmem:[%s14 + $0x8] sm:$0xff]
      %v6373 = vld [vmem:[%s14 + $0x10] sm:$0xff]
      %v6374 = vld [vmem:[%s14 + $0x18] sm:$0xff]
      %v6375 = vld [vmem:[%s14 + $0x20] sm:$0xff]
      %v6376 = vld [vmem:[%s14 + $0x28] sm:$0xff]
      %v6377 = vld [vmem:[%s14 + $0x30] sm:$0xff]
      %v6378 = vld [vmem:[%s14 + $0x38] sm:$0xff]
      %v6379 = vld [vmem:[%s14 + $0x40] sm:$0xff]
      %v6380 = vld [vmem:[%s14 + $0x48] sm:$0xff]
      %v6381 = vld [vmem:[%s14 + $0x50] sm:$0xff]
      %v6382 = vld [vmem:[%s14 + $0x58] sm:$0xff]
      %v6383 = vld [vmem:[%s14 + $0x60] sm:$0xff]
      %v6384 = vld [vmem:[%s14 + $0x68] sm:$0xff]
      %v6385 = vld [vmem:[%s14 + $0x70] sm:$0xff]
      %v6386 = vld [vmem:[%s14 + $0x78] sm:$0xff]
      %v6403 = vunpack.c.l.b16 %v6371
      %v6404 = vunpack.c.h.b16 %v6371
      %v6405 = vunpack.c.l.b16 %v6372
      %v6406 = vunpack.c.h.b16 %v6372
      %v6407 = vunpack.c.l.b16 %v6373
      %v6408 = vunpack.c.h.b16 %v6373
      %v6409 = vunpack.c.l.b16 %v6374
      %v6410 = vunpack.c.h.b16 %v6374
      %v6411 = vunpack.c.l.b16 %v6375
      %v6412 = vunpack.c.h.b16 %v6375
      %v6413 = vunpack.c.l.b16 %v6376
      %v6414 = vunpack.c.h.b16 %v6376
      %v6415 = vunpack.c.l.b16 %v6377
      %v6416 = vunpack.c.h.b16 %v6377
      %v6417 = vunpack.c.l.b16 %v6378
      %v6418 = vunpack.c.h.b16 %v6378
      %v6419 = vunpack.c.l.b16 %v6379
      %v6420 = vunpack.c.h.b16 %v6379
      %v6421 = vunpack.c.l.b16 %v6380
      %v6422 = vunpack.c.h.b16 %v6380
      %v6423 = vunpack.c.l.b16 %v6381
      %v6424 = vunpack.c.h.b16 %v6381
      %v6425 = vunpack.c.l.b16 %v6382
      %v6426 = vunpack.c.h.b16 %v6382
      %v6427 = vunpack.c.l.b16 %v6383
      %v6428 = vunpack.c.h.b16 %v6383
      %v6429 = vunpack.c.l.b16 %v6384
      %v6430 = vunpack.c.h.b16 %v6384
      %v6431 = vunpack.c.l.b16 %v6385
      %v6432 = vunpack.c.h.b16 %v6385
      %v6433 = vunpack.c.l.b16 %v6386
      %v6434 = vunpack.c.h.b16 %v6386
      %v6435 = vpack.c.b16 %v6405, %v6403
      %v6436 = vpack.c.b16 %v6406, %v6404
      %v6437 = vpack.c.b16 %v6409, %v6407
      %v6438 = vpack.c.b16 %v6410, %v6408
      %v6439 = vpack.c.b16 %v6413, %v6411
      %v6440 = vpack.c.b16 %v6414, %v6412
      %v6441 = vpack.c.b16 %v6417, %v6415
      %v6442 = vpack.c.b16 %v6418, %v6416
      %v6443 = vpack.c.b16 %v6421, %v6419
      %v6444 = vpack.c.b16 %v6422, %v6420
      %v6445 = vpack.c.b16 %v6425, %v6423
      %v6446 = vpack.c.b16 %v6426, %v6424
      %v6447 = vpack.c.b16 %v6429, %v6427
      %v6448 = vpack.c.b16 %v6430, %v6428
      %v6449 = vpack.c.b16 %v6433, %v6431
      %v6450 = vpack.c.b16 %v6434, %v6432
      %6467 = vmatprep.subr.bf16.mxu0 %v6436
      %6468 = vmatpush1.bf16.msra.mxu0 %v6435
      %6469 = vmatprep.subr.bf16.mxu0 %v6438
      %6470 = vmatpush1.bf16.msra.mxu0 %v6437
      %6471 = vmatprep.subr.bf16.mxu0 %v6440
      %6472 = vmatpush1.bf16.msra.mxu0 %v6439
      %6473 = vmatprep.subr.bf16.mxu0 %v6442
      %6474 = vmatpush1.bf16.msra.mxu0 %v6441
      %6475 = vmatprep.subr.bf16.mxu0 %v6444
      %6476 = vmatpush1.bf16.msra.mxu0 %v6443
      %6477 = vmatprep.subr.bf16.mxu0 %v6446
      %6478 = vmatpush1.bf16.msra.mxu0 %v6445
      %6479 = vmatprep.subr.bf16.mxu0 %v6448
      %6480 = vmatpush1.bf16.msra.mxu0 %v6447
      %6481 = vmatprep.subr.bf16.mxu0 %v6450
      %6482 = vmatpush1.bf16.msra.mxu0 %v6449
      %6483 = vmatprep.subr.bf16.mxu0 0
      %6484 = vmatpush1.bf16.msra.mxu0 0
      %6485 = vmatprep.subr.bf16.mxu0 0
      %6486 = vmatpush1.bf16.msra.mxu0 0
      %6487 = vmatprep.subr.bf16.mxu0 0
      %6488 = vmatpush1.bf16.msra.mxu0 0
      %6489 = vmatprep.subr.bf16.mxu0 0
      %6490 = vmatpush1.bf16.msra.mxu0 0
      %6491 = vmatprep.subr.bf16.mxu0 0
      %6492 = vmatpush1.bf16.msra.mxu0 0
      %6493 = vmatprep.subr.bf16.mxu0 0
      %6494 = vmatpush1.bf16.msra.mxu0 0
      %6495 = vmatprep.subr.bf16.mxu0 0
      %6496 = vmatpush1.bf16.msra.mxu0 0
      %6497 = vmatprep.subr.bf16.mxu0 0
      %6498 = vmatpush1.bf16.msra.mxu0 0
      %6499 = vmatprep.mubr.bf16.mxu0 0
      %6500 = vmatmul.mubr.bf16.gmra.mrb[0].mxu0 %v6370
      %v6501 = vpop.f32.mrb[0].mxu0
      %v6502 = vadd.f32 0.0, %v6501
      %v6503 = vpop.f32.mrb[0].mxu0
      %v6504 = vadd.f32 0.0, %v6503
      %v6505 = vpop.f32.mrb[0].mxu0
      %v6506 = vpop.f32.mrb[0].mxu0
      %6507 = vdwg.mxu0
      %v6508 = vld [vmem:[%s15] sm:$0x3]
      %v6510 = vlaneseq
      %v6511 = vshrl.u32 %v6510, 7
      %v6512 = vsub.s32 0, %v6511
      %v6513 = vrot.slane %v6508, %v6512
      %v6514 = vlaneseq
      %v6515 = vshrl.u32 %v6514, 7
      %v6516 = vsub.s32 1, %v6515
      %v6517 = vrot.slane %v6508, %v6516
      %v6520 = vmul.f32 %v6502, %v6513
      %v6521 = vmul.f32 %v6504, %v6517
      %v6522 = vld [vmem:[%s16] sm:$0x3]
      %v6524 = vlaneseq
      %v6525 = vshrl.u32 %v6524, 7
      %v6526 = vsub.s32 0, %v6525
      %v6527 = vrot.slane %v6522, %v6526
      %v6528 = vlaneseq
      %v6529 = vshrl.u32 %v6528, 7
      %v6530 = vsub.s32 1, %v6529
      %v6531 = vrot.slane %v6522, %v6530
      %v6534 = vadd.f32 %v6520, %v6527
      %v6535 = vadd.f32 %v6521, %v6531
      %v6536 = vmax.f32 %v6534, 0.0
      %v6537 = vmax.f32 %v6535, 0.0
      %v6538 = vpack.c.bf16 %v6536, %v6536
      %v6539 = vpack.c.bf16 %v6537, %v6537
      %v6540 = vld [vmem:[%s17] sm:$0xf]
      %v6541 = vld [vmem:[%s17 + $0x4] sm:$0xf]
      %v6542 = vld [vmem:[%s17 + $0x8] sm:$0xf]
      %v6543 = vld [vmem:[%s17 + $0xc] sm:$0xf]
      %v6544 = vld [vmem:[%s17 + $0x10] sm:$0xf]
      %v6545 = vld [vmem:[%s17 + $0x14] sm:$0xf]
      %v6546 = vld [vmem:[%s17 + $0x18] sm:$0xf]
      %v6547 = vld [vmem:[%s17 + $0x1c] sm:$0xf]
      %v6548 = vld [vmem:[%s17 + $0x20] sm:$0xf]
      %v6549 = vld [vmem:[%s17 + $0x24] sm:$0xf]
      %v6550 = vld [vmem:[%s17 + $0x28] sm:$0xf]
      %v6551 = vld [vmem:[%s17 + $0x2c] sm:$0xf]
      %v6552 = vld [vmem:[%s17 + $0x30] sm:$0xf]
      %v6553 = vld [vmem:[%s17 + $0x34] sm:$0xf]
      %v6554 = vld [vmem:[%s17 + $0x38] sm:$0xf]
      %v6555 = vld [vmem:[%s17 + $0x3c] sm:$0xf]
      %v6556 = vld [vmem:[%s17 + $0x40] sm:$0xf]
      %v6557 = vld [vmem:[%s17 + $0x44] sm:$0xf]
      %v6558 = vld [vmem:[%s17 + $0x48] sm:$0xf]
      %v6559 = vld [vmem:[%s17 + $0x4c] sm:$0xf]
      %v6560 = vld [vmem:[%s17 + $0x50] sm:$0xf]
      %v6561 = vld [vmem:[%s17 + $0x54] sm:$0xf]
      %v6562 = vld [vmem:[%s17 + $0x58] sm:$0xf]
      %v6563 = vld [vmem:[%s17 + $0x5c] sm:$0xf]
      %v6564 = vld [vmem:[%s17 + $0x60] sm:$0xf]
      %v6565 = vld [vmem:[%s17 + $0x64] sm:$0xf]
      %v6566 = vld [vmem:[%s17 + $0x68] sm:$0xf]
      %v6567 = vld [vmem:[%s17 + $0x6c] sm:$0xf]
      %v6568 = vld [vmem:[%s17 + $0x70] sm:$0xf]
      %v6569 = vld [vmem:[%s17 + $0x74] sm:$0xf]
      %v6570 = vld [vmem:[%s17 + $0x78] sm:$0xf]
      %v6571 = vld [vmem:[%s17 + $0x7c] sm:$0xf]
      %v6604 = vunpack.c.l.b16 %v6540
      %v6605 = vunpack.c.l.b16 %v6541
      %v6606 = vunpack.c.l.b16 %v6542
      %v6607 = vunpack.c.l.b16 %v6543
      %v6608 = vunpack.c.l.b16 %v6544
      %v6609 = vunpack.c.l.b16 %v6545
      %v6610 = vunpack.c.l.b16 %v6546
      %v6611 = vunpack.c.l.b16 %v6547
      %v6612 = vunpack.c.l.b16 %v6548
      %v6613 = vunpack.c.l.b16 %v6549
      %v6614 = vunpack.c.l.b16 %v6550
      %v6615 = vunpack.c.l.b16 %v6551
      %v6616 = vunpack.c.l.b16 %v6552
      %v6617 = vunpack.c.l.b16 %v6553
      %v6618 = vunpack.c.l.b16 %v6554
      %v6619 = vunpack.c.l.b16 %v6555
      %v6620 = vunpack.c.l.b16 %v6556
      %v6621 = vunpack.c.l.b16 %v6557
      %v6622 = vunpack.c.l.b16 %v6558
      %v6623 = vunpack.c.l.b16 %v6559
      %v6624 = vunpack.c.l.b16 %v6560
      %v6625 = vunpack.c.l.b16 %v6561
      %v6626 = vunpack.c.l.b16 %v6562
      %v6627 = vunpack.c.l.b16 %v6563
      %v6628 = vunpack.c.l.b16 %v6564
      %v6629 = vunpack.c.l.b16 %v6565
      %v6630 = vunpack.c.l.b16 %v6566
      %v6631 = vunpack.c.l.b16 %v6567
      %v6632 = vunpack.c.l.b16 %v6568
      %v6633 = vunpack.c.l.b16 %v6569
      %v6634 = vunpack.c.l.b16 %v6570
      %v6635 = vunpack.c.l.b16 %v6571
      %v6636 = vpack.c.b16 %v6605, %v6604
      %v6637 = vpack.c.b16 %v6607, %v6606
      %v6638 = vpack.c.b16 %v6609, %v6608
      %v6639 = vpack.c.b16 %v6611, %v6610
      %v6640 = vpack.c.b16 %v6613, %v6612
      %v6641 = vpack.c.b16 %v6615, %v6614
      %v6642 = vpack.c.b16 %v6617, %v6616
      %v6643 = vpack.c.b16 %v6619, %v6618
      %v6644 = vpack.c.b16 %v6621, %v6620
      %v6645 = vpack.c.b16 %v6623, %v6622
      %v6646 = vpack.c.b16 %v6625, %v6624
      %v6647 = vpack.c.b16 %v6627, %v6626
      %v6648 = vpack.c.b16 %v6629, %v6628
      %v6649 = vpack.c.b16 %v6631, %v6630
      %v6650 = vpack.c.b16 %v6633, %v6632
      %v6651 = vpack.c.b16 %v6635, %v6634
      %6668 = vmatprep.subr.bf16.mxu0 0
      %6669 = vmatpush1.bf16.msra.mxu0 %v6636
      %6670 = vmatprep.subr.bf16.mxu0 0
      %6671 = vmatpush1.bf16.msra.mxu0 %v6637
      %6672 = vmatprep.subr.bf16.mxu0 0
      %6673 = vmatpush1.bf16.msra.mxu0 %v6638
      %6674 = vmatprep.subr.bf16.mxu0 0
      %6675 = vmatpush1.bf16.msra.mxu0 %v6639
      %6676 = vmatprep.subr.bf16.mxu0 0
      %6677 = vmatpush1.bf16.msra.mxu0 %v6640
      %6678 = vmatprep.subr.bf16.mxu0 0
      %6679 = vmatpush1.bf16.msra.mxu0 %v6641
      %6680 = vmatprep.subr.bf16.mxu0 0
      %6681 = vmatpush1.bf16.msra.mxu0 %v6642
      %6682 = vmatprep.subr.bf16.mxu0 0
      %6683 = vmatpush1.bf16.msra.mxu0 %v6643
      %6684 = vmatprep.subr.bf16.mxu0 0
      %6685 = vmatpush1.bf16.msra.mxu0 %v6644
      %6686 = vmatprep.subr.bf16.mxu0 0
      %6687 = vmatpush1.bf16.msra.mxu0 %v6645
      %6688 = vmatprep.subr.bf16.mxu0 0
      %6689 = vmatpush1.bf16.msra.mxu0 %v6646
      %6690 = vmatprep.subr.bf16.mxu0 0
      %6691 = vmatpush1.bf16.msra.mxu0 %v6647
      %6692 = vmatprep.subr.bf16.mxu0 0
      %6693 = vmatpush1.bf16.msra.mxu0 %v6648
      %6694 = vmatprep.subr.bf16.mxu0 0
      %6695 = vmatpush1.bf16.msra.mxu0 %v6649
      %6696 = vmatprep.subr.bf16.mxu0 0
      %6697 = vmatpush1.bf16.msra.mxu0 %v6650
      %6698 = vmatprep.subr.bf16.mxu0 0
      %6699 = vmatpush1.bf16.msra.mxu0 %v6651
      %6700 = vmatprep.mubr.bf16.mxu0 %v6539
      %6701 = vmatmul.mubr.bf16.gmra.mrb[0].mxu0 %v6538
      %v6702 = vpop.f32.mrb[0].mxu0
      %v6703 = vadd.f32 0.0, %v6702
      %v6704 = vpop.f32.mrb[0].mxu0
      %v6705 = vpop.f32.mrb[0].mxu0
      %v6706 = vpop.f32.mrb[0].mxu0
      %6707 = vdwg.mxu0
      %v6708 = vld [vmem:[%s18] sm:$0x1]
      %v6709 = vmul.f32 %v6703, %v6708
      %v6710 = vld [vmem:[%s19] sm:$0x1]
      %v6711 = vadd.f32 %v6709, %v6710
      %v6712 = vmax.f32 %v6711, 0.0
      %v6713 = vpack.c.bf16 %v6712, %v6712
      %v6714 = vld [vmem:[%s20] sm:$0xf]
      %v6715 = vld [vmem:[%s20 + $0x4] sm:$0xf]
      %v6716 = vld [vmem:[%s20 + $0x8] sm:$0xf]
      %v6717 = vld [vmem:[%s20 + $0xc] sm:$0xf]
      %v6718 = vld [vmem:[%s20 + $0x10] sm:$0xf]
      %v6719 = vld [vmem:[%s20 + $0x14] sm:$0xf]
      %v6720 = vld [vmem:[%s20 + $0x18] sm:$0xf]
      %v6721 = vld [vmem:[%s20 + $0x1c] sm:$0xf]
      %v6722 = vld [vmem:[%s20 + $0x20] sm:$0xf]
      %v6723 = vld [vmem:[%s20 + $0x24] sm:$0xf]
      %v6724 = vld [vmem:[%s20 + $0x28] sm:$0xf]
      %v6725 = vld [vmem:[%s20 + $0x2c] sm:$0xf]
      %v6726 = vld [vmem:[%s20 + $0x30] sm:$0xf]
      %v6727 = vld [vmem:[%s20 + $0x34] sm:$0xf]
      %v6728 = vld [vmem:[%s20 + $0x38] sm:$0xf]
      %v6729 = vld [vmem:[%s20 + $0x3c] sm:$0xf]
      %v6730 = vld [vmem:[%s21] sm:$0x1]
      %v6747 = vunpack.c.l.b16 %v6714
      %v6748 = vunpack.c.l.b16 %v6715
      %v6749 = vunpack.c.l.b16 %v6716
      %v6750 = vunpack.c.l.b16 %v6717
      %v6751 = vunpack.c.l.b16 %v6718
      %v6752 = vunpack.c.l.b16 %v6719
      %v6753 = vunpack.c.l.b16 %v6720
      %v6754 = vunpack.c.l.b16 %v6721
      %v6755 = vunpack.c.l.b16 %v6722
      %v6756 = vunpack.c.l.b16 %v6723
      %v6757 = vunpack.c.l.b16 %v6724
      %v6758 = vunpack.c.l.b16 %v6725
      %v6759 = vunpack.c.l.b16 %v6726
      %v6760 = vunpack.c.l.b16 %v6727
      %v6761 = vunpack.c.l.b16 %v6728
      %v6762 = vunpack.c.l.b16 %v6729
      %v6763 = vpack.c.b16 %v6748, %v6747
      %v6764 = vpack.c.b16 %v6750, %v6749
      %v6765 = vpack.c.b16 %v6752, %v6751
      %v6766 = vpack.c.b16 %v6754, %v6753
      %v6767 = vpack.c.b16 %v6756, %v6755
      %v6768 = vpack.c.b16 %v6758, %v6757
      %v6769 = vpack.c.b16 %v6760, %v6759
      %v6770 = vpack.c.b16 %v6762, %v6761
      %6779 = vmatprep.subr.bf16.mxu0 0
      %6780 = vmatpush1.bf16.msra.mxu0 %v6763
      %6781 = vmatprep.subr.bf16.mxu0 0
      %6782 = vmatpush1.bf16.msra.mxu0 %v6764
      %6783 = vmatprep.subr.bf16.mxu0 0
      %6784 = vmatpush1.bf16.msra.mxu0 %v6765
      %6785 = vmatprep.subr.bf16.mxu0 0
      %6786 = vmatpush1.bf16.msra.mxu0 %v6766
      %6787 = vmatprep.subr.bf16.mxu0 0
      %6788 = vmatpush1.bf16.msra.mxu0 %v6767
      %6789 = vmatprep.subr.bf16.mxu0 0
      %6790 = vmatpush1.bf16.msra.mxu0 %v6768
      %6791 = vmatprep.subr.bf16.mxu0 0
      %6792 = vmatpush1.bf16.msra.mxu0 %v6769
      %6793 = vmatprep.subr.bf16.mxu0 0
      %6794 = vmatpush1.bf16.msra.mxu0 %v6770
      %6795 = vmatprep.subr.bf16.mxu0 0
      %6796 = vmatpush1.bf16.msra.mxu0 0
      %6797 = vmatprep.subr.bf16.mxu0 0
      %6798 = vmatpush1.bf16.msra.mxu0 0
      %6799 = vmatprep.subr.bf16.mxu0 0
      %6800 = vmatpush1.bf16.msra.mxu0 0
      %6801 = vmatprep.subr.bf16.mxu0 0
      %6802 = vmatpush1.bf16.msra.mxu0 0
      %6803 = vmatprep.subr.bf16.mxu0 0
      %6804 = vmatpush1.bf16.msra.mxu0 0
      %6805 = vmatprep.subr.bf16.mxu0 0
      %6806 = vmatpush1.bf16.msra.mxu0 0
      %6807 = vmatprep.subr.bf16.mxu0 0
      %6808 = vmatpush1.bf16.msra.mxu0 0
      %6809 = vmatprep.subr.bf16.mxu0 0
      %6810 = vmatpush1.bf16.msra.mxu0 0
      %6811 = vmatprep.mubr.bf16.mxu0 0
      %6812 = vmatmul.mubr.bf16.gmra.mrb[0].mxu0 %v6713
      %v6813 = vpop.f32.mrb[0].mxu0
      %v6814 = vadd.f32 %v6730, %v6813
      %v6815 = vpop.f32.mrb[0].mxu0
      %v6816 = vpop.f32.mrb[0].mxu0
      %v6817 = vpop.f32.mrb[0].mxu0
      %6818 = vdwg.mxu0
      %v6819 = vmax.f32 %v6814, 0.0
      %v6820 = vld [vmem:[%s22] sm:$0x1]
      %v6821 = vmul.f32 %v6819, %v6820
      %vm6822 = vcmask 516096
      %v6823 = vsel %vm6822, %v6821, 0.0
      %6824 = vadd.xlane.f32.xlu0 %v6823
      %v6825 = vpop.xlane.xlu0 %6824
      %v6826 = vld [vmem:[#allocation6] sm:$0x1]
      %v6827 = vadd.f32 %v6825, %v6826
      %vm6828 = vcmask 0
      %6829 = vst.msk [vmem:[%s735] sm:$0x1] %vm6828, %v6827
      %p6830 = scmp.lt.s32.totalorder %s37, 1
      %s6831 = scalar_select %p6830, %s37, 1
      %s6832 = scalar_lea.vmem %s24, %s6831
      // Predicated region
      $region117: #{improved_language_detection_cnn.1} parent=115 // pred_check
        %p6833 = pneg %p564
      $region118: #{improved_language_detection_cnn.1} parent=115 // pred_check_branch
        %6835 = sbr.rel (%p6833) target = $region120
      $region119: #{improved_language_detection_cnn.1} parent=115 // pred_region
        _
      $region120: #{improved_language_detection_cnn.1} parent=115 // pred_fallthru
        _
    $region116: #{improved_language_detection_cnn.1} parent=5 // pred_fallthru
      _
    %p6836 = scmp.le.s32.totalorder 2, %s32
    // Predicated region
    $region121: #{improved_language_detection_cnn.1} parent=5 // pred_check
      %p6837 = pneg %p6836
    $region122: #{improved_language_detection_cnn.1} parent=5 // pred_check_branch
      %6839 = sbr.rel (%p6837) target = $region124
    $region123: #{improved_language_detection_cnn.1} parent=5 // pred_region
      %s6840 = ssub.s32 %s32, 2
      // Predicated region
      $region125: #{improved_language_detection_cnn.1} parent=123 // pred_check
        %p6841 = pneg %p570
      $region126: #{improved_language_detection_cnn.1} parent=123 // pred_check_branch
        %6843 = sbr.rel (%p6841) target = $region128
      $region127: #{improved_language_detection_cnn.1} parent=123 // pred_region
        %p6844 = scmp.lt.s32.totalorder %s38, 1
        %s6845 = scalar_select %p6844, %s38, 1
        %s6846 = scalar_lea.vmem %s24, %s6845
      $region128: #{improved_language_detection_cnn.1} parent=123 // pred_fallthru
        _
    $region124: #{improved_language_detection_cnn.1} parent=5 // pred_fallthru
      _
  $region6: #{improved_language_detection_cnn.1} parent=0 // loop_footer
    %s36 = sadd.s32 1, %s32
  $region7: #{improved_language_detection_cnn.1} parent=0 // loop_footer_branch
    %31 = sbr.rel target = $region3
  $region8: #{improved_language_detection_cnn.1} parent=0 // loop_exit
    _

</llo_original>
